<compile_context>
chip_gen: v6e
topology: v6e:2x2x1
jax: 0.10.0
libtpu: 0.0.40
codegen_flags: <defaults>
</compile_context>

<pallas_src>
import jax
import jax.numpy as jnp
from jax.experimental import pallas as pl
from jax.experimental.pallas import tpu as pltpu


def _round_up(x, m):
    return (x + m - 1) // m * m


# ----------------------------------------------------------------------------
# Kernels
# ----------------------------------------------------------------------------
def conv_relu_pool_kernel(p_ref, w_ref, b_ref, o_ref):
    """Fused conv (im2col matmul) + 2x2 max-pool + bias + ReLU for one row tile.

    p_ref : (4, TILE, K)  bf16  im2col patches, one slab per 2x2 pool offset
    w_ref : (K, Cout)     bf16  resident conv weights
    b_ref : (1, Cout)     f32   resident bias
    o_ref : (TILE, Cout)  bf16  pooled activations
    """
    four, tile, k = p_ref.shape
    cout = w_ref.shape[1]

    # One long MXU call instead of 4 short ones (bf16 operands, f32 acc).
    p = p_ref[...].reshape(four * tile, k)
    y = jnp.dot(p, w_ref[...], preferred_element_type=jnp.float32)
    y = y.reshape(four, tile, cout)

    # max-pool over the 4 window offsets, then bias + ReLU in f32 (VPU).
    m = jnp.max(y, axis=0) + b_ref[...]
    o_ref[...] = jnp.maximum(m, 0.0).astype(o_ref.dtype)


def linear_kernel(x_ref, w_ref, b_ref, o_ref):
    """x:(TILE_B,F) bf16  w:(F,128) bf16  b:(1,128) f32  o:(TILE_B,128) f32."""
    o_ref[...] = (
        jnp.dot(x_ref[...], w_ref[...], preferred_element_type=jnp.float32)
        + b_ref[...]
    )


# ----------------------------------------------------------------------------
# Wrappers
# ----------------------------------------------------------------------------
def conv_relu_pool(x_nhwc, w_oihw, b, *, kernel_size=5, pad=2, tile_rows=512):
    """x_nhwc: (B, H, W, Cin) bf16 ; w_oihw: (Cout, Cin, kh, kw) PyTorch layout."""
    B, H, W, Cin = x_nhwc.shape
    Cout = w_oihw.shape[0]
    K = Cin * kernel_size * kernel_size
    Ho, Wo = H // 2, W // 2
    N = B * Ho * Wo

    # --- im2col glue (bf16 to halve the HBM-materialized expansion) ---------
    x_pad = jnp.pad(
        x_nhwc.astype(jnp.bfloat16), ((0, 0), (pad, pad), (pad, pad), (0, 0))
    )
    cols = []
    for kh in range(kernel_size):
        for kw in range(kernel_size):
            cols.append(x_pad[:, kh:kh + H, kw:kw + W, :])   # (B, H, W, Cin)
    # feature index = ci*25 + kh*5 + kw  ==  PyTorch weight.reshape(Cout,-1)
    patches = jnp.stack(cols, axis=-1).reshape(B, H, W, K)

    # group conv-output positions by 2x2 pool window offset -> (4, N, K)
    pg = patches.reshape(B, Ho, 2, Wo, 2, K)
    pools = jnp.stack(
        [pg[:, :, di, :, dj, :].reshape(N, K) for di in range(2) for dj in range(2)],
        axis=0,
    )

    # --- tiling: multiple of 32 rows (f32 & bf16 sublane aligned) -----------
    tn = min(tile_rows, _round_up(N, 32))
    N_pad = _round_up(N, tn)
    if N_pad != N:
        pools = jnp.pad(pools, ((0, 0), (0, N_pad - N), (0, 0)))

    w_mat = w_oihw.reshape(Cout, K).T.astype(jnp.bfloat16)   # (K, Cout)
    b_mat = b.reshape(1, Cout).astype(jnp.float32)

    out = pl.pallas_call(
        conv_relu_pool_kernel,
        out_shape=jax.ShapeDtypeStruct((N_pad, Cout), jnp.bfloat16),
        grid=(N_pad // tn,),
        in_specs=[
            pl.BlockSpec((4, tn, K), lambda i: (0, i, 0)),   # streamed patches
            pl.BlockSpec((K, Cout), lambda i: (0, 0)),       # resident weights
            pl.BlockSpec((1, Cout), lambda i: (0, 0)),       # resident bias
        ],
        out_specs=pl.BlockSpec((tn, Cout), lambda i: (i, 0)),
        compiler_params=pltpu.CompilerParams(
            dimension_semantics=("parallel",)
        ),
    )(pools, w_mat, b_mat)
    return out[:N].reshape(B, Ho, Wo, Cout)


def linear_padded(x_bf16, w_mat_bf16, b_row_f32, *, tile_b=512):
    """x: (B, F) bf16 ; w_mat: (F, Opad) bf16 ; b_row: (1, Opad) f32."""
    B, F = x_bf16.shape
    Opad = w_mat_bf16.shape[1]
    tb = min(tile_b, _round_up(B, 8))
    B_pad = _round_up(B, tb)
    if B_pad != B:
        x_bf16 = jnp.pad(x_bf16, ((0, B_pad - B), (0, 0)))

    out = pl.pallas_call(
        linear_kernel,
        out_shape=jax.ShapeDtypeStruct((B_pad, Opad), jnp.float32),
        grid=(B_pad // tb,),
        in_specs=[
            pl.BlockSpec((tb, F), lambda i: (i, 0)),
            pl.BlockSpec((F, Opad), lambda i: (0, 0)),
            pl.BlockSpec((1, Opad), lambda i: (0, 0)),
        ],
        out_specs=pl.BlockSpec((tb, Opad), lambda i: (i, 0)),
        compiler_params=pltpu.CompilerParams(
            dimension_semantics=("parallel",)
        ),
    )(x_bf16, w_mat_bf16, b_row_f32)
    return out[:B]


# ----------------------------------------------------------------------------
# Model
# ----------------------------------------------------------------------------
def init_params(key):
    # Deterministic synthetic parameters with the shapes defined by CNN.__init__.
    k1, k2, k3, k4, k5, k6 = jax.random.split(key, 6)
    return {
        "conv1_w": 0.10 * jax.random.normal(k1, (16, 1, 5, 5), jnp.float32),
        "conv1_b": 0.10 * jax.random.normal(k2, (16,), jnp.float32),
        "conv2_w": 0.05 * jax.random.normal(k3, (32, 16, 5, 5), jnp.float32),
        "conv2_b": 0.05 * jax.random.normal(k4, (32,), jnp.float32),
        "out_w": 0.02 * jax.random.normal(k5, (10, 32 * 7 * 7), jnp.float32),
        "out_b": 0.02 * jax.random.normal(k6, (10,), jnp.float32),
    }


@jax.jit
def cnn_forward(x_nchw, params):
    # NCHW -> NHWC, bf16 activations throughout the conv stages.
    x = jnp.transpose(x_nchw, (0, 2, 3, 1)).astype(jnp.bfloat16)
    x = conv_relu_pool(x, params["conv1_w"], params["conv1_b"])   # (B,14,14,16)
    x = conv_relu_pool(x, params["conv2_w"], params["conv2_b"])   # (B, 7, 7,32)

    B = x.shape[0]
    # Flatten in NHWC order (no activation transpose); instead permute the
    # linear weight columns from PyTorch's (C,H,W) flatten order to (H,W,C).
    x_flat = x.reshape(B, 7 * 7 * 32)                              # bf16

    w = params["out_w"]                                            # (10, 32*7*7)
    O = w.shape[0]
    w_hwc = w.reshape(O, 32, 7, 7).transpose(0, 2, 3, 1).reshape(O, 7 * 7 * 32)

    # Lane-dense output: pad output columns to 128, slice back afterwards.
    O_pad = 128
    w_mat = jnp.zeros((7 * 7 * 32, O_pad), jnp.bfloat16)
    w_mat = w_mat.at[:, :O].set(w_hwc.T.astype(jnp.bfloat16))
    b_row = jnp.zeros((1, O_pad), jnp.float32)
    b_row = b_row.at[0, :O].set(params["out_b"].astype(jnp.float32))

    logits = linear_padded(x_flat, w_mat, b_row)                   # (B, 128) f32
    return logits[:, :O]                                           # (B, 10)  f32


if __name__ == "__main__":
    key = jax.random.PRNGKey(0)
    pkey, xkey = jax.random.split(key)
    params = init_params(pkey)
    # Linear(32*7*7, 10) fixes the spatial size: input must be 1x28x28.
    x = jax.random.normal(xkey, (2, 1, 28, 28), jnp.float32)  # NCHW, batch=2
    out = jax.block_until_ready(cnn_forward(x, params))
    assert out.shape == (2, 10) and out.dtype == jnp.float32
    print("KERNEL_OK")
</pallas_src>

<mosaic_0001>
module attributes {stable_mosaic.version = 11 : i64} {
  func.func @conv_relu_pool_kernel(%arg0: i32, %arg1: memref<4x416x25xbf16, #tpu.memory_space<vmem>>, %arg2: memref<25x16xbf16, #tpu.memory_space<vmem>>, %arg3: memref<1x16xf32, #tpu.memory_space<vmem>>, %arg4: memref<416x16xbf16, #tpu.memory_space<vmem>>) attributes {dimension_semantics = [#tpu.dimension_semantics<parallel>], iteration_bounds = array<i64: 1>, scalar_prefetch = 0 : i64, scratch_operands = 0 : i64, tpu.core_type = #tpu.core_type<tc>, window_params = [{transform_indices = @transform_0, window_bounds = array<i64: 4, 416, 25>}, {pipeline_mode = #tpu.pipeline_mode<synchronous>, transform_indices = @transform_1, window_bounds = array<i64: 25, 16>}, {pipeline_mode = #tpu.pipeline_mode<synchronous>, transform_indices = @transform_2, window_bounds = array<i64: 1, 16>}, {transform_indices = @transform_3, window_bounds = array<i64: 416, 16>}]} {
    %c0 = arith.constant 0 : index
    %c0_0 = arith.constant 0 : index
    %c0_1 = arith.constant 0 : index
    %0 = vector.load %arg1[%c0, %c0_0, %c0_1] : memref<4x416x25xbf16, #tpu.memory_space<vmem>>, vector<4x416x25xbf16>
    %1 = vector.shape_cast %0 : vector<4x416x25xbf16> to vector<1664x25xbf16>
    %c0_2 = arith.constant 0 : index
    %c0_3 = arith.constant 0 : index
    %2 = vector.load %arg2[%c0_2, %c0_3] : memref<25x16xbf16, #tpu.memory_space<vmem>>, vector<25x16xbf16>
    %cst = arith.constant dense<0.000000e+00> : vector<1664x16xf32>
    %3 = tpu.matmul %1, %2, %cst {dimension_numbers = #tpu.dot_dimension_numbers<[1], [0], [0], [1], [0, 0, 1, 1], [], []>} : vector<1664x25xbf16>, vector<25x16xbf16>, vector<1664x16xf32> -> vector<1664x16xf32>
    %4 = vector.shape_cast %3 : vector<1664x16xf32> to vector<4x416x16xf32>
    %cst_4 = arith.constant dense<0xFF800000> : vector<416x16xf32>
    %5 = vector.multi_reduction <maximumf>, %4, %cst_4 [0] : vector<4x416x16xf32> to vector<416x16xf32>
    %c0_5 = arith.constant 0 : index
    %c0_6 = arith.constant 0 : index
    %6 = vector.load %arg3[%c0_5, %c0_6] : memref<1x16xf32, #tpu.memory_space<vmem>>, vector<1x16xf32>
    %7 = vector.broadcast %6 : vector<1x16xf32> to vector<416x16xf32>
    %8 = arith.addf %5, %7 : vector<416x16xf32>
    %cst_7 = arith.constant 0.000000e+00 : f32
    %9 = vector.broadcast %cst_7 : f32 to vector<416x16xf32>
    %10 = arith.maximumf %8, %9 : vector<416x16xf32>
    %11 = arith.truncf %10 : vector<416x16xf32> to vector<416x16xbf16>
    %c0_8 = arith.constant 0 : index
    %c0_9 = arith.constant 0 : index
    %12 = vector.load %arg4[%c0_8, %c0_9] : memref<416x16xbf16, #tpu.memory_space<vmem>>, vector<416x16xbf16>
    tpu.vector_store %arg4[%c0_8, %c0_9], %11 {strides = array<i32>} : memref<416x16xbf16, #tpu.memory_space<vmem>>, vector<416x16xbf16>,
    return
  }
  func.func @transform_0(%arg0: i32) -> (i32, i32, i32) {
    %c0_i32 = arith.constant 0 : i32
    %c0_i32_0 = arith.constant 0 : i32
    %c0_i32_1 = arith.constant 0 : i32
    return %c0_i32, %arg0, %c0_i32_0 : i32, i32, i32
  }
  func.func @transform_1(%arg0: i32) -> (i32, i32) {
    %c0_i32 = arith.constant 0 : i32
    %c0_i32_0 = arith.constant 0 : i32
    %c0_i32_1 = arith.constant 0 : i32
    return %c0_i32, %c0_i32_0 : i32, i32
  }
  func.func @transform_2(%arg0: i32) -> (i32, i32) {
    %c0_i32 = arith.constant 0 : i32
    %c0_i32_0 = arith.constant 0 : i32
    %c0_i32_1 = arith.constant 0 : i32
    return %c0_i32, %c0_i32_0 : i32, i32
  }
  func.func @transform_3(%arg0: i32) -> (i32, i32) {
    %c0_i32 = arith.constant 0 : i32
    %c0_i32_0 = arith.constant 0 : i32
    return %arg0, %c0_i32 : i32, i32
  }
}

module attributes {stable_mosaic.version = 11 : i64} {
  func.func @conv_relu_pool_kernel(%arg0: i32, %arg1: memref<4x128x400xbf16, #tpu.memory_space<vmem>>, %arg2: memref<400x32xbf16, #tpu.memory_space<vmem>>, %arg3: memref<1x32xf32, #tpu.memory_space<vmem>>, %arg4: memref<128x32xbf16, #tpu.memory_space<vmem>>) attributes {dimension_semantics = [#tpu.dimension_semantics<parallel>], iteration_bounds = array<i64: 1>, scalar_prefetch = 0 : i64, scratch_operands = 0 : i64, tpu.core_type = #tpu.core_type<tc>, window_params = [{transform_indices = @transform_0, window_bounds = array<i64: 4, 128, 400>}, {pipeline_mode = #tpu.pipeline_mode<synchronous>, transform_indices = @transform_1, window_bounds = array<i64: 400, 32>}, {pipeline_mode = #tpu.pipeline_mode<synchronous>, transform_indices = @transform_2, window_bounds = array<i64: 1, 32>}, {transform_indices = @transform_3, window_bounds = array<i64: 128, 32>}]} {
    %c0 = arith.constant 0 : index
    %c0_0 = arith.constant 0 : index
    %c0_1 = arith.constant 0 : index
    %0 = vector.load %arg1[%c0, %c0_0, %c0_1] : memref<4x128x400xbf16, #tpu.memory_space<vmem>>, vector<4x128x400xbf16>
    %1 = vector.shape_cast %0 : vector<4x128x400xbf16> to vector<512x400xbf16>
    %c0_2 = arith.constant 0 : index
    %c0_3 = arith.constant 0 : index
    %2 = vector.load %arg2[%c0_2, %c0_3] : memref<400x32xbf16, #tpu.memory_space<vmem>>, vector<400x32xbf16>
    %cst = arith.constant dense<0.000000e+00> : vector<512x32xf32>
    %3 = tpu.matmul %1, %2, %cst {dimension_numbers = #tpu.dot_dimension_numbers<[1], [0], [0], [1], [0, 0, 1, 1], [], []>} : vector<512x400xbf16>, vector<400x32xbf16>, vector<512x32xf32> -> vector<512x32xf32>
    %4 = vector.shape_cast %3 : vector<512x32xf32> to vector<4x128x32xf32>
    %cst_4 = arith.constant dense<0xFF800000> : vector<128x32xf32>
    %5 = vector.multi_reduction <maximumf>, %4, %cst_4 [0] : vector<4x128x32xf32> to vector<128x32xf32>
    %c0_5 = arith.constant 0 : index
    %c0_6 = arith.constant 0 : index
    %6 = vector.load %arg3[%c0_5, %c0_6] : memref<1x32xf32, #tpu.memory_space<vmem>>, vector<1x32xf32>
    %7 = vector.broadcast %6 : vector<1x32xf32> to vector<128x32xf32>
    %8 = arith.addf %5, %7 : vector<128x32xf32>
    %cst_7 = arith.constant 0.000000e+00 : f32
    %9 = vector.broadcast %cst_7 : f32 to vector<128x32xf32>
    %10 = arith.maximumf %8, %9 : vector<128x32xf32>
    %11 = arith.truncf %10 : vector<128x32xf32> to vector<128x32xbf16>
    %c0_8 = arith.constant 0 : index
    %c0_9 = arith.constant 0 : index
    %12 = vector.load %arg4[%c0_8, %c0_9] : memref<128x32xbf16, #tpu.memory_space<vmem>>, vector<128x32xbf16>
    tpu.vector_store %arg4[%c0_8, %c0_9], %11 {strides = array<i32>} : memref<128x32xbf16, #tpu.memory_space<vmem>>, vector<128x32xbf16>,
    return
  }
  func.func @transform_0(%arg0: i32) -> (i32, i32, i32) {
    %c0_i32 = arith.constant 0 : i32
    %c0_i32_0 = arith.constant 0 : i32
    %c0_i32_1 = arith.constant 0 : i32
    return %c0_i32, %arg0, %c0_i32_0 : i32, i32, i32
  }
  func.func @transform_1(%arg0: i32) -> (i32, i32) {
    %c0_i32 = arith.constant 0 : i32
    %c0_i32_0 = arith.constant 0 : i32
    %c0_i32_1 = arith.constant 0 : i32
    return %c0_i32, %c0_i32_0 : i32, i32
  }
  func.func @transform_2(%arg0: i32) -> (i32, i32) {
    %c0_i32 = arith.constant 0 : i32
    %c0_i32_0 = arith.constant 0 : i32
    %c0_i32_1 = arith.constant 0 : i32
    return %c0_i32, %c0_i32_0 : i32, i32
  }
  func.func @transform_3(%arg0: i32) -> (i32, i32) {
    %c0_i32 = arith.constant 0 : i32
    %c0_i32_0 = arith.constant 0 : i32
    return %arg0, %c0_i32 : i32, i32
  }
}

module attributes {stable_mosaic.version = 11 : i64} {
  func.func @linear_kernel(%arg0: i32, %arg1: memref<8x1568xbf16, #tpu.memory_space<vmem>>, %arg2: memref<1568x128xbf16, #tpu.memory_space<vmem>>, %arg3: memref<1x128xf32, #tpu.memory_space<vmem>>, %arg4: memref<8x128xf32, #tpu.memory_space<vmem>>) attributes {dimension_semantics = [#tpu.dimension_semantics<parallel>], iteration_bounds = array<i64: 1>, scalar_prefetch = 0 : i64, scratch_operands = 0 : i64, tpu.core_type = #tpu.core_type<tc>, window_params = [{transform_indices = @transform_0, window_bounds = array<i64: 8, 1568>}, {pipeline_mode = #tpu.pipeline_mode<synchronous>, transform_indices = @transform_1, window_bounds = array<i64: 1568, 128>}, {pipeline_mode = #tpu.pipeline_mode<synchronous>, transform_indices = @transform_2, window_bounds = array<i64: 1, 128>}, {transform_indices = @transform_3, window_bounds = array<i64: 8, 128>}]} {
    %c0 = arith.constant 0 : index
    %c0_0 = arith.constant 0 : index
    %0 = vector.load %arg1[%c0, %c0_0] : memref<8x1568xbf16, #tpu.memory_space<vmem>>, vector<8x1568xbf16>
    %c0_1 = arith.constant 0 : index
    %c0_2 = arith.constant 0 : index
    %1 = vector.load %arg2[%c0_1, %c0_2] : memref<1568x128xbf16, #tpu.memory_space<vmem>>, vector<1568x128xbf16>
    %cst = arith.constant dense<0.000000e+00> : vector<8x128xf32>
    %2 = tpu.matmul %0, %1, %cst {dimension_numbers = #tpu.dot_dimension_numbers<[1], [0], [0], [1], [0, 0, 1, 1], [], []>} : vector<8x1568xbf16>, vector<1568x128xbf16>, vector<8x128xf32> -> vector<8x128xf32>
    %c0_3 = arith.constant 0 : index
    %c0_4 = arith.constant 0 : index
    %3 = vector.load %arg3[%c0_3, %c0_4] : memref<1x128xf32, #tpu.memory_space<vmem>>, vector<1x128xf32>
    %4 = vector.broadcast %3 : vector<1x128xf32> to vector<8x128xf32>
    %5 = arith.addf %2, %4 : vector<8x128xf32>
    %c0_5 = arith.constant 0 : index
    %c0_6 = arith.constant 0 : index
    %6 = vector.load %arg4[%c0_5, %c0_6] : memref<8x128xf32, #tpu.memory_space<vmem>>, vector<8x128xf32>
    tpu.vector_store %arg4[%c0_5, %c0_6], %5 {strides = array<i32>} : memref<8x128xf32, #tpu.memory_space<vmem>>, vector<8x128xf32>,
    return
  }
  func.func @transform_0(%arg0: i32) -> (i32, i32) {
    %c0_i32 = arith.constant 0 : i32
    %c0_i32_0 = arith.constant 0 : i32
    return %arg0, %c0_i32 : i32, i32
  }
  func.func @transform_1(%arg0: i32) -> (i32, i32) {
    %c0_i32 = arith.constant 0 : i32
    %c0_i32_0 = arith.constant 0 : i32
    %c0_i32_1 = arith.constant 0 : i32
    return %c0_i32, %c0_i32_0 : i32, i32
  }
  func.func @transform_2(%arg0: i32) -> (i32, i32) {
    %c0_i32 = arith.constant 0 : i32
    %c0_i32_0 = arith.constant 0 : i32
    %c0_i32_1 = arith.constant 0 : i32
    return %c0_i32, %c0_i32_0 : i32, i32
  }
  func.func @transform_3(%arg0: i32) -> (i32, i32) {
    %c0_i32 = arith.constant 0 : i32
    %c0_i32_0 = arith.constant 0 : i32
    return %arg0, %c0_i32 : i32, i32
  }
}

</mosaic_0001>

<llo_original>
// kernel: squeeze.10
$region0: #{squeeze.10}
  %s0 = inlined_call_operand.vmem [shape: bf16[2,14,14,25], index: 0, kind: input, shape index: {}]
  %s1 = inlined_call_operand.vmem [shape: bf16[1,392,25], index: 1, kind: output, shape index: {}]
  $region1: #{squeeze.10} parent=0
    #allocation0 [shape = 'u8[200704]{0}', space=vmem, size = 0x31000, scoped, tag = 'scoped mem for output reshape']
    #allocation1 [shape = 'u8[229376]{0}', space=vmem, size = 0x38000, scoped, tag = 'scoped mem for input reshape']
    %s3 = smul.u32 4, 2
    %s4 = sshll.u32 1, %s3
    %s5 = ssub.s32 %s4, 1
    %s6 = smul.addr 4, 55
    %s7 = scalar_lea.vmem %s0, %s6
    %s8 = sshrl.u32 %s5, 1
    %s9 = sor.u32 %s5, %s8
    %s10 = sand.u32 %s9, 85
    %s11 = sshrl.u32 %s10, 1
    %s12 = sor.u32 %s10, %s11
    %s13 = sand.u32 51, %s12
    %s14 = sshrl.u32 %s13, 2
    %s15 = sor.u32 %s13, %s14
    %s16 = sand.u32 15, %s15
    %v17 = vld [vmem:[%s7] sm:%s16]
    %v18 = vunpack.c.l.bf16 %v17
    %v19 = vunpack.c.h.bf16 %v17
    %s20 = scalar_lea.vmem [#allocation1], 440
    %21 = vst [vmem:[%s20] sm:%s5] %v18
    %s22 = smul.addr 4, 54
    %s23 = scalar_lea.vmem %s0, %s22
    %s24 = sshrl.u32 %s5, 1
    %s25 = sor.u32 %s5, %s24
    %s26 = sand.u32 %s25, 85
    %s27 = sshrl.u32 %s26, 1
    %s28 = sor.u32 %s26, %s27
    %s29 = sand.u32 51, %s28
    %s30 = sshrl.u32 %s29, 2
    %s31 = sor.u32 %s29, %s30
    %s32 = sand.u32 15, %s31
    %v33 = vld [vmem:[%s23] sm:%s32]
    %v34 = vunpack.c.l.bf16 %v33
    %v35 = vunpack.c.h.bf16 %v33
    %s36 = scalar_lea.vmem [#allocation1], 432
    %37 = vst [vmem:[%s36] sm:%s5] %v34
    %s38 = smul.addr 4, 53
    %s39 = scalar_lea.vmem %s0, %s38
    %s40 = sshrl.u32 %s5, 1
    %s41 = sor.u32 %s5, %s40
    %s42 = sand.u32 %s41, 85
    %s43 = sshrl.u32 %s42, 1
    %s44 = sor.u32 %s42, %s43
    %s45 = sand.u32 51, %s44
    %s46 = sshrl.u32 %s45, 2
    %s47 = sor.u32 %s45, %s46
    %s48 = sand.u32 15, %s47
    %v49 = vld [vmem:[%s39] sm:%s48]
    %v50 = vunpack.c.l.bf16 %v49
    %v51 = vunpack.c.h.bf16 %v49
    %s52 = scalar_lea.vmem [#allocation1], 424
    %53 = vst [vmem:[%s52] sm:%s5] %v50
    %s54 = smul.addr 4, 52
    %s55 = scalar_lea.vmem %s0, %s54
    %s56 = sshrl.u32 %s5, 1
    %s57 = sor.u32 %s5, %s56
    %s58 = sand.u32 %s57, 85
    %s59 = sshrl.u32 %s58, 1
    %s60 = sor.u32 %s58, %s59
    %s61 = sand.u32 51, %s60
    %s62 = sshrl.u32 %s61, 2
    %s63 = sor.u32 %s61, %s62
    %s64 = sand.u32 15, %s63
    %v65 = vld [vmem:[%s55] sm:%s64]
    %v66 = vunpack.c.l.bf16 %v65
    %v67 = vunpack.c.h.bf16 %v65
    %s68 = scalar_lea.vmem [#allocation1], 416
    %69 = vst [vmem:[%s68] sm:%s5] %v66
    %s70 = smul.addr 4, 51
    %s71 = scalar_lea.vmem %s0, %s70
    %s72 = sshrl.u32 %s5, 1
    %s73 = sor.u32 %s5, %s72
    %s74 = sand.u32 %s73, 85
    %s75 = sshrl.u32 %s74, 1
    %s76 = sor.u32 %s74, %s75
    %s77 = sand.u32 51, %s76
    %s78 = sshrl.u32 %s77, 2
    %s79 = sor.u32 %s77, %s78
    %s80 = sand.u32 15, %s79
    %v81 = vld [vmem:[%s71] sm:%s80]
    %v82 = vunpack.c.l.bf16 %v81
    %v83 = vunpack.c.h.bf16 %v81
    %s84 = scalar_lea.vmem [#allocation1], 408
    %85 = vst [vmem:[%s84] sm:%s5] %v82
    %s86 = smul.addr 4, 50
    %s87 = scalar_lea.vmem %s0, %s86
    %s88 = sshrl.u32 %s5, 1
    %s89 = sor.u32 %s5, %s88
    %s90 = sand.u32 %s89, 85
    %s91 = sshrl.u32 %s90, 1
    %s92 = sor.u32 %s90, %s91
    %s93 = sand.u32 51, %s92
    %s94 = sshrl.u32 %s93, 2
    %s95 = sor.u32 %s93, %s94
    %s96 = sand.u32 15, %s95
    %v97 = vld [vmem:[%s87] sm:%s96]
    %v98 = vunpack.c.l.bf16 %v97
    %v99 = vunpack.c.h.bf16 %v97
    %s100 = scalar_lea.vmem [#allocation1], 400
    %101 = vst [vmem:[%s100] sm:%s5] %v98
    %s102 = smul.addr 4, 49
    %s103 = scalar_lea.vmem %s0, %s102
    %s104 = sshrl.u32 %s5, 1
    %s105 = sor.u32 %s5, %s104
    %s106 = sand.u32 %s105, 85
    %s107 = sshrl.u32 %s106, 1
    %s108 = sor.u32 %s106, %s107
    %s109 = sand.u32 51, %s108
    %s110 = sshrl.u32 %s109, 2
    %s111 = sor.u32 %s109, %s110
    %s112 = sand.u32 15, %s111
    %v113 = vld [vmem:[%s103] sm:%s112]
    %v114 = vunpack.c.l.bf16 %v113
    %v115 = vunpack.c.h.bf16 %v113
    %s116 = scalar_lea.vmem [#allocation1], 392
    %117 = vst [vmem:[%s116] sm:%s5] %v114
    %s118 = smul.addr 4, 48
    %s119 = scalar_lea.vmem %s0, %s118
    %s120 = sshrl.u32 %s5, 1
    %s121 = sor.u32 %s5, %s120
    %s122 = sand.u32 %s121, 85
    %s123 = sshrl.u32 %s122, 1
    %s124 = sor.u32 %s122, %s123
    %s125 = sand.u32 51, %s124
    %s126 = sshrl.u32 %s125, 2
    %s127 = sor.u32 %s125, %s126
    %s128 = sand.u32 15, %s127
    %v129 = vld [vmem:[%s119] sm:%s128]
    %v130 = vunpack.c.l.bf16 %v129
    %v131 = vunpack.c.h.bf16 %v129
    %s132 = scalar_lea.vmem [#allocation1], 384
    %133 = vst [vmem:[%s132] sm:%s5] %v130
    %s134 = smul.addr 4, 47
    %s135 = scalar_lea.vmem %s0, %s134
    %s136 = sshrl.u32 %s5, 1
    %s137 = sor.u32 %s5, %s136
    %s138 = sand.u32 %s137, 85
    %s139 = sshrl.u32 %s138, 1
    %s140 = sor.u32 %s138, %s139
    %s141 = sand.u32 51, %s140
    %s142 = sshrl.u32 %s141, 2
    %s143 = sor.u32 %s141, %s142
    %s144 = sand.u32 15, %s143
    %v145 = vld [vmem:[%s135] sm:%s144]
    %v146 = vunpack.c.l.bf16 %v145
    %v147 = vunpack.c.h.bf16 %v145
    %s148 = scalar_lea.vmem [#allocation1], 376
    %149 = vst [vmem:[%s148] sm:%s5] %v146
    %s150 = smul.addr 4, 46
    %s151 = scalar_lea.vmem %s0, %s150
    %s152 = sshrl.u32 %s5, 1
    %s153 = sor.u32 %s5, %s152
    %s154 = sand.u32 %s153, 85
    %s155 = sshrl.u32 %s154, 1
    %s156 = sor.u32 %s154, %s155
    %s157 = sand.u32 51, %s156
    %s158 = sshrl.u32 %s157, 2
    %s159 = sor.u32 %s157, %s158
    %s160 = sand.u32 15, %s159
    %v161 = vld [vmem:[%s151] sm:%s160]
    %v162 = vunpack.c.l.bf16 %v161
    %v163 = vunpack.c.h.bf16 %v161
    %s164 = scalar_lea.vmem [#allocation1], 368
    %165 = vst [vmem:[%s164] sm:%s5] %v162
    %s166 = smul.addr 4, 45
    %s167 = scalar_lea.vmem %s0, %s166
    %s168 = sshrl.u32 %s5, 1
    %s169 = sor.u32 %s5, %s168
    %s170 = sand.u32 %s169, 85
    %s171 = sshrl.u32 %s170, 1
    %s172 = sor.u32 %s170, %s171
    %s173 = sand.u32 51, %s172
    %s174 = sshrl.u32 %s173, 2
    %s175 = sor.u32 %s173, %s174
    %s176 = sand.u32 15, %s175
    %v177 = vld [vmem:[%s167] sm:%s176]
    %v178 = vunpack.c.l.bf16 %v177
    %v179 = vunpack.c.h.bf16 %v177
    %s180 = scalar_lea.vmem [#allocation1], 360
    %181 = vst [vmem:[%s180] sm:%s5] %v178
    %s182 = smul.addr 4, 44
    %s183 = scalar_lea.vmem %s0, %s182
    %s184 = sshrl.u32 %s5, 1
    %s185 = sor.u32 %s5, %s184
    %s186 = sand.u32 %s185, 85
    %s187 = sshrl.u32 %s186, 1
    %s188 = sor.u32 %s186, %s187
    %s189 = sand.u32 51, %s188
    %s190 = sshrl.u32 %s189, 2
    %s191 = sor.u32 %s189, %s190
    %s192 = sand.u32 15, %s191
    %v193 = vld [vmem:[%s183] sm:%s192]
    %v194 = vunpack.c.l.bf16 %v193
    %v195 = vunpack.c.h.bf16 %v193
    %s196 = scalar_lea.vmem [#allocation1], 352
    %197 = vst [vmem:[%s196] sm:%s5] %v194
    %s198 = smul.addr 4, 43
    %s199 = scalar_lea.vmem %s0, %s198
    %s200 = sshrl.u32 %s5, 1
    %s201 = sor.u32 %s5, %s200
    %s202 = sand.u32 %s201, 85
    %s203 = sshrl.u32 %s202, 1
    %s204 = sor.u32 %s202, %s203
    %s205 = sand.u32 51, %s204
    %s206 = sshrl.u32 %s205, 2
    %s207 = sor.u32 %s205, %s206
    %s208 = sand.u32 15, %s207
    %v209 = vld [vmem:[%s199] sm:%s208]
    %v210 = vunpack.c.l.bf16 %v209
    %v211 = vunpack.c.h.bf16 %v209
    %s212 = scalar_lea.vmem [#allocation1], 344
    %213 = vst [vmem:[%s212] sm:%s5] %v210
    %s214 = smul.addr 4, 42
    %s215 = scalar_lea.vmem %s0, %s214
    %s216 = sshrl.u32 %s5, 1
    %s217 = sor.u32 %s5, %s216
    %s218 = sand.u32 %s217, 85
    %s219 = sshrl.u32 %s218, 1
    %s220 = sor.u32 %s218, %s219
    %s221 = sand.u32 51, %s220
    %s222 = sshrl.u32 %s221, 2
    %s223 = sor.u32 %s221, %s222
    %s224 = sand.u32 15, %s223
    %v225 = vld [vmem:[%s215] sm:%s224]
    %v226 = vunpack.c.l.bf16 %v225
    %v227 = vunpack.c.h.bf16 %v225
    %s228 = scalar_lea.vmem [#allocation1], 336
    %229 = vst [vmem:[%s228] sm:%s5] %v226
    %s230 = smul.addr 4, 41
    %s231 = scalar_lea.vmem %s0, %s230
    %s232 = sshrl.u32 %s5, 1
    %s233 = sor.u32 %s5, %s232
    %s234 = sand.u32 %s233, 85
    %s235 = sshrl.u32 %s234, 1
    %s236 = sor.u32 %s234, %s235
    %s237 = sand.u32 51, %s236
    %s238 = sshrl.u32 %s237, 2
    %s239 = sor.u32 %s237, %s238
    %s240 = sand.u32 15, %s239
    %v241 = vld [vmem:[%s231] sm:%s240]
    %v242 = vunpack.c.l.bf16 %v241
    %v243 = vunpack.c.h.bf16 %v241
    %s244 = scalar_lea.vmem [#allocation1], 328
    %245 = vst [vmem:[%s244] sm:%s5] %v242
    %s246 = smul.addr 4, 40
    %s247 = scalar_lea.vmem %s0, %s246
    %s248 = sshrl.u32 %s5, 1
    %s249 = sor.u32 %s5, %s248
    %s250 = sand.u32 %s249, 85
    %s251 = sshrl.u32 %s250, 1
    %s252 = sor.u32 %s250, %s251
    %s253 = sand.u32 51, %s252
    %s254 = sshrl.u32 %s253, 2
    %s255 = sor.u32 %s253, %s254
    %s256 = sand.u32 15, %s255
    %v257 = vld [vmem:[%s247] sm:%s256]
    %v258 = vunpack.c.l.bf16 %v257
    %v259 = vunpack.c.h.bf16 %v257
    %s260 = scalar_lea.vmem [#allocation1], 320
    %261 = vst [vmem:[%s260] sm:%s5] %v258
    %s262 = smul.addr 4, 39
    %s263 = scalar_lea.vmem %s0, %s262
    %s264 = sshrl.u32 %s5, 1
    %s265 = sor.u32 %s5, %s264
    %s266 = sand.u32 %s265, 85
    %s267 = sshrl.u32 %s266, 1
    %s268 = sor.u32 %s266, %s267
    %s269 = sand.u32 51, %s268
    %s270 = sshrl.u32 %s269, 2
    %s271 = sor.u32 %s269, %s270
    %s272 = sand.u32 15, %s271
    %v273 = vld [vmem:[%s263] sm:%s272]
    %v274 = vunpack.c.l.bf16 %v273
    %v275 = vunpack.c.h.bf16 %v273
    %s276 = scalar_lea.vmem [#allocation1], 312
    %277 = vst [vmem:[%s276] sm:%s5] %v274
    %s278 = smul.addr 4, 38
    %s279 = scalar_lea.vmem %s0, %s278
    %s280 = sshrl.u32 %s5, 1
    %s281 = sor.u32 %s5, %s280
    %s282 = sand.u32 %s281, 85
    %s283 = sshrl.u32 %s282, 1
    %s284 = sor.u32 %s282, %s283
    %s285 = sand.u32 51, %s284
    %s286 = sshrl.u32 %s285, 2
    %s287 = sor.u32 %s285, %s286
    %s288 = sand.u32 15, %s287
    %v289 = vld [vmem:[%s279] sm:%s288]
    %v290 = vunpack.c.l.bf16 %v289
    %v291 = vunpack.c.h.bf16 %v289
    %s292 = scalar_lea.vmem [#allocation1], 304
    %293 = vst [vmem:[%s292] sm:%s5] %v290
    %s294 = smul.addr 4, 37
    %s295 = scalar_lea.vmem %s0, %s294
    %s296 = sshrl.u32 %s5, 1
    %s297 = sor.u32 %s5, %s296
    %s298 = sand.u32 %s297, 85
    %s299 = sshrl.u32 %s298, 1
    %s300 = sor.u32 %s298, %s299
    %s301 = sand.u32 51, %s300
    %s302 = sshrl.u32 %s301, 2
    %s303 = sor.u32 %s301, %s302
    %s304 = sand.u32 15, %s303
    %v305 = vld [vmem:[%s295] sm:%s304]
    %v306 = vunpack.c.l.bf16 %v305
    %v307 = vunpack.c.h.bf16 %v305
    %s308 = scalar_lea.vmem [#allocation1], 296
    %309 = vst [vmem:[%s308] sm:%s5] %v306
    %s310 = smul.addr 4, 36
    %s311 = scalar_lea.vmem %s0, %s310
    %s312 = sshrl.u32 %s5, 1
    %s313 = sor.u32 %s5, %s312
    %s314 = sand.u32 %s313, 85
    %s315 = sshrl.u32 %s314, 1
    %s316 = sor.u32 %s314, %s315
    %s317 = sand.u32 51, %s316
    %s318 = sshrl.u32 %s317, 2
    %s319 = sor.u32 %s317, %s318
    %s320 = sand.u32 15, %s319
    %v321 = vld [vmem:[%s311] sm:%s320]
    %v322 = vunpack.c.l.bf16 %v321
    %v323 = vunpack.c.h.bf16 %v321
    %s324 = scalar_lea.vmem [#allocation1], 288
    %325 = vst [vmem:[%s324] sm:%s5] %v322
    %s326 = smul.addr 4, 35
    %s327 = scalar_lea.vmem %s0, %s326
    %s328 = sshrl.u32 %s5, 1
    %s329 = sor.u32 %s5, %s328
    %s330 = sand.u32 %s329, 85
    %s331 = sshrl.u32 %s330, 1
    %s332 = sor.u32 %s330, %s331
    %s333 = sand.u32 51, %s332
    %s334 = sshrl.u32 %s333, 2
    %s335 = sor.u32 %s333, %s334
    %s336 = sand.u32 15, %s335
    %v337 = vld [vmem:[%s327] sm:%s336]
    %v338 = vunpack.c.l.bf16 %v337
    %v339 = vunpack.c.h.bf16 %v337
    %s340 = scalar_lea.vmem [#allocation1], 280
    %341 = vst [vmem:[%s340] sm:%s5] %v338
    %s342 = smul.addr 4, 34
    %s343 = scalar_lea.vmem %s0, %s342
    %s344 = sshrl.u32 %s5, 1
    %s345 = sor.u32 %s5, %s344
    %s346 = sand.u32 %s345, 85
    %s347 = sshrl.u32 %s346, 1
    %s348 = sor.u32 %s346, %s347
    %s349 = sand.u32 51, %s348
    %s350 = sshrl.u32 %s349, 2
    %s351 = sor.u32 %s349, %s350
    %s352 = sand.u32 15, %s351
    %v353 = vld [vmem:[%s343] sm:%s352]
    %v354 = vunpack.c.l.bf16 %v353
    %v355 = vunpack.c.h.bf16 %v353
    %s356 = scalar_lea.vmem [#allocation1], 272
    %357 = vst [vmem:[%s356] sm:%s5] %v354
    %s358 = smul.addr 4, 33
    %s359 = scalar_lea.vmem %s0, %s358
    %s360 = sshrl.u32 %s5, 1
    %s361 = sor.u32 %s5, %s360
    %s362 = sand.u32 %s361, 85
    %s363 = sshrl.u32 %s362, 1
    %s364 = sor.u32 %s362, %s363
    %s365 = sand.u32 51, %s364
    %s366 = sshrl.u32 %s365, 2
    %s367 = sor.u32 %s365, %s366
    %s368 = sand.u32 15, %s367
    %v369 = vld [vmem:[%s359] sm:%s368]
    %v370 = vunpack.c.l.bf16 %v369
    %v371 = vunpack.c.h.bf16 %v369
    %s372 = scalar_lea.vmem [#allocation1], 264
    %373 = vst [vmem:[%s372] sm:%s5] %v370
    %s374 = smul.addr 4, 32
    %s375 = scalar_lea.vmem %s0, %s374
    %s376 = sshrl.u32 %s5, 1
    %s377 = sor.u32 %s5, %s376
    %s378 = sand.u32 %s377, 85
    %s379 = sshrl.u32 %s378, 1
    %s380 = sor.u32 %s378, %s379
    %s381 = sand.u32 51, %s380
    %s382 = sshrl.u32 %s381, 2
    %s383 = sor.u32 %s381, %s382
    %s384 = sand.u32 15, %s383
    %v385 = vld [vmem:[%s375] sm:%s384]
    %v386 = vunpack.c.l.bf16 %v385
    %v387 = vunpack.c.h.bf16 %v385
    %s388 = scalar_lea.vmem [#allocation1], 256
    %389 = vst [vmem:[%s388] sm:%s5] %v386
    %s390 = smul.addr 4, 31
    %s391 = scalar_lea.vmem %s0, %s390
    %s392 = sshrl.u32 %s5, 1
    %s393 = sor.u32 %s5, %s392
    %s394 = sand.u32 %s393, 85
    %s395 = sshrl.u32 %s394, 1
    %s396 = sor.u32 %s394, %s395
    %s397 = sand.u32 51, %s396
    %s398 = sshrl.u32 %s397, 2
    %s399 = sor.u32 %s397, %s398
    %s400 = sand.u32 15, %s399
    %v401 = vld [vmem:[%s391] sm:%s400]
    %v402 = vunpack.c.l.bf16 %v401
    %v403 = vunpack.c.h.bf16 %v401
    %s404 = scalar_lea.vmem [#allocation1], 248
    %405 = vst [vmem:[%s404] sm:%s5] %v402
    %s406 = smul.addr 4, 30
    %s407 = scalar_lea.vmem %s0, %s406
    %s408 = sshrl.u32 %s5, 1
    %s409 = sor.u32 %s5, %s408
    %s410 = sand.u32 %s409, 85
    %s411 = sshrl.u32 %s410, 1
    %s412 = sor.u32 %s410, %s411
    %s413 = sand.u32 51, %s412
    %s414 = sshrl.u32 %s413, 2
    %s415 = sor.u32 %s413, %s414
    %s416 = sand.u32 15, %s415
    %v417 = vld [vmem:[%s407] sm:%s416]
    %v418 = vunpack.c.l.bf16 %v417
    %v419 = vunpack.c.h.bf16 %v417
    %s420 = scalar_lea.vmem [#allocation1], 240
    %421 = vst [vmem:[%s420] sm:%s5] %v418
    %s422 = smul.addr 4, 29
    %s423 = scalar_lea.vmem %s0, %s422
    %s424 = sshrl.u32 %s5, 1
    %s425 = sor.u32 %s5, %s424
    %s426 = sand.u32 %s425, 85
    %s427 = sshrl.u32 %s426, 1
    %s428 = sor.u32 %s426, %s427
    %s429 = sand.u32 51, %s428
    %s430 = sshrl.u32 %s429, 2
    %s431 = sor.u32 %s429, %s430
    %s432 = sand.u32 15, %s431
    %v433 = vld [vmem:[%s423] sm:%s432]
    %v434 = vunpack.c.l.bf16 %v433
    %v435 = vunpack.c.h.bf16 %v433
    %s436 = scalar_lea.vmem [#allocation1], 232
    %437 = vst [vmem:[%s436] sm:%s5] %v434
    %s438 = smul.addr 4, 28
    %s439 = scalar_lea.vmem %s0, %s438
    %s440 = sshrl.u32 %s5, 1
    %s441 = sor.u32 %s5, %s440
    %s442 = sand.u32 %s441, 85
    %s443 = sshrl.u32 %s442, 1
    %s444 = sor.u32 %s442, %s443
    %s445 = sand.u32 51, %s444
    %s446 = sshrl.u32 %s445, 2
    %s447 = sor.u32 %s445, %s446
    %s448 = sand.u32 15, %s447
    %v449 = vld [vmem:[%s439] sm:%s448]
    %v450 = vunpack.c.l.bf16 %v449
    %v451 = vunpack.c.h.bf16 %v449
    %s452 = scalar_lea.vmem [#allocation1], 224
    %453 = vst [vmem:[%s452] sm:%s5] %v450
    %s454 = smul.addr 4, 27
    %s455 = scalar_lea.vmem %s0, %s454
    %s456 = sshrl.u32 %s5, 1
    %s457 = sor.u32 %s5, %s456
    %s458 = sand.u32 %s457, 85
    %s459 = sshrl.u32 %s458, 1
    %s460 = sor.u32 %s458, %s459
    %s461 = sand.u32 51, %s460
    %s462 = sshrl.u32 %s461, 2
    %s463 = sor.u32 %s461, %s462
    %s464 = sand.u32 15, %s463
    %v465 = vld [vmem:[%s455] sm:%s464]
    %v466 = vunpack.c.l.bf16 %v465
    %v467 = vunpack.c.h.bf16 %v465
    %s468 = scalar_lea.vmem [#allocation1], 216
    %469 = vst [vmem:[%s468] sm:%s5] %v466
    %s470 = smul.addr 4, 26
    %s471 = scalar_lea.vmem %s0, %s470
    %s472 = sshrl.u32 %s5, 1
    %s473 = sor.u32 %s5, %s472
    %s474 = sand.u32 %s473, 85
    %s475 = sshrl.u32 %s474, 1
    %s476 = sor.u32 %s474, %s475
    %s477 = sand.u32 51, %s476
    %s478 = sshrl.u32 %s477, 2
    %s479 = sor.u32 %s477, %s478
    %s480 = sand.u32 15, %s479
    %v481 = vld [vmem:[%s471] sm:%s480]
    %v482 = vunpack.c.l.bf16 %v481
    %v483 = vunpack.c.h.bf16 %v481
    %s484 = scalar_lea.vmem [#allocation1], 208
    %485 = vst [vmem:[%s484] sm:%s5] %v482
    %s486 = smul.addr 4, 25
    %s487 = scalar_lea.vmem %s0, %s486
    %s488 = sshrl.u32 %s5, 1
    %s489 = sor.u32 %s5, %s488
    %s490 = sand.u32 %s489, 85
    %s491 = sshrl.u32 %s490, 1
    %s492 = sor.u32 %s490, %s491
    %s493 = sand.u32 51, %s492
    %s494 = sshrl.u32 %s493, 2
    %s495 = sor.u32 %s493, %s494
    %s496 = sand.u32 15, %s495
    %v497 = vld [vmem:[%s487] sm:%s496]
    %v498 = vunpack.c.l.bf16 %v497
    %v499 = vunpack.c.h.bf16 %v497
    %s500 = scalar_lea.vmem [#allocation1], 200
    %501 = vst [vmem:[%s500] sm:%s5] %v498
    %s502 = smul.addr 4, 24
    %s503 = scalar_lea.vmem %s0, %s502
    %s504 = sshrl.u32 %s5, 1
    %s505 = sor.u32 %s5, %s504
    %s506 = sand.u32 %s505, 85
    %s507 = sshrl.u32 %s506, 1
    %s508 = sor.u32 %s506, %s507
    %s509 = sand.u32 51, %s508
    %s510 = sshrl.u32 %s509, 2
    %s511 = sor.u32 %s509, %s510
    %s512 = sand.u32 15, %s511
    %v513 = vld [vmem:[%s503] sm:%s512]
    %v514 = vunpack.c.l.bf16 %v513
    %v515 = vunpack.c.h.bf16 %v513
    %s516 = scalar_lea.vmem [#allocation1], 192
    %517 = vst [vmem:[%s516] sm:%s5] %v514
    %s518 = smul.addr 4, 23
    %s519 = scalar_lea.vmem %s0, %s518
    %s520 = sshrl.u32 %s5, 1
    %s521 = sor.u32 %s5, %s520
    %s522 = sand.u32 %s521, 85
    %s523 = sshrl.u32 %s522, 1
    %s524 = sor.u32 %s522, %s523
    %s525 = sand.u32 51, %s524
    %s526 = sshrl.u32 %s525, 2
    %s527 = sor.u32 %s525, %s526
    %s528 = sand.u32 15, %s527
    %v529 = vld [vmem:[%s519] sm:%s528]
    %v530 = vunpack.c.l.bf16 %v529
    %v531 = vunpack.c.h.bf16 %v529
    %s532 = scalar_lea.vmem [#allocation1], 184
    %533 = vst [vmem:[%s532] sm:%s5] %v530
    %s534 = smul.addr 4, 22
    %s535 = scalar_lea.vmem %s0, %s534
    %s536 = sshrl.u32 %s5, 1
    %s537 = sor.u32 %s5, %s536
    %s538 = sand.u32 %s537, 85
    %s539 = sshrl.u32 %s538, 1
    %s540 = sor.u32 %s538, %s539
    %s541 = sand.u32 51, %s540
    %s542 = sshrl.u32 %s541, 2
    %s543 = sor.u32 %s541, %s542
    %s544 = sand.u32 15, %s543
    %v545 = vld [vmem:[%s535] sm:%s544]
    %v546 = vunpack.c.l.bf16 %v545
    %v547 = vunpack.c.h.bf16 %v545
    %s548 = scalar_lea.vmem [#allocation1], 176
    %549 = vst [vmem:[%s548] sm:%s5] %v546
    %s550 = smul.addr 4, 21
    %s551 = scalar_lea.vmem %s0, %s550
    %s552 = sshrl.u32 %s5, 1
    %s553 = sor.u32 %s5, %s552
    %s554 = sand.u32 %s553, 85
    %s555 = sshrl.u32 %s554, 1
    %s556 = sor.u32 %s554, %s555
    %s557 = sand.u32 51, %s556
    %s558 = sshrl.u32 %s557, 2
    %s559 = sor.u32 %s557, %s558
    %s560 = sand.u32 15, %s559
    %v561 = vld [vmem:[%s551] sm:%s560]
    %v562 = vunpack.c.l.bf16 %v561
    %v563 = vunpack.c.h.bf16 %v561
    %s564 = scalar_lea.vmem [#allocation1], 168
    %565 = vst [vmem:[%s564] sm:%s5] %v562
    %s566 = smul.addr 4, 20
    %s567 = scalar_lea.vmem %s0, %s566
    %s568 = sshrl.u32 %s5, 1
    %s569 = sor.u32 %s5, %s568
    %s570 = sand.u32 %s569, 85
    %s571 = sshrl.u32 %s570, 1
    %s572 = sor.u32 %s570, %s571
    %s573 = sand.u32 51, %s572
    %s574 = sshrl.u32 %s573, 2
    %s575 = sor.u32 %s573, %s574
    %s576 = sand.u32 15, %s575
    %v577 = vld [vmem:[%s567] sm:%s576]
    %v578 = vunpack.c.l.bf16 %v577
    %v579 = vunpack.c.h.bf16 %v577
    %s580 = scalar_lea.vmem [#allocation1], 160
    %581 = vst [vmem:[%s580] sm:%s5] %v578
    %s582 = smul.addr 4, 19
    %s583 = scalar_lea.vmem %s0, %s582
    %s584 = sshrl.u32 %s5, 1
    %s585 = sor.u32 %s5, %s584
    %s586 = sand.u32 %s585, 85
    %s587 = sshrl.u32 %s586, 1
    %s588 = sor.u32 %s586, %s587
    %s589 = sand.u32 51, %s588
    %s590 = sshrl.u32 %s589, 2
    %s591 = sor.u32 %s589, %s590
    %s592 = sand.u32 15, %s591
    %v593 = vld [vmem:[%s583] sm:%s592]
    %v594 = vunpack.c.l.bf16 %v593
    %v595 = vunpack.c.h.bf16 %v593
    %s596 = scalar_lea.vmem [#allocation1], 152
    %597 = vst [vmem:[%s596] sm:%s5] %v594
    %s598 = smul.addr 4, 18
    %s599 = scalar_lea.vmem %s0, %s598
    %s600 = sshrl.u32 %s5, 1
    %s601 = sor.u32 %s5, %s600
    %s602 = sand.u32 %s601, 85
    %s603 = sshrl.u32 %s602, 1
    %s604 = sor.u32 %s602, %s603
    %s605 = sand.u32 51, %s604
    %s606 = sshrl.u32 %s605, 2
    %s607 = sor.u32 %s605, %s606
    %s608 = sand.u32 15, %s607
    %v609 = vld [vmem:[%s599] sm:%s608]
    %v610 = vunpack.c.l.bf16 %v609
    %v611 = vunpack.c.h.bf16 %v609
    %s612 = scalar_lea.vmem [#allocation1], 144
    %613 = vst [vmem:[%s612] sm:%s5] %v610
    %s614 = smul.addr 4, 17
    %s615 = scalar_lea.vmem %s0, %s614
    %s616 = sshrl.u32 %s5, 1
    %s617 = sor.u32 %s5, %s616
    %s618 = sand.u32 %s617, 85
    %s619 = sshrl.u32 %s618, 1
    %s620 = sor.u32 %s618, %s619
    %s621 = sand.u32 51, %s620
    %s622 = sshrl.u32 %s621, 2
    %s623 = sor.u32 %s621, %s622
    %s624 = sand.u32 15, %s623
    %v625 = vld [vmem:[%s615] sm:%s624]
    %v626 = vunpack.c.l.bf16 %v625
    %v627 = vunpack.c.h.bf16 %v625
    %s628 = scalar_lea.vmem [#allocation1], 136
    %629 = vst [vmem:[%s628] sm:%s5] %v626
    %s630 = smul.addr 4, 16
    %s631 = scalar_lea.vmem %s0, %s630
    %s632 = sshrl.u32 %s5, 1
    %s633 = sor.u32 %s5, %s632
    %s634 = sand.u32 %s633, 85
    %s635 = sshrl.u32 %s634, 1
    %s636 = sor.u32 %s634, %s635
    %s637 = sand.u32 51, %s636
    %s638 = sshrl.u32 %s637, 2
    %s639 = sor.u32 %s637, %s638
    %s640 = sand.u32 15, %s639
    %v641 = vld [vmem:[%s631] sm:%s640]
    %v642 = vunpack.c.l.bf16 %v641
    %v643 = vunpack.c.h.bf16 %v641
    %s644 = scalar_lea.vmem [#allocation1], 128
    %645 = vst [vmem:[%s644] sm:%s5] %v642
    %s646 = smul.addr 4, 15
    %s647 = scalar_lea.vmem %s0, %s646
    %s648 = sshrl.u32 %s5, 1
    %s649 = sor.u32 %s5, %s648
    %s650 = sand.u32 %s649, 85
    %s651 = sshrl.u32 %s650, 1
    %s652 = sor.u32 %s650, %s651
    %s653 = sand.u32 51, %s652
    %s654 = sshrl.u32 %s653, 2
    %s655 = sor.u32 %s653, %s654
    %s656 = sand.u32 15, %s655
    %v657 = vld [vmem:[%s647] sm:%s656]
    %v658 = vunpack.c.l.bf16 %v657
    %v659 = vunpack.c.h.bf16 %v657
    %s660 = scalar_lea.vmem [#allocation1], 120
    %661 = vst [vmem:[%s660] sm:%s5] %v658
    %s662 = smul.addr 4, 14
    %s663 = scalar_lea.vmem %s0, %s662
    %s664 = sshrl.u32 %s5, 1
    %s665 = sor.u32 %s5, %s664
    %s666 = sand.u32 %s665, 85
    %s667 = sshrl.u32 %s666, 1
    %s668 = sor.u32 %s666, %s667
    %s669 = sand.u32 51, %s668
    %s670 = sshrl.u32 %s669, 2
    %s671 = sor.u32 %s669, %s670
    %s672 = sand.u32 15, %s671
    %v673 = vld [vmem:[%s663] sm:%s672]
    %v674 = vunpack.c.l.bf16 %v673
    %v675 = vunpack.c.h.bf16 %v673
    %s676 = scalar_lea.vmem [#allocation1], 112
    %677 = vst [vmem:[%s676] sm:%s5] %v674
    %s678 = smul.addr 4, 13
    %s679 = scalar_lea.vmem %s0, %s678
    %s680 = sshrl.u32 %s5, 1
    %s681 = sor.u32 %s5, %s680
    %s682 = sand.u32 %s681, 85
    %s683 = sshrl.u32 %s682, 1
    %s684 = sor.u32 %s682, %s683
    %s685 = sand.u32 51, %s684
    %s686 = sshrl.u32 %s685, 2
    %s687 = sor.u32 %s685, %s686
    %s688 = sand.u32 15, %s687
    %v689 = vld [vmem:[%s679] sm:%s688]
    %v690 = vunpack.c.l.bf16 %v689
    %v691 = vunpack.c.h.bf16 %v689
    %s692 = scalar_lea.vmem [#allocation1], 104
    %693 = vst [vmem:[%s692] sm:%s5] %v690
    %s694 = smul.addr 4, 12
    %s695 = scalar_lea.vmem %s0, %s694
    %s696 = sshrl.u32 %s5, 1
    %s697 = sor.u32 %s5, %s696
    %s698 = sand.u32 %s697, 85
    %s699 = sshrl.u32 %s698, 1
    %s700 = sor.u32 %s698, %s699
    %s701 = sand.u32 51, %s700
    %s702 = sshrl.u32 %s701, 2
    %s703 = sor.u32 %s701, %s702
    %s704 = sand.u32 15, %s703
    %v705 = vld [vmem:[%s695] sm:%s704]
    %v706 = vunpack.c.l.bf16 %v705
    %v707 = vunpack.c.h.bf16 %v705
    %s708 = scalar_lea.vmem [#allocation1], 96
    %709 = vst [vmem:[%s708] sm:%s5] %v706
    %s710 = smul.addr 4, 11
    %s711 = scalar_lea.vmem %s0, %s710
    %s712 = sshrl.u32 %s5, 1
    %s713 = sor.u32 %s5, %s712
    %s714 = sand.u32 %s713, 85
    %s715 = sshrl.u32 %s714, 1
    %s716 = sor.u32 %s714, %s715
    %s717 = sand.u32 51, %s716
    %s718 = sshrl.u32 %s717, 2
    %s719 = sor.u32 %s717, %s718
    %s720 = sand.u32 15, %s719
    %v721 = vld [vmem:[%s711] sm:%s720]
    %v722 = vunpack.c.l.bf16 %v721
    %v723 = vunpack.c.h.bf16 %v721
    %s724 = scalar_lea.vmem [#allocation1], 88
    %725 = vst [vmem:[%s724] sm:%s5] %v722
    %s726 = smul.addr 4, 10
    %s727 = scalar_lea.vmem %s0, %s726
    %s728 = sshrl.u32 %s5, 1
    %s729 = sor.u32 %s5, %s728
    %s730 = sand.u32 %s729, 85
    %s731 = sshrl.u32 %s730, 1
    %s732 = sor.u32 %s730, %s731
    %s733 = sand.u32 51, %s732
    %s734 = sshrl.u32 %s733, 2
    %s735 = sor.u32 %s733, %s734
    %s736 = sand.u32 15, %s735
    %v737 = vld [vmem:[%s727] sm:%s736]
    %v738 = vunpack.c.l.bf16 %v737
    %v739 = vunpack.c.h.bf16 %v737
    %s740 = scalar_lea.vmem [#allocation1], 80
    %741 = vst [vmem:[%s740] sm:%s5] %v738
    %s742 = smul.addr 4, 9
    %s743 = scalar_lea.vmem %s0, %s742
    %s744 = sshrl.u32 %s5, 1
    %s745 = sor.u32 %s5, %s744
    %s746 = sand.u32 %s745, 85
    %s747 = sshrl.u32 %s746, 1
    %s748 = sor.u32 %s746, %s747
    %s749 = sand.u32 51, %s748
    %s750 = sshrl.u32 %s749, 2
    %s751 = sor.u32 %s749, %s750
    %s752 = sand.u32 15, %s751
    %v753 = vld [vmem:[%s743] sm:%s752]
    %v754 = vunpack.c.l.bf16 %v753
    %v755 = vunpack.c.h.bf16 %v753
    %s756 = scalar_lea.vmem [#allocation1], 72
    %757 = vst [vmem:[%s756] sm:%s5] %v754
    %s758 = smul.addr 4, 8
    %s759 = scalar_lea.vmem %s0, %s758
    %s760 = sshrl.u32 %s5, 1
    %s761 = sor.u32 %s5, %s760
    %s762 = sand.u32 %s761, 85
    %s763 = sshrl.u32 %s762, 1
    %s764 = sor.u32 %s762, %s763
    %s765 = sand.u32 51, %s764
    %s766 = sshrl.u32 %s765, 2
    %s767 = sor.u32 %s765, %s766
    %s768 = sand.u32 15, %s767
    %v769 = vld [vmem:[%s759] sm:%s768]
    %v770 = vunpack.c.l.bf16 %v769
    %v771 = vunpack.c.h.bf16 %v769
    %s772 = scalar_lea.vmem [#allocation1], 64
    %773 = vst [vmem:[%s772] sm:%s5] %v770
    %s774 = smul.addr 4, 7
    %s775 = scalar_lea.vmem %s0, %s774
    %s776 = sshrl.u32 %s5, 1
    %s777 = sor.u32 %s5, %s776
    %s778 = sand.u32 %s777, 85
    %s779 = sshrl.u32 %s778, 1
    %s780 = sor.u32 %s778, %s779
    %s781 = sand.u32 51, %s780
    %s782 = sshrl.u32 %s781, 2
    %s783 = sor.u32 %s781, %s782
    %s784 = sand.u32 15, %s783
    %v785 = vld [vmem:[%s775] sm:%s784]
    %v786 = vunpack.c.l.bf16 %v785
    %v787 = vunpack.c.h.bf16 %v785
    %s788 = scalar_lea.vmem [#allocation1], 56
    %789 = vst [vmem:[%s788] sm:%s5] %v786
    %s790 = smul.addr 4, 6
    %s791 = scalar_lea.vmem %s0, %s790
    %s792 = sshrl.u32 %s5, 1
    %s793 = sor.u32 %s5, %s792
    %s794 = sand.u32 %s793, 85
    %s795 = sshrl.u32 %s794, 1
    %s796 = sor.u32 %s794, %s795
    %s797 = sand.u32 51, %s796
    %s798 = sshrl.u32 %s797, 2
    %s799 = sor.u32 %s797, %s798
    %s800 = sand.u32 15, %s799
    %v801 = vld [vmem:[%s791] sm:%s800]
    %v802 = vunpack.c.l.bf16 %v801
    %v803 = vunpack.c.h.bf16 %v801
    %s804 = scalar_lea.vmem [#allocation1], 48
    %805 = vst [vmem:[%s804] sm:%s5] %v802
    %s806 = smul.addr 4, 5
    %s807 = scalar_lea.vmem %s0, %s806
    %s808 = sshrl.u32 %s5, 1
    %s809 = sor.u32 %s5, %s808
    %s810 = sand.u32 %s809, 85
    %s811 = sshrl.u32 %s810, 1
    %s812 = sor.u32 %s810, %s811
    %s813 = sand.u32 51, %s812
    %s814 = sshrl.u32 %s813, 2
    %s815 = sor.u32 %s813, %s814
    %s816 = sand.u32 15, %s815
    %v817 = vld [vmem:[%s807] sm:%s816]
    %v818 = vunpack.c.l.bf16 %v817
    %v819 = vunpack.c.h.bf16 %v817
    %s820 = scalar_lea.vmem [#allocation1], 40
    %821 = vst [vmem:[%s820] sm:%s5] %v818
    %s822 = smul.addr 4, 4
    %s823 = scalar_lea.vmem %s0, %s822
    %s824 = sshrl.u32 %s5, 1
    %s825 = sor.u32 %s5, %s824
    %s826 = sand.u32 %s825, 85
    %s827 = sshrl.u32 %s826, 1
    %s828 = sor.u32 %s826, %s827
    %s829 = sand.u32 51, %s828
    %s830 = sshrl.u32 %s829, 2
    %s831 = sor.u32 %s829, %s830
    %s832 = sand.u32 15, %s831
    %v833 = vld [vmem:[%s823] sm:%s832]
    %v834 = vunpack.c.l.bf16 %v833
    %v835 = vunpack.c.h.bf16 %v833
    %s836 = scalar_lea.vmem [#allocation1], 32
    %837 = vst [vmem:[%s836] sm:%s5] %v834
    %s838 = smul.addr 4, 3
    %s839 = scalar_lea.vmem %s0, %s838
    %s840 = sshrl.u32 %s5, 1
    %s841 = sor.u32 %s5, %s840
    %s842 = sand.u32 %s841, 85
    %s843 = sshrl.u32 %s842, 1
    %s844 = sor.u32 %s842, %s843
    %s845 = sand.u32 51, %s844
    %s846 = sshrl.u32 %s845, 2
    %s847 = sor.u32 %s845, %s846
    %s848 = sand.u32 15, %s847
    %v849 = vld [vmem:[%s839] sm:%s848]
    %v850 = vunpack.c.l.bf16 %v849
    %v851 = vunpack.c.h.bf16 %v849
    %s852 = scalar_lea.vmem [#allocation1], 24
    %853 = vst [vmem:[%s852] sm:%s5] %v850
    %s854 = smul.addr 4, 2
    %s855 = scalar_lea.vmem %s0, %s854
    %s856 = sshrl.u32 %s5, 1
    %s857 = sor.u32 %s5, %s856
    %s858 = sand.u32 %s857, 85
    %s859 = sshrl.u32 %s858, 1
    %s860 = sor.u32 %s858, %s859
    %s861 = sand.u32 51, %s860
    %s862 = sshrl.u32 %s861, 2
    %s863 = sor.u32 %s861, %s862
    %s864 = sand.u32 15, %s863
    %v865 = vld [vmem:[%s855] sm:%s864]
    %v866 = vunpack.c.l.bf16 %v865
    %v867 = vunpack.c.h.bf16 %v865
    %s868 = scalar_lea.vmem [#allocation1], 16
    %869 = vst [vmem:[%s868] sm:%s5] %v866
    %s870 = scalar_lea.vmem %s0, 4
    %s871 = sshrl.u32 %s5, 1
    %s872 = sor.u32 %s5, %s871
    %s873 = sand.u32 %s872, 85
    %s874 = sshrl.u32 %s873, 1
    %s875 = sor.u32 %s873, %s874
    %s876 = sand.u32 51, %s875
    %s877 = sshrl.u32 %s876, 2
    %s878 = sor.u32 %s876, %s877
    %s879 = sand.u32 15, %s878
    %v880 = vld [vmem:[%s870] sm:%s879]
    %v881 = vunpack.c.l.bf16 %v880
    %v882 = vunpack.c.h.bf16 %v880
    %s883 = scalar_lea.vmem [#allocation1], 8
    %884 = vst [vmem:[%s883] sm:%s5] %v881
    %s885 = sshrl.u32 %s5, 1
    %s886 = sor.u32 %s5, %s885
    %s887 = sand.u32 %s886, 85
    %s888 = sshrl.u32 %s887, 1
    %s889 = sor.u32 %s887, %s888
    %s890 = sand.u32 51, %s889
    %s891 = sshrl.u32 %s890, 2
    %s892 = sor.u32 %s890, %s891
    %s893 = sand.u32 15, %s892
    %v894 = vld [vmem:[%s0] sm:%s893]
    %v895 = vunpack.c.l.bf16 %v894
    %v896 = vunpack.c.h.bf16 %v894
    %897 = vst [vmem:[#allocation1] sm:%s5] %v895
    %v898 = vld [vmem:[#allocation1] sm:$0xff]
    %vm899 = vcmask 203776
    %900 = vst.msk [vmem:[#allocation0] sm:$0xff] %vm899, %v898
    %s901 = scalar_lea.vmem [#allocation1], 8
    %v902 = vld [vmem:[%s901] sm:$0x3f]
    %vm903 = vcmask 203776
    %s904 = scalar_lea.vmem [#allocation0], 8
    %905 = vst.msk [vmem:[%s904] sm:$0x3f] %vm903, %v902
    %s906 = scalar_lea.vmem [#allocation1], 16
    %v907 = vld [vmem:[%s906] sm:$0xff]
    %vm908 = vcmask 203776
    %s909 = scalar_lea.vmem [#allocation0], 14
    %910 = vst.msk [vmem:[%s909] sm:$0xff] %vm908, %v907
    %s911 = scalar_lea.vmem [#allocation1], 24
    %v912 = vld [vmem:[%s911] sm:$0x3f]
    %vm913 = vcmask 203776
    %s914 = scalar_lea.vmem [#allocation0], 22
    %915 = vst.msk [vmem:[%s914] sm:$0x3f] %vm913, %v912
    %s916 = scalar_lea.vmem [#allocation1], 32
    %v917 = vld [vmem:[%s916] sm:$0xff]
    %vm918 = vcmask 203776
    %s919 = scalar_lea.vmem [#allocation0], 28
    %920 = vst.msk [vmem:[%s919] sm:$0xff] %vm918, %v917
    %s921 = scalar_lea.vmem [#allocation1], 40
    %v922 = vld [vmem:[%s921] sm:$0x3f]
    %vm923 = vcmask 203776
    %s924 = scalar_lea.vmem [#allocation0], 36
    %925 = vst.msk [vmem:[%s924] sm:$0x3f] %vm923, %v922
    %s926 = scalar_lea.vmem [#allocation1], 48
    %v927 = vld [vmem:[%s926] sm:$0xff]
    %vm928 = vcmask 203776
    %s929 = scalar_lea.vmem [#allocation0], 42
    %930 = vst.msk [vmem:[%s929] sm:$0xff] %vm928, %v927
    %s931 = scalar_lea.vmem [#allocation1], 56
    %v932 = vld [vmem:[%s931] sm:$0x3f]
    %vm933 = vcmask 203776
    %s934 = scalar_lea.vmem [#allocation0], 50
    %935 = vst.msk [vmem:[%s934] sm:$0x3f] %vm933, %v932
    %s936 = scalar_lea.vmem [#allocation1], 64
    %v937 = vld [vmem:[%s936] sm:$0xff]
    %vm938 = vcmask 203776
    %s939 = scalar_lea.vmem [#allocation0], 56
    %940 = vst.msk [vmem:[%s939] sm:$0xff] %vm938, %v937
    %s941 = scalar_lea.vmem [#allocation1], 72
    %v942 = vld [vmem:[%s941] sm:$0x3f]
    %vm943 = vcmask 203776
    %s944 = scalar_lea.vmem [#allocation0], 64
    %945 = vst.msk [vmem:[%s944] sm:$0x3f] %vm943, %v942
    %s946 = scalar_lea.vmem [#allocation1], 80
    %v947 = vld [vmem:[%s946] sm:$0xff]
    %vm948 = vcmask 203776
    %s949 = scalar_lea.vmem [#allocation0], 70
    %950 = vst.msk [vmem:[%s949] sm:$0xff] %vm948, %v947
    %s951 = scalar_lea.vmem [#allocation1], 88
    %v952 = vld [vmem:[%s951] sm:$0x3f]
    %vm953 = vcmask 203776
    %s954 = scalar_lea.vmem [#allocation0], 78
    %955 = vst.msk [vmem:[%s954] sm:$0x3f] %vm953, %v952
    %s956 = scalar_lea.vmem [#allocation1], 96
    %v957 = vld [vmem:[%s956] sm:$0xff]
    %vm958 = vcmask 203776
    %s959 = scalar_lea.vmem [#allocation0], 84
    %960 = vst.msk [vmem:[%s959] sm:$0xff] %vm958, %v957
    %s961 = scalar_lea.vmem [#allocation1], 104
    %v962 = vld [vmem:[%s961] sm:$0x3f]
    %vm963 = vcmask 203776
    %s964 = scalar_lea.vmem [#allocation0], 92
    %965 = vst.msk [vmem:[%s964] sm:$0x3f] %vm963, %v962
    %s966 = scalar_lea.vmem [#allocation1], 112
    %v967 = vld [vmem:[%s966] sm:$0xff]
    %vm968 = vcmask 203776
    %s969 = scalar_lea.vmem [#allocation0], 98
    %970 = vst.msk [vmem:[%s969] sm:$0xff] %vm968, %v967
    %s971 = scalar_lea.vmem [#allocation1], 120
    %v972 = vld [vmem:[%s971] sm:$0x3f]
    %vm973 = vcmask 203776
    %s974 = scalar_lea.vmem [#allocation0], 106
    %975 = vst.msk [vmem:[%s974] sm:$0x3f] %vm973, %v972
    %s976 = scalar_lea.vmem [#allocation1], 128
    %v977 = vld [vmem:[%s976] sm:$0xff]
    %vm978 = vcmask 203776
    %s979 = scalar_lea.vmem [#allocation0], 112
    %980 = vst.msk [vmem:[%s979] sm:$0xff] %vm978, %v977
    %s981 = scalar_lea.vmem [#allocation1], 136
    %v982 = vld [vmem:[%s981] sm:$0x3f]
    %vm983 = vcmask 203776
    %s984 = scalar_lea.vmem [#allocation0], 120
    %985 = vst.msk [vmem:[%s984] sm:$0x3f] %vm983, %v982
    %s986 = scalar_lea.vmem [#allocation1], 144
    %v987 = vld [vmem:[%s986] sm:$0xff]
    %vm988 = vcmask 203776
    %s989 = scalar_lea.vmem [#allocation0], 126
    %990 = vst.msk [vmem:[%s989] sm:$0xff] %vm988, %v987
    %s991 = scalar_lea.vmem [#allocation1], 152
    %v992 = vld [vmem:[%s991] sm:$0x3f]
    %vm993 = vcmask 203776
    %s994 = scalar_lea.vmem [#allocation0], 134
    %995 = vst.msk [vmem:[%s994] sm:$0x3f] %vm993, %v992
    %s996 = scalar_lea.vmem [#allocation1], 160
    %v997 = vld [vmem:[%s996] sm:$0xff]
    %vm998 = vcmask 203776
    %s999 = scalar_lea.vmem [#allocation0], 140
    %1000 = vst.msk [vmem:[%s999] sm:$0xff] %vm998, %v997
    %s1001 = scalar_lea.vmem [#allocation1], 168
    %v1002 = vld [vmem:[%s1001] sm:$0x3f]
    %vm1003 = vcmask 203776
    %s1004 = scalar_lea.vmem [#allocation0], 148
    %1005 = vst.msk [vmem:[%s1004] sm:$0x3f] %vm1003, %v1002
    %s1006 = scalar_lea.vmem [#allocation1], 176
    %v1007 = vld [vmem:[%s1006] sm:$0xff]
    %vm1008 = vcmask 203776
    %s1009 = scalar_lea.vmem [#allocation0], 154
    %1010 = vst.msk [vmem:[%s1009] sm:$0xff] %vm1008, %v1007
    %s1011 = scalar_lea.vmem [#allocation1], 184
    %v1012 = vld [vmem:[%s1011] sm:$0x3f]
    %vm1013 = vcmask 203776
    %s1014 = scalar_lea.vmem [#allocation0], 162
    %1015 = vst.msk [vmem:[%s1014] sm:$0x3f] %vm1013, %v1012
    %s1016 = scalar_lea.vmem [#allocation1], 192
    %v1017 = vld [vmem:[%s1016] sm:$0xff]
    %vm1018 = vcmask 203776
    %s1019 = scalar_lea.vmem [#allocation0], 168
    %1020 = vst.msk [vmem:[%s1019] sm:$0xff] %vm1018, %v1017
    %s1021 = scalar_lea.vmem [#allocation1], 200
    %v1022 = vld [vmem:[%s1021] sm:$0x3f]
    %vm1023 = vcmask 203776
    %s1024 = scalar_lea.vmem [#allocation0], 176
    %1025 = vst.msk [vmem:[%s1024] sm:$0x3f] %vm1023, %v1022
    %s1026 = scalar_lea.vmem [#allocation1], 208
    %v1027 = vld [vmem:[%s1026] sm:$0xff]
    %vm1028 = vcmask 203776
    %s1029 = scalar_lea.vmem [#allocation0], 182
    %1030 = vst.msk [vmem:[%s1029] sm:$0xff] %vm1028, %v1027
    %s1031 = scalar_lea.vmem [#allocation1], 216
    %v1032 = vld [vmem:[%s1031] sm:$0x3f]
    %vm1033 = vcmask 203776
    %s1034 = scalar_lea.vmem [#allocation0], 190
    %1035 = vst.msk [vmem:[%s1034] sm:$0x3f] %vm1033, %v1032
    %s1036 = scalar_lea.vmem [#allocation1], 224
    %v1037 = vld [vmem:[%s1036] sm:$0xff]
    %vm1038 = vcmask 203776
    %s1039 = scalar_lea.vmem [#allocation0], 196
    %1040 = vst.msk [vmem:[%s1039] sm:$0xff] %vm1038, %v1037
    %s1041 = scalar_lea.vmem [#allocation1], 232
    %v1042 = vld [vmem:[%s1041] sm:$0x3f]
    %vm1043 = vcmask 203776
    %s1044 = scalar_lea.vmem [#allocation0], 204
    %1045 = vst.msk [vmem:[%s1044] sm:$0x3f] %vm1043, %v1042
    %s1046 = scalar_lea.vmem [#allocation1], 240
    %v1047 = vld [vmem:[%s1046] sm:$0xff]
    %vm1048 = vcmask 203776
    %s1049 = scalar_lea.vmem [#allocation0], 210
    %1050 = vst.msk [vmem:[%s1049] sm:$0xff] %vm1048, %v1047
    %s1051 = scalar_lea.vmem [#allocation1], 248
    %v1052 = vld [vmem:[%s1051] sm:$0x3f]
    %vm1053 = vcmask 203776
    %s1054 = scalar_lea.vmem [#allocation0], 218
    %1055 = vst.msk [vmem:[%s1054] sm:$0x3f] %vm1053, %v1052
    %s1056 = scalar_lea.vmem [#allocation1], 256
    %v1057 = vld [vmem:[%s1056] sm:$0xff]
    %vm1058 = vcmask 203776
    %s1059 = scalar_lea.vmem [#allocation0], 224
    %1060 = vst.msk [vmem:[%s1059] sm:$0xff] %vm1058, %v1057
    %s1061 = scalar_lea.vmem [#allocation1], 264
    %v1062 = vld [vmem:[%s1061] sm:$0x3f]
    %vm1063 = vcmask 203776
    %s1064 = scalar_lea.vmem [#allocation0], 232
    %1065 = vst.msk [vmem:[%s1064] sm:$0x3f] %vm1063, %v1062
    %s1066 = scalar_lea.vmem [#allocation1], 272
    %v1067 = vld [vmem:[%s1066] sm:$0xff]
    %vm1068 = vcmask 203776
    %s1069 = scalar_lea.vmem [#allocation0], 238
    %1070 = vst.msk [vmem:[%s1069] sm:$0xff] %vm1068, %v1067
    %s1071 = scalar_lea.vmem [#allocation1], 280
    %v1072 = vld [vmem:[%s1071] sm:$0x3f]
    %vm1073 = vcmask 203776
    %s1074 = scalar_lea.vmem [#allocation0], 246
    %1075 = vst.msk [vmem:[%s1074] sm:$0x3f] %vm1073, %v1072
    %s1076 = scalar_lea.vmem [#allocation1], 288
    %v1077 = vld [vmem:[%s1076] sm:$0xff]
    %vm1078 = vcmask 203776
    %s1079 = scalar_lea.vmem [#allocation0], 252
    %1080 = vst.msk [vmem:[%s1079] sm:$0xff] %vm1078, %v1077
    %s1081 = scalar_lea.vmem [#allocation1], 296
    %v1082 = vld [vmem:[%s1081] sm:$0x3f]
    %vm1083 = vcmask 203776
    %s1084 = scalar_lea.vmem [#allocation0], 260
    %1085 = vst.msk [vmem:[%s1084] sm:$0x3f] %vm1083, %v1082
    %s1086 = scalar_lea.vmem [#allocation1], 304
    %v1087 = vld [vmem:[%s1086] sm:$0xff]
    %vm1088 = vcmask 203776
    %s1089 = scalar_lea.vmem [#allocation0], 266
    %1090 = vst.msk [vmem:[%s1089] sm:$0xff] %vm1088, %v1087
    %s1091 = scalar_lea.vmem [#allocation1], 312
    %v1092 = vld [vmem:[%s1091] sm:$0x3f]
    %vm1093 = vcmask 203776
    %s1094 = scalar_lea.vmem [#allocation0], 274
    %1095 = vst.msk [vmem:[%s1094] sm:$0x3f] %vm1093, %v1092
    %s1096 = scalar_lea.vmem [#allocation1], 320
    %v1097 = vld [vmem:[%s1096] sm:$0xff]
    %vm1098 = vcmask 203776
    %s1099 = scalar_lea.vmem [#allocation0], 280
    %1100 = vst.msk [vmem:[%s1099] sm:$0xff] %vm1098, %v1097
    %s1101 = scalar_lea.vmem [#allocation1], 328
    %v1102 = vld [vmem:[%s1101] sm:$0x3f]
    %vm1103 = vcmask 203776
    %s1104 = scalar_lea.vmem [#allocation0], 288
    %1105 = vst.msk [vmem:[%s1104] sm:$0x3f] %vm1103, %v1102
    %s1106 = scalar_lea.vmem [#allocation1], 336
    %v1107 = vld [vmem:[%s1106] sm:$0xff]
    %vm1108 = vcmask 203776
    %s1109 = scalar_lea.vmem [#allocation0], 294
    %1110 = vst.msk [vmem:[%s1109] sm:$0xff] %vm1108, %v1107
    %s1111 = scalar_lea.vmem [#allocation1], 344
    %v1112 = vld [vmem:[%s1111] sm:$0x3f]
    %vm1113 = vcmask 203776
    %s1114 = scalar_lea.vmem [#allocation0], 302
    %1115 = vst.msk [vmem:[%s1114] sm:$0x3f] %vm1113, %v1112
    %s1116 = scalar_lea.vmem [#allocation1], 352
    %v1117 = vld [vmem:[%s1116] sm:$0xff]
    %vm1118 = vcmask 203776
    %s1119 = scalar_lea.vmem [#allocation0], 308
    %1120 = vst.msk [vmem:[%s1119] sm:$0xff] %vm1118, %v1117
    %s1121 = scalar_lea.vmem [#allocation1], 360
    %v1122 = vld [vmem:[%s1121] sm:$0x3f]
    %vm1123 = vcmask 203776
    %s1124 = scalar_lea.vmem [#allocation0], 316
    %1125 = vst.msk [vmem:[%s1124] sm:$0x3f] %vm1123, %v1122
    %s1126 = scalar_lea.vmem [#allocation1], 368
    %v1127 = vld [vmem:[%s1126] sm:$0xff]
    %vm1128 = vcmask 203776
    %s1129 = scalar_lea.vmem [#allocation0], 322
    %1130 = vst.msk [vmem:[%s1129] sm:$0xff] %vm1128, %v1127
    %s1131 = scalar_lea.vmem [#allocation1], 376
    %v1132 = vld [vmem:[%s1131] sm:$0x3f]
    %vm1133 = vcmask 203776
    %s1134 = scalar_lea.vmem [#allocation0], 330
    %1135 = vst.msk [vmem:[%s1134] sm:$0x3f] %vm1133, %v1132
    %s1136 = scalar_lea.vmem [#allocation1], 384
    %v1137 = vld [vmem:[%s1136] sm:$0xff]
    %vm1138 = vcmask 203776
    %s1139 = scalar_lea.vmem [#allocation0], 336
    %1140 = vst.msk [vmem:[%s1139] sm:$0xff] %vm1138, %v1137
    %s1141 = scalar_lea.vmem [#allocation1], 392
    %v1142 = vld [vmem:[%s1141] sm:$0x3f]
    %vm1143 = vcmask 203776
    %s1144 = scalar_lea.vmem [#allocation0], 344
    %1145 = vst.msk [vmem:[%s1144] sm:$0x3f] %vm1143, %v1142
    %s1146 = scalar_lea.vmem [#allocation1], 400
    %v1147 = vld [vmem:[%s1146] sm:$0xff]
    %vm1148 = vcmask 203776
    %s1149 = scalar_lea.vmem [#allocation0], 350
    %1150 = vst.msk [vmem:[%s1149] sm:$0xff] %vm1148, %v1147
    %s1151 = scalar_lea.vmem [#allocation1], 408
    %v1152 = vld [vmem:[%s1151] sm:$0x3f]
    %vm1153 = vcmask 203776
    %s1154 = scalar_lea.vmem [#allocation0], 358
    %1155 = vst.msk [vmem:[%s1154] sm:$0x3f] %vm1153, %v1152
    %s1156 = scalar_lea.vmem [#allocation1], 416
    %v1157 = vld [vmem:[%s1156] sm:$0xff]
    %vm1158 = vcmask 203776
    %s1159 = scalar_lea.vmem [#allocation0], 364
    %1160 = vst.msk [vmem:[%s1159] sm:$0xff] %vm1158, %v1157
    %s1161 = scalar_lea.vmem [#allocation1], 424
    %v1162 = vld [vmem:[%s1161] sm:$0x3f]
    %vm1163 = vcmask 203776
    %s1164 = scalar_lea.vmem [#allocation0], 372
    %1165 = vst.msk [vmem:[%s1164] sm:$0x3f] %vm1163, %v1162
    %s1166 = scalar_lea.vmem [#allocation1], 432
    %v1167 = vld [vmem:[%s1166] sm:$0xff]
    %vm1168 = vcmask 203776
    %s1169 = scalar_lea.vmem [#allocation0], 378
    %1170 = vst.msk [vmem:[%s1169] sm:$0xff] %vm1168, %v1167
    %s1171 = scalar_lea.vmem [#allocation1], 440
    %v1172 = vld [vmem:[%s1171] sm:$0x3f]
    %vm1173 = vcmask 203776
    %s1174 = scalar_lea.vmem [#allocation0], 386
    %1175 = vst.msk [vmem:[%s1174] sm:$0x3f] %vm1173, %v1172
    %s1177 = smul.u32 4, 2
    %s1178 = sshll.u32 1, %s1177
    %s1179 = ssub.s32 %s1178, 1
    %s1180 = sshrl.u32 %s1177, 1
    %v1181 = vld [vmem:[#allocation0] sm:%s1179]
    %v1182 = vpack.c.bf16 0.0, %v1181
    %s1183 = sshll.u32 1, %s1180
    %s1184 = ssub.s32 %s1183, 1
    %1185 = vst [vmem:[%s1] sm:%s1184] %v1182
    %s1186 = scalar_lea.vmem [#allocation0], 8
    %v1187 = vld [vmem:[%s1186] sm:%s1179]
    %v1188 = vpack.c.bf16 0.0, %v1187
    %s1189 = sshll.u32 1, %s1180
    %s1190 = ssub.s32 %s1189, 1
    %s1191 = scalar_lea.vmem %s1, 4
    %1192 = vst [vmem:[%s1191] sm:%s1190] %v1188
    %s1193 = scalar_lea.vmem [#allocation0], 16
    %v1194 = vld [vmem:[%s1193] sm:%s1179]
    %v1195 = vpack.c.bf16 0.0, %v1194
    %s1196 = sshll.u32 1, %s1180
    %s1197 = ssub.s32 %s1196, 1
    %s1198 = smul.addr 4, 2
    %s1199 = scalar_lea.vmem %s1, %s1198
    %1200 = vst [vmem:[%s1199] sm:%s1197] %v1195
    %s1201 = scalar_lea.vmem [#allocation0], 24
    %v1202 = vld [vmem:[%s1201] sm:%s1179]
    %v1203 = vpack.c.bf16 0.0, %v1202
    %s1204 = sshll.u32 1, %s1180
    %s1205 = ssub.s32 %s1204, 1
    %s1206 = smul.addr 4, 3
    %s1207 = scalar_lea.vmem %s1, %s1206
    %1208 = vst [vmem:[%s1207] sm:%s1205] %v1203
    %s1209 = scalar_lea.vmem [#allocation0], 32
    %v1210 = vld [vmem:[%s1209] sm:%s1179]
    %v1211 = vpack.c.bf16 0.0, %v1210
    %s1212 = sshll.u32 1, %s1180
    %s1213 = ssub.s32 %s1212, 1
    %s1214 = smul.addr 4, 4
    %s1215 = scalar_lea.vmem %s1, %s1214
    %1216 = vst [vmem:[%s1215] sm:%s1213] %v1211
    %s1217 = scalar_lea.vmem [#allocation0], 40
    %v1218 = vld [vmem:[%s1217] sm:%s1179]
    %v1219 = vpack.c.bf16 0.0, %v1218
    %s1220 = sshll.u32 1, %s1180
    %s1221 = ssub.s32 %s1220, 1
    %s1222 = smul.addr 4, 5
    %s1223 = scalar_lea.vmem %s1, %s1222
    %1224 = vst [vmem:[%s1223] sm:%s1221] %v1219
    %s1225 = scalar_lea.vmem [#allocation0], 48
    %v1226 = vld [vmem:[%s1225] sm:%s1179]
    %v1227 = vpack.c.bf16 0.0, %v1226
    %s1228 = sshll.u32 1, %s1180
    %s1229 = ssub.s32 %s1228, 1
    %s1230 = smul.addr 4, 6
    %s1231 = scalar_lea.vmem %s1, %s1230
    %1232 = vst [vmem:[%s1231] sm:%s1229] %v1227
    %s1233 = scalar_lea.vmem [#allocation0], 56
    %v1234 = vld [vmem:[%s1233] sm:%s1179]
    %v1235 = vpack.c.bf16 0.0, %v1234
    %s1236 = sshll.u32 1, %s1180
    %s1237 = ssub.s32 %s1236, 1
    %s1238 = smul.addr 4, 7
    %s1239 = scalar_lea.vmem %s1, %s1238
    %1240 = vst [vmem:[%s1239] sm:%s1237] %v1235
    %s1241 = scalar_lea.vmem [#allocation0], 64
    %v1242 = vld [vmem:[%s1241] sm:%s1179]
    %v1243 = vpack.c.bf16 0.0, %v1242
    %s1244 = sshll.u32 1, %s1180
    %s1245 = ssub.s32 %s1244, 1
    %s1246 = smul.addr 4, 8
    %s1247 = scalar_lea.vmem %s1, %s1246
    %1248 = vst [vmem:[%s1247] sm:%s1245] %v1243
    %s1249 = scalar_lea.vmem [#allocation0], 72
    %v1250 = vld [vmem:[%s1249] sm:%s1179]
    %v1251 = vpack.c.bf16 0.0, %v1250
    %s1252 = sshll.u32 1, %s1180
    %s1253 = ssub.s32 %s1252, 1
    %s1254 = smul.addr 4, 9
    %s1255 = scalar_lea.vmem %s1, %s1254
    %1256 = vst [vmem:[%s1255] sm:%s1253] %v1251
    %s1257 = scalar_lea.vmem [#allocation0], 80
    %v1258 = vld [vmem:[%s1257] sm:%s1179]
    %v1259 = vpack.c.bf16 0.0, %v1258
    %s1260 = sshll.u32 1, %s1180
    %s1261 = ssub.s32 %s1260, 1
    %s1262 = smul.addr 4, 10
    %s1263 = scalar_lea.vmem %s1, %s1262
    %1264 = vst [vmem:[%s1263] sm:%s1261] %v1259
    %s1265 = scalar_lea.vmem [#allocation0], 88
    %v1266 = vld [vmem:[%s1265] sm:%s1179]
    %v1267 = vpack.c.bf16 0.0, %v1266
    %s1268 = sshll.u32 1, %s1180
    %s1269 = ssub.s32 %s1268, 1
    %s1270 = smul.addr 4, 11
    %s1271 = scalar_lea.vmem %s1, %s1270
    %1272 = vst [vmem:[%s1271] sm:%s1269] %v1267
    %s1273 = scalar_lea.vmem [#allocation0], 96
    %v1274 = vld [vmem:[%s1273] sm:%s1179]
    %v1275 = vpack.c.bf16 0.0, %v1274
    %s1276 = sshll.u32 1, %s1180
    %s1277 = ssub.s32 %s1276, 1
    %s1278 = smul.addr 4, 12
    %s1279 = scalar_lea.vmem %s1, %s1278
    %1280 = vst [vmem:[%s1279] sm:%s1277] %v1275
    %s1281 = scalar_lea.vmem [#allocation0], 104
    %v1282 = vld [vmem:[%s1281] sm:%s1179]
    %v1283 = vpack.c.bf16 0.0, %v1282
    %s1284 = sshll.u32 1, %s1180
    %s1285 = ssub.s32 %s1284, 1
    %s1286 = smul.addr 4, 13
    %s1287 = scalar_lea.vmem %s1, %s1286
    %1288 = vst [vmem:[%s1287] sm:%s1285] %v1283
    %s1289 = scalar_lea.vmem [#allocation0], 112
    %v1290 = vld [vmem:[%s1289] sm:%s1179]
    %v1291 = vpack.c.bf16 0.0, %v1290
    %s1292 = sshll.u32 1, %s1180
    %s1293 = ssub.s32 %s1292, 1
    %s1294 = smul.addr 4, 14
    %s1295 = scalar_lea.vmem %s1, %s1294
    %1296 = vst [vmem:[%s1295] sm:%s1293] %v1291
    %s1297 = scalar_lea.vmem [#allocation0], 120
    %v1298 = vld [vmem:[%s1297] sm:%s1179]
    %v1299 = vpack.c.bf16 0.0, %v1298
    %s1300 = sshll.u32 1, %s1180
    %s1301 = ssub.s32 %s1300, 1
    %s1302 = smul.addr 4, 15
    %s1303 = scalar_lea.vmem %s1, %s1302
    %1304 = vst [vmem:[%s1303] sm:%s1301] %v1299
    %s1305 = scalar_lea.vmem [#allocation0], 128
    %v1306 = vld [vmem:[%s1305] sm:%s1179]
    %v1307 = vpack.c.bf16 0.0, %v1306
    %s1308 = sshll.u32 1, %s1180
    %s1309 = ssub.s32 %s1308, 1
    %s1310 = smul.addr 4, 16
    %s1311 = scalar_lea.vmem %s1, %s1310
    %1312 = vst [vmem:[%s1311] sm:%s1309] %v1307
    %s1313 = scalar_lea.vmem [#allocation0], 136
    %v1314 = vld [vmem:[%s1313] sm:%s1179]
    %v1315 = vpack.c.bf16 0.0, %v1314
    %s1316 = sshll.u32 1, %s1180
    %s1317 = ssub.s32 %s1316, 1
    %s1318 = smul.addr 4, 17
    %s1319 = scalar_lea.vmem %s1, %s1318
    %1320 = vst [vmem:[%s1319] sm:%s1317] %v1315
    %s1321 = scalar_lea.vmem [#allocation0], 144
    %v1322 = vld [vmem:[%s1321] sm:%s1179]
    %v1323 = vpack.c.bf16 0.0, %v1322
    %s1324 = sshll.u32 1, %s1180
    %s1325 = ssub.s32 %s1324, 1
    %s1326 = smul.addr 4, 18
    %s1327 = scalar_lea.vmem %s1, %s1326
    %1328 = vst [vmem:[%s1327] sm:%s1325] %v1323
    %s1329 = scalar_lea.vmem [#allocation0], 152
    %v1330 = vld [vmem:[%s1329] sm:%s1179]
    %v1331 = vpack.c.bf16 0.0, %v1330
    %s1332 = sshll.u32 1, %s1180
    %s1333 = ssub.s32 %s1332, 1
    %s1334 = smul.addr 4, 19
    %s1335 = scalar_lea.vmem %s1, %s1334
    %1336 = vst [vmem:[%s1335] sm:%s1333] %v1331
    %s1337 = scalar_lea.vmem [#allocation0], 160
    %v1338 = vld [vmem:[%s1337] sm:%s1179]
    %v1339 = vpack.c.bf16 0.0, %v1338
    %s1340 = sshll.u32 1, %s1180
    %s1341 = ssub.s32 %s1340, 1
    %s1342 = smul.addr 4, 20
    %s1343 = scalar_lea.vmem %s1, %s1342
    %1344 = vst [vmem:[%s1343] sm:%s1341] %v1339
    %s1345 = scalar_lea.vmem [#allocation0], 168
    %v1346 = vld [vmem:[%s1345] sm:%s1179]
    %v1347 = vpack.c.bf16 0.0, %v1346
    %s1348 = sshll.u32 1, %s1180
    %s1349 = ssub.s32 %s1348, 1
    %s1350 = smul.addr 4, 21
    %s1351 = scalar_lea.vmem %s1, %s1350
    %1352 = vst [vmem:[%s1351] sm:%s1349] %v1347
    %s1353 = scalar_lea.vmem [#allocation0], 176
    %v1354 = vld [vmem:[%s1353] sm:%s1179]
    %v1355 = vpack.c.bf16 0.0, %v1354
    %s1356 = sshll.u32 1, %s1180
    %s1357 = ssub.s32 %s1356, 1
    %s1358 = smul.addr 4, 22
    %s1359 = scalar_lea.vmem %s1, %s1358
    %1360 = vst [vmem:[%s1359] sm:%s1357] %v1355
    %s1361 = scalar_lea.vmem [#allocation0], 184
    %v1362 = vld [vmem:[%s1361] sm:%s1179]
    %v1363 = vpack.c.bf16 0.0, %v1362
    %s1364 = sshll.u32 1, %s1180
    %s1365 = ssub.s32 %s1364, 1
    %s1366 = smul.addr 4, 23
    %s1367 = scalar_lea.vmem %s1, %s1366
    %1368 = vst [vmem:[%s1367] sm:%s1365] %v1363
    %s1369 = scalar_lea.vmem [#allocation0], 192
    %v1370 = vld [vmem:[%s1369] sm:%s1179]
    %v1371 = vpack.c.bf16 0.0, %v1370
    %s1372 = sshll.u32 1, %s1180
    %s1373 = ssub.s32 %s1372, 1
    %s1374 = smul.addr 4, 24
    %s1375 = scalar_lea.vmem %s1, %s1374
    %1376 = vst [vmem:[%s1375] sm:%s1373] %v1371
    %s1377 = scalar_lea.vmem [#allocation0], 200
    %v1378 = vld [vmem:[%s1377] sm:%s1179]
    %v1379 = vpack.c.bf16 0.0, %v1378
    %s1380 = sshll.u32 1, %s1180
    %s1381 = ssub.s32 %s1380, 1
    %s1382 = smul.addr 4, 25
    %s1383 = scalar_lea.vmem %s1, %s1382
    %1384 = vst [vmem:[%s1383] sm:%s1381] %v1379
    %s1385 = scalar_lea.vmem [#allocation0], 208
    %v1386 = vld [vmem:[%s1385] sm:%s1179]
    %v1387 = vpack.c.bf16 0.0, %v1386
    %s1388 = sshll.u32 1, %s1180
    %s1389 = ssub.s32 %s1388, 1
    %s1390 = smul.addr 4, 26
    %s1391 = scalar_lea.vmem %s1, %s1390
    %1392 = vst [vmem:[%s1391] sm:%s1389] %v1387
    %s1393 = scalar_lea.vmem [#allocation0], 216
    %v1394 = vld [vmem:[%s1393] sm:%s1179]
    %v1395 = vpack.c.bf16 0.0, %v1394
    %s1396 = sshll.u32 1, %s1180
    %s1397 = ssub.s32 %s1396, 1
    %s1398 = smul.addr 4, 27
    %s1399 = scalar_lea.vmem %s1, %s1398
    %1400 = vst [vmem:[%s1399] sm:%s1397] %v1395
    %s1401 = scalar_lea.vmem [#allocation0], 224
    %v1402 = vld [vmem:[%s1401] sm:%s1179]
    %v1403 = vpack.c.bf16 0.0, %v1402
    %s1404 = sshll.u32 1, %s1180
    %s1405 = ssub.s32 %s1404, 1
    %s1406 = smul.addr 4, 28
    %s1407 = scalar_lea.vmem %s1, %s1406
    %1408 = vst [vmem:[%s1407] sm:%s1405] %v1403
    %s1409 = scalar_lea.vmem [#allocation0], 232
    %v1410 = vld [vmem:[%s1409] sm:%s1179]
    %v1411 = vpack.c.bf16 0.0, %v1410
    %s1412 = sshll.u32 1, %s1180
    %s1413 = ssub.s32 %s1412, 1
    %s1414 = smul.addr 4, 29
    %s1415 = scalar_lea.vmem %s1, %s1414
    %1416 = vst [vmem:[%s1415] sm:%s1413] %v1411
    %s1417 = scalar_lea.vmem [#allocation0], 240
    %v1418 = vld [vmem:[%s1417] sm:%s1179]
    %v1419 = vpack.c.bf16 0.0, %v1418
    %s1420 = sshll.u32 1, %s1180
    %s1421 = ssub.s32 %s1420, 1
    %s1422 = smul.addr 4, 30
    %s1423 = scalar_lea.vmem %s1, %s1422
    %1424 = vst [vmem:[%s1423] sm:%s1421] %v1419
    %s1425 = scalar_lea.vmem [#allocation0], 248
    %v1426 = vld [vmem:[%s1425] sm:%s1179]
    %v1427 = vpack.c.bf16 0.0, %v1426
    %s1428 = sshll.u32 1, %s1180
    %s1429 = ssub.s32 %s1428, 1
    %s1430 = smul.addr 4, 31
    %s1431 = scalar_lea.vmem %s1, %s1430
    %1432 = vst [vmem:[%s1431] sm:%s1429] %v1427
    %s1433 = scalar_lea.vmem [#allocation0], 256
    %v1434 = vld [vmem:[%s1433] sm:%s1179]
    %v1435 = vpack.c.bf16 0.0, %v1434
    %s1436 = sshll.u32 1, %s1180
    %s1437 = ssub.s32 %s1436, 1
    %s1438 = smul.addr 4, 32
    %s1439 = scalar_lea.vmem %s1, %s1438
    %1440 = vst [vmem:[%s1439] sm:%s1437] %v1435
    %s1441 = scalar_lea.vmem [#allocation0], 264
    %v1442 = vld [vmem:[%s1441] sm:%s1179]
    %v1443 = vpack.c.bf16 0.0, %v1442
    %s1444 = sshll.u32 1, %s1180
    %s1445 = ssub.s32 %s1444, 1
    %s1446 = smul.addr 4, 33
    %s1447 = scalar_lea.vmem %s1, %s1446
    %1448 = vst [vmem:[%s1447] sm:%s1445] %v1443
    %s1449 = scalar_lea.vmem [#allocation0], 272
    %v1450 = vld [vmem:[%s1449] sm:%s1179]
    %v1451 = vpack.c.bf16 0.0, %v1450
    %s1452 = sshll.u32 1, %s1180
    %s1453 = ssub.s32 %s1452, 1
    %s1454 = smul.addr 4, 34
    %s1455 = scalar_lea.vmem %s1, %s1454
    %1456 = vst [vmem:[%s1455] sm:%s1453] %v1451
    %s1457 = scalar_lea.vmem [#allocation0], 280
    %v1458 = vld [vmem:[%s1457] sm:%s1179]
    %v1459 = vpack.c.bf16 0.0, %v1458
    %s1460 = sshll.u32 1, %s1180
    %s1461 = ssub.s32 %s1460, 1
    %s1462 = smul.addr 4, 35
    %s1463 = scalar_lea.vmem %s1, %s1462
    %1464 = vst [vmem:[%s1463] sm:%s1461] %v1459
    %s1465 = scalar_lea.vmem [#allocation0], 288
    %v1466 = vld [vmem:[%s1465] sm:%s1179]
    %v1467 = vpack.c.bf16 0.0, %v1466
    %s1468 = sshll.u32 1, %s1180
    %s1469 = ssub.s32 %s1468, 1
    %s1470 = smul.addr 4, 36
    %s1471 = scalar_lea.vmem %s1, %s1470
    %1472 = vst [vmem:[%s1471] sm:%s1469] %v1467
    %s1473 = scalar_lea.vmem [#allocation0], 296
    %v1474 = vld [vmem:[%s1473] sm:%s1179]
    %v1475 = vpack.c.bf16 0.0, %v1474
    %s1476 = sshll.u32 1, %s1180
    %s1477 = ssub.s32 %s1476, 1
    %s1478 = smul.addr 4, 37
    %s1479 = scalar_lea.vmem %s1, %s1478
    %1480 = vst [vmem:[%s1479] sm:%s1477] %v1475
    %s1481 = scalar_lea.vmem [#allocation0], 304
    %v1482 = vld [vmem:[%s1481] sm:%s1179]
    %v1483 = vpack.c.bf16 0.0, %v1482
    %s1484 = sshll.u32 1, %s1180
    %s1485 = ssub.s32 %s1484, 1
    %s1486 = smul.addr 4, 38
    %s1487 = scalar_lea.vmem %s1, %s1486
    %1488 = vst [vmem:[%s1487] sm:%s1485] %v1483
    %s1489 = scalar_lea.vmem [#allocation0], 312
    %v1490 = vld [vmem:[%s1489] sm:%s1179]
    %v1491 = vpack.c.bf16 0.0, %v1490
    %s1492 = sshll.u32 1, %s1180
    %s1493 = ssub.s32 %s1492, 1
    %s1494 = smul.addr 4, 39
    %s1495 = scalar_lea.vmem %s1, %s1494
    %1496 = vst [vmem:[%s1495] sm:%s1493] %v1491
    %s1497 = scalar_lea.vmem [#allocation0], 320
    %v1498 = vld [vmem:[%s1497] sm:%s1179]
    %v1499 = vpack.c.bf16 0.0, %v1498
    %s1500 = sshll.u32 1, %s1180
    %s1501 = ssub.s32 %s1500, 1
    %s1502 = smul.addr 4, 40
    %s1503 = scalar_lea.vmem %s1, %s1502
    %1504 = vst [vmem:[%s1503] sm:%s1501] %v1499
    %s1505 = scalar_lea.vmem [#allocation0], 328
    %v1506 = vld [vmem:[%s1505] sm:%s1179]
    %v1507 = vpack.c.bf16 0.0, %v1506
    %s1508 = sshll.u32 1, %s1180
    %s1509 = ssub.s32 %s1508, 1
    %s1510 = smul.addr 4, 41
    %s1511 = scalar_lea.vmem %s1, %s1510
    %1512 = vst [vmem:[%s1511] sm:%s1509] %v1507
    %s1513 = scalar_lea.vmem [#allocation0], 336
    %v1514 = vld [vmem:[%s1513] sm:%s1179]
    %v1515 = vpack.c.bf16 0.0, %v1514
    %s1516 = sshll.u32 1, %s1180
    %s1517 = ssub.s32 %s1516, 1
    %s1518 = smul.addr 4, 42
    %s1519 = scalar_lea.vmem %s1, %s1518
    %1520 = vst [vmem:[%s1519] sm:%s1517] %v1515
    %s1521 = scalar_lea.vmem [#allocation0], 344
    %v1522 = vld [vmem:[%s1521] sm:%s1179]
    %v1523 = vpack.c.bf16 0.0, %v1522
    %s1524 = sshll.u32 1, %s1180
    %s1525 = ssub.s32 %s1524, 1
    %s1526 = smul.addr 4, 43
    %s1527 = scalar_lea.vmem %s1, %s1526
    %1528 = vst [vmem:[%s1527] sm:%s1525] %v1523
    %s1529 = scalar_lea.vmem [#allocation0], 352
    %v1530 = vld [vmem:[%s1529] sm:%s1179]
    %v1531 = vpack.c.bf16 0.0, %v1530
    %s1532 = sshll.u32 1, %s1180
    %s1533 = ssub.s32 %s1532, 1
    %s1534 = smul.addr 4, 44
    %s1535 = scalar_lea.vmem %s1, %s1534
    %1536 = vst [vmem:[%s1535] sm:%s1533] %v1531
    %s1537 = scalar_lea.vmem [#allocation0], 360
    %v1538 = vld [vmem:[%s1537] sm:%s1179]
    %v1539 = vpack.c.bf16 0.0, %v1538
    %s1540 = sshll.u32 1, %s1180
    %s1541 = ssub.s32 %s1540, 1
    %s1542 = smul.addr 4, 45
    %s1543 = scalar_lea.vmem %s1, %s1542
    %1544 = vst [vmem:[%s1543] sm:%s1541] %v1539
    %s1545 = scalar_lea.vmem [#allocation0], 368
    %v1546 = vld [vmem:[%s1545] sm:%s1179]
    %v1547 = vpack.c.bf16 0.0, %v1546
    %s1548 = sshll.u32 1, %s1180
    %s1549 = ssub.s32 %s1548, 1
    %s1550 = smul.addr 4, 46
    %s1551 = scalar_lea.vmem %s1, %s1550
    %1552 = vst [vmem:[%s1551] sm:%s1549] %v1547
    %s1553 = scalar_lea.vmem [#allocation0], 376
    %v1554 = vld [vmem:[%s1553] sm:%s1179]
    %v1555 = vpack.c.bf16 0.0, %v1554
    %s1556 = sshll.u32 1, %s1180
    %s1557 = ssub.s32 %s1556, 1
    %s1558 = smul.addr 4, 47
    %s1559 = scalar_lea.vmem %s1, %s1558
    %1560 = vst [vmem:[%s1559] sm:%s1557] %v1555
    %s1561 = scalar_lea.vmem [#allocation0], 384
    %v1562 = vld [vmem:[%s1561] sm:%s1179]
    %v1563 = vpack.c.bf16 0.0, %v1562
    %s1564 = sshll.u32 1, %s1180
    %s1565 = ssub.s32 %s1564, 1
    %s1566 = smul.addr 4, 48
    %s1567 = scalar_lea.vmem %s1, %s1566
    %1568 = vst [vmem:[%s1567] sm:%s1565] %v1563

// kernel: cnn_forward.3
$region0: #{cnn_forward.3}
  #allocation0 [shape = 'u32[]', space=smem, size = 0x4, offset = 0x4, fixed_abs, tag = 'smem constant byte address 0x4 - core index']
  #allocation1 [shape = 'u32[144,128]{1,0:T(1,128)}', space=vmem, size = 0x12000, scoped, tag = 'internal scratch']
  %s0 = inlined_call_operand.vmem [shape: bf16[4,416,25], index: 0, kind: input, shape index: {}]
  %s1 = inlined_call_operand.vmem [shape: bf16[25,16], index: 1, kind: input, shape index: {}]
  %s2 = inlined_call_operand.vmem [shape: f32[1,16], index: 2, kind: input, shape index: {}]
  %s3 = inlined_call_operand.vmem [shape: bf16[416,16], index: 3, kind: output, shape index: {}]
  %s4 = sld [smem:[#allocation0]]
  $region22: #{cnn_forward.3} parent=0
    _
  %s6 = ssub.s32 1, %s4
  %s7 = scalar_select 0, %s6, %s4
  // Predicated region
  $region2: #{cnn_forward.3} parent=0 // pred_check
    _
  $region3: #{cnn_forward.3} parent=0 // pred_check_branch
    %9 = sbr.rel (0) target = $region5
  $region4: #{cnn_forward.3} parent=0 // pred_region
    _
  $region5: #{cnn_forward.3} parent=0 // pred_fallthru
    _
  // Predicated region
  $region6: #{cnn_forward.3} parent=0 // pred_check
    _
  $region7: #{cnn_forward.3} parent=0 // pred_check_branch
    %11 = sbr.rel (0) target = $region9
  $region8: #{cnn_forward.3} parent=0 // pred_region
    _
  $region9: #{cnn_forward.3} parent=0 // pred_fallthru
    _
  // Predicated region
  $region10: #{cnn_forward.3} parent=0 // pred_check
    _
  $region11: #{cnn_forward.3} parent=0 // pred_check_branch
    %13 = sbr.rel (0) target = $region13
  $region12: #{cnn_forward.3} parent=0 // pred_region
    _
  $region13: #{cnn_forward.3} parent=0 // pred_fallthru
    _
  %v15 = vld [vmem:[%s0] sm:$0xf]
  %v16 = vld [vmem:[%s0 + $0x4] sm:$0xf]
  %v17 = vld [vmem:[%s0 + $0x8] sm:$0xf]
  %v18 = vld [vmem:[%s0 + $0xc] sm:$0xf]
  %v19 = vld [vmem:[%s0 + $0x10] sm:$0xf]
  %v20 = vld [vmem:[%s0 + $0x14] sm:$0xf]
  %v21 = vld [vmem:[%s0 + $0x18] sm:$0xf]
  %v22 = vld [vmem:[%s0 + $0x1c] sm:$0xf]
  %v23 = vld [vmem:[%s0 + $0x20] sm:$0xf]
  %v24 = vld [vmem:[%s0 + $0x24] sm:$0xf]
  %v25 = vld [vmem:[%s0 + $0x28] sm:$0xf]
  %v26 = vld [vmem:[%s0 + $0x2c] sm:$0xf]
  %v27 = vld [vmem:[%s0 + $0x30] sm:$0xf]
  %v28 = vld [vmem:[%s0 + $0x34] sm:$0xf]
  %v29 = vld [vmem:[%s0 + $0x38] sm:$0xf]
  %v30 = vld [vmem:[%s0 + $0x3c] sm:$0xf]
  %v31 = vld [vmem:[%s0 + $0x40] sm:$0xf]
  %v32 = vld [vmem:[%s0 + $0x44] sm:$0xf]
  %v33 = vld [vmem:[%s0 + $0x48] sm:$0xf]
  %v34 = vld [vmem:[%s0 + $0x4c] sm:$0xf]
  %v35 = vld [vmem:[%s0 + $0x50] sm:$0xf]
  %v36 = vld [vmem:[%s0 + $0x54] sm:$0xf]
  %v37 = vld [vmem:[%s0 + $0x58] sm:$0xf]
  %v38 = vld [vmem:[%s0 + $0x5c] sm:$0xf]
  %v39 = vld [vmem:[%s0 + $0x60] sm:$0xf]
  %v40 = vld [vmem:[%s0 + $0x64] sm:$0xf]
  %v41 = vld [vmem:[%s0 + $0x68] sm:$0xf]
  %v42 = vld [vmem:[%s0 + $0x6c] sm:$0xf]
  %v43 = vld [vmem:[%s0 + $0x70] sm:$0xf]
  %v44 = vld [vmem:[%s0 + $0x74] sm:$0xf]
  %v45 = vld [vmem:[%s0 + $0x78] sm:$0xf]
  %v46 = vld [vmem:[%s0 + $0x7c] sm:$0xf]
  %v47 = vld [vmem:[%s0 + $0x80] sm:$0xf]
  %v48 = vld [vmem:[%s0 + $0x84] sm:$0xf]
  %v49 = vld [vmem:[%s0 + $0x88] sm:$0xf]
  %v50 = vld [vmem:[%s0 + $0x8c] sm:$0xf]
  %v51 = vld [vmem:[%s0 + $0x90] sm:$0xf]
  %v52 = vld [vmem:[%s0 + $0x94] sm:$0xf]
  %v53 = vld [vmem:[%s0 + $0x98] sm:$0xf]
  %v54 = vld [vmem:[%s0 + $0x9c] sm:$0xf]
  %v55 = vld [vmem:[%s0 + $0xa0] sm:$0xf]
  %v56 = vld [vmem:[%s0 + $0xa4] sm:$0xf]
  %v57 = vld [vmem:[%s0 + $0xa8] sm:$0xf]
  %v58 = vld [vmem:[%s0 + $0xac] sm:$0xf]
  %v59 = vld [vmem:[%s0 + $0xb0] sm:$0xf]
  %v60 = vld [vmem:[%s0 + $0xb4] sm:$0xf]
  %v61 = vld [vmem:[%s0 + $0xb8] sm:$0xf]
  %v62 = vld [vmem:[%s0 + $0xbc] sm:$0xf]
  %v63 = vld [vmem:[%s0 + $0xc0] sm:$0xf]
  %v64 = vld [vmem:[%s0 + $0xc4] sm:$0xf]
  %v65 = vld [vmem:[%s0 + $0xc8] sm:$0xf]
  %v66 = vld [vmem:[%s0 + $0xcc] sm:$0xf]
  %v67 = vld [vmem:[%s0 + $0xd0] sm:$0xf]
  %v68 = vld [vmem:[%s0 + $0xd4] sm:$0xf]
  %v69 = vld [vmem:[%s0 + $0xd8] sm:$0xf]
  %v70 = vld [vmem:[%s0 + $0xdc] sm:$0xf]
  %v71 = vld [vmem:[%s0 + $0xe0] sm:$0xf]
  %v72 = vld [vmem:[%s0 + $0xe4] sm:$0xf]
  %v73 = vld [vmem:[%s0 + $0xe8] sm:$0xf]
  %v74 = vld [vmem:[%s0 + $0xec] sm:$0xf]
  %v75 = vld [vmem:[%s0 + $0xf0] sm:$0xf]
  %v76 = vld [vmem:[%s0 + $0xf4] sm:$0xf]
  %v77 = vld [vmem:[%s0 + $0xf8] sm:$0xf]
  %v78 = vld [vmem:[%s0 + $0xfc] sm:$0xf]
  %v79 = vld [vmem:[%s0 + $0x100] sm:$0xf]
  %v80 = vld [vmem:[%s0 + $0x104] sm:$0xf]
  %v81 = vld [vmem:[%s0 + $0x108] sm:$0xf]
  %v82 = vld [vmem:[%s0 + $0x10c] sm:$0xf]
  %v83 = vld [vmem:[%s0 + $0x110] sm:$0xf]
  %v84 = vld [vmem:[%s0 + $0x114] sm:$0xf]
  %v85 = vld [vmem:[%s0 + $0x118] sm:$0xf]
  %v86 = vld [vmem:[%s0 + $0x11c] sm:$0xf]
  %v87 = vld [vmem:[%s0 + $0x120] sm:$0xf]
  %v88 = vld [vmem:[%s0 + $0x124] sm:$0xf]
  %v89 = vld [vmem:[%s0 + $0x128] sm:$0xf]
  %v90 = vld [vmem:[%s0 + $0x12c] sm:$0xf]
  %v91 = vld [vmem:[%s0 + $0x130] sm:$0xf]
  %v92 = vld [vmem:[%s0 + $0x134] sm:$0xf]
  %v93 = vld [vmem:[%s0 + $0x138] sm:$0xf]
  %v94 = vld [vmem:[%s0 + $0x13c] sm:$0xf]
  %v95 = vld [vmem:[%s0 + $0x140] sm:$0xf]
  %v96 = vld [vmem:[%s0 + $0x144] sm:$0xf]
  %v97 = vld [vmem:[%s0 + $0x148] sm:$0xf]
  %v98 = vld [vmem:[%s0 + $0x14c] sm:$0xf]
  %v99 = vld [vmem:[%s0 + $0x150] sm:$0xf]
  %v100 = vld [vmem:[%s0 + $0x154] sm:$0xf]
  %v101 = vld [vmem:[%s0 + $0x158] sm:$0xf]
  %v102 = vld [vmem:[%s0 + $0x15c] sm:$0xf]
  %v103 = vld [vmem:[%s0 + $0x160] sm:$0xf]
  %v104 = vld [vmem:[%s0 + $0x164] sm:$0xf]
  %v105 = vld [vmem:[%s0 + $0x168] sm:$0xf]
  %v106 = vld [vmem:[%s0 + $0x16c] sm:$0xf]
  %v107 = vld [vmem:[%s0 + $0x170] sm:$0xf]
  %v108 = vld [vmem:[%s0 + $0x174] sm:$0xf]
  %v109 = vld [vmem:[%s0 + $0x178] sm:$0xf]
  %v110 = vld [vmem:[%s0 + $0x17c] sm:$0xf]
  %v111 = vld [vmem:[%s0 + $0x180] sm:$0xf]
  %v112 = vld [vmem:[%s0 + $0x184] sm:$0xf]
  %v113 = vld [vmem:[%s0 + $0x188] sm:$0xf]
  %v114 = vld [vmem:[%s0 + $0x18c] sm:$0xf]
  %v115 = vld [vmem:[%s0 + $0x190] sm:$0xf]
  %v116 = vld [vmem:[%s0 + $0x194] sm:$0xf]
  %v117 = vld [vmem:[%s0 + $0x198] sm:$0xf]
  %v118 = vld [vmem:[%s0 + $0x19c] sm:$0xf]
  %v119 = vld [vmem:[%s0 + $0x1a0] sm:$0xf]
  %v120 = vld [vmem:[%s0 + $0x1a4] sm:$0xf]
  %v121 = vld [vmem:[%s0 + $0x1a8] sm:$0xf]
  %v122 = vld [vmem:[%s0 + $0x1ac] sm:$0xf]
  %v123 = vld [vmem:[%s0 + $0x1b0] sm:$0xf]
  %v124 = vld [vmem:[%s0 + $0x1b4] sm:$0xf]
  %v125 = vld [vmem:[%s0 + $0x1b8] sm:$0xf]
  %v126 = vld [vmem:[%s0 + $0x1bc] sm:$0xf]
  %v127 = vld [vmem:[%s0 + $0x1c0] sm:$0xf]
  %v128 = vld [vmem:[%s0 + $0x1c4] sm:$0xf]
  %v129 = vld [vmem:[%s0 + $0x1c8] sm:$0xf]
  %v130 = vld [vmem:[%s0 + $0x1cc] sm:$0xf]
  %v131 = vld [vmem:[%s0 + $0x1d0] sm:$0xf]
  %v132 = vld [vmem:[%s0 + $0x1d4] sm:$0xf]
  %v133 = vld [vmem:[%s0 + $0x1d8] sm:$0xf]
  %v134 = vld [vmem:[%s0 + $0x1dc] sm:$0xf]
  %v135 = vld [vmem:[%s0 + $0x1e0] sm:$0xf]
  %v136 = vld [vmem:[%s0 + $0x1e4] sm:$0xf]
  %v137 = vld [vmem:[%s0 + $0x1e8] sm:$0xf]
  %v138 = vld [vmem:[%s0 + $0x1ec] sm:$0xf]
  %v139 = vld [vmem:[%s0 + $0x1f0] sm:$0xf]
  %v140 = vld [vmem:[%s0 + $0x1f4] sm:$0xf]
  %v141 = vld [vmem:[%s0 + $0x1f8] sm:$0xf]
  %v142 = vld [vmem:[%s0 + $0x1fc] sm:$0xf]
  %v143 = vld [vmem:[%s0 + $0x200] sm:$0xf]
  %v144 = vld [vmem:[%s0 + $0x204] sm:$0xf]
  %v145 = vld [vmem:[%s0 + $0x208] sm:$0xf]
  %v146 = vld [vmem:[%s0 + $0x20c] sm:$0xf]
  %v147 = vld [vmem:[%s0 + $0x210] sm:$0xf]
  %v148 = vld [vmem:[%s0 + $0x214] sm:$0xf]
  %v149 = vld [vmem:[%s0 + $0x218] sm:$0xf]
  %v150 = vld [vmem:[%s0 + $0x21c] sm:$0xf]
  %v151 = vld [vmem:[%s0 + $0x220] sm:$0xf]
  %v152 = vld [vmem:[%s0 + $0x224] sm:$0xf]
  %v153 = vld [vmem:[%s0 + $0x228] sm:$0xf]
  %v154 = vld [vmem:[%s0 + $0x22c] sm:$0xf]
  %v155 = vld [vmem:[%s0 + $0x230] sm:$0xf]
  %v156 = vld [vmem:[%s0 + $0x234] sm:$0xf]
  %v157 = vld [vmem:[%s0 + $0x238] sm:$0xf]
  %v158 = vld [vmem:[%s0 + $0x23c] sm:$0xf]
  %v159 = vld [vmem:[%s0 + $0x240] sm:$0xf]
  %v160 = vld [vmem:[%s0 + $0x244] sm:$0xf]
  %v161 = vld [vmem:[%s0 + $0x248] sm:$0xf]
  %v162 = vld [vmem:[%s0 + $0x24c] sm:$0xf]
  %v163 = vld [vmem:[%s0 + $0x250] sm:$0xf]
  %v164 = vld [vmem:[%s0 + $0x254] sm:$0xf]
  %v165 = vld [vmem:[%s0 + $0x258] sm:$0xf]
  %v166 = vld [vmem:[%s0 + $0x25c] sm:$0xf]
  %v167 = vld [vmem:[%s0 + $0x260] sm:$0xf]
  %v168 = vld [vmem:[%s0 + $0x264] sm:$0xf]
  %v169 = vld [vmem:[%s0 + $0x268] sm:$0xf]
  %v170 = vld [vmem:[%s0 + $0x26c] sm:$0xf]
  %v171 = vld [vmem:[%s0 + $0x270] sm:$0xf]
  %v172 = vld [vmem:[%s0 + $0x274] sm:$0xf]
  %v173 = vld [vmem:[%s0 + $0x278] sm:$0xf]
  %v174 = vld [vmem:[%s0 + $0x27c] sm:$0xf]
  %v175 = vld [vmem:[%s0 + $0x280] sm:$0xf]
  %v176 = vld [vmem:[%s0 + $0x284] sm:$0xf]
  %v177 = vld [vmem:[%s0 + $0x288] sm:$0xf]
  %v178 = vld [vmem:[%s0 + $0x28c] sm:$0xf]
  %v179 = vld [vmem:[%s0 + $0x290] sm:$0xf]
  %v180 = vld [vmem:[%s0 + $0x294] sm:$0xf]
  %v181 = vld [vmem:[%s0 + $0x298] sm:$0xf]
  %v182 = vld [vmem:[%s0 + $0x29c] sm:$0xf]
  %v183 = vld [vmem:[%s0 + $0x2a0] sm:$0xf]
  %v184 = vld [vmem:[%s0 + $0x2a4] sm:$0xf]
  %v185 = vld [vmem:[%s0 + $0x2a8] sm:$0xf]
  %v186 = vld [vmem:[%s0 + $0x2ac] sm:$0xf]
  %v187 = vld [vmem:[%s0 + $0x2b0] sm:$0xf]
  %v188 = vld [vmem:[%s0 + $0x2b4] sm:$0xf]
  %v189 = vld [vmem:[%s0 + $0x2b8] sm:$0xf]
  %v190 = vld [vmem:[%s0 + $0x2bc] sm:$0xf]
  %v191 = vld [vmem:[%s0 + $0x2c0] sm:$0xf]
  %v192 = vld [vmem:[%s0 + $0x2c4] sm:$0xf]
  %v193 = vld [vmem:[%s0 + $0x2c8] sm:$0xf]
  %v194 = vld [vmem:[%s0 + $0x2cc] sm:$0xf]
  %v195 = vld [vmem:[%s0 + $0x2d0] sm:$0xf]
  %v196 = vld [vmem:[%s0 + $0x2d4] sm:$0xf]
  %v197 = vld [vmem:[%s0 + $0x2d8] sm:$0xf]
  %v198 = vld [vmem:[%s0 + $0x2dc] sm:$0xf]
  %v199 = vld [vmem:[%s0 + $0x2e0] sm:$0xf]
  %v200 = vld [vmem:[%s0 + $0x2e4] sm:$0xf]
  %v201 = vld [vmem:[%s0 + $0x2e8] sm:$0xf]
  %v202 = vld [vmem:[%s0 + $0x2ec] sm:$0xf]
  %v203 = vld [vmem:[%s0 + $0x2f0] sm:$0xf]
  %v204 = vld [vmem:[%s0 + $0x2f4] sm:$0xf]
  %v205 = vld [vmem:[%s0 + $0x2f8] sm:$0xf]
  %v206 = vld [vmem:[%s0 + $0x2fc] sm:$0xf]
  %v207 = vld [vmem:[%s0 + $0x300] sm:$0xf]
  %v208 = vld [vmem:[%s0 + $0x304] sm:$0xf]
  %v209 = vld [vmem:[%s0 + $0x308] sm:$0xf]
  %v210 = vld [vmem:[%s0 + $0x30c] sm:$0xf]
  %v211 = vld [vmem:[%s0 + $0x310] sm:$0xf]
  %v212 = vld [vmem:[%s0 + $0x314] sm:$0xf]
  %v213 = vld [vmem:[%s0 + $0x318] sm:$0xf]
  %v214 = vld [vmem:[%s0 + $0x31c] sm:$0xf]
  %v215 = vld [vmem:[%s0 + $0x320] sm:$0xf]
  %v216 = vld [vmem:[%s0 + $0x324] sm:$0xf]
  %v217 = vld [vmem:[%s0 + $0x328] sm:$0xf]
  %v218 = vld [vmem:[%s0 + $0x32c] sm:$0xf]
  %v219 = vld [vmem:[%s0 + $0x330] sm:$0xf]
  %v220 = vld [vmem:[%s0 + $0x334] sm:$0xf]
  %v221 = vld [vmem:[%s0 + $0x338] sm:$0xf]
  %v222 = vld [vmem:[%s0 + $0x33c] sm:$0xf]
  %v223 = vld [vmem:[%s1] sm:$0xf]
  %v224 = vld [vmem:[%s1 + $0x4] sm:$0xf]
  %v225 = vld [vmem:[%s1 + $0x8] sm:$0xf]
  %v226 = vld [vmem:[%s1 + $0xc] sm:$0x1]
  %v435 = vunpack.c.l.b16 %v15
  %v436 = vunpack.c.l.b16 %v16
  %v437 = vunpack.c.l.b16 %v17
  %v438 = vunpack.c.l.b16 %v18
  %v439 = vunpack.c.l.b16 %v19
  %v440 = vunpack.c.l.b16 %v20
  %v441 = vunpack.c.l.b16 %v21
  %v442 = vunpack.c.l.b16 %v22
  %v443 = vunpack.c.l.b16 %v23
  %v444 = vunpack.c.l.b16 %v24
  %v445 = vunpack.c.l.b16 %v25
  %v446 = vunpack.c.l.b16 %v26
  %v447 = vunpack.c.l.b16 %v27
  %v448 = vunpack.c.l.b16 %v28
  %v449 = vunpack.c.l.b16 %v29
  %v450 = vunpack.c.l.b16 %v30
  %v451 = vunpack.c.l.b16 %v31
  %v452 = vunpack.c.l.b16 %v32
  %v453 = vunpack.c.l.b16 %v33
  %v454 = vunpack.c.l.b16 %v34
  %v455 = vunpack.c.l.b16 %v35
  %v456 = vunpack.c.l.b16 %v36
  %v457 = vunpack.c.l.b16 %v37
  %v458 = vunpack.c.l.b16 %v38
  %v459 = vunpack.c.l.b16 %v39
  %v460 = vunpack.c.l.b16 %v40
  %v461 = vunpack.c.l.b16 %v41
  %v462 = vunpack.c.l.b16 %v42
  %v463 = vunpack.c.l.b16 %v43
  %v464 = vunpack.c.l.b16 %v44
  %v465 = vunpack.c.l.b16 %v45
  %v466 = vunpack.c.l.b16 %v46
  %v467 = vunpack.c.l.b16 %v47
  %v468 = vunpack.c.l.b16 %v48
  %v469 = vunpack.c.l.b16 %v49
  %v470 = vunpack.c.l.b16 %v50
  %v471 = vunpack.c.l.b16 %v51
  %v472 = vunpack.c.l.b16 %v52
  %v473 = vunpack.c.l.b16 %v53
  %v474 = vunpack.c.l.b16 %v54
  %v475 = vunpack.c.l.b16 %v55
  %v476 = vunpack.c.l.b16 %v56
  %v477 = vunpack.c.l.b16 %v57
  %v478 = vunpack.c.l.b16 %v58
  %v479 = vunpack.c.l.b16 %v59
  %v480 = vunpack.c.l.b16 %v60
  %v481 = vunpack.c.l.b16 %v61
  %v482 = vunpack.c.l.b16 %v62
  %v483 = vunpack.c.l.b16 %v63
  %v484 = vunpack.c.l.b16 %v64
  %v485 = vunpack.c.l.b16 %v65
  %v486 = vunpack.c.l.b16 %v66
  %v487 = vunpack.c.l.b16 %v67
  %v488 = vunpack.c.l.b16 %v68
  %v489 = vunpack.c.l.b16 %v69
  %v490 = vunpack.c.l.b16 %v70
  %v491 = vunpack.c.l.b16 %v71
  %v492 = vunpack.c.l.b16 %v72
  %v493 = vunpack.c.l.b16 %v73
  %v494 = vunpack.c.l.b16 %v74
  %v495 = vunpack.c.l.b16 %v75
  %v496 = vunpack.c.l.b16 %v76
  %v497 = vunpack.c.l.b16 %v77
  %v498 = vunpack.c.l.b16 %v78
  %v499 = vunpack.c.l.b16 %v79
  %v500 = vunpack.c.l.b16 %v80
  %v501 = vunpack.c.l.b16 %v81
  %v502 = vunpack.c.l.b16 %v82
  %v503 = vunpack.c.l.b16 %v83
  %v504 = vunpack.c.l.b16 %v84
  %v505 = vunpack.c.l.b16 %v85
  %v506 = vunpack.c.l.b16 %v86
  %v507 = vunpack.c.l.b16 %v87
  %v508 = vunpack.c.l.b16 %v88
  %v509 = vunpack.c.l.b16 %v89
  %v510 = vunpack.c.l.b16 %v90
  %v511 = vunpack.c.l.b16 %v91
  %v512 = vunpack.c.l.b16 %v92
  %v513 = vunpack.c.l.b16 %v93
  %v514 = vunpack.c.l.b16 %v94
  %v515 = vunpack.c.l.b16 %v95
  %v516 = vunpack.c.l.b16 %v96
  %v517 = vunpack.c.l.b16 %v97
  %v518 = vunpack.c.l.b16 %v98
  %v519 = vunpack.c.l.b16 %v99
  %v520 = vunpack.c.l.b16 %v100
  %v521 = vunpack.c.l.b16 %v101
  %v522 = vunpack.c.l.b16 %v102
  %v523 = vunpack.c.l.b16 %v103
  %v524 = vunpack.c.l.b16 %v104
  %v525 = vunpack.c.l.b16 %v105
  %v526 = vunpack.c.l.b16 %v106
  %v527 = vunpack.c.l.b16 %v107
  %v528 = vunpack.c.l.b16 %v108
  %v529 = vunpack.c.l.b16 %v109
  %v530 = vunpack.c.l.b16 %v110
  %v531 = vunpack.c.l.b16 %v111
  %v532 = vunpack.c.l.b16 %v112
  %v533 = vunpack.c.l.b16 %v113
  %v534 = vunpack.c.l.b16 %v114
  %v535 = vunpack.c.l.b16 %v115
  %v536 = vunpack.c.l.b16 %v116
  %v537 = vunpack.c.l.b16 %v117
  %v538 = vunpack.c.l.b16 %v118
  %v539 = vunpack.c.l.b16 %v119
  %v540 = vunpack.c.l.b16 %v120
  %v541 = vunpack.c.l.b16 %v121
  %v542 = vunpack.c.l.b16 %v122
  %v543 = vunpack.c.l.b16 %v123
  %v544 = vunpack.c.l.b16 %v124
  %v545 = vunpack.c.l.b16 %v125
  %v546 = vunpack.c.l.b16 %v126
  %v547 = vunpack.c.l.b16 %v127
  %v548 = vunpack.c.l.b16 %v128
  %v549 = vunpack.c.l.b16 %v129
  %v550 = vunpack.c.l.b16 %v130
  %v551 = vunpack.c.l.b16 %v131
  %v552 = vunpack.c.l.b16 %v132
  %v553 = vunpack.c.l.b16 %v133
  %v554 = vunpack.c.l.b16 %v134
  %v555 = vunpack.c.l.b16 %v135
  %v556 = vunpack.c.l.b16 %v136
  %v557 = vunpack.c.l.b16 %v137
  %v558 = vunpack.c.l.b16 %v138
  %v559 = vunpack.c.l.b16 %v139
  %v560 = vunpack.c.l.b16 %v140
  %v561 = vunpack.c.l.b16 %v141
  %v562 = vunpack.c.l.b16 %v142
  %v563 = vunpack.c.l.b16 %v143
  %v564 = vunpack.c.l.b16 %v144
  %v565 = vunpack.c.l.b16 %v145
  %v566 = vunpack.c.l.b16 %v146
  %v567 = vunpack.c.l.b16 %v147
  %v568 = vunpack.c.l.b16 %v148
  %v569 = vunpack.c.l.b16 %v149
  %v570 = vunpack.c.l.b16 %v150
  %v571 = vunpack.c.l.b16 %v151
  %v572 = vunpack.c.l.b16 %v152
  %v573 = vunpack.c.l.b16 %v153
  %v574 = vunpack.c.l.b16 %v154
  %v575 = vunpack.c.l.b16 %v155
  %v576 = vunpack.c.l.b16 %v156
  %v577 = vunpack.c.l.b16 %v157
  %v578 = vunpack.c.l.b16 %v158
  %v579 = vunpack.c.l.b16 %v159
  %v580 = vunpack.c.l.b16 %v160
  %v581 = vunpack.c.l.b16 %v161
  %v582 = vunpack.c.l.b16 %v162
  %v583 = vunpack.c.l.b16 %v163
  %v584 = vunpack.c.l.b16 %v164
  %v585 = vunpack.c.l.b16 %v165
  %v586 = vunpack.c.l.b16 %v166
  %v587 = vunpack.c.l.b16 %v167
  %v588 = vunpack.c.l.b16 %v168
  %v589 = vunpack.c.l.b16 %v169
  %v590 = vunpack.c.l.b16 %v170
  %v591 = vunpack.c.l.b16 %v171
  %v592 = vunpack.c.l.b16 %v172
  %v593 = vunpack.c.l.b16 %v173
  %v594 = vunpack.c.l.b16 %v174
  %v595 = vunpack.c.l.b16 %v175
  %v596 = vunpack.c.l.b16 %v176
  %v597 = vunpack.c.l.b16 %v177
  %v598 = vunpack.c.l.b16 %v178
  %v599 = vunpack.c.l.b16 %v179
  %v600 = vunpack.c.l.b16 %v180
  %v601 = vunpack.c.l.b16 %v181
  %v602 = vunpack.c.l.b16 %v182
  %v603 = vunpack.c.l.b16 %v183
  %v604 = vunpack.c.l.b16 %v184
  %v605 = vunpack.c.l.b16 %v185
  %v606 = vunpack.c.l.b16 %v186
  %v607 = vunpack.c.l.b16 %v187
  %v608 = vunpack.c.l.b16 %v188
  %v609 = vunpack.c.l.b16 %v189
  %v610 = vunpack.c.l.b16 %v190
  %v611 = vunpack.c.l.b16 %v191
  %v612 = vunpack.c.l.b16 %v192
  %v613 = vunpack.c.l.b16 %v193
  %v614 = vunpack.c.l.b16 %v194
  %v615 = vunpack.c.l.b16 %v195
  %v616 = vunpack.c.l.b16 %v196
  %v617 = vunpack.c.l.b16 %v197
  %v618 = vunpack.c.l.b16 %v198
  %v619 = vunpack.c.l.b16 %v199
  %v620 = vunpack.c.l.b16 %v200
  %v621 = vunpack.c.l.b16 %v201
  %v622 = vunpack.c.l.b16 %v202
  %v623 = vunpack.c.l.b16 %v203
  %v624 = vunpack.c.l.b16 %v204
  %v625 = vunpack.c.l.b16 %v205
  %v626 = vunpack.c.l.b16 %v206
  %v627 = vunpack.c.l.b16 %v207
  %v628 = vunpack.c.l.b16 %v208
  %v629 = vunpack.c.l.b16 %v209
  %v630 = vunpack.c.l.b16 %v210
  %v631 = vunpack.c.l.b16 %v211
  %v632 = vunpack.c.l.b16 %v212
  %v633 = vunpack.c.l.b16 %v213
  %v634 = vunpack.c.l.b16 %v214
  %v635 = vunpack.c.l.b16 %v215
  %v636 = vunpack.c.l.b16 %v216
  %v637 = vunpack.c.l.b16 %v217
  %v638 = vunpack.c.l.b16 %v218
  %v639 = vunpack.c.l.b16 %v219
  %v640 = vunpack.c.l.b16 %v220
  %v641 = vunpack.c.l.b16 %v221
  %v642 = vunpack.c.l.b16 %v222
  %v643 = vpack.c.b16 %v436, %v435
  %v644 = vpack.c.b16 %v438, %v437
  %v645 = vpack.c.b16 %v440, %v439
  %v646 = vpack.c.b16 %v442, %v441
  %v647 = vpack.c.b16 %v444, %v443
  %v648 = vpack.c.b16 %v446, %v445
  %v649 = vpack.c.b16 %v448, %v447
  %v650 = vpack.c.b16 %v450, %v449
  %v651 = vpack.c.b16 %v452, %v451
  %v652 = vpack.c.b16 %v454, %v453
  %v653 = vpack.c.b16 %v456, %v455
  %v654 = vpack.c.b16 %v458, %v457
  %v655 = vpack.c.b16 %v460, %v459
  %v656 = vpack.c.b16 %v462, %v461
  %v657 = vpack.c.b16 %v464, %v463
  %v658 = vpack.c.b16 %v466, %v465
  %v659 = vpack.c.b16 %v468, %v467
  %v660 = vpack.c.b16 %v470, %v469
  %v661 = vpack.c.b16 %v472, %v471
  %v662 = vpack.c.b16 %v474, %v473
  %v663 = vpack.c.b16 %v476, %v475
  %v664 = vpack.c.b16 %v478, %v477
  %v665 = vpack.c.b16 %v480, %v479
  %v666 = vpack.c.b16 %v482, %v481
  %v667 = vpack.c.b16 %v484, %v483
  %v668 = vpack.c.b16 %v486, %v485
  %v669 = vpack.c.b16 %v488, %v487
  %v670 = vpack.c.b16 %v490, %v489
  %v671 = vpack.c.b16 %v492, %v491
  %v672 = vpack.c.b16 %v494, %v493
  %v673 = vpack.c.b16 %v496, %v495
  %v674 = vpack.c.b16 %v498, %v497
  %v675 = vpack.c.b16 %v500, %v499
  %v676 = vpack.c.b16 %v502, %v501
  %v677 = vpack.c.b16 %v504, %v503
  %v678 = vpack.c.b16 %v506, %v505
  %v679 = vpack.c.b16 %v508, %v507
  %v680 = vpack.c.b16 %v510, %v509
  %v681 = vpack.c.b16 %v512, %v511
  %v682 = vpack.c.b16 %v514, %v513
  %v683 = vpack.c.b16 %v516, %v515
  %v684 = vpack.c.b16 %v518, %v517
  %v685 = vpack.c.b16 %v520, %v519
  %v686 = vpack.c.b16 %v522, %v521
  %v687 = vpack.c.b16 %v524, %v523
  %v688 = vpack.c.b16 %v526, %v525
  %v689 = vpack.c.b16 %v528, %v527
  %v690 = vpack.c.b16 %v530, %v529
  %v691 = vpack.c.b16 %v532, %v531
  %v692 = vpack.c.b16 %v534, %v533
  %v693 = vpack.c.b16 %v536, %v535
  %v694 = vpack.c.b16 %v538, %v537
  %v695 = vpack.c.b16 %v540, %v539
  %v696 = vpack.c.b16 %v542, %v541
  %v697 = vpack.c.b16 %v544, %v543
  %v698 = vpack.c.b16 %v546, %v545
  %v699 = vpack.c.b16 %v548, %v547
  %v700 = vpack.c.b16 %v550, %v549
  %v701 = vpack.c.b16 %v552, %v551
  %v702 = vpack.c.b16 %v554, %v553
  %v703 = vpack.c.b16 %v556, %v555
  %v704 = vpack.c.b16 %v558, %v557
  %v705 = vpack.c.b16 %v560, %v559
  %v706 = vpack.c.b16 %v562, %v561
  %v707 = vpack.c.b16 %v564, %v563
  %v708 = vpack.c.b16 %v566, %v565
  %v709 = vpack.c.b16 %v568, %v567
  %v710 = vpack.c.b16 %v570, %v569
  %v711 = vpack.c.b16 %v572, %v571
  %v712 = vpack.c.b16 %v574, %v573
  %v713 = vpack.c.b16 %v576, %v575
  %v714 = vpack.c.b16 %v578, %v577
  %v715 = vpack.c.b16 %v580, %v579
  %v716 = vpack.c.b16 %v582, %v581
  %v717 = vpack.c.b16 %v584, %v583
  %v718 = vpack.c.b16 %v586, %v585
  %v719 = vpack.c.b16 %v588, %v587
  %v720 = vpack.c.b16 %v590, %v589
  %v721 = vpack.c.b16 %v592, %v591
  %v722 = vpack.c.b16 %v594, %v593
  %v723 = vpack.c.b16 %v596, %v595
  %v724 = vpack.c.b16 %v598, %v597
  %v725 = vpack.c.b16 %v600, %v599
  %v726 = vpack.c.b16 %v602, %v601
  %v727 = vpack.c.b16 %v604, %v603
  %v728 = vpack.c.b16 %v606, %v605
  %v729 = vpack.c.b16 %v608, %v607
  %v730 = vpack.c.b16 %v610, %v609
  %v731 = vpack.c.b16 %v612, %v611
  %v732 = vpack.c.b16 %v614, %v613
  %v733 = vpack.c.b16 %v616, %v615
  %v734 = vpack.c.b16 %v618, %v617
  %v735 = vpack.c.b16 %v620, %v619
  %v736 = vpack.c.b16 %v622, %v621
  %v737 = vpack.c.b16 %v624, %v623
  %v738 = vpack.c.b16 %v626, %v625
  %v739 = vpack.c.b16 %v628, %v627
  %v740 = vpack.c.b16 %v630, %v629
  %v741 = vpack.c.b16 %v632, %v631
  %v742 = vpack.c.b16 %v634, %v633
  %v743 = vpack.c.b16 %v636, %v635
  %v744 = vpack.c.b16 %v638, %v637
  %v745 = vpack.c.b16 %v640, %v639
  %v746 = vpack.c.b16 %v642, %v641
  %v751 = vunpack.c.l.b16 %v223
  %v752 = vunpack.c.l.b16 %v224
  %v753 = vunpack.c.l.b16 %v225
  %v754 = vunpack.c.l.b16 %v226
  %v755 = vpack.c.b16 %v752, %v751
  %v756 = vpack.c.b16 %v754, %v753
  %vm758 = vcmask 203776
  %v760 = vsel %vm758, %v643, 0
  %v763 = vsel %vm758, %v644, 0
  %v766 = vsel %vm758, %v645, 0
  %v769 = vsel %vm758, %v646, 0
  %v772 = vsel %vm758, %v647, 0
  %v775 = vsel %vm758, %v648, 0
  %v778 = vsel %vm758, %v649, 0
  %v781 = vsel %vm758, %v650, 0
  %v784 = vsel %vm758, %v651, 0
  %v787 = vsel %vm758, %v652, 0
  %v790 = vsel %vm758, %v653, 0
  %v793 = vsel %vm758, %v654, 0
  %v796 = vsel %vm758, %v655, 0
  %v799 = vsel %vm758, %v656, 0
  %v802 = vsel %vm758, %v657, 0
  %v805 = vsel %vm758, %v658, 0
  %v808 = vsel %vm758, %v659, 0
  %v811 = vsel %vm758, %v660, 0
  %v814 = vsel %vm758, %v661, 0
  %v817 = vsel %vm758, %v662, 0
  %v820 = vsel %vm758, %v663, 0
  %v823 = vsel %vm758, %v664, 0
  %v826 = vsel %vm758, %v665, 0
  %v829 = vsel %vm758, %v666, 0
  %v832 = vsel %vm758, %v667, 0
  %v835 = vsel %vm758, %v668, 0
  %v838 = vsel %vm758, %v669, 0
  %v841 = vsel %vm758, %v670, 0
  %v844 = vsel %vm758, %v671, 0
  %v847 = vsel %vm758, %v672, 0
  %v850 = vsel %vm758, %v673, 0
  %v853 = vsel %vm758, %v674, 0
  %v856 = vsel %vm758, %v675, 0
  %v859 = vsel %vm758, %v676, 0
  %v862 = vsel %vm758, %v677, 0
  %v865 = vsel %vm758, %v678, 0
  %v868 = vsel %vm758, %v679, 0
  %v871 = vsel %vm758, %v680, 0
  %v874 = vsel %vm758, %v681, 0
  %v877 = vsel %vm758, %v682, 0
  %v880 = vsel %vm758, %v683, 0
  %v883 = vsel %vm758, %v684, 0
  %v886 = vsel %vm758, %v685, 0
  %v889 = vsel %vm758, %v686, 0
  %v892 = vsel %vm758, %v687, 0
  %v895 = vsel %vm758, %v688, 0
  %v898 = vsel %vm758, %v689, 0
  %v901 = vsel %vm758, %v690, 0
  %v904 = vsel %vm758, %v691, 0
  %v907 = vsel %vm758, %v692, 0
  %v910 = vsel %vm758, %v693, 0
  %v913 = vsel %vm758, %v694, 0
  %v916 = vsel %vm758, %v695, 0
  %v919 = vsel %vm758, %v696, 0
  %v922 = vsel %vm758, %v697, 0
  %v925 = vsel %vm758, %v698, 0
  %v928 = vsel %vm758, %v699, 0
  %v931 = vsel %vm758, %v700, 0
  %v934 = vsel %vm758, %v701, 0
  %v937 = vsel %vm758, %v702, 0
  %v940 = vsel %vm758, %v703, 0
  %v943 = vsel %vm758, %v704, 0
  %v946 = vsel %vm758, %v705, 0
  %v949 = vsel %vm758, %v706, 0
  %v952 = vsel %vm758, %v707, 0
  %v955 = vsel %vm758, %v708, 0
  %v958 = vsel %vm758, %v709, 0
  %v961 = vsel %vm758, %v710, 0
  %v964 = vsel %vm758, %v711, 0
  %v967 = vsel %vm758, %v712, 0
  %v970 = vsel %vm758, %v713, 0
  %v973 = vsel %vm758, %v714, 0
  %v976 = vsel %vm758, %v715, 0
  %v979 = vsel %vm758, %v716, 0
  %v982 = vsel %vm758, %v717, 0
  %v985 = vsel %vm758, %v718, 0
  %v988 = vsel %vm758, %v719, 0
  %v991 = vsel %vm758, %v720, 0
  %v994 = vsel %vm758, %v721, 0
  %v997 = vsel %vm758, %v722, 0
  %v1000 = vsel %vm758, %v723, 0
  %v1003 = vsel %vm758, %v724, 0
  %v1006 = vsel %vm758, %v725, 0
  %v1009 = vsel %vm758, %v726, 0
  %v1012 = vsel %vm758, %v727, 0
  %v1015 = vsel %vm758, %v728, 0
  %v1018 = vsel %vm758, %v729, 0
  %v1021 = vsel %vm758, %v730, 0
  %v1024 = vsel %vm758, %v731, 0
  %v1027 = vsel %vm758, %v732, 0
  %v1030 = vsel %vm758, %v733, 0
  %v1033 = vsel %vm758, %v734, 0
  %v1036 = vsel %vm758, %v735, 0
  %v1039 = vsel %vm758, %v736, 0
  %v1042 = vsel %vm758, %v737, 0
  %v1045 = vsel %vm758, %v738, 0
  %v1048 = vsel %vm758, %v739, 0
  %v1051 = vsel %vm758, %v740, 0
  %v1054 = vsel %vm758, %v741, 0
  %v1057 = vsel %vm758, %v742, 0
  %v1060 = vsel %vm758, %v743, 0
  %v1063 = vsel %vm758, %v744, 0
  %v1066 = vsel %vm758, %v745, 0
  %v1069 = vsel %vm758, %v746, 0
  %vm1071 = vcmask 1043456
  %vm1072 = vcmask 1044480
  %v1073 = vsel %vm1071, 4294967295, 65535
  %v1074 = vsel %vm1072, %v1073, 0
  %v1076 = vand.u32 %v756, %v1074
  %1078 = vmatprep.subr.bf16.mxu0 0
  %1079 = vmatpush1.bf16.msra.mxu0 0
  %1080 = vmatprep.subr.bf16.mxu0 0
  %1081 = vmatpush1.bf16.msra.mxu0 0
  %1082 = vmatprep.subr.bf16.mxu0 0
  %1083 = vmatpush1.bf16.msra.mxu0 0
  %1084 = vmatprep.subr.bf16.mxu0 0
  %1085 = vmatpush1.bf16.msra.mxu0 0
  %1086 = vmatprep.subr.bf16.mxu0 0
  %1087 = vmatpush1.bf16.msra.mxu0 0
  %1088 = vmatprep.subr.bf16.mxu0 0
  %1089 = vmatpush1.bf16.msra.mxu0 0
  %1090 = vmatprep.subr.bf16.mxu0 0
  %1091 = vmatpush1.bf16.msra.mxu0 %v1076
  %1092 = vmatprep.subr.bf16.mxu0 0
  %1093 = vmatpush1.bf16.msra.mxu0 %v755
  %1094 = vmatprep.subr.bf16.mxu0 0
  %1095 = vmatpush2.bf16.msra.mxu0 0
  %1096 = vmatprep.subr.bf16.mxu0 0
  %1097 = vmatpush2.bf16.msra.mxu0 0
  %1098 = vmatprep.subr.bf16.mxu0 0
  %1099 = vmatpush2.bf16.msra.mxu0 0
  %1100 = vmatprep.subr.bf16.mxu0 0
  %1101 = vmatpush2.bf16.msra.mxu0 0
  %1102 = vmatprep.subr.bf16.mxu0 0
  %1103 = vmatpush2.bf16.msra.mxu0 0
  %1104 = vmatprep.subr.bf16.mxu0 0
  %1105 = vmatpush2.bf16.msra.mxu0 0
  %1106 = vmatprep.subr.bf16.mxu0 0
  %1107 = vmatpush2.bf16.msra.mxu0 0
  %1108 = vmatprep.subr.bf16.mxu0 0
  %1109 = vmatpush2.bf16.msra.mxu0 0
  %1110 = vmatprep.mubr.bf16.mxu0 0
  %1111 = vmatmul.mubr.bf16.gmra.mxu0 %v760
  %v1112 = vpop.f32.mrf.mxu0
  %v1113 = vadd.f32 0.0, %v1112
  %v1114 = vpop.f32.mrf.mxu0
  %v1115 = vpop.f32.mrf.mxu0
  %v1116 = vadd.f32 0.0, %v1115
  %v1117 = vpop.f32.mrf.mxu0
  %1118 = vmatprep.mubr.bf16.mxu0 0
  %1119 = vmatmul.mubr.bf16.gmra.mxu0 %v763
  %v1120 = vpop.f32.mrf.mxu0
  %v1121 = vadd.f32 0.0, %v1120
  %v1122 = vpop.f32.mrf.mxu0
  %v1123 = vpop.f32.mrf.mxu0
  %v1124 = vadd.f32 0.0, %v1123
  %v1125 = vpop.f32.mrf.mxu0
  %1126 = vmatprep.mubr.bf16.mxu0 0
  %1127 = vmatmul.mubr.bf16.gmra.mxu0 %v766
  %v1128 = vpop.f32.mrf.mxu0
  %v1129 = vadd.f32 0.0, %v1128
  %v1130 = vpop.f32.mrf.mxu0
  %v1131 = vpop.f32.mrf.mxu0
  %v1132 = vadd.f32 0.0, %v1131
  %v1133 = vpop.f32.mrf.mxu0
  %1134 = vmatprep.mubr.bf16.mxu0 0
  %1135 = vmatmul.mubr.bf16.gmra.mxu0 %v769
  %v1136 = vpop.f32.mrf.mxu0
  %v1137 = vadd.f32 0.0, %v1136
  %v1138 = vpop.f32.mrf.mxu0
  %v1139 = vpop.f32.mrf.mxu0
  %v1140 = vadd.f32 0.0, %v1139
  %v1141 = vpop.f32.mrf.mxu0
  %1142 = vmatprep.mubr.bf16.mxu0 0
  %1143 = vmatmul.mubr.bf16.gmra.mxu0 %v772
  %v1144 = vpop.f32.mrf.mxu0
  %v1145 = vadd.f32 0.0, %v1144
  %v1146 = vpop.f32.mrf.mxu0
  %v1147 = vpop.f32.mrf.mxu0
  %v1148 = vadd.f32 0.0, %v1147
  %v1149 = vpop.f32.mrf.mxu0
  %1150 = vmatprep.mubr.bf16.mxu0 0
  %1151 = vmatmul.mubr.bf16.gmra.mxu0 %v775
  %v1152 = vpop.f32.mrf.mxu0
  %v1153 = vadd.f32 0.0, %v1152
  %v1154 = vpop.f32.mrf.mxu0
  %v1155 = vpop.f32.mrf.mxu0
  %v1156 = vadd.f32 0.0, %v1155
  %v1157 = vpop.f32.mrf.mxu0
  %1158 = vmatprep.mubr.bf16.mxu0 0
  %1159 = vmatmul.mubr.bf16.gmra.mxu0 %v778
  %v1160 = vpop.f32.mrf.mxu0
  %v1161 = vadd.f32 0.0, %v1160
  %v1162 = vpop.f32.mrf.mxu0
  %v1163 = vpop.f32.mrf.mxu0
  %v1164 = vadd.f32 0.0, %v1163
  %v1165 = vpop.f32.mrf.mxu0
  %1166 = vmatprep.mubr.bf16.mxu0 0
  %1167 = vmatmul.mubr.bf16.gmra.mxu0 %v781
  %v1168 = vpop.f32.mrf.mxu0
  %v1169 = vadd.f32 0.0, %v1168
  %v1170 = vpop.f32.mrf.mxu0
  %v1171 = vpop.f32.mrf.mxu0
  %v1172 = vadd.f32 0.0, %v1171
  %v1173 = vpop.f32.mrf.mxu0
  %1174 = vmatprep.mubr.bf16.mxu0 0
  %1175 = vmatmul.mubr.bf16.gmra.mxu0 %v784
  %v1176 = vpop.f32.mrf.mxu0
  %v1177 = vadd.f32 0.0, %v1176
  %v1178 = vpop.f32.mrf.mxu0
  %v1179 = vpop.f32.mrf.mxu0
  %v1180 = vadd.f32 0.0, %v1179
  %v1181 = vpop.f32.mrf.mxu0
  %1182 = vmatprep.mubr.bf16.mxu0 0
  %1183 = vmatmul.mubr.bf16.gmra.mxu0 %v787
  %v1184 = vpop.f32.mrf.mxu0
  %v1185 = vadd.f32 0.0, %v1184
  %v1186 = vpop.f32.mrf.mxu0
  %v1187 = vpop.f32.mrf.mxu0
  %v1188 = vadd.f32 0.0, %v1187
  %v1189 = vpop.f32.mrf.mxu0
  %1190 = vmatprep.mubr.bf16.mxu0 0
  %1191 = vmatmul.mubr.bf16.gmra.mxu0 %v790
  %v1192 = vpop.f32.mrf.mxu0
  %v1193 = vadd.f32 0.0, %v1192
  %v1194 = vpop.f32.mrf.mxu0
  %v1195 = vpop.f32.mrf.mxu0
  %v1196 = vadd.f32 0.0, %v1195
  %v1197 = vpop.f32.mrf.mxu0
  %1198 = vmatprep.mubr.bf16.mxu0 0
  %1199 = vmatmul.mubr.bf16.gmra.mxu0 %v793
  %v1200 = vpop.f32.mrf.mxu0
  %v1201 = vadd.f32 0.0, %v1200
  %v1202 = vpop.f32.mrf.mxu0
  %v1203 = vpop.f32.mrf.mxu0
  %v1204 = vadd.f32 0.0, %v1203
  %v1205 = vpop.f32.mrf.mxu0
  %1206 = vmatprep.mubr.bf16.mxu0 0
  %1207 = vmatmul.mubr.bf16.gmra.mxu0 %v796
  %v1208 = vpop.f32.mrf.mxu0
  %v1209 = vadd.f32 0.0, %v1208
  %v1210 = vpop.f32.mrf.mxu0
  %v1211 = vpop.f32.mrf.mxu0
  %v1212 = vadd.f32 0.0, %v1211
  %v1213 = vpop.f32.mrf.mxu0
  %1214 = vmatprep.mubr.bf16.mxu0 0
  %1215 = vmatmul.mubr.bf16.gmra.mxu0 %v799
  %v1216 = vpop.f32.mrf.mxu0
  %v1217 = vadd.f32 0.0, %v1216
  %v1218 = vpop.f32.mrf.mxu0
  %v1219 = vpop.f32.mrf.mxu0
  %v1220 = vadd.f32 0.0, %v1219
  %v1221 = vpop.f32.mrf.mxu0
  %1222 = vmatprep.mubr.bf16.mxu0 0
  %1223 = vmatmul.mubr.bf16.gmra.mxu0 %v802
  %v1224 = vpop.f32.mrf.mxu0
  %v1225 = vadd.f32 0.0, %v1224
  %v1226 = vpop.f32.mrf.mxu0
  %v1227 = vpop.f32.mrf.mxu0
  %v1228 = vadd.f32 0.0, %v1227
  %v1229 = vpop.f32.mrf.mxu0
  %1230 = vmatprep.mubr.bf16.mxu0 0
  %1231 = vmatmul.mubr.bf16.gmra.mxu0 %v805
  %v1232 = vpop.f32.mrf.mxu0
  %v1233 = vadd.f32 0.0, %v1232
  %v1234 = vpop.f32.mrf.mxu0
  %v1235 = vpop.f32.mrf.mxu0
  %v1236 = vadd.f32 0.0, %v1235
  %v1237 = vpop.f32.mrf.mxu0
  %1238 = vmatprep.mubr.bf16.mxu0 0
  %1239 = vmatmul.mubr.bf16.gmra.mxu0 %v808
  %v1240 = vpop.f32.mrf.mxu0
  %v1241 = vadd.f32 0.0, %v1240
  %v1242 = vpop.f32.mrf.mxu0
  %v1243 = vpop.f32.mrf.mxu0
  %v1244 = vadd.f32 0.0, %v1243
  %v1245 = vpop.f32.mrf.mxu0
  %1246 = vmatprep.mubr.bf16.mxu0 0
  %1247 = vmatmul.mubr.bf16.gmra.mxu0 %v811
  %v1248 = vpop.f32.mrf.mxu0
  %v1249 = vadd.f32 0.0, %v1248
  %v1250 = vpop.f32.mrf.mxu0
  %v1251 = vpop.f32.mrf.mxu0
  %v1252 = vadd.f32 0.0, %v1251
  %v1253 = vpop.f32.mrf.mxu0
  %1254 = vmatprep.mubr.bf16.mxu0 0
  %1255 = vmatmul.mubr.bf16.gmra.mxu0 %v814
  %v1256 = vpop.f32.mrf.mxu0
  %v1257 = vadd.f32 0.0, %v1256
  %v1258 = vpop.f32.mrf.mxu0
  %v1259 = vpop.f32.mrf.mxu0
  %v1260 = vadd.f32 0.0, %v1259
  %v1261 = vpop.f32.mrf.mxu0
  %1262 = vmatprep.mubr.bf16.mxu0 0
  %1263 = vmatmul.mubr.bf16.gmra.mxu0 %v817
  %v1264 = vpop.f32.mrf.mxu0
  %v1265 = vadd.f32 0.0, %v1264
  %v1266 = vpop.f32.mrf.mxu0
  %v1267 = vpop.f32.mrf.mxu0
  %v1268 = vadd.f32 0.0, %v1267
  %v1269 = vpop.f32.mrf.mxu0
  %1270 = vmatprep.mubr.bf16.mxu0 0
  %1271 = vmatmul.mubr.bf16.gmra.mxu0 %v820
  %v1272 = vpop.f32.mrf.mxu0
  %v1273 = vadd.f32 0.0, %v1272
  %v1274 = vpop.f32.mrf.mxu0
  %v1275 = vpop.f32.mrf.mxu0
  %v1276 = vadd.f32 0.0, %v1275
  %v1277 = vpop.f32.mrf.mxu0
  %1278 = vmatprep.mubr.bf16.mxu0 0
  %1279 = vmatmul.mubr.bf16.gmra.mxu0 %v823
  %v1280 = vpop.f32.mrf.mxu0
  %v1281 = vadd.f32 0.0, %v1280
  %v1282 = vpop.f32.mrf.mxu0
  %v1283 = vpop.f32.mrf.mxu0
  %v1284 = vadd.f32 0.0, %v1283
  %v1285 = vpop.f32.mrf.mxu0
  %1286 = vmatprep.mubr.bf16.mxu0 0
  %1287 = vmatmul.mubr.bf16.gmra.mxu0 %v826
  %v1288 = vpop.f32.mrf.mxu0
  %v1289 = vadd.f32 0.0, %v1288
  %v1290 = vpop.f32.mrf.mxu0
  %v1291 = vpop.f32.mrf.mxu0
  %v1292 = vadd.f32 0.0, %v1291
  %v1293 = vpop.f32.mrf.mxu0
  %1294 = vmatprep.mubr.bf16.mxu0 0
  %1295 = vmatmul.mubr.bf16.gmra.mxu0 %v829
  %v1296 = vpop.f32.mrf.mxu0
  %v1297 = vadd.f32 0.0, %v1296
  %v1298 = vpop.f32.mrf.mxu0
  %v1299 = vpop.f32.mrf.mxu0
  %v1300 = vadd.f32 0.0, %v1299
  %v1301 = vpop.f32.mrf.mxu0
  %1302 = vmatprep.mubr.bf16.mxu0 0
  %1303 = vmatmul.mubr.bf16.gmra.mxu0 %v832
  %v1304 = vpop.f32.mrf.mxu0
  %v1305 = vadd.f32 0.0, %v1304
  %v1306 = vpop.f32.mrf.mxu0
  %v1307 = vpop.f32.mrf.mxu0
  %v1308 = vadd.f32 0.0, %v1307
  %v1309 = vpop.f32.mrf.mxu0
  %1310 = vmatprep.mubr.bf16.mxu0 0
  %1311 = vmatmul.mubr.bf16.gmra.mxu0 %v835
  %v1312 = vpop.f32.mrf.mxu0
  %v1313 = vadd.f32 0.0, %v1312
  %v1314 = vpop.f32.mrf.mxu0
  %v1315 = vpop.f32.mrf.mxu0
  %v1316 = vadd.f32 0.0, %v1315
  %v1317 = vpop.f32.mrf.mxu0
  %1318 = vmatprep.mubr.bf16.mxu0 0
  %1319 = vmatmul.mubr.bf16.gmra.mxu0 %v838
  %v1320 = vpop.f32.mrf.mxu0
  %v1321 = vadd.f32 0.0, %v1320
  %v1322 = vpop.f32.mrf.mxu0
  %v1323 = vpop.f32.mrf.mxu0
  %v1324 = vadd.f32 0.0, %v1323
  %v1325 = vpop.f32.mrf.mxu0
  %1326 = vmatprep.mubr.bf16.mxu0 0
  %1327 = vmatmul.mubr.bf16.gmra.mxu0 %v841
  %v1328 = vpop.f32.mrf.mxu0
  %v1329 = vadd.f32 0.0, %v1328
  %v1330 = vpop.f32.mrf.mxu0
  %v1331 = vpop.f32.mrf.mxu0
  %v1332 = vadd.f32 0.0, %v1331
  %v1333 = vpop.f32.mrf.mxu0
  %1334 = vmatprep.mubr.bf16.mxu0 0
  %1335 = vmatmul.mubr.bf16.gmra.mxu0 %v844
  %v1336 = vpop.f32.mrf.mxu0
  %v1337 = vadd.f32 0.0, %v1336
  %v1338 = vpop.f32.mrf.mxu0
  %v1339 = vpop.f32.mrf.mxu0
  %v1340 = vadd.f32 0.0, %v1339
  %v1341 = vpop.f32.mrf.mxu0
  %1342 = vmatprep.mubr.bf16.mxu0 0
  %1343 = vmatmul.mubr.bf16.gmra.mxu0 %v847
  %v1344 = vpop.f32.mrf.mxu0
  %v1345 = vadd.f32 0.0, %v1344
  %v1346 = vpop.f32.mrf.mxu0
  %v1347 = vpop.f32.mrf.mxu0
  %v1348 = vadd.f32 0.0, %v1347
  %v1349 = vpop.f32.mrf.mxu0
  %1350 = vmatprep.mubr.bf16.mxu0 0
  %1351 = vmatmul.mubr.bf16.gmra.mxu0 %v850
  %v1352 = vpop.f32.mrf.mxu0
  %v1353 = vadd.f32 0.0, %v1352
  %v1354 = vpop.f32.mrf.mxu0
  %v1355 = vpop.f32.mrf.mxu0
  %v1356 = vadd.f32 0.0, %v1355
  %v1357 = vpop.f32.mrf.mxu0
  %1358 = vmatprep.mubr.bf16.mxu0 0
  %1359 = vmatmul.mubr.bf16.gmra.mxu0 %v853
  %v1360 = vpop.f32.mrf.mxu0
  %v1361 = vadd.f32 0.0, %v1360
  %v1362 = vpop.f32.mrf.mxu0
  %v1363 = vpop.f32.mrf.mxu0
  %v1364 = vadd.f32 0.0, %v1363
  %v1365 = vpop.f32.mrf.mxu0
  %1366 = vmatprep.mubr.bf16.mxu0 0
  %1367 = vmatmul.mubr.bf16.gmra.mxu0 %v856
  %v1368 = vpop.f32.mrf.mxu0
  %v1369 = vadd.f32 0.0, %v1368
  %v1370 = vpop.f32.mrf.mxu0
  %v1371 = vpop.f32.mrf.mxu0
  %v1372 = vadd.f32 0.0, %v1371
  %v1373 = vpop.f32.mrf.mxu0
  %1374 = vmatprep.mubr.bf16.mxu0 0
  %1375 = vmatmul.mubr.bf16.gmra.mxu0 %v859
  %v1376 = vpop.f32.mrf.mxu0
  %v1377 = vadd.f32 0.0, %v1376
  %v1378 = vpop.f32.mrf.mxu0
  %v1379 = vpop.f32.mrf.mxu0
  %v1380 = vadd.f32 0.0, %v1379
  %v1381 = vpop.f32.mrf.mxu0
  %1382 = vmatprep.mubr.bf16.mxu0 0
  %1383 = vmatmul.mubr.bf16.gmra.mxu0 %v862
  %v1384 = vpop.f32.mrf.mxu0
  %v1385 = vadd.f32 0.0, %v1384
  %v1386 = vpop.f32.mrf.mxu0
  %v1387 = vpop.f32.mrf.mxu0
  %v1388 = vadd.f32 0.0, %v1387
  %v1389 = vpop.f32.mrf.mxu0
  %1390 = vmatprep.mubr.bf16.mxu0 0
  %1391 = vmatmul.mubr.bf16.gmra.mxu0 %v865
  %v1392 = vpop.f32.mrf.mxu0
  %v1393 = vadd.f32 0.0, %v1392
  %v1394 = vpop.f32.mrf.mxu0
  %v1395 = vpop.f32.mrf.mxu0
  %v1396 = vadd.f32 0.0, %v1395
  %v1397 = vpop.f32.mrf.mxu0
  %1398 = vmatprep.mubr.bf16.mxu0 0
  %1399 = vmatmul.mubr.bf16.gmra.mxu0 %v868
  %v1400 = vpop.f32.mrf.mxu0
  %v1401 = vadd.f32 0.0, %v1400
  %v1402 = vpop.f32.mrf.mxu0
  %v1403 = vpop.f32.mrf.mxu0
  %v1404 = vadd.f32 0.0, %v1403
  %v1405 = vpop.f32.mrf.mxu0
  %1406 = vmatprep.mubr.bf16.mxu0 0
  %1407 = vmatmul.mubr.bf16.gmra.mxu0 %v871
  %v1408 = vpop.f32.mrf.mxu0
  %v1409 = vadd.f32 0.0, %v1408
  %v1410 = vpop.f32.mrf.mxu0
  %v1411 = vpop.f32.mrf.mxu0
  %v1412 = vadd.f32 0.0, %v1411
  %v1413 = vpop.f32.mrf.mxu0
  %1414 = vmatprep.mubr.bf16.mxu0 0
  %1415 = vmatmul.mubr.bf16.gmra.mxu0 %v874
  %v1416 = vpop.f32.mrf.mxu0
  %v1417 = vadd.f32 0.0, %v1416
  %v1418 = vpop.f32.mrf.mxu0
  %v1419 = vpop.f32.mrf.mxu0
  %v1420 = vadd.f32 0.0, %v1419
  %v1421 = vpop.f32.mrf.mxu0
  %1422 = vmatprep.mubr.bf16.mxu0 0
  %1423 = vmatmul.mubr.bf16.gmra.mxu0 %v877
  %v1424 = vpop.f32.mrf.mxu0
  %v1425 = vadd.f32 0.0, %v1424
  %v1426 = vpop.f32.mrf.mxu0
  %v1427 = vpop.f32.mrf.mxu0
  %v1428 = vadd.f32 0.0, %v1427
  %v1429 = vpop.f32.mrf.mxu0
  %1430 = vmatprep.mubr.bf16.mxu0 0
  %1431 = vmatmul.mubr.bf16.gmra.mxu0 %v880
  %v1432 = vpop.f32.mrf.mxu0
  %v1433 = vadd.f32 0.0, %v1432
  %v1434 = vpop.f32.mrf.mxu0
  %v1435 = vpop.f32.mrf.mxu0
  %v1436 = vadd.f32 0.0, %v1435
  %v1437 = vpop.f32.mrf.mxu0
  %1438 = vmatprep.mubr.bf16.mxu0 0
  %1439 = vmatmul.mubr.bf16.gmra.mxu0 %v883
  %v1440 = vpop.f32.mrf.mxu0
  %v1441 = vadd.f32 0.0, %v1440
  %v1442 = vpop.f32.mrf.mxu0
  %v1443 = vpop.f32.mrf.mxu0
  %v1444 = vadd.f32 0.0, %v1443
  %v1445 = vpop.f32.mrf.mxu0
  %1446 = vmatprep.mubr.bf16.mxu0 0
  %1447 = vmatmul.mubr.bf16.gmra.mxu0 %v886
  %v1448 = vpop.f32.mrf.mxu0
  %v1449 = vadd.f32 0.0, %v1448
  %v1450 = vpop.f32.mrf.mxu0
  %v1451 = vpop.f32.mrf.mxu0
  %v1452 = vadd.f32 0.0, %v1451
  %v1453 = vpop.f32.mrf.mxu0
  %1454 = vmatprep.mubr.bf16.mxu0 0
  %1455 = vmatmul.mubr.bf16.gmra.mxu0 %v889
  %v1456 = vpop.f32.mrf.mxu0
  %v1457 = vadd.f32 0.0, %v1456
  %v1458 = vpop.f32.mrf.mxu0
  %v1459 = vpop.f32.mrf.mxu0
  %v1460 = vadd.f32 0.0, %v1459
  %v1461 = vpop.f32.mrf.mxu0
  %1462 = vmatprep.mubr.bf16.mxu0 0
  %1463 = vmatmul.mubr.bf16.gmra.mxu0 %v892
  %v1464 = vpop.f32.mrf.mxu0
  %v1465 = vadd.f32 0.0, %v1464
  %v1466 = vpop.f32.mrf.mxu0
  %v1467 = vpop.f32.mrf.mxu0
  %v1468 = vadd.f32 0.0, %v1467
  %v1469 = vpop.f32.mrf.mxu0
  %1470 = vmatprep.mubr.bf16.mxu0 0
  %1471 = vmatmul.mubr.bf16.gmra.mxu0 %v895
  %v1472 = vpop.f32.mrf.mxu0
  %v1473 = vadd.f32 0.0, %v1472
  %v1474 = vpop.f32.mrf.mxu0
  %v1475 = vpop.f32.mrf.mxu0
  %v1476 = vadd.f32 0.0, %v1475
  %v1477 = vpop.f32.mrf.mxu0
  %1478 = vmatprep.mubr.bf16.mxu0 0
  %1479 = vmatmul.mubr.bf16.gmra.mxu0 %v898
  %v1480 = vpop.f32.mrf.mxu0
  %v1481 = vadd.f32 0.0, %v1480
  %v1482 = vpop.f32.mrf.mxu0
  %v1483 = vpop.f32.mrf.mxu0
  %v1484 = vadd.f32 0.0, %v1483
  %v1485 = vpop.f32.mrf.mxu0
  %1486 = vmatprep.mubr.bf16.mxu0 0
  %1487 = vmatmul.mubr.bf16.gmra.mxu0 %v901
  %v1488 = vpop.f32.mrf.mxu0
  %v1489 = vadd.f32 0.0, %v1488
  %v1490 = vpop.f32.mrf.mxu0
  %v1491 = vpop.f32.mrf.mxu0
  %v1492 = vadd.f32 0.0, %v1491
  %v1493 = vpop.f32.mrf.mxu0
  %1494 = vmatprep.mubr.bf16.mxu0 0
  %1495 = vmatmul.mubr.bf16.gmra.mxu0 %v904
  %v1496 = vpop.f32.mrf.mxu0
  %v1497 = vadd.f32 0.0, %v1496
  %v1498 = vpop.f32.mrf.mxu0
  %v1499 = vpop.f32.mrf.mxu0
  %v1500 = vadd.f32 0.0, %v1499
  %v1501 = vpop.f32.mrf.mxu0
  %1502 = vmatprep.mubr.bf16.mxu0 0
  %1503 = vmatmul.mubr.bf16.gmra.mxu0 %v907
  %v1504 = vpop.f32.mrf.mxu0
  %v1505 = vadd.f32 0.0, %v1504
  %v1506 = vpop.f32.mrf.mxu0
  %v1507 = vpop.f32.mrf.mxu0
  %v1508 = vadd.f32 0.0, %v1507
  %v1509 = vpop.f32.mrf.mxu0
  %1510 = vmatprep.mubr.bf16.mxu0 0
  %1511 = vmatmul.mubr.bf16.gmra.mxu0 %v910
  %v1512 = vpop.f32.mrf.mxu0
  %v1513 = vadd.f32 0.0, %v1512
  %v1514 = vpop.f32.mrf.mxu0
  %v1515 = vpop.f32.mrf.mxu0
  %v1516 = vadd.f32 0.0, %v1515
  %v1517 = vpop.f32.mrf.mxu0
  %1518 = vmatprep.mubr.bf16.mxu0 0
  %1519 = vmatmul.mubr.bf16.gmra.mxu0 %v913
  %v1520 = vpop.f32.mrf.mxu0
  %v1521 = vadd.f32 0.0, %v1520
  %v1522 = vpop.f32.mrf.mxu0
  %v1523 = vpop.f32.mrf.mxu0
  %v1524 = vadd.f32 0.0, %v1523
  %v1525 = vpop.f32.mrf.mxu0
  %1526 = vmatprep.mubr.bf16.mxu0 0
  %1527 = vmatmul.mubr.bf16.gmra.mxu0 %v916
  %v1528 = vpop.f32.mrf.mxu0
  %v1529 = vadd.f32 0.0, %v1528
  %v1530 = vpop.f32.mrf.mxu0
  %v1531 = vpop.f32.mrf.mxu0
  %v1532 = vadd.f32 0.0, %v1531
  %v1533 = vpop.f32.mrf.mxu0
  %1534 = vmatprep.mubr.bf16.mxu0 0
  %1535 = vmatmul.mubr.bf16.gmra.mxu0 %v919
  %v1536 = vpop.f32.mrf.mxu0
  %v1537 = vadd.f32 0.0, %v1536
  %v1538 = vpop.f32.mrf.mxu0
  %v1539 = vpop.f32.mrf.mxu0
  %v1540 = vadd.f32 0.0, %v1539
  %v1541 = vpop.f32.mrf.mxu0
  %1542 = vmatprep.mubr.bf16.mxu0 0
  %1543 = vmatmul.mubr.bf16.gmra.mxu0 %v922
  %v1544 = vpop.f32.mrf.mxu0
  %v1545 = vadd.f32 0.0, %v1544
  %v1546 = vpop.f32.mrf.mxu0
  %v1547 = vpop.f32.mrf.mxu0
  %v1548 = vadd.f32 0.0, %v1547
  %v1549 = vpop.f32.mrf.mxu0
  %1550 = vmatprep.mubr.bf16.mxu0 0
  %1551 = vmatmul.mubr.bf16.gmra.mxu0 %v925
  %v1552 = vpop.f32.mrf.mxu0
  %v1553 = vadd.f32 0.0, %v1552
  %v1554 = vpop.f32.mrf.mxu0
  %v1555 = vpop.f32.mrf.mxu0
  %v1556 = vadd.f32 0.0, %v1555
  %v1557 = vpop.f32.mrf.mxu0
  %1558 = vmatprep.mubr.bf16.mxu0 0
  %1559 = vmatmul.mubr.bf16.gmra.mxu0 %v928
  %v1560 = vpop.f32.mrf.mxu0
  %v1561 = vadd.f32 0.0, %v1560
  %v1562 = vpop.f32.mrf.mxu0
  %v1563 = vpop.f32.mrf.mxu0
  %v1564 = vadd.f32 0.0, %v1563
  %v1565 = vpop.f32.mrf.mxu0
  %1566 = vmatprep.mubr.bf16.mxu0 0
  %1567 = vmatmul.mubr.bf16.gmra.mxu0 %v931
  %v1568 = vpop.f32.mrf.mxu0
  %v1569 = vadd.f32 0.0, %v1568
  %v1570 = vpop.f32.mrf.mxu0
  %v1571 = vpop.f32.mrf.mxu0
  %v1572 = vadd.f32 0.0, %v1571
  %v1573 = vpop.f32.mrf.mxu0
  %1574 = vmatprep.mubr.bf16.mxu0 0
  %1575 = vmatmul.mubr.bf16.gmra.mxu0 %v934
  %v1576 = vpop.f32.mrf.mxu0
  %v1577 = vadd.f32 0.0, %v1576
  %v1578 = vpop.f32.mrf.mxu0
  %v1579 = vpop.f32.mrf.mxu0
  %v1580 = vadd.f32 0.0, %v1579
  %v1581 = vpop.f32.mrf.mxu0
  %1582 = vmatprep.mubr.bf16.mxu0 0
  %1583 = vmatmul.mubr.bf16.gmra.mxu0 %v937
  %v1584 = vpop.f32.mrf.mxu0
  %v1585 = vadd.f32 0.0, %v1584
  %v1586 = vpop.f32.mrf.mxu0
  %v1587 = vpop.f32.mrf.mxu0
  %v1588 = vadd.f32 0.0, %v1587
  %v1589 = vpop.f32.mrf.mxu0
  %1590 = vmatprep.mubr.bf16.mxu0 0
  %1591 = vmatmul.mubr.bf16.gmra.mxu0 %v940
  %v1592 = vpop.f32.mrf.mxu0
  %v1593 = vadd.f32 0.0, %v1592
  %v1594 = vpop.f32.mrf.mxu0
  %v1595 = vpop.f32.mrf.mxu0
  %v1596 = vadd.f32 0.0, %v1595
  %v1597 = vpop.f32.mrf.mxu0
  %1598 = vmatprep.mubr.bf16.mxu0 0
  %1599 = vmatmul.mubr.bf16.gmra.mxu0 %v943
  %v1600 = vpop.f32.mrf.mxu0
  %v1601 = vadd.f32 0.0, %v1600
  %v1602 = vpop.f32.mrf.mxu0
  %v1603 = vpop.f32.mrf.mxu0
  %v1604 = vadd.f32 0.0, %v1603
  %v1605 = vpop.f32.mrf.mxu0
  %1606 = vmatprep.mubr.bf16.mxu0 0
  %1607 = vmatmul.mubr.bf16.gmra.mxu0 %v946
  %v1608 = vpop.f32.mrf.mxu0
  %v1609 = vadd.f32 0.0, %v1608
  %v1610 = vpop.f32.mrf.mxu0
  %v1611 = vpop.f32.mrf.mxu0
  %v1612 = vadd.f32 0.0, %v1611
  %v1613 = vpop.f32.mrf.mxu0
  %1614 = vmatprep.mubr.bf16.mxu0 0
  %1615 = vmatmul.mubr.bf16.gmra.mxu0 %v949
  %v1616 = vpop.f32.mrf.mxu0
  %v1617 = vadd.f32 0.0, %v1616
  %v1618 = vpop.f32.mrf.mxu0
  %v1619 = vpop.f32.mrf.mxu0
  %v1620 = vadd.f32 0.0, %v1619
  %v1621 = vpop.f32.mrf.mxu0
  %1622 = vmatprep.mubr.bf16.mxu0 0
  %1623 = vmatmul.mubr.bf16.gmra.mxu0 %v952
  %v1624 = vpop.f32.mrf.mxu0
  %v1625 = vadd.f32 0.0, %v1624
  %v1626 = vpop.f32.mrf.mxu0
  %v1627 = vpop.f32.mrf.mxu0
  %v1628 = vadd.f32 0.0, %v1627
  %v1629 = vpop.f32.mrf.mxu0
  %1630 = vmatprep.mubr.bf16.mxu0 0
  %1631 = vmatmul.mubr.bf16.gmra.mxu0 %v955
  %v1632 = vpop.f32.mrf.mxu0
  %v1633 = vadd.f32 0.0, %v1632
  %v1634 = vpop.f32.mrf.mxu0
  %v1635 = vpop.f32.mrf.mxu0
  %v1636 = vadd.f32 0.0, %v1635
  %v1637 = vpop.f32.mrf.mxu0
  %1638 = vmatprep.mubr.bf16.mxu0 0
  %1639 = vmatmul.mubr.bf16.gmra.mxu0 %v958
  %v1640 = vpop.f32.mrf.mxu0
  %v1641 = vadd.f32 0.0, %v1640
  %v1642 = vpop.f32.mrf.mxu0
  %v1643 = vpop.f32.mrf.mxu0
  %v1644 = vadd.f32 0.0, %v1643
  %v1645 = vpop.f32.mrf.mxu0
  %1646 = vmatprep.mubr.bf16.mxu0 0
  %1647 = vmatmul.mubr.bf16.gmra.mxu0 %v961
  %v1648 = vpop.f32.mrf.mxu0
  %v1649 = vadd.f32 0.0, %v1648
  %v1650 = vpop.f32.mrf.mxu0
  %v1651 = vpop.f32.mrf.mxu0
  %v1652 = vadd.f32 0.0, %v1651
  %v1653 = vpop.f32.mrf.mxu0
  %1654 = vmatprep.mubr.bf16.mxu0 0
  %1655 = vmatmul.mubr.bf16.gmra.mxu0 %v964
  %v1656 = vpop.f32.mrf.mxu0
  %v1657 = vadd.f32 0.0, %v1656
  %v1658 = vpop.f32.mrf.mxu0
  %v1659 = vpop.f32.mrf.mxu0
  %v1660 = vadd.f32 0.0, %v1659
  %v1661 = vpop.f32.mrf.mxu0
  %1662 = vmatprep.mubr.bf16.mxu0 0
  %1663 = vmatmul.mubr.bf16.gmra.mxu0 %v967
  %v1664 = vpop.f32.mrf.mxu0
  %v1665 = vadd.f32 0.0, %v1664
  %v1666 = vpop.f32.mrf.mxu0
  %v1667 = vpop.f32.mrf.mxu0
  %v1668 = vadd.f32 0.0, %v1667
  %v1669 = vpop.f32.mrf.mxu0
  %1670 = vmatprep.mubr.bf16.mxu0 0
  %1671 = vmatmul.mubr.bf16.gmra.mxu0 %v970
  %v1672 = vpop.f32.mrf.mxu0
  %v1673 = vadd.f32 0.0, %v1672
  %v1674 = vpop.f32.mrf.mxu0
  %v1675 = vpop.f32.mrf.mxu0
  %v1676 = vadd.f32 0.0, %v1675
  %v1677 = vpop.f32.mrf.mxu0
  %1678 = vmatprep.mubr.bf16.mxu0 0
  %1679 = vmatmul.mubr.bf16.gmra.mxu0 %v973
  %v1680 = vpop.f32.mrf.mxu0
  %v1681 = vadd.f32 0.0, %v1680
  %v1682 = vpop.f32.mrf.mxu0
  %v1683 = vpop.f32.mrf.mxu0
  %v1684 = vadd.f32 0.0, %v1683
  %v1685 = vpop.f32.mrf.mxu0
  %1686 = vmatprep.mubr.bf16.mxu0 0
  %1687 = vmatmul.mubr.bf16.gmra.mxu0 %v976
  %v1688 = vpop.f32.mrf.mxu0
  %v1689 = vadd.f32 0.0, %v1688
  %v1690 = vpop.f32.mrf.mxu0
  %v1691 = vpop.f32.mrf.mxu0
  %v1692 = vadd.f32 0.0, %v1691
  %v1693 = vpop.f32.mrf.mxu0
  %1694 = vmatprep.mubr.bf16.mxu0 0
  %1695 = vmatmul.mubr.bf16.gmra.mxu0 %v979
  %v1696 = vpop.f32.mrf.mxu0
  %v1697 = vadd.f32 0.0, %v1696
  %v1698 = vpop.f32.mrf.mxu0
  %v1699 = vpop.f32.mrf.mxu0
  %v1700 = vadd.f32 0.0, %v1699
  %v1701 = vpop.f32.mrf.mxu0
  %1702 = vmatprep.mubr.bf16.mxu0 0
  %1703 = vmatmul.mubr.bf16.gmra.mxu0 %v982
  %v1704 = vpop.f32.mrf.mxu0
  %v1705 = vadd.f32 0.0, %v1704
  %v1706 = vpop.f32.mrf.mxu0
  %v1707 = vpop.f32.mrf.mxu0
  %v1708 = vadd.f32 0.0, %v1707
  %v1709 = vpop.f32.mrf.mxu0
  %1710 = vmatprep.mubr.bf16.mxu0 0
  %1711 = vmatmul.mubr.bf16.gmra.mxu0 %v985
  %v1712 = vpop.f32.mrf.mxu0
  %v1713 = vadd.f32 0.0, %v1712
  %v1714 = vpop.f32.mrf.mxu0
  %v1715 = vpop.f32.mrf.mxu0
  %v1716 = vadd.f32 0.0, %v1715
  %v1717 = vpop.f32.mrf.mxu0
  %1718 = vmatprep.mubr.bf16.mxu0 0
  %1719 = vmatmul.mubr.bf16.gmra.mxu0 %v988
  %v1720 = vpop.f32.mrf.mxu0
  %v1721 = vadd.f32 0.0, %v1720
  %v1722 = vpop.f32.mrf.mxu0
  %v1723 = vpop.f32.mrf.mxu0
  %v1724 = vadd.f32 0.0, %v1723
  %v1725 = vpop.f32.mrf.mxu0
  %1726 = vmatprep.mubr.bf16.mxu0 0
  %1727 = vmatmul.mubr.bf16.gmra.mxu0 %v991
  %v1728 = vpop.f32.mrf.mxu0
  %v1729 = vadd.f32 0.0, %v1728
  %v1730 = vpop.f32.mrf.mxu0
  %v1731 = vpop.f32.mrf.mxu0
  %v1732 = vadd.f32 0.0, %v1731
  %v1733 = vpop.f32.mrf.mxu0
  %1734 = vmatprep.mubr.bf16.mxu0 0
  %1735 = vmatmul.mubr.bf16.gmra.mxu0 %v994
  %v1736 = vpop.f32.mrf.mxu0
  %v1737 = vadd.f32 0.0, %v1736
  %v1738 = vpop.f32.mrf.mxu0
  %v1739 = vpop.f32.mrf.mxu0
  %v1740 = vadd.f32 0.0, %v1739
  %v1741 = vpop.f32.mrf.mxu0
  %1742 = vmatprep.mubr.bf16.mxu0 0
  %1743 = vmatmul.mubr.bf16.gmra.mxu0 %v997
  %v1744 = vpop.f32.mrf.mxu0
  %v1745 = vadd.f32 0.0, %v1744
  %v1746 = vpop.f32.mrf.mxu0
  %v1747 = vpop.f32.mrf.mxu0
  %v1748 = vadd.f32 0.0, %v1747
  %v1749 = vpop.f32.mrf.mxu0
  %1750 = vmatprep.mubr.bf16.mxu0 0
  %1751 = vmatmul.mubr.bf16.gmra.mxu0 %v1000
  %v1752 = vpop.f32.mrf.mxu0
  %v1753 = vadd.f32 0.0, %v1752
  %v1754 = vpop.f32.mrf.mxu0
  %v1755 = vpop.f32.mrf.mxu0
  %v1756 = vadd.f32 0.0, %v1755
  %v1757 = vpop.f32.mrf.mxu0
  %1758 = vmatprep.mubr.bf16.mxu0 0
  %1759 = vmatmul.mubr.bf16.gmra.mxu0 %v1003
  %v1760 = vpop.f32.mrf.mxu0
  %v1761 = vadd.f32 0.0, %v1760
  %v1762 = vpop.f32.mrf.mxu0
  %v1763 = vpop.f32.mrf.mxu0
  %v1764 = vadd.f32 0.0, %v1763
  %v1765 = vpop.f32.mrf.mxu0
  %1766 = vmatprep.mubr.bf16.mxu0 0
  %1767 = vmatmul.mubr.bf16.gmra.mxu0 %v1006
  %v1768 = vpop.f32.mrf.mxu0
  %v1769 = vadd.f32 0.0, %v1768
  %v1770 = vpop.f32.mrf.mxu0
  %v1771 = vpop.f32.mrf.mxu0
  %v1772 = vadd.f32 0.0, %v1771
  %v1773 = vpop.f32.mrf.mxu0
  %1774 = vmatprep.mubr.bf16.mxu0 0
  %1775 = vmatmul.mubr.bf16.gmra.mxu0 %v1009
  %v1776 = vpop.f32.mrf.mxu0
  %v1777 = vadd.f32 0.0, %v1776
  %v1778 = vpop.f32.mrf.mxu0
  %v1779 = vpop.f32.mrf.mxu0
  %v1780 = vadd.f32 0.0, %v1779
  %v1781 = vpop.f32.mrf.mxu0
  %1782 = vmatprep.mubr.bf16.mxu0 0
  %1783 = vmatmul.mubr.bf16.gmra.mxu0 %v1012
  %v1784 = vpop.f32.mrf.mxu0
  %v1785 = vadd.f32 0.0, %v1784
  %v1786 = vpop.f32.mrf.mxu0
  %v1787 = vpop.f32.mrf.mxu0
  %v1788 = vadd.f32 0.0, %v1787
  %v1789 = vpop.f32.mrf.mxu0
  %1790 = vmatprep.mubr.bf16.mxu0 0
  %1791 = vmatmul.mubr.bf16.gmra.mxu0 %v1015
  %v1792 = vpop.f32.mrf.mxu0
  %v1793 = vadd.f32 0.0, %v1792
  %v1794 = vpop.f32.mrf.mxu0
  %v1795 = vpop.f32.mrf.mxu0
  %v1796 = vadd.f32 0.0, %v1795
  %v1797 = vpop.f32.mrf.mxu0
  %1798 = vmatprep.mubr.bf16.mxu0 0
  %1799 = vmatmul.mubr.bf16.gmra.mxu0 %v1018
  %v1800 = vpop.f32.mrf.mxu0
  %v1801 = vadd.f32 0.0, %v1800
  %v1802 = vpop.f32.mrf.mxu0
  %v1803 = vpop.f32.mrf.mxu0
  %v1804 = vadd.f32 0.0, %v1803
  %v1805 = vpop.f32.mrf.mxu0
  %1806 = vmatprep.mubr.bf16.mxu0 0
  %1807 = vmatmul.mubr.bf16.gmra.mxu0 %v1021
  %v1808 = vpop.f32.mrf.mxu0
  %v1809 = vadd.f32 0.0, %v1808
  %v1810 = vpop.f32.mrf.mxu0
  %v1811 = vpop.f32.mrf.mxu0
  %v1812 = vadd.f32 0.0, %v1811
  %v1813 = vpop.f32.mrf.mxu0
  %1814 = vmatprep.mubr.bf16.mxu0 0
  %1815 = vmatmul.mubr.bf16.gmra.mxu0 %v1024
  %v1816 = vpop.f32.mrf.mxu0
  %v1817 = vadd.f32 0.0, %v1816
  %v1818 = vpop.f32.mrf.mxu0
  %v1819 = vpop.f32.mrf.mxu0
  %v1820 = vadd.f32 0.0, %v1819
  %v1821 = vpop.f32.mrf.mxu0
  %1822 = vmatprep.mubr.bf16.mxu0 0
  %1823 = vmatmul.mubr.bf16.gmra.mxu0 %v1027
  %v1824 = vpop.f32.mrf.mxu0
  %v1825 = vadd.f32 0.0, %v1824
  %v1826 = vpop.f32.mrf.mxu0
  %v1827 = vpop.f32.mrf.mxu0
  %v1828 = vadd.f32 0.0, %v1827
  %v1829 = vpop.f32.mrf.mxu0
  %1830 = vmatprep.mubr.bf16.mxu0 0
  %1831 = vmatmul.mubr.bf16.gmra.mxu0 %v1030
  %v1832 = vpop.f32.mrf.mxu0
  %v1833 = vadd.f32 0.0, %v1832
  %v1834 = vpop.f32.mrf.mxu0
  %v1835 = vpop.f32.mrf.mxu0
  %v1836 = vadd.f32 0.0, %v1835
  %v1837 = vpop.f32.mrf.mxu0
  %1838 = vmatprep.mubr.bf16.mxu0 0
  %1839 = vmatmul.mubr.bf16.gmra.mxu0 %v1033
  %v1840 = vpop.f32.mrf.mxu0
  %v1841 = vadd.f32 0.0, %v1840
  %v1842 = vpop.f32.mrf.mxu0
  %v1843 = vpop.f32.mrf.mxu0
  %v1844 = vadd.f32 0.0, %v1843
  %v1845 = vpop.f32.mrf.mxu0
  %1846 = vmatprep.mubr.bf16.mxu0 0
  %1847 = vmatmul.mubr.bf16.gmra.mxu0 %v1036
  %v1848 = vpop.f32.mrf.mxu0
  %v1849 = vadd.f32 0.0, %v1848
  %v1850 = vpop.f32.mrf.mxu0
  %v1851 = vpop.f32.mrf.mxu0
  %v1852 = vadd.f32 0.0, %v1851
  %v1853 = vpop.f32.mrf.mxu0
  %1854 = vmatprep.mubr.bf16.mxu0 0
  %1855 = vmatmul.mubr.bf16.gmra.mxu0 %v1039
  %v1856 = vpop.f32.mrf.mxu0
  %v1857 = vadd.f32 0.0, %v1856
  %v1858 = vpop.f32.mrf.mxu0
  %v1859 = vpop.f32.mrf.mxu0
  %v1860 = vadd.f32 0.0, %v1859
  %v1861 = vpop.f32.mrf.mxu0
  %1862 = vmatprep.mubr.bf16.mxu0 0
  %1863 = vmatmul.mubr.bf16.gmra.mxu0 %v1042
  %v1864 = vpop.f32.mrf.mxu0
  %v1865 = vadd.f32 0.0, %v1864
  %v1866 = vpop.f32.mrf.mxu0
  %v1867 = vpop.f32.mrf.mxu0
  %v1868 = vadd.f32 0.0, %v1867
  %v1869 = vpop.f32.mrf.mxu0
  %1870 = vmatprep.mubr.bf16.mxu0 0
  %1871 = vmatmul.mubr.bf16.gmra.mxu0 %v1045
  %v1872 = vpop.f32.mrf.mxu0
  %v1873 = vadd.f32 0.0, %v1872
  %v1874 = vpop.f32.mrf.mxu0
  %v1875 = vpop.f32.mrf.mxu0
  %v1876 = vadd.f32 0.0, %v1875
  %v1877 = vpop.f32.mrf.mxu0
  %1878 = vmatprep.mubr.bf16.mxu0 0
  %1879 = vmatmul.mubr.bf16.gmra.mxu0 %v1048
  %v1880 = vpop.f32.mrf.mxu0
  %v1881 = vadd.f32 0.0, %v1880
  %v1882 = vpop.f32.mrf.mxu0
  %v1883 = vpop.f32.mrf.mxu0
  %v1884 = vadd.f32 0.0, %v1883
  %v1885 = vpop.f32.mrf.mxu0
  %1886 = vmatprep.mubr.bf16.mxu0 0
  %1887 = vmatmul.mubr.bf16.gmra.mxu0 %v1051
  %v1888 = vpop.f32.mrf.mxu0
  %v1889 = vadd.f32 0.0, %v1888
  %v1890 = vpop.f32.mrf.mxu0
  %v1891 = vpop.f32.mrf.mxu0
  %v1892 = vadd.f32 0.0, %v1891
  %v1893 = vpop.f32.mrf.mxu0
  %1894 = vmatprep.mubr.bf16.mxu0 0
  %1895 = vmatmul.mubr.bf16.gmra.mxu0 %v1054
  %v1896 = vpop.f32.mrf.mxu0
  %v1897 = vadd.f32 0.0, %v1896
  %v1898 = vpop.f32.mrf.mxu0
  %v1899 = vpop.f32.mrf.mxu0
  %v1900 = vadd.f32 0.0, %v1899
  %v1901 = vpop.f32.mrf.mxu0
  %1902 = vmatprep.mubr.bf16.mxu0 0
  %1903 = vmatmul.mubr.bf16.gmra.mxu0 %v1057
  %v1904 = vpop.f32.mrf.mxu0
  %v1905 = vadd.f32 0.0, %v1904
  %v1906 = vpop.f32.mrf.mxu0
  %v1907 = vpop.f32.mrf.mxu0
  %v1908 = vadd.f32 0.0, %v1907
  %v1909 = vpop.f32.mrf.mxu0
  %1910 = vmatprep.mubr.bf16.mxu0 0
  %1911 = vmatmul.mubr.bf16.gmra.mxu0 %v1060
  %v1912 = vpop.f32.mrf.mxu0
  %v1913 = vadd.f32 0.0, %v1912
  %v1914 = vpop.f32.mrf.mxu0
  %v1915 = vpop.f32.mrf.mxu0
  %v1916 = vadd.f32 0.0, %v1915
  %v1917 = vpop.f32.mrf.mxu0
  %1918 = vmatprep.mubr.bf16.mxu0 0
  %1919 = vmatmul.mubr.bf16.gmra.mxu0 %v1063
  %v1920 = vpop.f32.mrf.mxu0
  %v1921 = vadd.f32 0.0, %v1920
  %v1922 = vpop.f32.mrf.mxu0
  %v1923 = vpop.f32.mrf.mxu0
  %v1924 = vadd.f32 0.0, %v1923
  %v1925 = vpop.f32.mrf.mxu0
  %1926 = vmatprep.mubr.bf16.mxu0 0
  %1927 = vmatmul.mubr.bf16.gmra.mxu0 %v1066
  %v1928 = vpop.f32.mrf.mxu0
  %v1929 = vadd.f32 0.0, %v1928
  %v1930 = vpop.f32.mrf.mxu0
  %v1931 = vpop.f32.mrf.mxu0
  %v1932 = vadd.f32 0.0, %v1931
  %v1933 = vpop.f32.mrf.mxu0
  %1934 = vmatprep.mubr.bf16.mxu0 0
  %1935 = vmatmul.mubr.bf16.gmra.mxu0 %v1069
  %v1936 = vpop.f32.mrf.mxu0
  %v1937 = vadd.f32 0.0, %v1936
  %v1938 = vpop.f32.mrf.mxu0
  %v1939 = vpop.f32.mrf.mxu0
  %v1940 = vadd.f32 0.0, %v1939
  %v1941 = vpop.f32.mrf.mxu0
  %1942 = vdwg.mxu0
  %vm1943 = vcmask 130048
  %v1944 = vsel %vm1943, %v1113, -inf
  %v1945 = vsel %vm1943, %v1321, -inf
  %v1946 = vmax.f32 %v1944, %v1945
  %v1947 = vsel %vm1943, %v1529, -inf
  %v1948 = vmax.f32 %v1946, %v1947
  %v1949 = vsel %vm1943, %v1737, -inf
  %v1950 = vmax.f32 %v1948, %v1949
  %v1951 = vsel %vm1943, %v1116, -inf
  %v1952 = vsel %vm1943, %v1324, -inf
  %v1953 = vmax.f32 %v1951, %v1952
  %v1954 = vsel %vm1943, %v1532, -inf
  %v1955 = vmax.f32 %v1953, %v1954
  %v1956 = vsel %vm1943, %v1740, -inf
  %v1957 = vmax.f32 %v1955, %v1956
  %v1958 = vsel %vm1943, %v1121, -inf
  %v1959 = vsel %vm1943, %v1329, -inf
  %v1960 = vmax.f32 %v1958, %v1959
  %v1961 = vsel %vm1943, %v1537, -inf
  %v1962 = vmax.f32 %v1960, %v1961
  %v1963 = vsel %vm1943, %v1745, -inf
  %v1964 = vmax.f32 %v1962, %v1963
  %v1965 = vsel %vm1943, %v1124, -inf
  %v1966 = vsel %vm1943, %v1332, -inf
  %v1967 = vmax.f32 %v1965, %v1966
  %v1968 = vsel %vm1943, %v1540, -inf
  %v1969 = vmax.f32 %v1967, %v1968
  %v1970 = vsel %vm1943, %v1748, -inf
  %v1971 = vmax.f32 %v1969, %v1970
  %v1972 = vsel %vm1943, %v1129, -inf
  %v1973 = vsel %vm1943, %v1337, -inf
  %v1974 = vmax.f32 %v1972, %v1973
  %v1975 = vsel %vm1943, %v1545, -inf
  %v1976 = vmax.f32 %v1974, %v1975
  %v1977 = vsel %vm1943, %v1753, -inf
  %v1978 = vmax.f32 %v1976, %v1977
  %v1979 = vsel %vm1943, %v1132, -inf
  %v1980 = vsel %vm1943, %v1340, -inf
  %v1981 = vmax.f32 %v1979, %v1980
  %v1982 = vsel %vm1943, %v1548, -inf
  %v1983 = vmax.f32 %v1981, %v1982
  %v1984 = vsel %vm1943, %v1756, -inf
  %v1985 = vmax.f32 %v1983, %v1984
  %v1986 = vsel %vm1943, %v1137, -inf
  %v1987 = vsel %vm1943, %v1345, -inf
  %v1988 = vmax.f32 %v1986, %v1987
  %v1989 = vsel %vm1943, %v1553, -inf
  %v1990 = vmax.f32 %v1988, %v1989
  %v1991 = vsel %vm1943, %v1761, -inf
  %v1992 = vmax.f32 %v1990, %v1991
  %v1993 = vsel %vm1943, %v1140, -inf
  %v1994 = vsel %vm1943, %v1348, -inf
  %v1995 = vmax.f32 %v1993, %v1994
  %v1996 = vsel %vm1943, %v1556, -inf
  %v1997 = vmax.f32 %v1995, %v1996
  %v1998 = vsel %vm1943, %v1764, -inf
  %v1999 = vmax.f32 %v1997, %v1998
  %v2000 = vsel %vm1943, %v1145, -inf
  %v2001 = vsel %vm1943, %v1353, -inf
  %v2002 = vmax.f32 %v2000, %v2001
  %v2003 = vsel %vm1943, %v1561, -inf
  %v2004 = vmax.f32 %v2002, %v2003
  %v2005 = vsel %vm1943, %v1769, -inf
  %v2006 = vmax.f32 %v2004, %v2005
  %v2007 = vsel %vm1943, %v1148, -inf
  %v2008 = vsel %vm1943, %v1356, -inf
  %v2009 = vmax.f32 %v2007, %v2008
  %v2010 = vsel %vm1943, %v1564, -inf
  %v2011 = vmax.f32 %v2009, %v2010
  %v2012 = vsel %vm1943, %v1772, -inf
  %v2013 = vmax.f32 %v2011, %v2012
  %v2014 = vsel %vm1943, %v1153, -inf
  %v2015 = vsel %vm1943, %v1361, -inf
  %v2016 = vmax.f32 %v2014, %v2015
  %v2017 = vsel %vm1943, %v1569, -inf
  %v2018 = vmax.f32 %v2016, %v2017
  %v2019 = vsel %vm1943, %v1777, -inf
  %v2020 = vmax.f32 %v2018, %v2019
  %v2021 = vsel %vm1943, %v1156, -inf
  %v2022 = vsel %vm1943, %v1364, -inf
  %v2023 = vmax.f32 %v2021, %v2022
  %v2024 = vsel %vm1943, %v1572, -inf
  %v2025 = vmax.f32 %v2023, %v2024
  %v2026 = vsel %vm1943, %v1780, -inf
  %v2027 = vmax.f32 %v2025, %v2026
  %v2028 = vsel %vm1943, %v1161, -inf
  %v2029 = vsel %vm1943, %v1369, -inf
  %v2030 = vmax.f32 %v2028, %v2029
  %v2031 = vsel %vm1943, %v1577, -inf
  %v2032 = vmax.f32 %v2030, %v2031
  %v2033 = vsel %vm1943, %v1785, -inf
  %v2034 = vmax.f32 %v2032, %v2033
  %v2035 = vsel %vm1943, %v1164, -inf
  %v2036 = vsel %vm1943, %v1372, -inf
  %v2037 = vmax.f32 %v2035, %v2036
  %v2038 = vsel %vm1943, %v1580, -inf
  %v2039 = vmax.f32 %v2037, %v2038
  %v2040 = vsel %vm1943, %v1788, -inf
  %v2041 = vmax.f32 %v2039, %v2040
  %v2042 = vsel %vm1943, %v1169, -inf
  %v2043 = vsel %vm1943, %v1377, -inf
  %v2044 = vmax.f32 %v2042, %v2043
  %v2045 = vsel %vm1943, %v1585, -inf
  %v2046 = vmax.f32 %v2044, %v2045
  %v2047 = vsel %vm1943, %v1793, -inf
  %v2048 = vmax.f32 %v2046, %v2047
  %v2049 = vsel %vm1943, %v1172, -inf
  %v2050 = vsel %vm1943, %v1380, -inf
  %v2051 = vmax.f32 %v2049, %v2050
  %v2052 = vsel %vm1943, %v1588, -inf
  %v2053 = vmax.f32 %v2051, %v2052
  %v2054 = vsel %vm1943, %v1796, -inf
  %v2055 = vmax.f32 %v2053, %v2054
  %v2056 = vsel %vm1943, %v1177, -inf
  %v2057 = vsel %vm1943, %v1385, -inf
  %v2058 = vmax.f32 %v2056, %v2057
  %v2059 = vsel %vm1943, %v1593, -inf
  %v2060 = vmax.f32 %v2058, %v2059
  %v2061 = vsel %vm1943, %v1801, -inf
  %v2062 = vmax.f32 %v2060, %v2061
  %v2063 = vsel %vm1943, %v1180, -inf
  %v2064 = vsel %vm1943, %v1388, -inf
  %v2065 = vmax.f32 %v2063, %v2064
  %v2066 = vsel %vm1943, %v1596, -inf
  %v2067 = vmax.f32 %v2065, %v2066
  %v2068 = vsel %vm1943, %v1804, -inf
  %v2069 = vmax.f32 %v2067, %v2068
  %v2070 = vsel %vm1943, %v1185, -inf
  %v2071 = vsel %vm1943, %v1393, -inf
  %v2072 = vmax.f32 %v2070, %v2071
  %v2073 = vsel %vm1943, %v1601, -inf
  %v2074 = vmax.f32 %v2072, %v2073
  %v2075 = vsel %vm1943, %v1809, -inf
  %v2076 = vmax.f32 %v2074, %v2075
  %v2077 = vsel %vm1943, %v1188, -inf
  %v2078 = vsel %vm1943, %v1396, -inf
  %v2079 = vmax.f32 %v2077, %v2078
  %v2080 = vsel %vm1943, %v1604, -inf
  %v2081 = vmax.f32 %v2079, %v2080
  %v2082 = vsel %vm1943, %v1812, -inf
  %v2083 = vmax.f32 %v2081, %v2082
  %v2084 = vsel %vm1943, %v1193, -inf
  %v2085 = vsel %vm1943, %v1401, -inf
  %v2086 = vmax.f32 %v2084, %v2085
  %v2087 = vsel %vm1943, %v1609, -inf
  %v2088 = vmax.f32 %v2086, %v2087
  %v2089 = vsel %vm1943, %v1817, -inf
  %v2090 = vmax.f32 %v2088, %v2089
  %v2091 = vsel %vm1943, %v1196, -inf
  %v2092 = vsel %vm1943, %v1404, -inf
  %v2093 = vmax.f32 %v2091, %v2092
  %v2094 = vsel %vm1943, %v1612, -inf
  %v2095 = vmax.f32 %v2093, %v2094
  %v2096 = vsel %vm1943, %v1820, -inf
  %v2097 = vmax.f32 %v2095, %v2096
  %v2098 = vsel %vm1943, %v1201, -inf
  %v2099 = vsel %vm1943, %v1409, -inf
  %v2100 = vmax.f32 %v2098, %v2099
  %v2101 = vsel %vm1943, %v1617, -inf
  %v2102 = vmax.f32 %v2100, %v2101
  %v2103 = vsel %vm1943, %v1825, -inf
  %v2104 = vmax.f32 %v2102, %v2103
  %v2105 = vsel %vm1943, %v1204, -inf
  %v2106 = vsel %vm1943, %v1412, -inf
  %v2107 = vmax.f32 %v2105, %v2106
  %v2108 = vsel %vm1943, %v1620, -inf
  %v2109 = vmax.f32 %v2107, %v2108
  %v2110 = vsel %vm1943, %v1828, -inf
  %v2111 = vmax.f32 %v2109, %v2110
  %v2112 = vsel %vm1943, %v1209, -inf
  %v2113 = vsel %vm1943, %v1417, -inf
  %v2114 = vmax.f32 %v2112, %v2113
  %v2115 = vsel %vm1943, %v1625, -inf
  %v2116 = vmax.f32 %v2114, %v2115
  %v2117 = vsel %vm1943, %v1833, -inf
  %v2118 = vmax.f32 %v2116, %v2117
  %v2119 = vsel %vm1943, %v1212, -inf
  %v2120 = vsel %vm1943, %v1420, -inf
  %v2121 = vmax.f32 %v2119, %v2120
  %v2122 = vsel %vm1943, %v1628, -inf
  %v2123 = vmax.f32 %v2121, %v2122
  %v2124 = vsel %vm1943, %v1836, -inf
  %v2125 = vmax.f32 %v2123, %v2124
  %v2126 = vsel %vm1943, %v1217, -inf
  %v2127 = vsel %vm1943, %v1425, -inf
  %v2128 = vmax.f32 %v2126, %v2127
  %v2129 = vsel %vm1943, %v1633, -inf
  %v2130 = vmax.f32 %v2128, %v2129
  %v2131 = vsel %vm1943, %v1841, -inf
  %v2132 = vmax.f32 %v2130, %v2131
  %v2133 = vsel %vm1943, %v1220, -inf
  %v2134 = vsel %vm1943, %v1428, -inf
  %v2135 = vmax.f32 %v2133, %v2134
  %v2136 = vsel %vm1943, %v1636, -inf
  %v2137 = vmax.f32 %v2135, %v2136
  %v2138 = vsel %vm1943, %v1844, -inf
  %v2139 = vmax.f32 %v2137, %v2138
  %v2140 = vsel %vm1943, %v1225, -inf
  %v2141 = vsel %vm1943, %v1433, -inf
  %v2142 = vmax.f32 %v2140, %v2141
  %v2143 = vsel %vm1943, %v1641, -inf
  %v2144 = vmax.f32 %v2142, %v2143
  %v2145 = vsel %vm1943, %v1849, -inf
  %v2146 = vmax.f32 %v2144, %v2145
  %v2147 = vsel %vm1943, %v1228, -inf
  %v2148 = vsel %vm1943, %v1436, -inf
  %v2149 = vmax.f32 %v2147, %v2148
  %v2150 = vsel %vm1943, %v1644, -inf
  %v2151 = vmax.f32 %v2149, %v2150
  %v2152 = vsel %vm1943, %v1852, -inf
  %v2153 = vmax.f32 %v2151, %v2152
  %v2154 = vsel %vm1943, %v1233, -inf
  %v2155 = vsel %vm1943, %v1441, -inf
  %v2156 = vmax.f32 %v2154, %v2155
  %v2157 = vsel %vm1943, %v1649, -inf
  %v2158 = vmax.f32 %v2156, %v2157
  %v2159 = vsel %vm1943, %v1857, -inf
  %v2160 = vmax.f32 %v2158, %v2159
  %v2161 = vsel %vm1943, %v1236, -inf
  %v2162 = vsel %vm1943, %v1444, -inf
  %v2163 = vmax.f32 %v2161, %v2162
  %v2164 = vsel %vm1943, %v1652, -inf
  %v2165 = vmax.f32 %v2163, %v2164
  %v2166 = vsel %vm1943, %v1860, -inf
  %v2167 = vmax.f32 %v2165, %v2166
  %v2168 = vsel %vm1943, %v1241, -inf
  %v2169 = vsel %vm1943, %v1449, -inf
  %v2170 = vmax.f32 %v2168, %v2169
  %v2171 = vsel %vm1943, %v1657, -inf
  %v2172 = vmax.f32 %v2170, %v2171
  %v2173 = vsel %vm1943, %v1865, -inf
  %v2174 = vmax.f32 %v2172, %v2173
  %v2175 = vsel %vm1943, %v1244, -inf
  %v2176 = vsel %vm1943, %v1452, -inf
  %v2177 = vmax.f32 %v2175, %v2176
  %v2178 = vsel %vm1943, %v1660, -inf
  %v2179 = vmax.f32 %v2177, %v2178
  %v2180 = vsel %vm1943, %v1868, -inf
  %v2181 = vmax.f32 %v2179, %v2180
  %v2182 = vsel %vm1943, %v1249, -inf
  %v2183 = vsel %vm1943, %v1457, -inf
  %v2184 = vmax.f32 %v2182, %v2183
  %v2185 = vsel %vm1943, %v1665, -inf
  %v2186 = vmax.f32 %v2184, %v2185
  %v2187 = vsel %vm1943, %v1873, -inf
  %v2188 = vmax.f32 %v2186, %v2187
  %v2189 = vsel %vm1943, %v1252, -inf
  %v2190 = vsel %vm1943, %v1460, -inf
  %v2191 = vmax.f32 %v2189, %v2190
  %v2192 = vsel %vm1943, %v1668, -inf
  %v2193 = vmax.f32 %v2191, %v2192
  %v2194 = vsel %vm1943, %v1876, -inf
  %v2195 = vmax.f32 %v2193, %v2194
  %v2196 = vsel %vm1943, %v1257, -inf
  %v2197 = vsel %vm1943, %v1465, -inf
  %v2198 = vmax.f32 %v2196, %v2197
  %v2199 = vsel %vm1943, %v1673, -inf
  %v2200 = vmax.f32 %v2198, %v2199
  %v2201 = vsel %vm1943, %v1881, -inf
  %v2202 = vmax.f32 %v2200, %v2201
  %v2203 = vsel %vm1943, %v1260, -inf
  %v2204 = vsel %vm1943, %v1468, -inf
  %v2205 = vmax.f32 %v2203, %v2204
  %v2206 = vsel %vm1943, %v1676, -inf
  %v2207 = vmax.f32 %v2205, %v2206
  %v2208 = vsel %vm1943, %v1884, -inf
  %v2209 = vmax.f32 %v2207, %v2208
  %v2210 = vsel %vm1943, %v1265, -inf
  %v2211 = vsel %vm1943, %v1473, -inf
  %v2212 = vmax.f32 %v2210, %v2211
  %v2213 = vsel %vm1943, %v1681, -inf
  %v2214 = vmax.f32 %v2212, %v2213
  %v2215 = vsel %vm1943, %v1889, -inf
  %v2216 = vmax.f32 %v2214, %v2215
  %v2217 = vsel %vm1943, %v1268, -inf
  %v2218 = vsel %vm1943, %v1476, -inf
  %v2219 = vmax.f32 %v2217, %v2218
  %v2220 = vsel %vm1943, %v1684, -inf
  %v2221 = vmax.f32 %v2219, %v2220
  %v2222 = vsel %vm1943, %v1892, -inf
  %v2223 = vmax.f32 %v2221, %v2222
  %v2224 = vsel %vm1943, %v1273, -inf
  %v2225 = vsel %vm1943, %v1481, -inf
  %v2226 = vmax.f32 %v2224, %v2225
  %v2227 = vsel %vm1943, %v1689, -inf
  %v2228 = vmax.f32 %v2226, %v2227
  %v2229 = vsel %vm1943, %v1897, -inf
  %v2230 = vmax.f32 %v2228, %v2229
  %v2231 = vsel %vm1943, %v1276, -inf
  %v2232 = vsel %vm1943, %v1484, -inf
  %v2233 = vmax.f32 %v2231, %v2232
  %v2234 = vsel %vm1943, %v1692, -inf
  %v2235 = vmax.f32 %v2233, %v2234
  %v2236 = vsel %vm1943, %v1900, -inf
  %v2237 = vmax.f32 %v2235, %v2236
  %v2238 = vsel %vm1943, %v1281, -inf
  %v2239 = vsel %vm1943, %v1489, -inf
  %v2240 = vmax.f32 %v2238, %v2239
  %v2241 = vsel %vm1943, %v1697, -inf
  %v2242 = vmax.f32 %v2240, %v2241
  %v2243 = vsel %vm1943, %v1905, -inf
  %v2244 = vmax.f32 %v2242, %v2243
  %v2245 = vsel %vm1943, %v1284, -inf
  %v2246 = vsel %vm1943, %v1492, -inf
  %v2247 = vmax.f32 %v2245, %v2246
  %v2248 = vsel %vm1943, %v1700, -inf
  %v2249 = vmax.f32 %v2247, %v2248
  %v2250 = vsel %vm1943, %v1908, -inf
  %v2251 = vmax.f32 %v2249, %v2250
  %v2252 = vsel %vm1943, %v1289, -inf
  %v2253 = vsel %vm1943, %v1497, -inf
  %v2254 = vmax.f32 %v2252, %v2253
  %v2255 = vsel %vm1943, %v1705, -inf
  %v2256 = vmax.f32 %v2254, %v2255
  %v2257 = vsel %vm1943, %v1913, -inf
  %v2258 = vmax.f32 %v2256, %v2257
  %v2259 = vsel %vm1943, %v1292, -inf
  %v2260 = vsel %vm1943, %v1500, -inf
  %v2261 = vmax.f32 %v2259, %v2260
  %v2262 = vsel %vm1943, %v1708, -inf
  %v2263 = vmax.f32 %v2261, %v2262
  %v2264 = vsel %vm1943, %v1916, -inf
  %v2265 = vmax.f32 %v2263, %v2264
  %v2266 = vsel %vm1943, %v1297, -inf
  %v2267 = vsel %vm1943, %v1505, -inf
  %v2268 = vmax.f32 %v2266, %v2267
  %v2269 = vsel %vm1943, %v1713, -inf
  %v2270 = vmax.f32 %v2268, %v2269
  %v2271 = vsel %vm1943, %v1921, -inf
  %v2272 = vmax.f32 %v2270, %v2271
  %v2273 = vsel %vm1943, %v1300, -inf
  %v2274 = vsel %vm1943, %v1508, -inf
  %v2275 = vmax.f32 %v2273, %v2274
  %v2276 = vsel %vm1943, %v1716, -inf
  %v2277 = vmax.f32 %v2275, %v2276
  %v2278 = vsel %vm1943, %v1924, -inf
  %v2279 = vmax.f32 %v2277, %v2278
  %v2280 = vsel %vm1943, %v1305, -inf
  %v2281 = vsel %vm1943, %v1513, -inf
  %v2282 = vmax.f32 %v2280, %v2281
  %v2283 = vsel %vm1943, %v1721, -inf
  %v2284 = vmax.f32 %v2282, %v2283
  %v2285 = vsel %vm1943, %v1929, -inf
  %v2286 = vmax.f32 %v2284, %v2285
  %v2287 = vsel %vm1943, %v1308, -inf
  %v2288 = vsel %vm1943, %v1516, -inf
  %v2289 = vmax.f32 %v2287, %v2288
  %v2290 = vsel %vm1943, %v1724, -inf
  %v2291 = vmax.f32 %v2289, %v2290
  %v2292 = vsel %vm1943, %v1932, -inf
  %v2293 = vmax.f32 %v2291, %v2292
  %v2294 = vsel %vm1943, %v1313, -inf
  %v2295 = vsel %vm1943, %v1521, -inf
  %v2296 = vmax.f32 %v2294, %v2295
  %v2297 = vsel %vm1943, %v1729, -inf
  %v2298 = vmax.f32 %v2296, %v2297
  %v2299 = vsel %vm1943, %v1937, -inf
  %v2300 = vmax.f32 %v2298, %v2299
  %v2301 = vsel %vm1943, %v1316, -inf
  %v2302 = vsel %vm1943, %v1524, -inf
  %v2303 = vmax.f32 %v2301, %v2302
  %v2304 = vsel %vm1943, %v1732, -inf
  %v2305 = vmax.f32 %v2303, %v2304
  %v2306 = vsel %vm1943, %v1940, -inf
  %v2307 = vmax.f32 %v2305, %v2306
  %v2308 = vld [vmem:[%s2] sm:$0x1]
  %v2310 = vlaneseq
  %v2311 = vshrl.u32 %v2310, 7
  %v2312 = vsub.s32 0, %v2311
  %v2313 = vrot.slane %v2308, %v2312
  %v2315 = vadd.f32 %v1950, %v2313
  %v2316 = vadd.f32 %v1957, %v2313
  %v2317 = vadd.f32 %v1964, %v2313
  %v2318 = vadd.f32 %v1971, %v2313
  %v2319 = vadd.f32 %v1978, %v2313
  %v2320 = vadd.f32 %v1985, %v2313
  %v2321 = vadd.f32 %v1992, %v2313
  %v2322 = vadd.f32 %v1999, %v2313
  %v2323 = vadd.f32 %v2006, %v2313
  %v2324 = vadd.f32 %v2013, %v2313
  %v2325 = vadd.f32 %v2020, %v2313
  %v2326 = vadd.f32 %v2027, %v2313
  %v2327 = vadd.f32 %v2034, %v2313
  %v2328 = vadd.f32 %v2041, %v2313
  %v2329 = vadd.f32 %v2048, %v2313
  %v2330 = vadd.f32 %v2055, %v2313
  %v2331 = vadd.f32 %v2062, %v2313
  %v2332 = vadd.f32 %v2069, %v2313
  %v2333 = vadd.f32 %v2076, %v2313
  %v2334 = vadd.f32 %v2083, %v2313
  %v2335 = vadd.f32 %v2090, %v2313
  %v2336 = vadd.f32 %v2097, %v2313
  %v2337 = vadd.f32 %v2104, %v2313
  %v2338 = vadd.f32 %v2111, %v2313
  %v2339 = vadd.f32 %v2118, %v2313
  %v2340 = vadd.f32 %v2125, %v2313
  %v2341 = vadd.f32 %v2132, %v2313
  %v2342 = vadd.f32 %v2139, %v2313
  %v2343 = vadd.f32 %v2146, %v2313
  %v2344 = vadd.f32 %v2153, %v2313
  %v2345 = vadd.f32 %v2160, %v2313
  %v2346 = vadd.f32 %v2167, %v2313
  %v2347 = vadd.f32 %v2174, %v2313
  %v2348 = vadd.f32 %v2181, %v2313
  %v2349 = vadd.f32 %v2188, %v2313
  %v2350 = vadd.f32 %v2195, %v2313
  %v2351 = vadd.f32 %v2202, %v2313
  %v2352 = vadd.f32 %v2209, %v2313
  %v2353 = vadd.f32 %v2216, %v2313
  %v2354 = vadd.f32 %v2223, %v2313
  %v2355 = vadd.f32 %v2230, %v2313
  %v2356 = vadd.f32 %v2237, %v2313
  %v2357 = vadd.f32 %v2244, %v2313
  %v2358 = vadd.f32 %v2251, %v2313
  %v2359 = vadd.f32 %v2258, %v2313
  %v2360 = vadd.f32 %v2265, %v2313
  %v2361 = vadd.f32 %v2272, %v2313
  %v2362 = vadd.f32 %v2279, %v2313
  %v2363 = vadd.f32 %v2286, %v2313
  %v2364 = vadd.f32 %v2293, %v2313
  %v2365 = vadd.f32 %v2300, %v2313
  %v2366 = vadd.f32 %v2307, %v2313
  %v2367 = vmax.f32 %v2315, 0.0
  %v2368 = vmax.f32 %v2316, 0.0
  %v2369 = vmax.f32 %v2317, 0.0
  %v2370 = vmax.f32 %v2318, 0.0
  %v2371 = vmax.f32 %v2319, 0.0
  %v2372 = vmax.f32 %v2320, 0.0
  %v2373 = vmax.f32 %v2321, 0.0
  %v2374 = vmax.f32 %v2322, 0.0
  %v2375 = vmax.f32 %v2323, 0.0
  %v2376 = vmax.f32 %v2324, 0.0
  %v2377 = vmax.f32 %v2325, 0.0
  %v2378 = vmax.f32 %v2326, 0.0
  %v2379 = vmax.f32 %v2327, 0.0
  %v2380 = vmax.f32 %v2328, 0.0
  %v2381 = vmax.f32 %v2329, 0.0
  %v2382 = vmax.f32 %v2330, 0.0
  %v2383 = vmax.f32 %v2331, 0.0
  %v2384 = vmax.f32 %v2332, 0.0
  %v2385 = vmax.f32 %v2333, 0.0
  %v2386 = vmax.f32 %v2334, 0.0
  %v2387 = vmax.f32 %v2335, 0.0
  %v2388 = vmax.f32 %v2336, 0.0
  %v2389 = vmax.f32 %v2337, 0.0
  %v2390 = vmax.f32 %v2338, 0.0
  %v2391 = vmax.f32 %v2339, 0.0
  %v2392 = vmax.f32 %v2340, 0.0
  %v2393 = vmax.f32 %v2341, 0.0
  %v2394 = vmax.f32 %v2342, 0.0
  %v2395 = vmax.f32 %v2343, 0.0
  %v2396 = vmax.f32 %v2344, 0.0
  %v2397 = vmax.f32 %v2345, 0.0
  %v2398 = vmax.f32 %v2346, 0.0
  %v2399 = vmax.f32 %v2347, 0.0
  %v2400 = vmax.f32 %v2348, 0.0
  %v2401 = vmax.f32 %v2349, 0.0
  %v2402 = vmax.f32 %v2350, 0.0
  %v2403 = vmax.f32 %v2351, 0.0
  %v2404 = vmax.f32 %v2352, 0.0
  %v2405 = vmax.f32 %v2353, 0.0
  %v2406 = vmax.f32 %v2354, 0.0
  %v2407 = vmax.f32 %v2355, 0.0
  %v2408 = vmax.f32 %v2356, 0.0
  %v2409 = vmax.f32 %v2357, 0.0
  %v2410 = vmax.f32 %v2358, 0.0
  %v2411 = vmax.f32 %v2359, 0.0
  %v2412 = vmax.f32 %v2360, 0.0
  %v2413 = vmax.f32 %v2361, 0.0
  %v2414 = vmax.f32 %v2362, 0.0
  %v2415 = vmax.f32 %v2363, 0.0
  %v2416 = vmax.f32 %v2364, 0.0
  %v2417 = vmax.f32 %v2365, 0.0
  %v2418 = vmax.f32 %v2366, 0.0
  %v2419 = vpack.c.bf16 %v2368, %v2367
  %v2420 = vpack.c.bf16 %v2370, %v2369
  %v2421 = vpack.c.bf16 %v2372, %v2371
  %v2422 = vpack.c.bf16 %v2374, %v2373
  %v2423 = vpack.c.bf16 %v2376, %v2375
  %v2424 = vpack.c.bf16 %v2378, %v2377
  %v2425 = vpack.c.bf16 %v2380, %v2379
  %v2426 = vpack.c.bf16 %v2382, %v2381
  %v2427 = vpack.c.bf16 %v2384, %v2383
  %v2428 = vpack.c.bf16 %v2386, %v2385
  %v2429 = vpack.c.bf16 %v2388, %v2387
  %v2430 = vpack.c.bf16 %v2390, %v2389
  %v2431 = vpack.c.bf16 %v2392, %v2391
  %v2432 = vpack.c.bf16 %v2394, %v2393
  %v2433 = vpack.c.bf16 %v2396, %v2395
  %v2434 = vpack.c.bf16 %v2398, %v2397
  %v2435 = vpack.c.bf16 %v2400, %v2399
  %v2436 = vpack.c.bf16 %v2402, %v2401
  %v2437 = vpack.c.bf16 %v2404, %v2403
  %v2438 = vpack.c.bf16 %v2406, %v2405
  %v2439 = vpack.c.bf16 %v2408, %v2407
  %v2440 = vpack.c.bf16 %v2410, %v2409
  %v2441 = vpack.c.bf16 %v2412, %v2411
  %v2442 = vpack.c.bf16 %v2414, %v2413
  %v2443 = vpack.c.bf16 %v2416, %v2415
  %v2444 = vpack.c.bf16 %v2418, %v2417
  %v2471 = vunpack.c.l.b16 %v2419
  %v2472 = vunpack.c.h.b16 %v2419
  %v2473 = vunpack.c.l.b16 %v2420
  %v2474 = vunpack.c.h.b16 %v2420
  %v2475 = vunpack.c.l.b16 %v2421
  %v2476 = vunpack.c.h.b16 %v2421
  %v2477 = vunpack.c.l.b16 %v2422
  %v2478 = vunpack.c.h.b16 %v2422
  %v2479 = vunpack.c.l.b16 %v2423
  %v2480 = vunpack.c.h.b16 %v2423
  %v2481 = vunpack.c.l.b16 %v2424
  %v2482 = vunpack.c.h.b16 %v2424
  %v2483 = vunpack.c.l.b16 %v2425
  %v2484 = vunpack.c.h.b16 %v2425
  %v2485 = vunpack.c.l.b16 %v2426
  %v2486 = vunpack.c.h.b16 %v2426
  %v2487 = vunpack.c.l.b16 %v2427
  %v2488 = vunpack.c.h.b16 %v2427
  %v2489 = vunpack.c.l.b16 %v2428
  %v2490 = vunpack.c.h.b16 %v2428
  %v2491 = vunpack.c.l.b16 %v2429
  %v2492 = vunpack.c.h.b16 %v2429
  %v2493 = vunpack.c.l.b16 %v2430
  %v2494 = vunpack.c.h.b16 %v2430
  %v2495 = vunpack.c.l.b16 %v2431
  %v2496 = vunpack.c.h.b16 %v2431
  %v2497 = vunpack.c.l.b16 %v2432
  %v2498 = vunpack.c.h.b16 %v2432
  %v2499 = vunpack.c.l.b16 %v2433
  %v2500 = vunpack.c.h.b16 %v2433
  %v2501 = vunpack.c.l.b16 %v2434
  %v2502 = vunpack.c.h.b16 %v2434
  %v2503 = vunpack.c.l.b16 %v2435
  %v2504 = vunpack.c.h.b16 %v2435
  %v2505 = vunpack.c.l.b16 %v2436
  %v2506 = vunpack.c.h.b16 %v2436
  %v2507 = vunpack.c.l.b16 %v2437
  %v2508 = vunpack.c.h.b16 %v2437
  %v2509 = vunpack.c.l.b16 %v2438
  %v2510 = vunpack.c.h.b16 %v2438
  %v2511 = vunpack.c.l.b16 %v2439
  %v2512 = vunpack.c.h.b16 %v2439
  %v2513 = vunpack.c.l.b16 %v2440
  %v2514 = vunpack.c.h.b16 %v2440
  %v2515 = vunpack.c.l.b16 %v2441
  %v2516 = vunpack.c.h.b16 %v2441
  %v2517 = vunpack.c.l.b16 %v2442
  %v2518 = vunpack.c.h.b16 %v2442
  %v2519 = vunpack.c.l.b16 %v2443
  %v2520 = vunpack.c.h.b16 %v2443
  %v2521 = vunpack.c.l.b16 %v2444
  %v2522 = vunpack.c.h.b16 %v2444
  %v2523 = vpack.c.b16 %v2471, %v2471
  %v2524 = vpack.c.b16 %v2472, %v2472
  %v2525 = vpack.c.b16 %v2473, %v2473
  %v2526 = vpack.c.b16 %v2474, %v2474
  %v2527 = vpack.c.b16 %v2475, %v2475
  %v2528 = vpack.c.b16 %v2476, %v2476
  %v2529 = vpack.c.b16 %v2477, %v2477
  %v2530 = vpack.c.b16 %v2478, %v2478
  %v2531 = vpack.c.b16 %v2479, %v2479
  %v2532 = vpack.c.b16 %v2480, %v2480
  %v2533 = vpack.c.b16 %v2481, %v2481
  %v2534 = vpack.c.b16 %v2482, %v2482
  %v2535 = vpack.c.b16 %v2483, %v2483
  %v2536 = vpack.c.b16 %v2484, %v2484
  %v2537 = vpack.c.b16 %v2485, %v2485
  %v2538 = vpack.c.b16 %v2486, %v2486
  %v2539 = vpack.c.b16 %v2487, %v2487
  %v2540 = vpack.c.b16 %v2488, %v2488
  %v2541 = vpack.c.b16 %v2489, %v2489
  %v2542 = vpack.c.b16 %v2490, %v2490
  %v2543 = vpack.c.b16 %v2491, %v2491
  %v2544 = vpack.c.b16 %v2492, %v2492
  %v2545 = vpack.c.b16 %v2493, %v2493
  %v2546 = vpack.c.b16 %v2494, %v2494
  %v2547 = vpack.c.b16 %v2495, %v2495
  %v2548 = vpack.c.b16 %v2496, %v2496
  %v2549 = vpack.c.b16 %v2497, %v2497
  %v2550 = vpack.c.b16 %v2498, %v2498
  %v2551 = vpack.c.b16 %v2499, %v2499
  %v2552 = vpack.c.b16 %v2500, %v2500
  %v2553 = vpack.c.b16 %v2501, %v2501
  %v2554 = vpack.c.b16 %v2502, %v2502
  %v2555 = vpack.c.b16 %v2503, %v2503
  %v2556 = vpack.c.b16 %v2504, %v2504
  %v2557 = vpack.c.b16 %v2505, %v2505
  %v2558 = vpack.c.b16 %v2506, %v2506
  %v2559 = vpack.c.b16 %v2507, %v2507
  %v2560 = vpack.c.b16 %v2508, %v2508
  %v2561 = vpack.c.b16 %v2509, %v2509
  %v2562 = vpack.c.b16 %v2510, %v2510
  %v2563 = vpack.c.b16 %v2511, %v2511
  %v2564 = vpack.c.b16 %v2512, %v2512
  %v2565 = vpack.c.b16 %v2513, %v2513
  %v2566 = vpack.c.b16 %v2514, %v2514
  %v2567 = vpack.c.b16 %v2515, %v2515
  %v2568 = vpack.c.b16 %v2516, %v2516
  %v2569 = vpack.c.b16 %v2517, %v2517
  %v2570 = vpack.c.b16 %v2518, %v2518
  %v2571 = vpack.c.b16 %v2519, %v2519
  %v2572 = vpack.c.b16 %v2520, %v2520
  %v2573 = vpack.c.b16 %v2521, %v2521
  %v2574 = vpack.c.b16 %v2522, %v2522
  %vm2627 = vcmask 125952
  %2628 = vst.msk [vmem:[%s3] sm:$0xf] %vm2627, %v2523
  %2629 = vst.msk [vmem:[%s3 + $0x4] sm:$0xf] %vm2627, %v2524
  %2630 = vst.msk [vmem:[%s3 + $0x8] sm:$0xf] %vm2627, %v2525
  %2631 = vst.msk [vmem:[%s3 + $0xc] sm:$0xf] %vm2627, %v2526
  %2632 = vst.msk [vmem:[%s3 + $0x10] sm:$0xf] %vm2627, %v2527
  %2633 = vst.msk [vmem:[%s3 + $0x14] sm:$0xf] %vm2627, %v2528
  %2634 = vst.msk [vmem:[%s3 + $0x18] sm:$0xf] %vm2627, %v2529
  %2635 = vst.msk [vmem:[%s3 + $0x1c] sm:$0xf] %vm2627, %v2530
  %2636 = vst.msk [vmem:[%s3 + $0x20] sm:$0xf] %vm2627, %v2531
  %2637 = vst.msk [vmem:[%s3 + $0x24] sm:$0xf] %vm2627, %v2532
  %2638 = vst.msk [vmem:[%s3 + $0x28] sm:$0xf] %vm2627, %v2533
  %2639 = vst.msk [vmem:[%s3 + $0x2c] sm:$0xf] %vm2627, %v2534
  %2640 = vst.msk [vmem:[%s3 + $0x30] sm:$0xf] %vm2627, %v2535
  %2641 = vst.msk [vmem:[%s3 + $0x34] sm:$0xf] %vm2627, %v2536
  %2642 = vst.msk [vmem:[%s3 + $0x38] sm:$0xf] %vm2627, %v2537
  %2643 = vst.msk [vmem:[%s3 + $0x3c] sm:$0xf] %vm2627, %v2538
  %2644 = vst.msk [vmem:[%s3 + $0x40] sm:$0xf] %vm2627, %v2539
  %2645 = vst.msk [vmem:[%s3 + $0x44] sm:$0xf] %vm2627, %v2540
  %2646 = vst.msk [vmem:[%s3 + $0x48] sm:$0xf] %vm2627, %v2541
  %2647 = vst.msk [vmem:[%s3 + $0x4c] sm:$0xf] %vm2627, %v2542
  %2648 = vst.msk [vmem:[%s3 + $0x50] sm:$0xf] %vm2627, %v2543
  %2649 = vst.msk [vmem:[%s3 + $0x54] sm:$0xf] %vm2627, %v2544
  %2650 = vst.msk [vmem:[%s3 + $0x58] sm:$0xf] %vm2627, %v2545
  %2651 = vst.msk [vmem:[%s3 + $0x5c] sm:$0xf] %vm2627, %v2546
  %2652 = vst.msk [vmem:[%s3 + $0x60] sm:$0xf] %vm2627, %v2547
  %2653 = vst.msk [vmem:[%s3 + $0x64] sm:$0xf] %vm2627, %v2548
  %2654 = vst.msk [vmem:[%s3 + $0x68] sm:$0xf] %vm2627, %v2549
  %2655 = vst.msk [vmem:[%s3 + $0x6c] sm:$0xf] %vm2627, %v2550
  %2656 = vst.msk [vmem:[%s3 + $0x70] sm:$0xf] %vm2627, %v2551
  %2657 = vst.msk [vmem:[%s3 + $0x74] sm:$0xf] %vm2627, %v2552
  %2658 = vst.msk [vmem:[%s3 + $0x78] sm:$0xf] %vm2627, %v2553
  %2659 = vst.msk [vmem:[%s3 + $0x7c] sm:$0xf] %vm2627, %v2554
  %2660 = vst.msk [vmem:[%s3 + $0x80] sm:$0xf] %vm2627, %v2555
  %2661 = vst.msk [vmem:[%s3 + $0x84] sm:$0xf] %vm2627, %v2556
  %2662 = vst.msk [vmem:[%s3 + $0x88] sm:$0xf] %vm2627, %v2557
  %2663 = vst.msk [vmem:[%s3 + $0x8c] sm:$0xf] %vm2627, %v2558
  %2664 = vst.msk [vmem:[%s3 + $0x90] sm:$0xf] %vm2627, %v2559
  %2665 = vst.msk [vmem:[%s3 + $0x94] sm:$0xf] %vm2627, %v2560
  %2666 = vst.msk [vmem:[%s3 + $0x98] sm:$0xf] %vm2627, %v2561
  %2667 = vst.msk [vmem:[%s3 + $0x9c] sm:$0xf] %vm2627, %v2562
  %2668 = vst.msk [vmem:[%s3 + $0xa0] sm:$0xf] %vm2627, %v2563
  %2669 = vst.msk [vmem:[%s3 + $0xa4] sm:$0xf] %vm2627, %v2564
  %2670 = vst.msk [vmem:[%s3 + $0xa8] sm:$0xf] %vm2627, %v2565
  %2671 = vst.msk [vmem:[%s3 + $0xac] sm:$0xf] %vm2627, %v2566
  %2672 = vst.msk [vmem:[%s3 + $0xb0] sm:$0xf] %vm2627, %v2567
  %2673 = vst.msk [vmem:[%s3 + $0xb4] sm:$0xf] %vm2627, %v2568
  %2674 = vst.msk [vmem:[%s3 + $0xb8] sm:$0xf] %vm2627, %v2569
  %2675 = vst.msk [vmem:[%s3 + $0xbc] sm:$0xf] %vm2627, %v2570
  %2676 = vst.msk [vmem:[%s3 + $0xc0] sm:$0xf] %vm2627, %v2571
  %2677 = vst.msk [vmem:[%s3 + $0xc4] sm:$0xf] %vm2627, %v2572
  %2678 = vst.msk [vmem:[%s3 + $0xc8] sm:$0xf] %vm2627, %v2573
  %2679 = vst.msk [vmem:[%s3 + $0xcc] sm:$0xf] %vm2627, %v2574
  // Predicated region
  $region14: #{cnn_forward.3} parent=0 // pred_check
    _
  $region15: #{cnn_forward.3} parent=0 // pred_check_branch
    %2681 = sbr.rel (0) target = $region17
  $region16: #{cnn_forward.3} parent=0 // pred_region
    _
  $region17: #{cnn_forward.3} parent=0 // pred_fallthru
    _
  // Predicated region
  $region18: #{cnn_forward.3} parent=0 // pred_check
    _
  $region19: #{cnn_forward.3} parent=0 // pred_check_branch
    %2683 = sbr.rel (0) target = $region21
  $region20: #{cnn_forward.3} parent=0 // pred_region
    _
  $region21: #{cnn_forward.3} parent=0 // pred_fallthru
    _

// kernel: squeeze.12
$region0: #{squeeze.12}
  %s0 = inlined_call_operand.vmem [shape: bf16[2,7,7,400], index: 0, kind: input, shape index: {}]
  %s1 = inlined_call_operand.vmem [shape: bf16[1,98,400], index: 1, kind: output, shape index: {}]
  $region1: #{squeeze.12} parent=0
    #allocation0 [shape = 'u8[212992]{0}', space=vmem, size = 0x34000, scoped, tag = 'scoped mem for output reshape']
    #allocation1 [shape = 'u8[229376]{0}', space=vmem, size = 0x38000, scoped, tag = 'scoped mem for input reshape']
    %s3 = smul.u32 4, 2
    %s4 = sshll.u32 1, %s3
    %s5 = ssub.s32 %s4, 1
    %s6 = smul.addr 4, 55
    %s7 = scalar_lea.vmem %s0, %s6
    %s8 = sshrl.u32 %s5, 1
    %s9 = sor.u32 %s5, %s8
    %s10 = sand.u32 %s9, 85
    %s11 = sshrl.u32 %s10, 1
    %s12 = sor.u32 %s10, %s11
    %s13 = sand.u32 51, %s12
    %s14 = sshrl.u32 %s13, 2
    %s15 = sor.u32 %s13, %s14
    %s16 = sand.u32 15, %s15
    %v17 = vld [vmem:[%s7] sm:%s16]
    %v18 = vunpack.c.l.bf16 %v17
    %v19 = vunpack.c.h.bf16 %v17
    %s20 = scalar_lea.vmem [#allocation1], 440
    %21 = vst [vmem:[%s20] sm:%s5] %v18
    %s22 = smul.addr 4, 54
    %s23 = scalar_lea.vmem %s0, %s22
    %s24 = sshrl.u32 %s5, 1
    %s25 = sor.u32 %s5, %s24
    %s26 = sand.u32 %s25, 85
    %s27 = sshrl.u32 %s26, 1
    %s28 = sor.u32 %s26, %s27
    %s29 = sand.u32 51, %s28
    %s30 = sshrl.u32 %s29, 2
    %s31 = sor.u32 %s29, %s30
    %s32 = sand.u32 15, %s31
    %v33 = vld [vmem:[%s23] sm:%s32]
    %v34 = vunpack.c.l.bf16 %v33
    %v35 = vunpack.c.h.bf16 %v33
    %s36 = scalar_lea.vmem [#allocation1], 432
    %37 = vst [vmem:[%s36] sm:%s5] %v34
    %s38 = smul.addr 4, 53
    %s39 = scalar_lea.vmem %s0, %s38
    %s40 = sshrl.u32 %s5, 1
    %s41 = sor.u32 %s5, %s40
    %s42 = sand.u32 %s41, 85
    %s43 = sshrl.u32 %s42, 1
    %s44 = sor.u32 %s42, %s43
    %s45 = sand.u32 51, %s44
    %s46 = sshrl.u32 %s45, 2
    %s47 = sor.u32 %s45, %s46
    %s48 = sand.u32 15, %s47
    %v49 = vld [vmem:[%s39] sm:%s48]
    %v50 = vunpack.c.l.bf16 %v49
    %v51 = vunpack.c.h.bf16 %v49
    %s52 = scalar_lea.vmem [#allocation1], 424
    %53 = vst [vmem:[%s52] sm:%s5] %v50
    %s54 = smul.addr 4, 52
    %s55 = scalar_lea.vmem %s0, %s54
    %s56 = sshrl.u32 %s5, 1
    %s57 = sor.u32 %s5, %s56
    %s58 = sand.u32 %s57, 85
    %s59 = sshrl.u32 %s58, 1
    %s60 = sor.u32 %s58, %s59
    %s61 = sand.u32 51, %s60
    %s62 = sshrl.u32 %s61, 2
    %s63 = sor.u32 %s61, %s62
    %s64 = sand.u32 15, %s63
    %v65 = vld [vmem:[%s55] sm:%s64]
    %v66 = vunpack.c.l.bf16 %v65
    %v67 = vunpack.c.h.bf16 %v65
    %s68 = scalar_lea.vmem [#allocation1], 416
    %69 = vst [vmem:[%s68] sm:%s5] %v66
    %s70 = smul.addr 4, 51
    %s71 = scalar_lea.vmem %s0, %s70
    %s72 = sshrl.u32 %s5, 1
    %s73 = sor.u32 %s5, %s72
    %s74 = sand.u32 %s73, 85
    %s75 = sshrl.u32 %s74, 1
    %s76 = sor.u32 %s74, %s75
    %s77 = sand.u32 51, %s76
    %s78 = sshrl.u32 %s77, 2
    %s79 = sor.u32 %s77, %s78
    %s80 = sand.u32 15, %s79
    %v81 = vld [vmem:[%s71] sm:%s80]
    %v82 = vunpack.c.l.bf16 %v81
    %v83 = vunpack.c.h.bf16 %v81
    %s84 = scalar_lea.vmem [#allocation1], 408
    %85 = vst [vmem:[%s84] sm:%s5] %v82
    %s86 = smul.addr 4, 50
    %s87 = scalar_lea.vmem %s0, %s86
    %s88 = sshrl.u32 %s5, 1
    %s89 = sor.u32 %s5, %s88
    %s90 = sand.u32 %s89, 85
    %s91 = sshrl.u32 %s90, 1
    %s92 = sor.u32 %s90, %s91
    %s93 = sand.u32 51, %s92
    %s94 = sshrl.u32 %s93, 2
    %s95 = sor.u32 %s93, %s94
    %s96 = sand.u32 15, %s95
    %v97 = vld [vmem:[%s87] sm:%s96]
    %v98 = vunpack.c.l.bf16 %v97
    %v99 = vunpack.c.h.bf16 %v97
    %s100 = scalar_lea.vmem [#allocation1], 400
    %101 = vst [vmem:[%s100] sm:%s5] %v98
    %s102 = smul.addr 4, 49
    %s103 = scalar_lea.vmem %s0, %s102
    %s104 = sshrl.u32 %s5, 1
    %s105 = sor.u32 %s5, %s104
    %s106 = sand.u32 %s105, 85
    %s107 = sshrl.u32 %s106, 1
    %s108 = sor.u32 %s106, %s107
    %s109 = sand.u32 51, %s108
    %s110 = sshrl.u32 %s109, 2
    %s111 = sor.u32 %s109, %s110
    %s112 = sand.u32 15, %s111
    %v113 = vld [vmem:[%s103] sm:%s112]
    %v114 = vunpack.c.l.bf16 %v113
    %v115 = vunpack.c.h.bf16 %v113
    %s116 = scalar_lea.vmem [#allocation1], 392
    %117 = vst [vmem:[%s116] sm:%s5] %v114
    %s118 = smul.addr 4, 48
    %s119 = scalar_lea.vmem %s0, %s118
    %s120 = sshrl.u32 %s5, 1
    %s121 = sor.u32 %s5, %s120
    %s122 = sand.u32 %s121, 85
    %s123 = sshrl.u32 %s122, 1
    %s124 = sor.u32 %s122, %s123
    %s125 = sand.u32 51, %s124
    %s126 = sshrl.u32 %s125, 2
    %s127 = sor.u32 %s125, %s126
    %s128 = sand.u32 15, %s127
    %v129 = vld [vmem:[%s119] sm:%s128]
    %v130 = vunpack.c.l.bf16 %v129
    %v131 = vunpack.c.h.bf16 %v129
    %s132 = scalar_lea.vmem [#allocation1], 384
    %133 = vst [vmem:[%s132] sm:%s5] %v130
    %s134 = smul.addr 4, 47
    %s135 = scalar_lea.vmem %s0, %s134
    %s136 = sshrl.u32 %s5, 1
    %s137 = sor.u32 %s5, %s136
    %s138 = sand.u32 %s137, 85
    %s139 = sshrl.u32 %s138, 1
    %s140 = sor.u32 %s138, %s139
    %s141 = sand.u32 51, %s140
    %s142 = sshrl.u32 %s141, 2
    %s143 = sor.u32 %s141, %s142
    %s144 = sand.u32 15, %s143
    %v145 = vld [vmem:[%s135] sm:%s144]
    %v146 = vunpack.c.l.bf16 %v145
    %v147 = vunpack.c.h.bf16 %v145
    %s148 = scalar_lea.vmem [#allocation1], 376
    %149 = vst [vmem:[%s148] sm:%s5] %v146
    %s150 = smul.addr 4, 46
    %s151 = scalar_lea.vmem %s0, %s150
    %s152 = sshrl.u32 %s5, 1
    %s153 = sor.u32 %s5, %s152
    %s154 = sand.u32 %s153, 85
    %s155 = sshrl.u32 %s154, 1
    %s156 = sor.u32 %s154, %s155
    %s157 = sand.u32 51, %s156
    %s158 = sshrl.u32 %s157, 2
    %s159 = sor.u32 %s157, %s158
    %s160 = sand.u32 15, %s159
    %v161 = vld [vmem:[%s151] sm:%s160]
    %v162 = vunpack.c.l.bf16 %v161
    %v163 = vunpack.c.h.bf16 %v161
    %s164 = scalar_lea.vmem [#allocation1], 368
    %165 = vst [vmem:[%s164] sm:%s5] %v162
    %s166 = smul.addr 4, 45
    %s167 = scalar_lea.vmem %s0, %s166
    %s168 = sshrl.u32 %s5, 1
    %s169 = sor.u32 %s5, %s168
    %s170 = sand.u32 %s169, 85
    %s171 = sshrl.u32 %s170, 1
    %s172 = sor.u32 %s170, %s171
    %s173 = sand.u32 51, %s172
    %s174 = sshrl.u32 %s173, 2
    %s175 = sor.u32 %s173, %s174
    %s176 = sand.u32 15, %s175
    %v177 = vld [vmem:[%s167] sm:%s176]
    %v178 = vunpack.c.l.bf16 %v177
    %v179 = vunpack.c.h.bf16 %v177
    %s180 = scalar_lea.vmem [#allocation1], 360
    %181 = vst [vmem:[%s180] sm:%s5] %v178
    %s182 = smul.addr 4, 44
    %s183 = scalar_lea.vmem %s0, %s182
    %s184 = sshrl.u32 %s5, 1
    %s185 = sor.u32 %s5, %s184
    %s186 = sand.u32 %s185, 85
    %s187 = sshrl.u32 %s186, 1
    %s188 = sor.u32 %s186, %s187
    %s189 = sand.u32 51, %s188
    %s190 = sshrl.u32 %s189, 2
    %s191 = sor.u32 %s189, %s190
    %s192 = sand.u32 15, %s191
    %v193 = vld [vmem:[%s183] sm:%s192]
    %v194 = vunpack.c.l.bf16 %v193
    %v195 = vunpack.c.h.bf16 %v193
    %s196 = scalar_lea.vmem [#allocation1], 352
    %197 = vst [vmem:[%s196] sm:%s5] %v194
    %s198 = smul.addr 4, 43
    %s199 = scalar_lea.vmem %s0, %s198
    %s200 = sshrl.u32 %s5, 1
    %s201 = sor.u32 %s5, %s200
    %s202 = sand.u32 %s201, 85
    %s203 = sshrl.u32 %s202, 1
    %s204 = sor.u32 %s202, %s203
    %s205 = sand.u32 51, %s204
    %s206 = sshrl.u32 %s205, 2
    %s207 = sor.u32 %s205, %s206
    %s208 = sand.u32 15, %s207
    %v209 = vld [vmem:[%s199] sm:%s208]
    %v210 = vunpack.c.l.bf16 %v209
    %v211 = vunpack.c.h.bf16 %v209
    %s212 = scalar_lea.vmem [#allocation1], 344
    %213 = vst [vmem:[%s212] sm:%s5] %v210
    %s214 = smul.addr 4, 42
    %s215 = scalar_lea.vmem %s0, %s214
    %s216 = sshrl.u32 %s5, 1
    %s217 = sor.u32 %s5, %s216
    %s218 = sand.u32 %s217, 85
    %s219 = sshrl.u32 %s218, 1
    %s220 = sor.u32 %s218, %s219
    %s221 = sand.u32 51, %s220
    %s222 = sshrl.u32 %s221, 2
    %s223 = sor.u32 %s221, %s222
    %s224 = sand.u32 15, %s223
    %v225 = vld [vmem:[%s215] sm:%s224]
    %v226 = vunpack.c.l.bf16 %v225
    %v227 = vunpack.c.h.bf16 %v225
    %s228 = scalar_lea.vmem [#allocation1], 336
    %229 = vst [vmem:[%s228] sm:%s5] %v226
    %s230 = smul.addr 4, 41
    %s231 = scalar_lea.vmem %s0, %s230
    %s232 = sshrl.u32 %s5, 1
    %s233 = sor.u32 %s5, %s232
    %s234 = sand.u32 %s233, 85
    %s235 = sshrl.u32 %s234, 1
    %s236 = sor.u32 %s234, %s235
    %s237 = sand.u32 51, %s236
    %s238 = sshrl.u32 %s237, 2
    %s239 = sor.u32 %s237, %s238
    %s240 = sand.u32 15, %s239
    %v241 = vld [vmem:[%s231] sm:%s240]
    %v242 = vunpack.c.l.bf16 %v241
    %v243 = vunpack.c.h.bf16 %v241
    %s244 = scalar_lea.vmem [#allocation1], 328
    %245 = vst [vmem:[%s244] sm:%s5] %v242
    %s246 = smul.addr 4, 40
    %s247 = scalar_lea.vmem %s0, %s246
    %s248 = sshrl.u32 %s5, 1
    %s249 = sor.u32 %s5, %s248
    %s250 = sand.u32 %s249, 85
    %s251 = sshrl.u32 %s250, 1
    %s252 = sor.u32 %s250, %s251
    %s253 = sand.u32 51, %s252
    %s254 = sshrl.u32 %s253, 2
    %s255 = sor.u32 %s253, %s254
    %s256 = sand.u32 15, %s255
    %v257 = vld [vmem:[%s247] sm:%s256]
    %v258 = vunpack.c.l.bf16 %v257
    %v259 = vunpack.c.h.bf16 %v257
    %s260 = scalar_lea.vmem [#allocation1], 320
    %261 = vst [vmem:[%s260] sm:%s5] %v258
    %s262 = smul.addr 4, 39
    %s263 = scalar_lea.vmem %s0, %s262
    %s264 = sshrl.u32 %s5, 1
    %s265 = sor.u32 %s5, %s264
    %s266 = sand.u32 %s265, 85
    %s267 = sshrl.u32 %s266, 1
    %s268 = sor.u32 %s266, %s267
    %s269 = sand.u32 51, %s268
    %s270 = sshrl.u32 %s269, 2
    %s271 = sor.u32 %s269, %s270
    %s272 = sand.u32 15, %s271
    %v273 = vld [vmem:[%s263] sm:%s272]
    %v274 = vunpack.c.l.bf16 %v273
    %v275 = vunpack.c.h.bf16 %v273
    %s276 = scalar_lea.vmem [#allocation1], 312
    %277 = vst [vmem:[%s276] sm:%s5] %v274
    %s278 = smul.addr 4, 38
    %s279 = scalar_lea.vmem %s0, %s278
    %s280 = sshrl.u32 %s5, 1
    %s281 = sor.u32 %s5, %s280
    %s282 = sand.u32 %s281, 85
    %s283 = sshrl.u32 %s282, 1
    %s284 = sor.u32 %s282, %s283
    %s285 = sand.u32 51, %s284
    %s286 = sshrl.u32 %s285, 2
    %s287 = sor.u32 %s285, %s286
    %s288 = sand.u32 15, %s287
    %v289 = vld [vmem:[%s279] sm:%s288]
    %v290 = vunpack.c.l.bf16 %v289
    %v291 = vunpack.c.h.bf16 %v289
    %s292 = scalar_lea.vmem [#allocation1], 304
    %293 = vst [vmem:[%s292] sm:%s5] %v290
    %s294 = smul.addr 4, 37
    %s295 = scalar_lea.vmem %s0, %s294
    %s296 = sshrl.u32 %s5, 1
    %s297 = sor.u32 %s5, %s296
    %s298 = sand.u32 %s297, 85
    %s299 = sshrl.u32 %s298, 1
    %s300 = sor.u32 %s298, %s299
    %s301 = sand.u32 51, %s300
    %s302 = sshrl.u32 %s301, 2
    %s303 = sor.u32 %s301, %s302
    %s304 = sand.u32 15, %s303
    %v305 = vld [vmem:[%s295] sm:%s304]
    %v306 = vunpack.c.l.bf16 %v305
    %v307 = vunpack.c.h.bf16 %v305
    %s308 = scalar_lea.vmem [#allocation1], 296
    %309 = vst [vmem:[%s308] sm:%s5] %v306
    %s310 = smul.addr 4, 36
    %s311 = scalar_lea.vmem %s0, %s310
    %s312 = sshrl.u32 %s5, 1
    %s313 = sor.u32 %s5, %s312
    %s314 = sand.u32 %s313, 85
    %s315 = sshrl.u32 %s314, 1
    %s316 = sor.u32 %s314, %s315
    %s317 = sand.u32 51, %s316
    %s318 = sshrl.u32 %s317, 2
    %s319 = sor.u32 %s317, %s318
    %s320 = sand.u32 15, %s319
    %v321 = vld [vmem:[%s311] sm:%s320]
    %v322 = vunpack.c.l.bf16 %v321
    %v323 = vunpack.c.h.bf16 %v321
    %s324 = scalar_lea.vmem [#allocation1], 288
    %325 = vst [vmem:[%s324] sm:%s5] %v322
    %s326 = smul.addr 4, 35
    %s327 = scalar_lea.vmem %s0, %s326
    %s328 = sshrl.u32 %s5, 1
    %s329 = sor.u32 %s5, %s328
    %s330 = sand.u32 %s329, 85
    %s331 = sshrl.u32 %s330, 1
    %s332 = sor.u32 %s330, %s331
    %s333 = sand.u32 51, %s332
    %s334 = sshrl.u32 %s333, 2
    %s335 = sor.u32 %s333, %s334
    %s336 = sand.u32 15, %s335
    %v337 = vld [vmem:[%s327] sm:%s336]
    %v338 = vunpack.c.l.bf16 %v337
    %v339 = vunpack.c.h.bf16 %v337
    %s340 = scalar_lea.vmem [#allocation1], 280
    %341 = vst [vmem:[%s340] sm:%s5] %v338
    %s342 = smul.addr 4, 34
    %s343 = scalar_lea.vmem %s0, %s342
    %s344 = sshrl.u32 %s5, 1
    %s345 = sor.u32 %s5, %s344
    %s346 = sand.u32 %s345, 85
    %s347 = sshrl.u32 %s346, 1
    %s348 = sor.u32 %s346, %s347
    %s349 = sand.u32 51, %s348
    %s350 = sshrl.u32 %s349, 2
    %s351 = sor.u32 %s349, %s350
    %s352 = sand.u32 15, %s351
    %v353 = vld [vmem:[%s343] sm:%s352]
    %v354 = vunpack.c.l.bf16 %v353
    %v355 = vunpack.c.h.bf16 %v353
    %s356 = scalar_lea.vmem [#allocation1], 272
    %357 = vst [vmem:[%s356] sm:%s5] %v354
    %s358 = smul.addr 4, 33
    %s359 = scalar_lea.vmem %s0, %s358
    %s360 = sshrl.u32 %s5, 1
    %s361 = sor.u32 %s5, %s360
    %s362 = sand.u32 %s361, 85
    %s363 = sshrl.u32 %s362, 1
    %s364 = sor.u32 %s362, %s363
    %s365 = sand.u32 51, %s364
    %s366 = sshrl.u32 %s365, 2
    %s367 = sor.u32 %s365, %s366
    %s368 = sand.u32 15, %s367
    %v369 = vld [vmem:[%s359] sm:%s368]
    %v370 = vunpack.c.l.bf16 %v369
    %v371 = vunpack.c.h.bf16 %v369
    %s372 = scalar_lea.vmem [#allocation1], 264
    %373 = vst [vmem:[%s372] sm:%s5] %v370
    %s374 = smul.addr 4, 32
    %s375 = scalar_lea.vmem %s0, %s374
    %s376 = sshrl.u32 %s5, 1
    %s377 = sor.u32 %s5, %s376
    %s378 = sand.u32 %s377, 85
    %s379 = sshrl.u32 %s378, 1
    %s380 = sor.u32 %s378, %s379
    %s381 = sand.u32 51, %s380
    %s382 = sshrl.u32 %s381, 2
    %s383 = sor.u32 %s381, %s382
    %s384 = sand.u32 15, %s383
    %v385 = vld [vmem:[%s375] sm:%s384]
    %v386 = vunpack.c.l.bf16 %v385
    %v387 = vunpack.c.h.bf16 %v385
    %s388 = scalar_lea.vmem [#allocation1], 256
    %389 = vst [vmem:[%s388] sm:%s5] %v386
    %s390 = smul.addr 4, 31
    %s391 = scalar_lea.vmem %s0, %s390
    %s392 = sshrl.u32 %s5, 1
    %s393 = sor.u32 %s5, %s392
    %s394 = sand.u32 %s393, 85
    %s395 = sshrl.u32 %s394, 1
    %s396 = sor.u32 %s394, %s395
    %s397 = sand.u32 51, %s396
    %s398 = sshrl.u32 %s397, 2
    %s399 = sor.u32 %s397, %s398
    %s400 = sand.u32 15, %s399
    %v401 = vld [vmem:[%s391] sm:%s400]
    %v402 = vunpack.c.l.bf16 %v401
    %v403 = vunpack.c.h.bf16 %v401
    %s404 = scalar_lea.vmem [#allocation1], 248
    %405 = vst [vmem:[%s404] sm:%s5] %v402
    %s406 = smul.addr 4, 30
    %s407 = scalar_lea.vmem %s0, %s406
    %s408 = sshrl.u32 %s5, 1
    %s409 = sor.u32 %s5, %s408
    %s410 = sand.u32 %s409, 85
    %s411 = sshrl.u32 %s410, 1
    %s412 = sor.u32 %s410, %s411
    %s413 = sand.u32 51, %s412
    %s414 = sshrl.u32 %s413, 2
    %s415 = sor.u32 %s413, %s414
    %s416 = sand.u32 15, %s415
    %v417 = vld [vmem:[%s407] sm:%s416]
    %v418 = vunpack.c.l.bf16 %v417
    %v419 = vunpack.c.h.bf16 %v417
    %s420 = scalar_lea.vmem [#allocation1], 240
    %421 = vst [vmem:[%s420] sm:%s5] %v418
    %s422 = smul.addr 4, 29
    %s423 = scalar_lea.vmem %s0, %s422
    %s424 = sshrl.u32 %s5, 1
    %s425 = sor.u32 %s5, %s424
    %s426 = sand.u32 %s425, 85
    %s427 = sshrl.u32 %s426, 1
    %s428 = sor.u32 %s426, %s427
    %s429 = sand.u32 51, %s428
    %s430 = sshrl.u32 %s429, 2
    %s431 = sor.u32 %s429, %s430
    %s432 = sand.u32 15, %s431
    %v433 = vld [vmem:[%s423] sm:%s432]
    %v434 = vunpack.c.l.bf16 %v433
    %v435 = vunpack.c.h.bf16 %v433
    %s436 = scalar_lea.vmem [#allocation1], 232
    %437 = vst [vmem:[%s436] sm:%s5] %v434
    %s438 = smul.addr 4, 28
    %s439 = scalar_lea.vmem %s0, %s438
    %s440 = sshrl.u32 %s5, 1
    %s441 = sor.u32 %s5, %s440
    %s442 = sand.u32 %s441, 85
    %s443 = sshrl.u32 %s442, 1
    %s444 = sor.u32 %s442, %s443
    %s445 = sand.u32 51, %s444
    %s446 = sshrl.u32 %s445, 2
    %s447 = sor.u32 %s445, %s446
    %s448 = sand.u32 15, %s447
    %v449 = vld [vmem:[%s439] sm:%s448]
    %v450 = vunpack.c.l.bf16 %v449
    %v451 = vunpack.c.h.bf16 %v449
    %s452 = scalar_lea.vmem [#allocation1], 224
    %453 = vst [vmem:[%s452] sm:%s5] %v450
    %s454 = smul.addr 4, 27
    %s455 = scalar_lea.vmem %s0, %s454
    %s456 = sshrl.u32 %s5, 1
    %s457 = sor.u32 %s5, %s456
    %s458 = sand.u32 %s457, 85
    %s459 = sshrl.u32 %s458, 1
    %s460 = sor.u32 %s458, %s459
    %s461 = sand.u32 51, %s460
    %s462 = sshrl.u32 %s461, 2
    %s463 = sor.u32 %s461, %s462
    %s464 = sand.u32 15, %s463
    %v465 = vld [vmem:[%s455] sm:%s464]
    %v466 = vunpack.c.l.bf16 %v465
    %v467 = vunpack.c.h.bf16 %v465
    %s468 = scalar_lea.vmem [#allocation1], 216
    %469 = vst [vmem:[%s468] sm:%s5] %v466
    %s470 = smul.addr 4, 26
    %s471 = scalar_lea.vmem %s0, %s470
    %s472 = sshrl.u32 %s5, 1
    %s473 = sor.u32 %s5, %s472
    %s474 = sand.u32 %s473, 85
    %s475 = sshrl.u32 %s474, 1
    %s476 = sor.u32 %s474, %s475
    %s477 = sand.u32 51, %s476
    %s478 = sshrl.u32 %s477, 2
    %s479 = sor.u32 %s477, %s478
    %s480 = sand.u32 15, %s479
    %v481 = vld [vmem:[%s471] sm:%s480]
    %v482 = vunpack.c.l.bf16 %v481
    %v483 = vunpack.c.h.bf16 %v481
    %s484 = scalar_lea.vmem [#allocation1], 208
    %485 = vst [vmem:[%s484] sm:%s5] %v482
    %s486 = smul.addr 4, 25
    %s487 = scalar_lea.vmem %s0, %s486
    %s488 = sshrl.u32 %s5, 1
    %s489 = sor.u32 %s5, %s488
    %s490 = sand.u32 %s489, 85
    %s491 = sshrl.u32 %s490, 1
    %s492 = sor.u32 %s490, %s491
    %s493 = sand.u32 51, %s492
    %s494 = sshrl.u32 %s493, 2
    %s495 = sor.u32 %s493, %s494
    %s496 = sand.u32 15, %s495
    %v497 = vld [vmem:[%s487] sm:%s496]
    %v498 = vunpack.c.l.bf16 %v497
    %v499 = vunpack.c.h.bf16 %v497
    %s500 = scalar_lea.vmem [#allocation1], 200
    %501 = vst [vmem:[%s500] sm:%s5] %v498
    %s502 = smul.addr 4, 24
    %s503 = scalar_lea.vmem %s0, %s502
    %s504 = sshrl.u32 %s5, 1
    %s505 = sor.u32 %s5, %s504
    %s506 = sand.u32 %s505, 85
    %s507 = sshrl.u32 %s506, 1
    %s508 = sor.u32 %s506, %s507
    %s509 = sand.u32 51, %s508
    %s510 = sshrl.u32 %s509, 2
    %s511 = sor.u32 %s509, %s510
    %s512 = sand.u32 15, %s511
    %v513 = vld [vmem:[%s503] sm:%s512]
    %v514 = vunpack.c.l.bf16 %v513
    %v515 = vunpack.c.h.bf16 %v513
    %s516 = scalar_lea.vmem [#allocation1], 192
    %517 = vst [vmem:[%s516] sm:%s5] %v514
    %s518 = smul.addr 4, 23
    %s519 = scalar_lea.vmem %s0, %s518
    %s520 = sshrl.u32 %s5, 1
    %s521 = sor.u32 %s5, %s520
    %s522 = sand.u32 %s521, 85
    %s523 = sshrl.u32 %s522, 1
    %s524 = sor.u32 %s522, %s523
    %s525 = sand.u32 51, %s524
    %s526 = sshrl.u32 %s525, 2
    %s527 = sor.u32 %s525, %s526
    %s528 = sand.u32 15, %s527
    %v529 = vld [vmem:[%s519] sm:%s528]
    %v530 = vunpack.c.l.bf16 %v529
    %v531 = vunpack.c.h.bf16 %v529
    %s532 = scalar_lea.vmem [#allocation1], 184
    %533 = vst [vmem:[%s532] sm:%s5] %v530
    %s534 = smul.addr 4, 22
    %s535 = scalar_lea.vmem %s0, %s534
    %s536 = sshrl.u32 %s5, 1
    %s537 = sor.u32 %s5, %s536
    %s538 = sand.u32 %s537, 85
    %s539 = sshrl.u32 %s538, 1
    %s540 = sor.u32 %s538, %s539
    %s541 = sand.u32 51, %s540
    %s542 = sshrl.u32 %s541, 2
    %s543 = sor.u32 %s541, %s542
    %s544 = sand.u32 15, %s543
    %v545 = vld [vmem:[%s535] sm:%s544]
    %v546 = vunpack.c.l.bf16 %v545
    %v547 = vunpack.c.h.bf16 %v545
    %s548 = scalar_lea.vmem [#allocation1], 176
    %549 = vst [vmem:[%s548] sm:%s5] %v546
    %s550 = smul.addr 4, 21
    %s551 = scalar_lea.vmem %s0, %s550
    %s552 = sshrl.u32 %s5, 1
    %s553 = sor.u32 %s5, %s552
    %s554 = sand.u32 %s553, 85
    %s555 = sshrl.u32 %s554, 1
    %s556 = sor.u32 %s554, %s555
    %s557 = sand.u32 51, %s556
    %s558 = sshrl.u32 %s557, 2
    %s559 = sor.u32 %s557, %s558
    %s560 = sand.u32 15, %s559
    %v561 = vld [vmem:[%s551] sm:%s560]
    %v562 = vunpack.c.l.bf16 %v561
    %v563 = vunpack.c.h.bf16 %v561
    %s564 = scalar_lea.vmem [#allocation1], 168
    %565 = vst [vmem:[%s564] sm:%s5] %v562
    %s566 = smul.addr 4, 20
    %s567 = scalar_lea.vmem %s0, %s566
    %s568 = sshrl.u32 %s5, 1
    %s569 = sor.u32 %s5, %s568
    %s570 = sand.u32 %s569, 85
    %s571 = sshrl.u32 %s570, 1
    %s572 = sor.u32 %s570, %s571
    %s573 = sand.u32 51, %s572
    %s574 = sshrl.u32 %s573, 2
    %s575 = sor.u32 %s573, %s574
    %s576 = sand.u32 15, %s575
    %v577 = vld [vmem:[%s567] sm:%s576]
    %v578 = vunpack.c.l.bf16 %v577
    %v579 = vunpack.c.h.bf16 %v577
    %s580 = scalar_lea.vmem [#allocation1], 160
    %581 = vst [vmem:[%s580] sm:%s5] %v578
    %s582 = smul.addr 4, 19
    %s583 = scalar_lea.vmem %s0, %s582
    %s584 = sshrl.u32 %s5, 1
    %s585 = sor.u32 %s5, %s584
    %s586 = sand.u32 %s585, 85
    %s587 = sshrl.u32 %s586, 1
    %s588 = sor.u32 %s586, %s587
    %s589 = sand.u32 51, %s588
    %s590 = sshrl.u32 %s589, 2
    %s591 = sor.u32 %s589, %s590
    %s592 = sand.u32 15, %s591
    %v593 = vld [vmem:[%s583] sm:%s592]
    %v594 = vunpack.c.l.bf16 %v593
    %v595 = vunpack.c.h.bf16 %v593
    %s596 = scalar_lea.vmem [#allocation1], 152
    %597 = vst [vmem:[%s596] sm:%s5] %v594
    %s598 = smul.addr 4, 18
    %s599 = scalar_lea.vmem %s0, %s598
    %s600 = sshrl.u32 %s5, 1
    %s601 = sor.u32 %s5, %s600
    %s602 = sand.u32 %s601, 85
    %s603 = sshrl.u32 %s602, 1
    %s604 = sor.u32 %s602, %s603
    %s605 = sand.u32 51, %s604
    %s606 = sshrl.u32 %s605, 2
    %s607 = sor.u32 %s605, %s606
    %s608 = sand.u32 15, %s607
    %v609 = vld [vmem:[%s599] sm:%s608]
    %v610 = vunpack.c.l.bf16 %v609
    %v611 = vunpack.c.h.bf16 %v609
    %s612 = scalar_lea.vmem [#allocation1], 144
    %613 = vst [vmem:[%s612] sm:%s5] %v610
    %s614 = smul.addr 4, 17
    %s615 = scalar_lea.vmem %s0, %s614
    %s616 = sshrl.u32 %s5, 1
    %s617 = sor.u32 %s5, %s616
    %s618 = sand.u32 %s617, 85
    %s619 = sshrl.u32 %s618, 1
    %s620 = sor.u32 %s618, %s619
    %s621 = sand.u32 51, %s620
    %s622 = sshrl.u32 %s621, 2
    %s623 = sor.u32 %s621, %s622
    %s624 = sand.u32 15, %s623
    %v625 = vld [vmem:[%s615] sm:%s624]
    %v626 = vunpack.c.l.bf16 %v625
    %v627 = vunpack.c.h.bf16 %v625
    %s628 = scalar_lea.vmem [#allocation1], 136
    %629 = vst [vmem:[%s628] sm:%s5] %v626
    %s630 = smul.addr 4, 16
    %s631 = scalar_lea.vmem %s0, %s630
    %s632 = sshrl.u32 %s5, 1
    %s633 = sor.u32 %s5, %s632
    %s634 = sand.u32 %s633, 85
    %s635 = sshrl.u32 %s634, 1
    %s636 = sor.u32 %s634, %s635
    %s637 = sand.u32 51, %s636
    %s638 = sshrl.u32 %s637, 2
    %s639 = sor.u32 %s637, %s638
    %s640 = sand.u32 15, %s639
    %v641 = vld [vmem:[%s631] sm:%s640]
    %v642 = vunpack.c.l.bf16 %v641
    %v643 = vunpack.c.h.bf16 %v641
    %s644 = scalar_lea.vmem [#allocation1], 128
    %645 = vst [vmem:[%s644] sm:%s5] %v642
    %s646 = smul.addr 4, 15
    %s647 = scalar_lea.vmem %s0, %s646
    %s648 = sshrl.u32 %s5, 1
    %s649 = sor.u32 %s5, %s648
    %s650 = sand.u32 %s649, 85
    %s651 = sshrl.u32 %s650, 1
    %s652 = sor.u32 %s650, %s651
    %s653 = sand.u32 51, %s652
    %s654 = sshrl.u32 %s653, 2
    %s655 = sor.u32 %s653, %s654
    %s656 = sand.u32 15, %s655
    %v657 = vld [vmem:[%s647] sm:%s656]
    %v658 = vunpack.c.l.bf16 %v657
    %v659 = vunpack.c.h.bf16 %v657
    %s660 = scalar_lea.vmem [#allocation1], 120
    %661 = vst [vmem:[%s660] sm:%s5] %v658
    %s662 = smul.addr 4, 14
    %s663 = scalar_lea.vmem %s0, %s662
    %s664 = sshrl.u32 %s5, 1
    %s665 = sor.u32 %s5, %s664
    %s666 = sand.u32 %s665, 85
    %s667 = sshrl.u32 %s666, 1
    %s668 = sor.u32 %s666, %s667
    %s669 = sand.u32 51, %s668
    %s670 = sshrl.u32 %s669, 2
    %s671 = sor.u32 %s669, %s670
    %s672 = sand.u32 15, %s671
    %v673 = vld [vmem:[%s663] sm:%s672]
    %v674 = vunpack.c.l.bf16 %v673
    %v675 = vunpack.c.h.bf16 %v673
    %s676 = scalar_lea.vmem [#allocation1], 112
    %677 = vst [vmem:[%s676] sm:%s5] %v674
    %s678 = smul.addr 4, 13
    %s679 = scalar_lea.vmem %s0, %s678
    %s680 = sshrl.u32 %s5, 1
    %s681 = sor.u32 %s5, %s680
    %s682 = sand.u32 %s681, 85
    %s683 = sshrl.u32 %s682, 1
    %s684 = sor.u32 %s682, %s683
    %s685 = sand.u32 51, %s684
    %s686 = sshrl.u32 %s685, 2
    %s687 = sor.u32 %s685, %s686
    %s688 = sand.u32 15, %s687
    %v689 = vld [vmem:[%s679] sm:%s688]
    %v690 = vunpack.c.l.bf16 %v689
    %v691 = vunpack.c.h.bf16 %v689
    %s692 = scalar_lea.vmem [#allocation1], 104
    %693 = vst [vmem:[%s692] sm:%s5] %v690
    %s694 = smul.addr 4, 12
    %s695 = scalar_lea.vmem %s0, %s694
    %s696 = sshrl.u32 %s5, 1
    %s697 = sor.u32 %s5, %s696
    %s698 = sand.u32 %s697, 85
    %s699 = sshrl.u32 %s698, 1
    %s700 = sor.u32 %s698, %s699
    %s701 = sand.u32 51, %s700
    %s702 = sshrl.u32 %s701, 2
    %s703 = sor.u32 %s701, %s702
    %s704 = sand.u32 15, %s703
    %v705 = vld [vmem:[%s695] sm:%s704]
    %v706 = vunpack.c.l.bf16 %v705
    %v707 = vunpack.c.h.bf16 %v705
    %s708 = scalar_lea.vmem [#allocation1], 96
    %709 = vst [vmem:[%s708] sm:%s5] %v706
    %s710 = smul.addr 4, 11
    %s711 = scalar_lea.vmem %s0, %s710
    %s712 = sshrl.u32 %s5, 1
    %s713 = sor.u32 %s5, %s712
    %s714 = sand.u32 %s713, 85
    %s715 = sshrl.u32 %s714, 1
    %s716 = sor.u32 %s714, %s715
    %s717 = sand.u32 51, %s716
    %s718 = sshrl.u32 %s717, 2
    %s719 = sor.u32 %s717, %s718
    %s720 = sand.u32 15, %s719
    %v721 = vld [vmem:[%s711] sm:%s720]
    %v722 = vunpack.c.l.bf16 %v721
    %v723 = vunpack.c.h.bf16 %v721
    %s724 = scalar_lea.vmem [#allocation1], 88
    %725 = vst [vmem:[%s724] sm:%s5] %v722
    %s726 = smul.addr 4, 10
    %s727 = scalar_lea.vmem %s0, %s726
    %s728 = sshrl.u32 %s5, 1
    %s729 = sor.u32 %s5, %s728
    %s730 = sand.u32 %s729, 85
    %s731 = sshrl.u32 %s730, 1
    %s732 = sor.u32 %s730, %s731
    %s733 = sand.u32 51, %s732
    %s734 = sshrl.u32 %s733, 2
    %s735 = sor.u32 %s733, %s734
    %s736 = sand.u32 15, %s735
    %v737 = vld [vmem:[%s727] sm:%s736]
    %v738 = vunpack.c.l.bf16 %v737
    %v739 = vunpack.c.h.bf16 %v737
    %s740 = scalar_lea.vmem [#allocation1], 80
    %741 = vst [vmem:[%s740] sm:%s5] %v738
    %s742 = smul.addr 4, 9
    %s743 = scalar_lea.vmem %s0, %s742
    %s744 = sshrl.u32 %s5, 1
    %s745 = sor.u32 %s5, %s744
    %s746 = sand.u32 %s745, 85
    %s747 = sshrl.u32 %s746, 1
    %s748 = sor.u32 %s746, %s747
    %s749 = sand.u32 51, %s748
    %s750 = sshrl.u32 %s749, 2
    %s751 = sor.u32 %s749, %s750
    %s752 = sand.u32 15, %s751
    %v753 = vld [vmem:[%s743] sm:%s752]
    %v754 = vunpack.c.l.bf16 %v753
    %v755 = vunpack.c.h.bf16 %v753
    %s756 = scalar_lea.vmem [#allocation1], 72
    %757 = vst [vmem:[%s756] sm:%s5] %v754
    %s758 = smul.addr 4, 8
    %s759 = scalar_lea.vmem %s0, %s758
    %s760 = sshrl.u32 %s5, 1
    %s761 = sor.u32 %s5, %s760
    %s762 = sand.u32 %s761, 85
    %s763 = sshrl.u32 %s762, 1
    %s764 = sor.u32 %s762, %s763
    %s765 = sand.u32 51, %s764
    %s766 = sshrl.u32 %s765, 2
    %s767 = sor.u32 %s765, %s766
    %s768 = sand.u32 15, %s767
    %v769 = vld [vmem:[%s759] sm:%s768]
    %v770 = vunpack.c.l.bf16 %v769
    %v771 = vunpack.c.h.bf16 %v769
    %s772 = scalar_lea.vmem [#allocation1], 64
    %773 = vst [vmem:[%s772] sm:%s5] %v770
    %s774 = smul.addr 4, 7
    %s775 = scalar_lea.vmem %s0, %s774
    %s776 = sshrl.u32 %s5, 1
    %s777 = sor.u32 %s5, %s776
    %s778 = sand.u32 %s777, 85
    %s779 = sshrl.u32 %s778, 1
    %s780 = sor.u32 %s778, %s779
    %s781 = sand.u32 51, %s780
    %s782 = sshrl.u32 %s781, 2
    %s783 = sor.u32 %s781, %s782
    %s784 = sand.u32 15, %s783
    %v785 = vld [vmem:[%s775] sm:%s784]
    %v786 = vunpack.c.l.bf16 %v785
    %v787 = vunpack.c.h.bf16 %v785
    %s788 = scalar_lea.vmem [#allocation1], 56
    %789 = vst [vmem:[%s788] sm:%s5] %v786
    %s790 = smul.addr 4, 6
    %s791 = scalar_lea.vmem %s0, %s790
    %s792 = sshrl.u32 %s5, 1
    %s793 = sor.u32 %s5, %s792
    %s794 = sand.u32 %s793, 85
    %s795 = sshrl.u32 %s794, 1
    %s796 = sor.u32 %s794, %s795
    %s797 = sand.u32 51, %s796
    %s798 = sshrl.u32 %s797, 2
    %s799 = sor.u32 %s797, %s798
    %s800 = sand.u32 15, %s799
    %v801 = vld [vmem:[%s791] sm:%s800]
    %v802 = vunpack.c.l.bf16 %v801
    %v803 = vunpack.c.h.bf16 %v801
    %s804 = scalar_lea.vmem [#allocation1], 48
    %805 = vst [vmem:[%s804] sm:%s5] %v802
    %s806 = smul.addr 4, 5
    %s807 = scalar_lea.vmem %s0, %s806
    %s808 = sshrl.u32 %s5, 1
    %s809 = sor.u32 %s5, %s808
    %s810 = sand.u32 %s809, 85
    %s811 = sshrl.u32 %s810, 1
    %s812 = sor.u32 %s810, %s811
    %s813 = sand.u32 51, %s812
    %s814 = sshrl.u32 %s813, 2
    %s815 = sor.u32 %s813, %s814
    %s816 = sand.u32 15, %s815
    %v817 = vld [vmem:[%s807] sm:%s816]
    %v818 = vunpack.c.l.bf16 %v817
    %v819 = vunpack.c.h.bf16 %v817
    %s820 = scalar_lea.vmem [#allocation1], 40
    %821 = vst [vmem:[%s820] sm:%s5] %v818
    %s822 = smul.addr 4, 4
    %s823 = scalar_lea.vmem %s0, %s822
    %s824 = sshrl.u32 %s5, 1
    %s825 = sor.u32 %s5, %s824
    %s826 = sand.u32 %s825, 85
    %s827 = sshrl.u32 %s826, 1
    %s828 = sor.u32 %s826, %s827
    %s829 = sand.u32 51, %s828
    %s830 = sshrl.u32 %s829, 2
    %s831 = sor.u32 %s829, %s830
    %s832 = sand.u32 15, %s831
    %v833 = vld [vmem:[%s823] sm:%s832]
    %v834 = vunpack.c.l.bf16 %v833
    %v835 = vunpack.c.h.bf16 %v833
    %s836 = scalar_lea.vmem [#allocation1], 32
    %837 = vst [vmem:[%s836] sm:%s5] %v834
    %s838 = smul.addr 4, 3
    %s839 = scalar_lea.vmem %s0, %s838
    %s840 = sshrl.u32 %s5, 1
    %s841 = sor.u32 %s5, %s840
    %s842 = sand.u32 %s841, 85
    %s843 = sshrl.u32 %s842, 1
    %s844 = sor.u32 %s842, %s843
    %s845 = sand.u32 51, %s844
    %s846 = sshrl.u32 %s845, 2
    %s847 = sor.u32 %s845, %s846
    %s848 = sand.u32 15, %s847
    %v849 = vld [vmem:[%s839] sm:%s848]
    %v850 = vunpack.c.l.bf16 %v849
    %v851 = vunpack.c.h.bf16 %v849
    %s852 = scalar_lea.vmem [#allocation1], 24
    %853 = vst [vmem:[%s852] sm:%s5] %v850
    %s854 = smul.addr 4, 2
    %s855 = scalar_lea.vmem %s0, %s854
    %s856 = sshrl.u32 %s5, 1
    %s857 = sor.u32 %s5, %s856
    %s858 = sand.u32 %s857, 85
    %s859 = sshrl.u32 %s858, 1
    %s860 = sor.u32 %s858, %s859
    %s861 = sand.u32 51, %s860
    %s862 = sshrl.u32 %s861, 2
    %s863 = sor.u32 %s861, %s862
    %s864 = sand.u32 15, %s863
    %v865 = vld [vmem:[%s855] sm:%s864]
    %v866 = vunpack.c.l.bf16 %v865
    %v867 = vunpack.c.h.bf16 %v865
    %s868 = scalar_lea.vmem [#allocation1], 16
    %869 = vst [vmem:[%s868] sm:%s5] %v866
    %s870 = scalar_lea.vmem %s0, 4
    %s871 = sshrl.u32 %s5, 1
    %s872 = sor.u32 %s5, %s871
    %s873 = sand.u32 %s872, 85
    %s874 = sshrl.u32 %s873, 1
    %s875 = sor.u32 %s873, %s874
    %s876 = sand.u32 51, %s875
    %s877 = sshrl.u32 %s876, 2
    %s878 = sor.u32 %s876, %s877
    %s879 = sand.u32 15, %s878
    %v880 = vld [vmem:[%s870] sm:%s879]
    %v881 = vunpack.c.l.bf16 %v880
    %v882 = vunpack.c.h.bf16 %v880
    %s883 = scalar_lea.vmem [#allocation1], 8
    %884 = vst [vmem:[%s883] sm:%s5] %v881
    %s885 = sshrl.u32 %s5, 1
    %s886 = sor.u32 %s5, %s885
    %s887 = sand.u32 %s886, 85
    %s888 = sshrl.u32 %s887, 1
    %s889 = sor.u32 %s887, %s888
    %s890 = sand.u32 51, %s889
    %s891 = sshrl.u32 %s890, 2
    %s892 = sor.u32 %s890, %s891
    %s893 = sand.u32 15, %s892
    %v894 = vld [vmem:[%s0] sm:%s893]
    %v895 = vunpack.c.l.bf16 %v894
    %v896 = vunpack.c.h.bf16 %v894
    %897 = vst [vmem:[#allocation1] sm:%s5] %v895
    %s898 = scalar_lea.vmem [#allocation1], 24
    %v899 = vld [vmem:[%s898] sm:$0x7f]
    %vm900 = vcmask 130048
    %s901 = scalar_lea.vmem [#allocation0], 24
    %902 = vst.msk [vmem:[%s901] sm:$0x7f] %vm900, %v899
    %s903 = scalar_lea.vmem [#allocation1], 56
    %v904 = vld [vmem:[%s903] sm:$0x7f]
    %vm905 = vcmask 130048
    %s906 = scalar_lea.vmem [#allocation0], 31
    %907 = vst.msk [vmem:[%s906] ss:$25 sm:$0x3] %vm905, %v904
    %s908 = scalar_lea.vmem [#allocation0], 55
    %909 = vst.msk [vmem:[%s908] sm:$0x7c] %vm905, %v904
    %s910 = scalar_lea.vmem [#allocation1], 88
    %v911 = vld [vmem:[%s910] sm:$0x7f]
    %vm912 = vcmask 130048
    %s913 = scalar_lea.vmem [#allocation0], 62
    %914 = vst.msk [vmem:[%s913] sm:$0x3] %vm912, %v911
    %s915 = scalar_lea.vmem [#allocation0], 86
    %916 = vst.msk [vmem:[%s915] sm:$0x7c] %vm912, %v911
    %s917 = scalar_lea.vmem [#allocation1], 120
    %v918 = vld [vmem:[%s917] sm:$0x7f]
    %vm919 = vcmask 130048
    %s920 = scalar_lea.vmem [#allocation0], 93
    %921 = vst.msk [vmem:[%s920] sm:$0x7] %vm919, %v918
    %s922 = scalar_lea.vmem [#allocation0], 117
    %923 = vst.msk [vmem:[%s922] sm:$0x78] %vm919, %v918
    %s924 = scalar_lea.vmem [#allocation1], 152
    %v925 = vld [vmem:[%s924] sm:$0x7f]
    %vm926 = vcmask 130048
    %s927 = scalar_lea.vmem [#allocation0], 124
    %928 = vst.msk [vmem:[%s927] sm:$0xf] %vm926, %v925
    %s929 = scalar_lea.vmem [#allocation0], 148
    %930 = vst.msk [vmem:[%s929] sm:$0x70] %vm926, %v925
    %s931 = scalar_lea.vmem [#allocation1], 184
    %v932 = vld [vmem:[%s931] sm:$0x7f]
    %vm933 = vcmask 130048
    %s934 = scalar_lea.vmem [#allocation0], 155
    %935 = vst.msk [vmem:[%s934] sm:$0x1f] %vm933, %v932
    %s936 = scalar_lea.vmem [#allocation0], 179
    %937 = vst.msk [vmem:[%s936] sm:$0x60] %vm933, %v932
    %s938 = scalar_lea.vmem [#allocation1], 216
    %v939 = vld [vmem:[%s938] sm:$0x7f]
    %vm940 = vcmask 130048
    %s941 = scalar_lea.vmem [#allocation0], 186
    %942 = vst.msk [vmem:[%s941] sm:$0x3f] %vm940, %v939
    %s943 = scalar_lea.vmem [#allocation0], 210
    %944 = vst.msk [vmem:[%s943] sm:$0x40] %vm940, %v939
    %s945 = scalar_lea.vmem [#allocation1], 248
    %v946 = vld [vmem:[%s945] sm:$0x7f]
    %vm947 = vcmask 130048
    %s948 = scalar_lea.vmem [#allocation0], 217
    %949 = vst.msk [vmem:[%s948] sm:$0x7f] %vm947, %v946
    %s950 = scalar_lea.vmem [#allocation1], 280
    %v951 = vld [vmem:[%s950] sm:$0x7f]
    %vm952 = vcmask 130048
    %s953 = scalar_lea.vmem [#allocation0], 248
    %954 = vst.msk [vmem:[%s953] sm:$0x7f] %vm952, %v951
    %s955 = scalar_lea.vmem [#allocation1], 312
    %v956 = vld [vmem:[%s955] sm:$0x7f]
    %vm957 = vcmask 130048
    %s958 = scalar_lea.vmem [#allocation0], 255
    %959 = vst.msk [vmem:[%s958] ss:$25 sm:$0x3] %vm957, %v956
    %s960 = scalar_lea.vmem [#allocation0], 279
    %961 = vst.msk [vmem:[%s960] sm:$0x7c] %vm957, %v956
    %s962 = scalar_lea.vmem [#allocation1], 344
    %v963 = vld [vmem:[%s962] sm:$0x7f]
    %vm964 = vcmask 130048
    %s965 = scalar_lea.vmem [#allocation0], 286
    %966 = vst.msk [vmem:[%s965] sm:$0x3] %vm964, %v963
    %s967 = scalar_lea.vmem [#allocation0], 310
    %968 = vst.msk [vmem:[%s967] sm:$0x7c] %vm964, %v963
    %s969 = scalar_lea.vmem [#allocation1], 376
    %v970 = vld [vmem:[%s969] sm:$0x7f]
    %vm971 = vcmask 130048
    %s972 = scalar_lea.vmem [#allocation0], 317
    %973 = vst.msk [vmem:[%s972] sm:$0x7] %vm971, %v970
    %s974 = scalar_lea.vmem [#allocation0], 341
    %975 = vst.msk [vmem:[%s974] sm:$0x78] %vm971, %v970
    %s976 = scalar_lea.vmem [#allocation1], 408
    %v977 = vld [vmem:[%s976] sm:$0x7f]
    %vm978 = vcmask 130048
    %s979 = scalar_lea.vmem [#allocation0], 348
    %980 = vst.msk [vmem:[%s979] sm:$0xf] %vm978, %v977
    %s981 = scalar_lea.vmem [#allocation0], 372
    %982 = vst.msk [vmem:[%s981] sm:$0x70] %vm978, %v977
    %s983 = scalar_lea.vmem [#allocation1], 440
    %v984 = vld [vmem:[%s983] sm:$0x7f]
    %vm985 = vcmask 130048
    %s986 = scalar_lea.vmem [#allocation0], 379
    %987 = vst.msk [vmem:[%s986] sm:$0x1f] %vm985, %v984
    %s988 = scalar_lea.vmem [#allocation0], 403
    %989 = vst.msk [vmem:[%s988] sm:$0x60] %vm985, %v984
    %v990 = vld [vmem:[#allocation1] sm:$0x7f]
    %991 = vst [vmem:[#allocation0] sm:$0x7f] %v990
    %s992 = scalar_lea.vmem [#allocation1], 8
    %v993 = vld [vmem:[%s992] sm:$0x7f]
    %s994 = scalar_lea.vmem [#allocation0], 8
    %995 = vst [vmem:[%s994] sm:$0x7f] %v993
    %s996 = scalar_lea.vmem [#allocation1], 16
    %v997 = vld [vmem:[%s996] sm:$0x7f]
    %s998 = scalar_lea.vmem [#allocation0], 16
    %999 = vst [vmem:[%s998] sm:$0x7f] %v997
    %s1000 = scalar_lea.vmem [#allocation1], 32
    %v1001 = vld [vmem:[%s1000] sm:$0x7f]
    %s1002 = scalar_lea.vmem [#allocation0], 7
    %1003 = vst [vmem:[%s1002] ss:$25 sm:$0x3] %v1001
    %s1004 = scalar_lea.vmem [#allocation0], 31
    %1005 = vst [vmem:[%s1004] sm:$0x7c] %v1001
    %s1006 = scalar_lea.vmem [#allocation1], 40
    %v1007 = vld [vmem:[%s1006] sm:$0x7f]
    %s1008 = scalar_lea.vmem [#allocation0], 15
    %1009 = vst [vmem:[%s1008] ss:$25 sm:$0x3] %v1007
    %s1010 = scalar_lea.vmem [#allocation0], 39
    %1011 = vst [vmem:[%s1010] sm:$0x7c] %v1007
    %s1012 = scalar_lea.vmem [#allocation1], 48
    %v1013 = vld [vmem:[%s1012] sm:$0x7f]
    %s1014 = scalar_lea.vmem [#allocation0], 23
    %1015 = vst [vmem:[%s1014] ss:$25 sm:$0x3] %v1013
    %s1016 = scalar_lea.vmem [#allocation0], 47
    %1017 = vst [vmem:[%s1016] sm:$0x7c] %v1013
    %s1018 = scalar_lea.vmem [#allocation1], 64
    %v1019 = vld [vmem:[%s1018] sm:$0x7f]
    %s1020 = scalar_lea.vmem [#allocation0], 38
    %1021 = vst [vmem:[%s1020] sm:$0x3] %v1019
    %s1022 = scalar_lea.vmem [#allocation0], 62
    %1023 = vst [vmem:[%s1022] sm:$0x7c] %v1019
    %s1024 = scalar_lea.vmem [#allocation1], 72
    %v1025 = vld [vmem:[%s1024] sm:$0x7f]
    %s1026 = scalar_lea.vmem [#allocation0], 46
    %1027 = vst [vmem:[%s1026] sm:$0x3] %v1025
    %s1028 = scalar_lea.vmem [#allocation0], 70
    %1029 = vst [vmem:[%s1028] sm:$0x7c] %v1025
    %s1030 = scalar_lea.vmem [#allocation1], 80
    %v1031 = vld [vmem:[%s1030] sm:$0x7f]
    %s1032 = scalar_lea.vmem [#allocation0], 54
    %1033 = vst [vmem:[%s1032] sm:$0x3] %v1031
    %s1034 = scalar_lea.vmem [#allocation0], 78
    %1035 = vst [vmem:[%s1034] sm:$0x7c] %v1031
    %s1036 = scalar_lea.vmem [#allocation1], 96
    %v1037 = vld [vmem:[%s1036] sm:$0x7f]
    %s1038 = scalar_lea.vmem [#allocation0], 69
    %1039 = vst [vmem:[%s1038] sm:$0x7] %v1037
    %s1040 = scalar_lea.vmem [#allocation0], 93
    %1041 = vst [vmem:[%s1040] sm:$0x78] %v1037
    %s1042 = scalar_lea.vmem [#allocation1], 104
    %v1043 = vld [vmem:[%s1042] sm:$0x7f]
    %s1044 = scalar_lea.vmem [#allocation0], 77
    %1045 = vst [vmem:[%s1044] sm:$0x7] %v1043
    %s1046 = scalar_lea.vmem [#allocation0], 101
    %1047 = vst [vmem:[%s1046] sm:$0x78] %v1043
    %s1048 = scalar_lea.vmem [#allocation1], 112
    %v1049 = vld [vmem:[%s1048] sm:$0x7f]
    %s1050 = scalar_lea.vmem [#allocation0], 85
    %1051 = vst [vmem:[%s1050] sm:$0x7] %v1049
    %s1052 = scalar_lea.vmem [#allocation0], 109
    %1053 = vst [vmem:[%s1052] sm:$0x78] %v1049
    %s1054 = scalar_lea.vmem [#allocation1], 128
    %v1055 = vld [vmem:[%s1054] sm:$0x7f]
    %s1056 = scalar_lea.vmem [#allocation0], 100
    %1057 = vst [vmem:[%s1056] sm:$0xf] %v1055
    %s1058 = scalar_lea.vmem [#allocation0], 124
    %1059 = vst [vmem:[%s1058] sm:$0x70] %v1055
    %s1060 = scalar_lea.vmem [#allocation1], 136
    %v1061 = vld [vmem:[%s1060] sm:$0x7f]
    %s1062 = scalar_lea.vmem [#allocation0], 108
    %1063 = vst [vmem:[%s1062] sm:$0xf] %v1061
    %s1064 = scalar_lea.vmem [#allocation0], 132
    %1065 = vst [vmem:[%s1064] sm:$0x70] %v1061
    %s1066 = scalar_lea.vmem [#allocation1], 144
    %v1067 = vld [vmem:[%s1066] sm:$0x7f]
    %s1068 = scalar_lea.vmem [#allocation0], 116
    %1069 = vst [vmem:[%s1068] sm:$0xf] %v1067
    %s1070 = scalar_lea.vmem [#allocation0], 140
    %1071 = vst [vmem:[%s1070] sm:$0x70] %v1067
    %s1072 = scalar_lea.vmem [#allocation1], 160
    %v1073 = vld [vmem:[%s1072] sm:$0x7f]
    %s1074 = scalar_lea.vmem [#allocation0], 131
    %1075 = vst [vmem:[%s1074] sm:$0x1f] %v1073
    %s1076 = scalar_lea.vmem [#allocation0], 155
    %1077 = vst [vmem:[%s1076] sm:$0x60] %v1073
    %s1078 = scalar_lea.vmem [#allocation1], 168
    %v1079 = vld [vmem:[%s1078] sm:$0x7f]
    %s1080 = scalar_lea.vmem [#allocation0], 139
    %1081 = vst [vmem:[%s1080] sm:$0x1f] %v1079
    %s1082 = scalar_lea.vmem [#allocation0], 163
    %1083 = vst [vmem:[%s1082] sm:$0x60] %v1079
    %s1084 = scalar_lea.vmem [#allocation1], 176
    %v1085 = vld [vmem:[%s1084] sm:$0x7f]
    %s1086 = scalar_lea.vmem [#allocation0], 147
    %1087 = vst [vmem:[%s1086] sm:$0x1f] %v1085
    %s1088 = scalar_lea.vmem [#allocation0], 171
    %1089 = vst [vmem:[%s1088] sm:$0x60] %v1085
    %s1090 = scalar_lea.vmem [#allocation1], 192
    %v1091 = vld [vmem:[%s1090] sm:$0x7f]
    %s1092 = scalar_lea.vmem [#allocation0], 162
    %1093 = vst [vmem:[%s1092] sm:$0x3f] %v1091
    %s1094 = scalar_lea.vmem [#allocation0], 186
    %1095 = vst [vmem:[%s1094] sm:$0x40] %v1091
    %s1096 = scalar_lea.vmem [#allocation1], 200
    %v1097 = vld [vmem:[%s1096] sm:$0x7f]
    %s1098 = scalar_lea.vmem [#allocation0], 170
    %1099 = vst [vmem:[%s1098] sm:$0x3f] %v1097
    %s1100 = scalar_lea.vmem [#allocation0], 194
    %1101 = vst [vmem:[%s1100] sm:$0x40] %v1097
    %s1102 = scalar_lea.vmem [#allocation1], 208
    %v1103 = vld [vmem:[%s1102] sm:$0x7f]
    %s1104 = scalar_lea.vmem [#allocation0], 178
    %1105 = vst [vmem:[%s1104] sm:$0x3f] %v1103
    %s1106 = scalar_lea.vmem [#allocation0], 202
    %1107 = vst [vmem:[%s1106] sm:$0x40] %v1103
    %s1108 = scalar_lea.vmem [#allocation1], 224
    %v1109 = vld [vmem:[%s1108] sm:$0x7f]
    %s1110 = scalar_lea.vmem [#allocation0], 193
    %1111 = vst [vmem:[%s1110] sm:$0x7f] %v1109
    %s1112 = scalar_lea.vmem [#allocation1], 232
    %v1113 = vld [vmem:[%s1112] sm:$0x7f]
    %s1114 = scalar_lea.vmem [#allocation0], 201
    %1115 = vst [vmem:[%s1114] sm:$0x7f] %v1113
    %s1116 = scalar_lea.vmem [#allocation1], 240
    %v1117 = vld [vmem:[%s1116] sm:$0x7f]
    %s1118 = scalar_lea.vmem [#allocation0], 209
    %1119 = vst [vmem:[%s1118] sm:$0x7f] %v1117
    %s1120 = scalar_lea.vmem [#allocation1], 256
    %v1121 = vld [vmem:[%s1120] sm:$0x7f]
    %s1122 = scalar_lea.vmem [#allocation0], 224
    %1123 = vst [vmem:[%s1122] sm:$0x7f] %v1121
    %s1124 = scalar_lea.vmem [#allocation1], 264
    %v1125 = vld [vmem:[%s1124] sm:$0x7f]
    %s1126 = scalar_lea.vmem [#allocation0], 232
    %1127 = vst [vmem:[%s1126] sm:$0x7f] %v1125
    %s1128 = scalar_lea.vmem [#allocation1], 272
    %v1129 = vld [vmem:[%s1128] sm:$0x7f]
    %s1130 = scalar_lea.vmem [#allocation0], 240
    %1131 = vst [vmem:[%s1130] sm:$0x7f] %v1129
    %s1132 = scalar_lea.vmem [#allocation1], 288
    %v1133 = vld [vmem:[%s1132] sm:$0x7f]
    %s1134 = scalar_lea.vmem [#allocation0], 231
    %1135 = vst [vmem:[%s1134] ss:$25 sm:$0x3] %v1133
    %s1136 = scalar_lea.vmem [#allocation0], 255
    %1137 = vst [vmem:[%s1136] sm:$0x7c] %v1133
    %s1138 = scalar_lea.vmem [#allocation1], 296
    %v1139 = vld [vmem:[%s1138] sm:$0x7f]
    %s1140 = scalar_lea.vmem [#allocation0], 239
    %1141 = vst [vmem:[%s1140] ss:$25 sm:$0x3] %v1139
    %s1142 = scalar_lea.vmem [#allocation0], 263
    %1143 = vst [vmem:[%s1142] sm:$0x7c] %v1139
    %s1144 = scalar_lea.vmem [#allocation1], 304
    %v1145 = vld [vmem:[%s1144] sm:$0x7f]
    %s1146 = scalar_lea.vmem [#allocation0], 247
    %1147 = vst [vmem:[%s1146] ss:$25 sm:$0x3] %v1145
    %s1148 = scalar_lea.vmem [#allocation0], 271
    %1149 = vst [vmem:[%s1148] sm:$0x7c] %v1145
    %s1150 = scalar_lea.vmem [#allocation1], 320
    %v1151 = vld [vmem:[%s1150] sm:$0x7f]
    %s1152 = scalar_lea.vmem [#allocation0], 262
    %1153 = vst [vmem:[%s1152] sm:$0x3] %v1151
    %s1154 = scalar_lea.vmem [#allocation0], 286
    %1155 = vst [vmem:[%s1154] sm:$0x7c] %v1151
    %s1156 = scalar_lea.vmem [#allocation1], 328
    %v1157 = vld [vmem:[%s1156] sm:$0x7f]
    %s1158 = scalar_lea.vmem [#allocation0], 270
    %1159 = vst [vmem:[%s1158] sm:$0x3] %v1157
    %s1160 = scalar_lea.vmem [#allocation0], 294
    %1161 = vst [vmem:[%s1160] sm:$0x7c] %v1157
    %s1162 = scalar_lea.vmem [#allocation1], 336
    %v1163 = vld [vmem:[%s1162] sm:$0x7f]
    %s1164 = scalar_lea.vmem [#allocation0], 278
    %1165 = vst [vmem:[%s1164] sm:$0x3] %v1163
    %s1166 = scalar_lea.vmem [#allocation0], 302
    %1167 = vst [vmem:[%s1166] sm:$0x7c] %v1163
    %s1168 = scalar_lea.vmem [#allocation1], 352
    %v1169 = vld [vmem:[%s1168] sm:$0x7f]
    %s1170 = scalar_lea.vmem [#allocation0], 293
    %1171 = vst [vmem:[%s1170] sm:$0x7] %v1169
    %s1172 = scalar_lea.vmem [#allocation0], 317
    %1173 = vst [vmem:[%s1172] sm:$0x78] %v1169
    %s1174 = scalar_lea.vmem [#allocation1], 360
    %v1175 = vld [vmem:[%s1174] sm:$0x7f]
    %s1176 = scalar_lea.vmem [#allocation0], 301
    %1177 = vst [vmem:[%s1176] sm:$0x7] %v1175
    %s1178 = scalar_lea.vmem [#allocation0], 325
    %1179 = vst [vmem:[%s1178] sm:$0x78] %v1175
    %s1180 = scalar_lea.vmem [#allocation1], 368
    %v1181 = vld [vmem:[%s1180] sm:$0x7f]
    %s1182 = scalar_lea.vmem [#allocation0], 309
    %1183 = vst [vmem:[%s1182] sm:$0x7] %v1181
    %s1184 = scalar_lea.vmem [#allocation0], 333
    %1185 = vst [vmem:[%s1184] sm:$0x78] %v1181
    %s1186 = scalar_lea.vmem [#allocation1], 384
    %v1187 = vld [vmem:[%s1186] sm:$0x7f]
    %s1188 = scalar_lea.vmem [#allocation0], 324
    %1189 = vst [vmem:[%s1188] sm:$0xf] %v1187
    %s1190 = scalar_lea.vmem [#allocation0], 348
    %1191 = vst [vmem:[%s1190] sm:$0x70] %v1187
    %s1192 = scalar_lea.vmem [#allocation1], 392
    %v1193 = vld [vmem:[%s1192] sm:$0x7f]
    %s1194 = scalar_lea.vmem [#allocation0], 332
    %1195 = vst [vmem:[%s1194] sm:$0xf] %v1193
    %s1196 = scalar_lea.vmem [#allocation0], 356
    %1197 = vst [vmem:[%s1196] sm:$0x70] %v1193
    %s1198 = scalar_lea.vmem [#allocation1], 400
    %v1199 = vld [vmem:[%s1198] sm:$0x7f]
    %s1200 = scalar_lea.vmem [#allocation0], 340
    %1201 = vst [vmem:[%s1200] sm:$0xf] %v1199
    %s1202 = scalar_lea.vmem [#allocation0], 364
    %1203 = vst [vmem:[%s1202] sm:$0x70] %v1199
    %s1204 = scalar_lea.vmem [#allocation1], 416
    %v1205 = vld [vmem:[%s1204] sm:$0x7f]
    %s1206 = scalar_lea.vmem [#allocation0], 355
    %1207 = vst [vmem:[%s1206] sm:$0x1f] %v1205
    %s1208 = scalar_lea.vmem [#allocation0], 379
    %1209 = vst [vmem:[%s1208] sm:$0x60] %v1205
    %s1210 = scalar_lea.vmem [#allocation1], 424
    %v1211 = vld [vmem:[%s1210] sm:$0x7f]
    %s1212 = scalar_lea.vmem [#allocation0], 363
    %1213 = vst [vmem:[%s1212] sm:$0x1f] %v1211
    %s1214 = scalar_lea.vmem [#allocation0], 387
    %1215 = vst [vmem:[%s1214] sm:$0x60] %v1211
    %s1216 = scalar_lea.vmem [#allocation1], 432
    %v1217 = vld [vmem:[%s1216] sm:$0x7f]
    %s1218 = scalar_lea.vmem [#allocation0], 371
    %1219 = vst [vmem:[%s1218] sm:$0x1f] %v1217
    %s1220 = scalar_lea.vmem [#allocation0], 395
    %1221 = vst [vmem:[%s1220] sm:$0x60] %v1217
    %s1223 = smul.u32 4, 2
    %s1224 = sshll.u32 1, %s1223
    %s1225 = ssub.s32 %s1224, 1
    %s1226 = sshrl.u32 %s1223, 1
    %v1227 = vld [vmem:[#allocation0] sm:%s1225]
    %v1228 = vpack.c.bf16 0.0, %v1227
    %s1229 = sshll.u32 1, %s1226
    %s1230 = ssub.s32 %s1229, 1
    %1231 = vst [vmem:[%s1] sm:%s1230] %v1228
    %s1232 = scalar_lea.vmem [#allocation0], 8
    %v1233 = vld [vmem:[%s1232] sm:%s1225]
    %v1234 = vpack.c.bf16 0.0, %v1233
    %s1235 = sshll.u32 1, %s1226
    %s1236 = ssub.s32 %s1235, 1
    %s1237 = scalar_lea.vmem %s1, 4
    %1238 = vst [vmem:[%s1237] sm:%s1236] %v1234
    %s1239 = scalar_lea.vmem [#allocation0], 16
    %v1240 = vld [vmem:[%s1239] sm:%s1225]
    %v1241 = vpack.c.bf16 0.0, %v1240
    %s1242 = sshll.u32 1, %s1226
    %s1243 = ssub.s32 %s1242, 1
    %s1244 = smul.addr 4, 2
    %s1245 = scalar_lea.vmem %s1, %s1244
    %1246 = vst [vmem:[%s1245] sm:%s1243] %v1241
    %s1247 = scalar_lea.vmem [#allocation0], 24
    %v1248 = vld [vmem:[%s1247] sm:%s1225]
    %v1249 = vpack.c.bf16 0.0, %v1248
    %s1250 = sshll.u32 1, %s1226
    %s1251 = ssub.s32 %s1250, 1
    %s1252 = smul.addr 4, 3
    %s1253 = scalar_lea.vmem %s1, %s1252
    %1254 = vst [vmem:[%s1253] sm:%s1251] %v1249
    %s1255 = scalar_lea.vmem [#allocation0], 32
    %v1256 = vld [vmem:[%s1255] sm:%s1225]
    %v1257 = vpack.c.bf16 0.0, %v1256
    %s1258 = sshll.u32 1, %s1226
    %s1259 = ssub.s32 %s1258, 1
    %s1260 = smul.addr 4, 4
    %s1261 = scalar_lea.vmem %s1, %s1260
    %1262 = vst [vmem:[%s1261] sm:%s1259] %v1257
    %s1263 = scalar_lea.vmem [#allocation0], 40
    %v1264 = vld [vmem:[%s1263] sm:%s1225]
    %v1265 = vpack.c.bf16 0.0, %v1264
    %s1266 = sshll.u32 1, %s1226
    %s1267 = ssub.s32 %s1266, 1
    %s1268 = smul.addr 4, 5
    %s1269 = scalar_lea.vmem %s1, %s1268
    %1270 = vst [vmem:[%s1269] sm:%s1267] %v1265
    %s1271 = scalar_lea.vmem [#allocation0], 48
    %v1272 = vld [vmem:[%s1271] sm:%s1225]
    %v1273 = vpack.c.bf16 0.0, %v1272
    %s1274 = sshll.u32 1, %s1226
    %s1275 = ssub.s32 %s1274, 1
    %s1276 = smul.addr 4, 6
    %s1277 = scalar_lea.vmem %s1, %s1276
    %1278 = vst [vmem:[%s1277] sm:%s1275] %v1273
    %s1279 = scalar_lea.vmem [#allocation0], 56
    %v1280 = vld [vmem:[%s1279] sm:%s1225]
    %v1281 = vpack.c.bf16 0.0, %v1280
    %s1282 = sshll.u32 1, %s1226
    %s1283 = ssub.s32 %s1282, 1
    %s1284 = smul.addr 4, 7
    %s1285 = scalar_lea.vmem %s1, %s1284
    %1286 = vst [vmem:[%s1285] sm:%s1283] %v1281
    %s1287 = scalar_lea.vmem [#allocation0], 64
    %v1288 = vld [vmem:[%s1287] sm:%s1225]
    %v1289 = vpack.c.bf16 0.0, %v1288
    %s1290 = sshll.u32 1, %s1226
    %s1291 = ssub.s32 %s1290, 1
    %s1292 = smul.addr 4, 8
    %s1293 = scalar_lea.vmem %s1, %s1292
    %1294 = vst [vmem:[%s1293] sm:%s1291] %v1289
    %s1295 = scalar_lea.vmem [#allocation0], 72
    %v1296 = vld [vmem:[%s1295] sm:%s1225]
    %v1297 = vpack.c.bf16 0.0, %v1296
    %s1298 = sshll.u32 1, %s1226
    %s1299 = ssub.s32 %s1298, 1
    %s1300 = smul.addr 4, 9
    %s1301 = scalar_lea.vmem %s1, %s1300
    %1302 = vst [vmem:[%s1301] sm:%s1299] %v1297
    %s1303 = scalar_lea.vmem [#allocation0], 80
    %v1304 = vld [vmem:[%s1303] sm:%s1225]
    %v1305 = vpack.c.bf16 0.0, %v1304
    %s1306 = sshll.u32 1, %s1226
    %s1307 = ssub.s32 %s1306, 1
    %s1308 = smul.addr 4, 10
    %s1309 = scalar_lea.vmem %s1, %s1308
    %1310 = vst [vmem:[%s1309] sm:%s1307] %v1305
    %s1311 = scalar_lea.vmem [#allocation0], 88
    %v1312 = vld [vmem:[%s1311] sm:%s1225]
    %v1313 = vpack.c.bf16 0.0, %v1312
    %s1314 = sshll.u32 1, %s1226
    %s1315 = ssub.s32 %s1314, 1
    %s1316 = smul.addr 4, 11
    %s1317 = scalar_lea.vmem %s1, %s1316
    %1318 = vst [vmem:[%s1317] sm:%s1315] %v1313
    %s1319 = scalar_lea.vmem [#allocation0], 96
    %v1320 = vld [vmem:[%s1319] sm:%s1225]
    %v1321 = vpack.c.bf16 0.0, %v1320
    %s1322 = sshll.u32 1, %s1226
    %s1323 = ssub.s32 %s1322, 1
    %s1324 = smul.addr 4, 12
    %s1325 = scalar_lea.vmem %s1, %s1324
    %1326 = vst [vmem:[%s1325] sm:%s1323] %v1321
    %s1327 = scalar_lea.vmem [#allocation0], 104
    %v1328 = vld [vmem:[%s1327] sm:%s1225]
    %v1329 = vpack.c.bf16 0.0, %v1328
    %s1330 = sshll.u32 1, %s1226
    %s1331 = ssub.s32 %s1330, 1
    %s1332 = smul.addr 4, 13
    %s1333 = scalar_lea.vmem %s1, %s1332
    %1334 = vst [vmem:[%s1333] sm:%s1331] %v1329
    %s1335 = scalar_lea.vmem [#allocation0], 112
    %v1336 = vld [vmem:[%s1335] sm:%s1225]
    %v1337 = vpack.c.bf16 0.0, %v1336
    %s1338 = sshll.u32 1, %s1226
    %s1339 = ssub.s32 %s1338, 1
    %s1340 = smul.addr 4, 14
    %s1341 = scalar_lea.vmem %s1, %s1340
    %1342 = vst [vmem:[%s1341] sm:%s1339] %v1337
    %s1343 = scalar_lea.vmem [#allocation0], 120
    %v1344 = vld [vmem:[%s1343] sm:%s1225]
    %v1345 = vpack.c.bf16 0.0, %v1344
    %s1346 = sshll.u32 1, %s1226
    %s1347 = ssub.s32 %s1346, 1
    %s1348 = smul.addr 4, 15
    %s1349 = scalar_lea.vmem %s1, %s1348
    %1350 = vst [vmem:[%s1349] sm:%s1347] %v1345
    %s1351 = scalar_lea.vmem [#allocation0], 128
    %v1352 = vld [vmem:[%s1351] sm:%s1225]
    %v1353 = vpack.c.bf16 0.0, %v1352
    %s1354 = sshll.u32 1, %s1226
    %s1355 = ssub.s32 %s1354, 1
    %s1356 = smul.addr 4, 16
    %s1357 = scalar_lea.vmem %s1, %s1356
    %1358 = vst [vmem:[%s1357] sm:%s1355] %v1353
    %s1359 = scalar_lea.vmem [#allocation0], 136
    %v1360 = vld [vmem:[%s1359] sm:%s1225]
    %v1361 = vpack.c.bf16 0.0, %v1360
    %s1362 = sshll.u32 1, %s1226
    %s1363 = ssub.s32 %s1362, 1
    %s1364 = smul.addr 4, 17
    %s1365 = scalar_lea.vmem %s1, %s1364
    %1366 = vst [vmem:[%s1365] sm:%s1363] %v1361
    %s1367 = scalar_lea.vmem [#allocation0], 144
    %v1368 = vld [vmem:[%s1367] sm:%s1225]
    %v1369 = vpack.c.bf16 0.0, %v1368
    %s1370 = sshll.u32 1, %s1226
    %s1371 = ssub.s32 %s1370, 1
    %s1372 = smul.addr 4, 18
    %s1373 = scalar_lea.vmem %s1, %s1372
    %1374 = vst [vmem:[%s1373] sm:%s1371] %v1369
    %s1375 = scalar_lea.vmem [#allocation0], 152
    %v1376 = vld [vmem:[%s1375] sm:%s1225]
    %v1377 = vpack.c.bf16 0.0, %v1376
    %s1378 = sshll.u32 1, %s1226
    %s1379 = ssub.s32 %s1378, 1
    %s1380 = smul.addr 4, 19
    %s1381 = scalar_lea.vmem %s1, %s1380
    %1382 = vst [vmem:[%s1381] sm:%s1379] %v1377
    %s1383 = scalar_lea.vmem [#allocation0], 160
    %v1384 = vld [vmem:[%s1383] sm:%s1225]
    %v1385 = vpack.c.bf16 0.0, %v1384
    %s1386 = sshll.u32 1, %s1226
    %s1387 = ssub.s32 %s1386, 1
    %s1388 = smul.addr 4, 20
    %s1389 = scalar_lea.vmem %s1, %s1388
    %1390 = vst [vmem:[%s1389] sm:%s1387] %v1385
    %s1391 = scalar_lea.vmem [#allocation0], 168
    %v1392 = vld [vmem:[%s1391] sm:%s1225]
    %v1393 = vpack.c.bf16 0.0, %v1392
    %s1394 = sshll.u32 1, %s1226
    %s1395 = ssub.s32 %s1394, 1
    %s1396 = smul.addr 4, 21
    %s1397 = scalar_lea.vmem %s1, %s1396
    %1398 = vst [vmem:[%s1397] sm:%s1395] %v1393
    %s1399 = scalar_lea.vmem [#allocation0], 176
    %v1400 = vld [vmem:[%s1399] sm:%s1225]
    %v1401 = vpack.c.bf16 0.0, %v1400
    %s1402 = sshll.u32 1, %s1226
    %s1403 = ssub.s32 %s1402, 1
    %s1404 = smul.addr 4, 22
    %s1405 = scalar_lea.vmem %s1, %s1404
    %1406 = vst [vmem:[%s1405] sm:%s1403] %v1401
    %s1407 = scalar_lea.vmem [#allocation0], 184
    %v1408 = vld [vmem:[%s1407] sm:%s1225]
    %v1409 = vpack.c.bf16 0.0, %v1408
    %s1410 = sshll.u32 1, %s1226
    %s1411 = ssub.s32 %s1410, 1
    %s1412 = smul.addr 4, 23
    %s1413 = scalar_lea.vmem %s1, %s1412
    %1414 = vst [vmem:[%s1413] sm:%s1411] %v1409
    %s1415 = scalar_lea.vmem [#allocation0], 192
    %v1416 = vld [vmem:[%s1415] sm:%s1225]
    %v1417 = vpack.c.bf16 0.0, %v1416
    %s1418 = sshll.u32 1, %s1226
    %s1419 = ssub.s32 %s1418, 1
    %s1420 = smul.addr 4, 24
    %s1421 = scalar_lea.vmem %s1, %s1420
    %1422 = vst [vmem:[%s1421] sm:%s1419] %v1417
    %s1423 = scalar_lea.vmem [#allocation0], 200
    %v1424 = vld [vmem:[%s1423] sm:%s1225]
    %v1425 = vpack.c.bf16 0.0, %v1424
    %s1426 = sshll.u32 1, %s1226
    %s1427 = ssub.s32 %s1426, 1
    %s1428 = smul.addr 4, 25
    %s1429 = scalar_lea.vmem %s1, %s1428
    %1430 = vst [vmem:[%s1429] sm:%s1427] %v1425
    %s1431 = scalar_lea.vmem [#allocation0], 208
    %v1432 = vld [vmem:[%s1431] sm:%s1225]
    %v1433 = vpack.c.bf16 0.0, %v1432
    %s1434 = sshll.u32 1, %s1226
    %s1435 = ssub.s32 %s1434, 1
    %s1436 = smul.addr 4, 26
    %s1437 = scalar_lea.vmem %s1, %s1436
    %1438 = vst [vmem:[%s1437] sm:%s1435] %v1433
    %s1439 = scalar_lea.vmem [#allocation0], 216
    %v1440 = vld [vmem:[%s1439] sm:%s1225]
    %v1441 = vpack.c.bf16 0.0, %v1440
    %s1442 = sshll.u32 1, %s1226
    %s1443 = ssub.s32 %s1442, 1
    %s1444 = smul.addr 4, 27
    %s1445 = scalar_lea.vmem %s1, %s1444
    %1446 = vst [vmem:[%s1445] sm:%s1443] %v1441
    %s1447 = scalar_lea.vmem [#allocation0], 224
    %v1448 = vld [vmem:[%s1447] sm:%s1225]
    %v1449 = vpack.c.bf16 0.0, %v1448
    %s1450 = sshll.u32 1, %s1226
    %s1451 = ssub.s32 %s1450, 1
    %s1452 = smul.addr 4, 28
    %s1453 = scalar_lea.vmem %s1, %s1452
    %1454 = vst [vmem:[%s1453] sm:%s1451] %v1449
    %s1455 = scalar_lea.vmem [#allocation0], 232
    %v1456 = vld [vmem:[%s1455] sm:%s1225]
    %v1457 = vpack.c.bf16 0.0, %v1456
    %s1458 = sshll.u32 1, %s1226
    %s1459 = ssub.s32 %s1458, 1
    %s1460 = smul.addr 4, 29
    %s1461 = scalar_lea.vmem %s1, %s1460
    %1462 = vst [vmem:[%s1461] sm:%s1459] %v1457
    %s1463 = scalar_lea.vmem [#allocation0], 240
    %v1464 = vld [vmem:[%s1463] sm:%s1225]
    %v1465 = vpack.c.bf16 0.0, %v1464
    %s1466 = sshll.u32 1, %s1226
    %s1467 = ssub.s32 %s1466, 1
    %s1468 = smul.addr 4, 30
    %s1469 = scalar_lea.vmem %s1, %s1468
    %1470 = vst [vmem:[%s1469] sm:%s1467] %v1465
    %s1471 = scalar_lea.vmem [#allocation0], 248
    %v1472 = vld [vmem:[%s1471] sm:%s1225]
    %v1473 = vpack.c.bf16 0.0, %v1472
    %s1474 = sshll.u32 1, %s1226
    %s1475 = ssub.s32 %s1474, 1
    %s1476 = smul.addr 4, 31
    %s1477 = scalar_lea.vmem %s1, %s1476
    %1478 = vst [vmem:[%s1477] sm:%s1475] %v1473
    %s1479 = scalar_lea.vmem [#allocation0], 256
    %v1480 = vld [vmem:[%s1479] sm:%s1225]
    %v1481 = vpack.c.bf16 0.0, %v1480
    %s1482 = sshll.u32 1, %s1226
    %s1483 = ssub.s32 %s1482, 1
    %s1484 = smul.addr 4, 32
    %s1485 = scalar_lea.vmem %s1, %s1484
    %1486 = vst [vmem:[%s1485] sm:%s1483] %v1481
    %s1487 = scalar_lea.vmem [#allocation0], 264
    %v1488 = vld [vmem:[%s1487] sm:%s1225]
    %v1489 = vpack.c.bf16 0.0, %v1488
    %s1490 = sshll.u32 1, %s1226
    %s1491 = ssub.s32 %s1490, 1
    %s1492 = smul.addr 4, 33
    %s1493 = scalar_lea.vmem %s1, %s1492
    %1494 = vst [vmem:[%s1493] sm:%s1491] %v1489
    %s1495 = scalar_lea.vmem [#allocation0], 272
    %v1496 = vld [vmem:[%s1495] sm:%s1225]
    %v1497 = vpack.c.bf16 0.0, %v1496
    %s1498 = sshll.u32 1, %s1226
    %s1499 = ssub.s32 %s1498, 1
    %s1500 = smul.addr 4, 34
    %s1501 = scalar_lea.vmem %s1, %s1500
    %1502 = vst [vmem:[%s1501] sm:%s1499] %v1497
    %s1503 = scalar_lea.vmem [#allocation0], 280
    %v1504 = vld [vmem:[%s1503] sm:%s1225]
    %v1505 = vpack.c.bf16 0.0, %v1504
    %s1506 = sshll.u32 1, %s1226
    %s1507 = ssub.s32 %s1506, 1
    %s1508 = smul.addr 4, 35
    %s1509 = scalar_lea.vmem %s1, %s1508
    %1510 = vst [vmem:[%s1509] sm:%s1507] %v1505
    %s1511 = scalar_lea.vmem [#allocation0], 288
    %v1512 = vld [vmem:[%s1511] sm:%s1225]
    %v1513 = vpack.c.bf16 0.0, %v1512
    %s1514 = sshll.u32 1, %s1226
    %s1515 = ssub.s32 %s1514, 1
    %s1516 = smul.addr 4, 36
    %s1517 = scalar_lea.vmem %s1, %s1516
    %1518 = vst [vmem:[%s1517] sm:%s1515] %v1513
    %s1519 = scalar_lea.vmem [#allocation0], 296
    %v1520 = vld [vmem:[%s1519] sm:%s1225]
    %v1521 = vpack.c.bf16 0.0, %v1520
    %s1522 = sshll.u32 1, %s1226
    %s1523 = ssub.s32 %s1522, 1
    %s1524 = smul.addr 4, 37
    %s1525 = scalar_lea.vmem %s1, %s1524
    %1526 = vst [vmem:[%s1525] sm:%s1523] %v1521
    %s1527 = scalar_lea.vmem [#allocation0], 304
    %v1528 = vld [vmem:[%s1527] sm:%s1225]
    %v1529 = vpack.c.bf16 0.0, %v1528
    %s1530 = sshll.u32 1, %s1226
    %s1531 = ssub.s32 %s1530, 1
    %s1532 = smul.addr 4, 38
    %s1533 = scalar_lea.vmem %s1, %s1532
    %1534 = vst [vmem:[%s1533] sm:%s1531] %v1529
    %s1535 = scalar_lea.vmem [#allocation0], 312
    %v1536 = vld [vmem:[%s1535] sm:%s1225]
    %v1537 = vpack.c.bf16 0.0, %v1536
    %s1538 = sshll.u32 1, %s1226
    %s1539 = ssub.s32 %s1538, 1
    %s1540 = smul.addr 4, 39
    %s1541 = scalar_lea.vmem %s1, %s1540
    %1542 = vst [vmem:[%s1541] sm:%s1539] %v1537
    %s1543 = scalar_lea.vmem [#allocation0], 320
    %v1544 = vld [vmem:[%s1543] sm:%s1225]
    %v1545 = vpack.c.bf16 0.0, %v1544
    %s1546 = sshll.u32 1, %s1226
    %s1547 = ssub.s32 %s1546, 1
    %s1548 = smul.addr 4, 40
    %s1549 = scalar_lea.vmem %s1, %s1548
    %1550 = vst [vmem:[%s1549] sm:%s1547] %v1545
    %s1551 = scalar_lea.vmem [#allocation0], 328
    %v1552 = vld [vmem:[%s1551] sm:%s1225]
    %v1553 = vpack.c.bf16 0.0, %v1552
    %s1554 = sshll.u32 1, %s1226
    %s1555 = ssub.s32 %s1554, 1
    %s1556 = smul.addr 4, 41
    %s1557 = scalar_lea.vmem %s1, %s1556
    %1558 = vst [vmem:[%s1557] sm:%s1555] %v1553
    %s1559 = scalar_lea.vmem [#allocation0], 336
    %v1560 = vld [vmem:[%s1559] sm:%s1225]
    %v1561 = vpack.c.bf16 0.0, %v1560
    %s1562 = sshll.u32 1, %s1226
    %s1563 = ssub.s32 %s1562, 1
    %s1564 = smul.addr 4, 42
    %s1565 = scalar_lea.vmem %s1, %s1564
    %1566 = vst [vmem:[%s1565] sm:%s1563] %v1561
    %s1567 = scalar_lea.vmem [#allocation0], 344
    %v1568 = vld [vmem:[%s1567] sm:%s1225]
    %v1569 = vpack.c.bf16 0.0, %v1568
    %s1570 = sshll.u32 1, %s1226
    %s1571 = ssub.s32 %s1570, 1
    %s1572 = smul.addr 4, 43
    %s1573 = scalar_lea.vmem %s1, %s1572
    %1574 = vst [vmem:[%s1573] sm:%s1571] %v1569
    %s1575 = scalar_lea.vmem [#allocation0], 352
    %v1576 = vld [vmem:[%s1575] sm:%s1225]
    %v1577 = vpack.c.bf16 0.0, %v1576
    %s1578 = sshll.u32 1, %s1226
    %s1579 = ssub.s32 %s1578, 1
    %s1580 = smul.addr 4, 44
    %s1581 = scalar_lea.vmem %s1, %s1580
    %1582 = vst [vmem:[%s1581] sm:%s1579] %v1577
    %s1583 = scalar_lea.vmem [#allocation0], 360
    %v1584 = vld [vmem:[%s1583] sm:%s1225]
    %v1585 = vpack.c.bf16 0.0, %v1584
    %s1586 = sshll.u32 1, %s1226
    %s1587 = ssub.s32 %s1586, 1
    %s1588 = smul.addr 4, 45
    %s1589 = scalar_lea.vmem %s1, %s1588
    %1590 = vst [vmem:[%s1589] sm:%s1587] %v1585
    %s1591 = scalar_lea.vmem [#allocation0], 368
    %v1592 = vld [vmem:[%s1591] sm:%s1225]
    %v1593 = vpack.c.bf16 0.0, %v1592
    %s1594 = sshll.u32 1, %s1226
    %s1595 = ssub.s32 %s1594, 1
    %s1596 = smul.addr 4, 46
    %s1597 = scalar_lea.vmem %s1, %s1596
    %1598 = vst [vmem:[%s1597] sm:%s1595] %v1593
    %s1599 = scalar_lea.vmem [#allocation0], 376
    %v1600 = vld [vmem:[%s1599] sm:%s1225]
    %v1601 = vpack.c.bf16 0.0, %v1600
    %s1602 = sshll.u32 1, %s1226
    %s1603 = ssub.s32 %s1602, 1
    %s1604 = smul.addr 4, 47
    %s1605 = scalar_lea.vmem %s1, %s1604
    %1606 = vst [vmem:[%s1605] sm:%s1603] %v1601
    %s1607 = scalar_lea.vmem [#allocation0], 384
    %v1608 = vld [vmem:[%s1607] sm:%s1225]
    %v1609 = vpack.c.bf16 0.0, %v1608
    %s1610 = sshll.u32 1, %s1226
    %s1611 = ssub.s32 %s1610, 1
    %s1612 = smul.addr 4, 48
    %s1613 = scalar_lea.vmem %s1, %s1612
    %1614 = vst [vmem:[%s1613] sm:%s1611] %v1609
    %s1615 = scalar_lea.vmem [#allocation0], 392
    %v1616 = vld [vmem:[%s1615] sm:%s1225]
    %v1617 = vpack.c.bf16 0.0, %v1616
    %s1618 = sshll.u32 1, %s1226
    %s1619 = ssub.s32 %s1618, 1
    %s1620 = smul.addr 4, 49
    %s1621 = scalar_lea.vmem %s1, %s1620
    %1622 = vst [vmem:[%s1621] sm:%s1619] %v1617
    %s1623 = scalar_lea.vmem [#allocation0], 400
    %v1624 = vld [vmem:[%s1623] sm:%s1225]
    %v1625 = vpack.c.bf16 0.0, %v1624
    %s1626 = sshll.u32 1, %s1226
    %s1627 = ssub.s32 %s1626, 1
    %s1628 = smul.addr 4, 50
    %s1629 = scalar_lea.vmem %s1, %s1628
    %1630 = vst [vmem:[%s1629] sm:%s1627] %v1625
    %s1631 = scalar_lea.vmem [#allocation0], 408
    %v1632 = vld [vmem:[%s1631] sm:%s1225]
    %v1633 = vpack.c.bf16 0.0, %v1632
    %s1634 = sshll.u32 1, %s1226
    %s1635 = ssub.s32 %s1634, 1
    %s1636 = smul.addr 4, 51
    %s1637 = scalar_lea.vmem %s1, %s1636
    %1638 = vst [vmem:[%s1637] sm:%s1635] %v1633

// kernel: cnn_forward.4
$region0: #{cnn_forward.4}
  #allocation0 [shape = 'u32[]', space=smem, size = 0x4, offset = 0x4, fixed_abs, tag = 'smem constant byte address 0x4 - core index']
  #allocation1 [shape = 'u32[144,128]{1,0:T(1,128)}', space=vmem, size = 0x12000, scoped, tag = 'internal scratch']
  %s0 = inlined_call_operand.vmem [shape: bf16[4,128,400], index: 0, kind: input, shape index: {}]
  %s1 = inlined_call_operand.vmem [shape: bf16[400,32], index: 1, kind: input, shape index: {}]
  %s2 = inlined_call_operand.vmem [shape: f32[1,32], index: 2, kind: input, shape index: {}]
  %s3 = inlined_call_operand.vmem [shape: bf16[128,32], index: 3, kind: output, shape index: {}]
  %s4 = sld [smem:[#allocation0]]
  $region22: #{cnn_forward.4} parent=0
    _
  %s6 = ssub.s32 1, %s4
  %s7 = scalar_select 0, %s6, %s4
  // Predicated region
  $region2: #{cnn_forward.4} parent=0 // pred_check
    _
  $region3: #{cnn_forward.4} parent=0 // pred_check_branch
    %9 = sbr.rel (0) target = $region5
  $region4: #{cnn_forward.4} parent=0 // pred_region
    _
  $region5: #{cnn_forward.4} parent=0 // pred_fallthru
    _
  // Predicated region
  $region6: #{cnn_forward.4} parent=0 // pred_check
    _
  $region7: #{cnn_forward.4} parent=0 // pred_check_branch
    %11 = sbr.rel (0) target = $region9
  $region8: #{cnn_forward.4} parent=0 // pred_region
    _
  $region9: #{cnn_forward.4} parent=0 // pred_fallthru
    _
  // Predicated region
  $region10: #{cnn_forward.4} parent=0 // pred_check
    _
  $region11: #{cnn_forward.4} parent=0 // pred_check_branch
    %13 = sbr.rel (0) target = $region13
  $region12: #{cnn_forward.4} parent=0 // pred_region
    _
  $region13: #{cnn_forward.4} parent=0 // pred_fallthru
    _
  %v15 = vld [vmem:[%s0] sm:$0xff]
  %v16 = vld [vmem:[%s0 + $0x8] sm:$0xff]
  %v17 = vld [vmem:[%s0 + $0x10] sm:$0xff]
  %v18 = vld [vmem:[%s0 + $0x18] sm:$0xff]
  %v19 = vld [vmem:[%s0 + $0x20] sm:$0xff]
  %v20 = vld [vmem:[%s0 + $0x28] sm:$0xff]
  %v21 = vld [vmem:[%s0 + $0x30] sm:$0xff]
  %v22 = vld [vmem:[%s0 + $0x38] sm:$0xff]
  %v23 = vld [vmem:[%s0 + $0x40] sm:$0xff]
  %v24 = vld [vmem:[%s0 + $0x48] sm:$0xff]
  %v25 = vld [vmem:[%s0 + $0x50] sm:$0xff]
  %v26 = vld [vmem:[%s0 + $0x58] sm:$0xff]
  %v27 = vld [vmem:[%s0 + $0x60] sm:$0xff]
  %v28 = vld [vmem:[%s0 + $0x68] sm:$0xff]
  %v29 = vld [vmem:[%s0 + $0x70] sm:$0xff]
  %v30 = vld [vmem:[%s0 + $0x78] sm:$0xff]
  %v31 = vld [vmem:[%s0 + $0x80] sm:$0xff]
  %v32 = vld [vmem:[%s0 + $0x88] sm:$0xff]
  %v33 = vld [vmem:[%s0 + $0x90] sm:$0xff]
  %v34 = vld [vmem:[%s0 + $0x98] sm:$0xff]
  %v35 = vld [vmem:[%s0 + $0xa0] sm:$0xff]
  %v36 = vld [vmem:[%s0 + $0xa8] sm:$0xff]
  %v37 = vld [vmem:[%s0 + $0xb0] sm:$0xff]
  %v38 = vld [vmem:[%s0 + $0xb8] sm:$0xff]
  %v39 = vld [vmem:[%s0 + $0xc0] sm:$0xff]
  %v40 = vld [vmem:[%s0 + $0xc8] sm:$0xff]
  %v41 = vld [vmem:[%s0 + $0xd0] sm:$0xff]
  %v42 = vld [vmem:[%s0 + $0xd8] sm:$0xff]
  %v43 = vld [vmem:[%s0 + $0xe0] sm:$0xff]
  %v44 = vld [vmem:[%s0 + $0xe8] sm:$0xff]
  %v45 = vld [vmem:[%s0 + $0xf0] sm:$0xff]
  %v46 = vld [vmem:[%s0 + $0xf8] sm:$0xff]
  %v47 = vld [vmem:[%s0 + $0x100] sm:$0xff]
  %v48 = vld [vmem:[%s0 + $0x108] sm:$0xff]
  %v49 = vld [vmem:[%s0 + $0x110] sm:$0xff]
  %v50 = vld [vmem:[%s0 + $0x118] sm:$0xff]
  %v51 = vld [vmem:[%s0 + $0x120] sm:$0xff]
  %v52 = vld [vmem:[%s0 + $0x128] sm:$0xff]
  %v53 = vld [vmem:[%s0 + $0x130] sm:$0xff]
  %v54 = vld [vmem:[%s0 + $0x138] sm:$0xff]
  %v55 = vld [vmem:[%s0 + $0x140] sm:$0xff]
  %v56 = vld [vmem:[%s0 + $0x148] sm:$0xff]
  %v57 = vld [vmem:[%s0 + $0x150] sm:$0xff]
  %v58 = vld [vmem:[%s0 + $0x158] sm:$0xff]
  %v59 = vld [vmem:[%s0 + $0x160] sm:$0xff]
  %v60 = vld [vmem:[%s0 + $0x168] sm:$0xff]
  %v61 = vld [vmem:[%s0 + $0x170] sm:$0xff]
  %v62 = vld [vmem:[%s0 + $0x178] sm:$0xff]
  %v63 = vld [vmem:[%s0 + $0x180] sm:$0xff]
  %v64 = vld [vmem:[%s0 + $0x188] sm:$0xff]
  %v65 = vld [vmem:[%s0 + $0x190] sm:$0xff]
  %v66 = vld [vmem:[%s0 + $0x198] sm:$0xff]
  %v67 = vld [vmem:[%s0 + $0x1a0] sm:$0xff]
  %v68 = vld [vmem:[%s0 + $0x1a8] sm:$0xff]
  %v69 = vld [vmem:[%s0 + $0x1b0] sm:$0xff]
  %v70 = vld [vmem:[%s0 + $0x1b8] sm:$0xff]
  %v71 = vld [vmem:[%s0 + $0x1c0] sm:$0xff]
  %v72 = vld [vmem:[%s0 + $0x1c8] sm:$0xff]
  %v73 = vld [vmem:[%s0 + $0x1d0] sm:$0xff]
  %v74 = vld [vmem:[%s0 + $0x1d8] sm:$0xff]
  %v75 = vld [vmem:[%s0 + $0x1e0] sm:$0xff]
  %v76 = vld [vmem:[%s0 + $0x1e8] sm:$0xff]
  %v77 = vld [vmem:[%s0 + $0x1f0] sm:$0xff]
  %v78 = vld [vmem:[%s0 + $0x1f8] sm:$0xff]
  %v79 = vld [vmem:[%s0 + $0x200] sm:$0xff]
  %v80 = vld [vmem:[%s0 + $0x208] sm:$0xff]
  %v81 = vld [vmem:[%s0 + $0x210] sm:$0xff]
  %v82 = vld [vmem:[%s0 + $0x218] sm:$0xff]
  %v83 = vld [vmem:[%s0 + $0x220] sm:$0xff]
  %v84 = vld [vmem:[%s0 + $0x228] sm:$0xff]
  %v85 = vld [vmem:[%s0 + $0x230] sm:$0xff]
  %v86 = vld [vmem:[%s0 + $0x238] sm:$0xff]
  %v87 = vld [vmem:[%s0 + $0x240] sm:$0xff]
  %v88 = vld [vmem:[%s0 + $0x248] sm:$0xff]
  %v89 = vld [vmem:[%s0 + $0x250] sm:$0xff]
  %v90 = vld [vmem:[%s0 + $0x258] sm:$0xff]
  %v91 = vld [vmem:[%s0 + $0x260] sm:$0xff]
  %v92 = vld [vmem:[%s0 + $0x268] sm:$0xff]
  %v93 = vld [vmem:[%s0 + $0x270] sm:$0xff]
  %v94 = vld [vmem:[%s0 + $0x278] sm:$0xff]
  %v95 = vld [vmem:[%s0 + $0x280] sm:$0xff]
  %v96 = vld [vmem:[%s0 + $0x288] sm:$0xff]
  %v97 = vld [vmem:[%s0 + $0x290] sm:$0xff]
  %v98 = vld [vmem:[%s0 + $0x298] sm:$0xff]
  %v99 = vld [vmem:[%s0 + $0x2a0] sm:$0xff]
  %v100 = vld [vmem:[%s0 + $0x2a8] sm:$0xff]
  %v101 = vld [vmem:[%s0 + $0x2b0] sm:$0xff]
  %v102 = vld [vmem:[%s0 + $0x2b8] sm:$0xff]
  %v103 = vld [vmem:[%s0 + $0x2c0] sm:$0xff]
  %v104 = vld [vmem:[%s0 + $0x2c8] sm:$0xff]
  %v105 = vld [vmem:[%s0 + $0x2d0] sm:$0xff]
  %v106 = vld [vmem:[%s0 + $0x2d8] sm:$0xff]
  %v107 = vld [vmem:[%s0 + $0x2e0] sm:$0xff]
  %v108 = vld [vmem:[%s0 + $0x2e8] sm:$0xff]
  %v109 = vld [vmem:[%s0 + $0x2f0] sm:$0xff]
  %v110 = vld [vmem:[%s0 + $0x2f8] sm:$0xff]
  %v111 = vld [vmem:[%s0 + $0x300] sm:$0xff]
  %v112 = vld [vmem:[%s0 + $0x308] sm:$0xff]
  %v113 = vld [vmem:[%s0 + $0x310] sm:$0xff]
  %v114 = vld [vmem:[%s0 + $0x318] sm:$0xff]
  %v115 = vld [vmem:[%s0 + $0x320] sm:$0xff]
  %v116 = vld [vmem:[%s0 + $0x328] sm:$0xff]
  %v117 = vld [vmem:[%s0 + $0x330] sm:$0xff]
  %v118 = vld [vmem:[%s0 + $0x338] sm:$0xff]
  %v119 = vld [vmem:[%s0 + $0x340] sm:$0xff]
  %v120 = vld [vmem:[%s0 + $0x348] sm:$0xff]
  %v121 = vld [vmem:[%s0 + $0x350] sm:$0xff]
  %v122 = vld [vmem:[%s0 + $0x358] sm:$0xff]
  %v123 = vld [vmem:[%s0 + $0x360] sm:$0xff]
  %v124 = vld [vmem:[%s0 + $0x368] sm:$0xff]
  %v125 = vld [vmem:[%s0 + $0x370] sm:$0xff]
  %v126 = vld [vmem:[%s0 + $0x378] sm:$0xff]
  %v127 = vld [vmem:[%s0 + $0x380] sm:$0xff]
  %v128 = vld [vmem:[%s0 + $0x388] sm:$0xff]
  %v129 = vld [vmem:[%s0 + $0x390] sm:$0xff]
  %v130 = vld [vmem:[%s0 + $0x398] sm:$0xff]
  %v131 = vld [vmem:[%s0 + $0x3a0] sm:$0xff]
  %v132 = vld [vmem:[%s0 + $0x3a8] sm:$0xff]
  %v133 = vld [vmem:[%s0 + $0x3b0] sm:$0xff]
  %v134 = vld [vmem:[%s0 + $0x3b8] sm:$0xff]
  %v135 = vld [vmem:[%s0 + $0x3c0] sm:$0xff]
  %v136 = vld [vmem:[%s0 + $0x3c8] sm:$0xff]
  %v137 = vld [vmem:[%s0 + $0x3d0] sm:$0xff]
  %v138 = vld [vmem:[%s0 + $0x3d8] sm:$0xff]
  %v139 = vld [vmem:[%s0 + $0x3e0] sm:$0xff]
  %v140 = vld [vmem:[%s0 + $0x3e8] sm:$0xff]
  %v141 = vld [vmem:[%s0 + $0x3f0] sm:$0xff]
  %v142 = vld [vmem:[%s0 + $0x3f8] sm:$0xff]
  %v143 = vld [vmem:[%s1] sm:$0xf]
  %v144 = vld [vmem:[%s1 + $0x4] sm:$0xf]
  %v145 = vld [vmem:[%s1 + $0x8] sm:$0xf]
  %v146 = vld [vmem:[%s1 + $0xc] sm:$0xf]
  %v147 = vld [vmem:[%s1 + $0x10] sm:$0xf]
  %v148 = vld [vmem:[%s1 + $0x14] sm:$0xf]
  %v149 = vld [vmem:[%s1 + $0x18] sm:$0xf]
  %v150 = vld [vmem:[%s1 + $0x1c] sm:$0xf]
  %v151 = vld [vmem:[%s1 + $0x20] sm:$0xf]
  %v152 = vld [vmem:[%s1 + $0x24] sm:$0xf]
  %v153 = vld [vmem:[%s1 + $0x28] sm:$0xf]
  %v154 = vld [vmem:[%s1 + $0x2c] sm:$0xf]
  %v155 = vld [vmem:[%s1 + $0x30] sm:$0xf]
  %v156 = vld [vmem:[%s1 + $0x34] sm:$0xf]
  %v157 = vld [vmem:[%s1 + $0x38] sm:$0xf]
  %v158 = vld [vmem:[%s1 + $0x3c] sm:$0xf]
  %v159 = vld [vmem:[%s1 + $0x40] sm:$0xf]
  %v160 = vld [vmem:[%s1 + $0x44] sm:$0xf]
  %v161 = vld [vmem:[%s1 + $0x48] sm:$0xf]
  %v162 = vld [vmem:[%s1 + $0x4c] sm:$0xf]
  %v163 = vld [vmem:[%s1 + $0x50] sm:$0xf]
  %v164 = vld [vmem:[%s1 + $0x54] sm:$0xf]
  %v165 = vld [vmem:[%s1 + $0x58] sm:$0xf]
  %v166 = vld [vmem:[%s1 + $0x5c] sm:$0xf]
  %v167 = vld [vmem:[%s1 + $0x60] sm:$0xf]
  %v168 = vld [vmem:[%s1 + $0x64] sm:$0xf]
  %v169 = vld [vmem:[%s1 + $0x68] sm:$0xf]
  %v170 = vld [vmem:[%s1 + $0x6c] sm:$0xf]
  %v171 = vld [vmem:[%s1 + $0x70] sm:$0xf]
  %v172 = vld [vmem:[%s1 + $0x74] sm:$0xf]
  %v173 = vld [vmem:[%s1 + $0x78] sm:$0xf]
  %v174 = vld [vmem:[%s1 + $0x7c] sm:$0xf]
  %v175 = vld [vmem:[%s1 + $0x80] sm:$0xf]
  %v176 = vld [vmem:[%s1 + $0x84] sm:$0xf]
  %v177 = vld [vmem:[%s1 + $0x88] sm:$0xf]
  %v178 = vld [vmem:[%s1 + $0x8c] sm:$0xf]
  %v179 = vld [vmem:[%s1 + $0x90] sm:$0xf]
  %v180 = vld [vmem:[%s1 + $0x94] sm:$0xf]
  %v181 = vld [vmem:[%s1 + $0x98] sm:$0xf]
  %v182 = vld [vmem:[%s1 + $0x9c] sm:$0xf]
  %v183 = vld [vmem:[%s1 + $0xa0] sm:$0xf]
  %v184 = vld [vmem:[%s1 + $0xa4] sm:$0xf]
  %v185 = vld [vmem:[%s1 + $0xa8] sm:$0xf]
  %v186 = vld [vmem:[%s1 + $0xac] sm:$0xf]
  %v187 = vld [vmem:[%s1 + $0xb0] sm:$0xf]
  %v188 = vld [vmem:[%s1 + $0xb4] sm:$0xf]
  %v189 = vld [vmem:[%s1 + $0xb8] sm:$0xf]
  %v190 = vld [vmem:[%s1 + $0xbc] sm:$0xf]
  %v191 = vld [vmem:[%s1 + $0xc0] sm:$0xf]
  %v192 = vld [vmem:[%s1 + $0xc4] sm:$0xf]
  %v321 = vunpack.c.l.b16 %v15
  %v322 = vunpack.c.h.b16 %v15
  %v323 = vunpack.c.l.b16 %v16
  %v324 = vunpack.c.h.b16 %v16
  %v325 = vunpack.c.l.b16 %v17
  %v326 = vunpack.c.h.b16 %v17
  %v327 = vunpack.c.l.b16 %v18
  %v328 = vunpack.c.h.b16 %v18
  %v329 = vunpack.c.l.b16 %v19
  %v330 = vunpack.c.h.b16 %v19
  %v331 = vunpack.c.l.b16 %v20
  %v332 = vunpack.c.h.b16 %v20
  %v333 = vunpack.c.l.b16 %v21
  %v334 = vunpack.c.h.b16 %v21
  %v335 = vunpack.c.l.b16 %v22
  %v336 = vunpack.c.h.b16 %v22
  %v337 = vunpack.c.l.b16 %v23
  %v338 = vunpack.c.h.b16 %v23
  %v339 = vunpack.c.l.b16 %v24
  %v340 = vunpack.c.h.b16 %v24
  %v341 = vunpack.c.l.b16 %v25
  %v342 = vunpack.c.h.b16 %v25
  %v343 = vunpack.c.l.b16 %v26
  %v344 = vunpack.c.h.b16 %v26
  %v345 = vunpack.c.l.b16 %v27
  %v346 = vunpack.c.h.b16 %v27
  %v347 = vunpack.c.l.b16 %v28
  %v348 = vunpack.c.h.b16 %v28
  %v349 = vunpack.c.l.b16 %v29
  %v350 = vunpack.c.h.b16 %v29
  %v351 = vunpack.c.l.b16 %v30
  %v352 = vunpack.c.h.b16 %v30
  %v353 = vunpack.c.l.b16 %v31
  %v354 = vunpack.c.h.b16 %v31
  %v355 = vunpack.c.l.b16 %v32
  %v356 = vunpack.c.h.b16 %v32
  %v357 = vunpack.c.l.b16 %v33
  %v358 = vunpack.c.h.b16 %v33
  %v359 = vunpack.c.l.b16 %v34
  %v360 = vunpack.c.h.b16 %v34
  %v361 = vunpack.c.l.b16 %v35
  %v362 = vunpack.c.h.b16 %v35
  %v363 = vunpack.c.l.b16 %v36
  %v364 = vunpack.c.h.b16 %v36
  %v365 = vunpack.c.l.b16 %v37
  %v366 = vunpack.c.h.b16 %v37
  %v367 = vunpack.c.l.b16 %v38
  %v368 = vunpack.c.h.b16 %v38
  %v369 = vunpack.c.l.b16 %v39
  %v370 = vunpack.c.h.b16 %v39
  %v371 = vunpack.c.l.b16 %v40
  %v372 = vunpack.c.h.b16 %v40
  %v373 = vunpack.c.l.b16 %v41
  %v374 = vunpack.c.h.b16 %v41
  %v375 = vunpack.c.l.b16 %v42
  %v376 = vunpack.c.h.b16 %v42
  %v377 = vunpack.c.l.b16 %v43
  %v378 = vunpack.c.h.b16 %v43
  %v379 = vunpack.c.l.b16 %v44
  %v380 = vunpack.c.h.b16 %v44
  %v381 = vunpack.c.l.b16 %v45
  %v382 = vunpack.c.h.b16 %v45
  %v383 = vunpack.c.l.b16 %v46
  %v384 = vunpack.c.h.b16 %v46
  %v385 = vunpack.c.l.b16 %v47
  %v386 = vunpack.c.h.b16 %v47
  %v387 = vunpack.c.l.b16 %v48
  %v388 = vunpack.c.h.b16 %v48
  %v389 = vunpack.c.l.b16 %v49
  %v390 = vunpack.c.h.b16 %v49
  %v391 = vunpack.c.l.b16 %v50
  %v392 = vunpack.c.h.b16 %v50
  %v393 = vunpack.c.l.b16 %v51
  %v394 = vunpack.c.h.b16 %v51
  %v395 = vunpack.c.l.b16 %v52
  %v396 = vunpack.c.h.b16 %v52
  %v397 = vunpack.c.l.b16 %v53
  %v398 = vunpack.c.h.b16 %v53
  %v399 = vunpack.c.l.b16 %v54
  %v400 = vunpack.c.h.b16 %v54
  %v401 = vunpack.c.l.b16 %v55
  %v402 = vunpack.c.h.b16 %v55
  %v403 = vunpack.c.l.b16 %v56
  %v404 = vunpack.c.h.b16 %v56
  %v405 = vunpack.c.l.b16 %v57
  %v406 = vunpack.c.h.b16 %v57
  %v407 = vunpack.c.l.b16 %v58
  %v408 = vunpack.c.h.b16 %v58
  %v409 = vunpack.c.l.b16 %v59
  %v410 = vunpack.c.h.b16 %v59
  %v411 = vunpack.c.l.b16 %v60
  %v412 = vunpack.c.h.b16 %v60
  %v413 = vunpack.c.l.b16 %v61
  %v414 = vunpack.c.h.b16 %v61
  %v415 = vunpack.c.l.b16 %v62
  %v416 = vunpack.c.h.b16 %v62
  %v417 = vunpack.c.l.b16 %v63
  %v418 = vunpack.c.h.b16 %v63
  %v419 = vunpack.c.l.b16 %v64
  %v420 = vunpack.c.h.b16 %v64
  %v421 = vunpack.c.l.b16 %v65
  %v422 = vunpack.c.h.b16 %v65
  %v423 = vunpack.c.l.b16 %v66
  %v424 = vunpack.c.h.b16 %v66
  %v425 = vunpack.c.l.b16 %v67
  %v426 = vunpack.c.h.b16 %v67
  %v427 = vunpack.c.l.b16 %v68
  %v428 = vunpack.c.h.b16 %v68
  %v429 = vunpack.c.l.b16 %v69
  %v430 = vunpack.c.h.b16 %v69
  %v431 = vunpack.c.l.b16 %v70
  %v432 = vunpack.c.h.b16 %v70
  %v433 = vunpack.c.l.b16 %v71
  %v434 = vunpack.c.h.b16 %v71
  %v435 = vunpack.c.l.b16 %v72
  %v436 = vunpack.c.h.b16 %v72
  %v437 = vunpack.c.l.b16 %v73
  %v438 = vunpack.c.h.b16 %v73
  %v439 = vunpack.c.l.b16 %v74
  %v440 = vunpack.c.h.b16 %v74
  %v441 = vunpack.c.l.b16 %v75
  %v442 = vunpack.c.h.b16 %v75
  %v443 = vunpack.c.l.b16 %v76
  %v444 = vunpack.c.h.b16 %v76
  %v445 = vunpack.c.l.b16 %v77
  %v446 = vunpack.c.h.b16 %v77
  %v447 = vunpack.c.l.b16 %v78
  %v448 = vunpack.c.h.b16 %v78
  %v449 = vunpack.c.l.b16 %v79
  %v450 = vunpack.c.h.b16 %v79
  %v451 = vunpack.c.l.b16 %v80
  %v452 = vunpack.c.h.b16 %v80
  %v453 = vunpack.c.l.b16 %v81
  %v454 = vunpack.c.h.b16 %v81
  %v455 = vunpack.c.l.b16 %v82
  %v456 = vunpack.c.h.b16 %v82
  %v457 = vunpack.c.l.b16 %v83
  %v458 = vunpack.c.h.b16 %v83
  %v459 = vunpack.c.l.b16 %v84
  %v460 = vunpack.c.h.b16 %v84
  %v461 = vunpack.c.l.b16 %v85
  %v462 = vunpack.c.h.b16 %v85
  %v463 = vunpack.c.l.b16 %v86
  %v464 = vunpack.c.h.b16 %v86
  %v465 = vunpack.c.l.b16 %v87
  %v466 = vunpack.c.h.b16 %v87
  %v467 = vunpack.c.l.b16 %v88
  %v468 = vunpack.c.h.b16 %v88
  %v469 = vunpack.c.l.b16 %v89
  %v470 = vunpack.c.h.b16 %v89
  %v471 = vunpack.c.l.b16 %v90
  %v472 = vunpack.c.h.b16 %v90
  %v473 = vunpack.c.l.b16 %v91
  %v474 = vunpack.c.h.b16 %v91
  %v475 = vunpack.c.l.b16 %v92
  %v476 = vunpack.c.h.b16 %v92
  %v477 = vunpack.c.l.b16 %v93
  %v478 = vunpack.c.h.b16 %v93
  %v479 = vunpack.c.l.b16 %v94
  %v480 = vunpack.c.h.b16 %v94
  %v481 = vunpack.c.l.b16 %v95
  %v482 = vunpack.c.h.b16 %v95
  %v483 = vunpack.c.l.b16 %v96
  %v484 = vunpack.c.h.b16 %v96
  %v485 = vunpack.c.l.b16 %v97
  %v486 = vunpack.c.h.b16 %v97
  %v487 = vunpack.c.l.b16 %v98
  %v488 = vunpack.c.h.b16 %v98
  %v489 = vunpack.c.l.b16 %v99
  %v490 = vunpack.c.h.b16 %v99
  %v491 = vunpack.c.l.b16 %v100
  %v492 = vunpack.c.h.b16 %v100
  %v493 = vunpack.c.l.b16 %v101
  %v494 = vunpack.c.h.b16 %v101
  %v495 = vunpack.c.l.b16 %v102
  %v496 = vunpack.c.h.b16 %v102
  %v497 = vunpack.c.l.b16 %v103
  %v498 = vunpack.c.h.b16 %v103
  %v499 = vunpack.c.l.b16 %v104
  %v500 = vunpack.c.h.b16 %v104
  %v501 = vunpack.c.l.b16 %v105
  %v502 = vunpack.c.h.b16 %v105
  %v503 = vunpack.c.l.b16 %v106
  %v504 = vunpack.c.h.b16 %v106
  %v505 = vunpack.c.l.b16 %v107
  %v506 = vunpack.c.h.b16 %v107
  %v507 = vunpack.c.l.b16 %v108
  %v508 = vunpack.c.h.b16 %v108
  %v509 = vunpack.c.l.b16 %v109
  %v510 = vunpack.c.h.b16 %v109
  %v511 = vunpack.c.l.b16 %v110
  %v512 = vunpack.c.h.b16 %v110
  %v513 = vunpack.c.l.b16 %v111
  %v514 = vunpack.c.h.b16 %v111
  %v515 = vunpack.c.l.b16 %v112
  %v516 = vunpack.c.h.b16 %v112
  %v517 = vunpack.c.l.b16 %v113
  %v518 = vunpack.c.h.b16 %v113
  %v519 = vunpack.c.l.b16 %v114
  %v520 = vunpack.c.h.b16 %v114
  %v521 = vunpack.c.l.b16 %v115
  %v522 = vunpack.c.h.b16 %v115
  %v523 = vunpack.c.l.b16 %v116
  %v524 = vunpack.c.h.b16 %v116
  %v525 = vunpack.c.l.b16 %v117
  %v526 = vunpack.c.h.b16 %v117
  %v527 = vunpack.c.l.b16 %v118
  %v528 = vunpack.c.h.b16 %v118
  %v529 = vunpack.c.l.b16 %v119
  %v530 = vunpack.c.h.b16 %v119
  %v531 = vunpack.c.l.b16 %v120
  %v532 = vunpack.c.h.b16 %v120
  %v533 = vunpack.c.l.b16 %v121
  %v534 = vunpack.c.h.b16 %v121
  %v535 = vunpack.c.l.b16 %v122
  %v536 = vunpack.c.h.b16 %v122
  %v537 = vunpack.c.l.b16 %v123
  %v538 = vunpack.c.h.b16 %v123
  %v539 = vunpack.c.l.b16 %v124
  %v540 = vunpack.c.h.b16 %v124
  %v541 = vunpack.c.l.b16 %v125
  %v542 = vunpack.c.h.b16 %v125
  %v543 = vunpack.c.l.b16 %v126
  %v544 = vunpack.c.h.b16 %v126
  %v545 = vunpack.c.l.b16 %v127
  %v546 = vunpack.c.h.b16 %v127
  %v547 = vunpack.c.l.b16 %v128
  %v548 = vunpack.c.h.b16 %v128
  %v549 = vunpack.c.l.b16 %v129
  %v550 = vunpack.c.h.b16 %v129
  %v551 = vunpack.c.l.b16 %v130
  %v552 = vunpack.c.h.b16 %v130
  %v553 = vunpack.c.l.b16 %v131
  %v554 = vunpack.c.h.b16 %v131
  %v555 = vunpack.c.l.b16 %v132
  %v556 = vunpack.c.h.b16 %v132
  %v557 = vunpack.c.l.b16 %v133
  %v558 = vunpack.c.h.b16 %v133
  %v559 = vunpack.c.l.b16 %v134
  %v560 = vunpack.c.h.b16 %v134
  %v561 = vunpack.c.l.b16 %v135
  %v562 = vunpack.c.h.b16 %v135
  %v563 = vunpack.c.l.b16 %v136
  %v564 = vunpack.c.h.b16 %v136
  %v565 = vunpack.c.l.b16 %v137
  %v566 = vunpack.c.h.b16 %v137
  %v567 = vunpack.c.l.b16 %v138
  %v568 = vunpack.c.h.b16 %v138
  %v569 = vunpack.c.l.b16 %v139
  %v570 = vunpack.c.h.b16 %v139
  %v571 = vunpack.c.l.b16 %v140
  %v572 = vunpack.c.h.b16 %v140
  %v573 = vunpack.c.l.b16 %v141
  %v574 = vunpack.c.h.b16 %v141
  %v575 = vunpack.c.l.b16 %v142
  %v576 = vunpack.c.h.b16 %v142
  %v577 = vpack.c.b16 %v325, %v321
  %v578 = vpack.c.b16 %v326, %v322
  %v579 = vpack.c.b16 %v327, %v323
  %v580 = vpack.c.b16 %v328, %v324
  %v581 = vpack.c.b16 %v333, %v329
  %v582 = vpack.c.b16 %v334, %v330
  %v583 = vpack.c.b16 %v335, %v331
  %v584 = vpack.c.b16 %v336, %v332
  %v585 = vpack.c.b16 %v341, %v337
  %v586 = vpack.c.b16 %v342, %v338
  %v587 = vpack.c.b16 %v343, %v339
  %v588 = vpack.c.b16 %v344, %v340
  %v589 = vpack.c.b16 %v349, %v345
  %v590 = vpack.c.b16 %v350, %v346
  %v591 = vpack.c.b16 %v351, %v347
  %v592 = vpack.c.b16 %v352, %v348
  %v593 = vpack.c.b16 %v357, %v353
  %v594 = vpack.c.b16 %v358, %v354
  %v595 = vpack.c.b16 %v359, %v355
  %v596 = vpack.c.b16 %v360, %v356
  %v597 = vpack.c.b16 %v365, %v361
  %v598 = vpack.c.b16 %v366, %v362
  %v599 = vpack.c.b16 %v367, %v363
  %v600 = vpack.c.b16 %v368, %v364
  %v601 = vpack.c.b16 %v373, %v369
  %v602 = vpack.c.b16 %v374, %v370
  %v603 = vpack.c.b16 %v375, %v371
  %v604 = vpack.c.b16 %v376, %v372
  %v605 = vpack.c.b16 %v381, %v377
  %v606 = vpack.c.b16 %v382, %v378
  %v607 = vpack.c.b16 %v383, %v379
  %v608 = vpack.c.b16 %v384, %v380
  %v609 = vpack.c.b16 %v389, %v385
  %v610 = vpack.c.b16 %v390, %v386
  %v611 = vpack.c.b16 %v391, %v387
  %v612 = vpack.c.b16 %v392, %v388
  %v613 = vpack.c.b16 %v397, %v393
  %v614 = vpack.c.b16 %v398, %v394
  %v615 = vpack.c.b16 %v399, %v395
  %v616 = vpack.c.b16 %v400, %v396
  %v617 = vpack.c.b16 %v405, %v401
  %v618 = vpack.c.b16 %v406, %v402
  %v619 = vpack.c.b16 %v407, %v403
  %v620 = vpack.c.b16 %v408, %v404
  %v621 = vpack.c.b16 %v413, %v409
  %v622 = vpack.c.b16 %v414, %v410
  %v623 = vpack.c.b16 %v415, %v411
  %v624 = vpack.c.b16 %v416, %v412
  %v625 = vpack.c.b16 %v421, %v417
  %v626 = vpack.c.b16 %v422, %v418
  %v627 = vpack.c.b16 %v423, %v419
  %v628 = vpack.c.b16 %v424, %v420
  %v629 = vpack.c.b16 %v429, %v425
  %v630 = vpack.c.b16 %v430, %v426
  %v631 = vpack.c.b16 %v431, %v427
  %v632 = vpack.c.b16 %v432, %v428
  %v633 = vpack.c.b16 %v437, %v433
  %v634 = vpack.c.b16 %v438, %v434
  %v635 = vpack.c.b16 %v439, %v435
  %v636 = vpack.c.b16 %v440, %v436
  %v637 = vpack.c.b16 %v445, %v441
  %v638 = vpack.c.b16 %v446, %v442
  %v639 = vpack.c.b16 %v447, %v443
  %v640 = vpack.c.b16 %v448, %v444
  %v641 = vpack.c.b16 %v453, %v449
  %v642 = vpack.c.b16 %v454, %v450
  %v643 = vpack.c.b16 %v455, %v451
  %v644 = vpack.c.b16 %v456, %v452
  %v645 = vpack.c.b16 %v461, %v457
  %v646 = vpack.c.b16 %v462, %v458
  %v647 = vpack.c.b16 %v463, %v459
  %v648 = vpack.c.b16 %v464, %v460
  %v649 = vpack.c.b16 %v469, %v465
  %v650 = vpack.c.b16 %v470, %v466
  %v651 = vpack.c.b16 %v471, %v467
  %v652 = vpack.c.b16 %v472, %v468
  %v653 = vpack.c.b16 %v477, %v473
  %v654 = vpack.c.b16 %v478, %v474
  %v655 = vpack.c.b16 %v479, %v475
  %v656 = vpack.c.b16 %v480, %v476
  %v657 = vpack.c.b16 %v485, %v481
  %v658 = vpack.c.b16 %v486, %v482
  %v659 = vpack.c.b16 %v487, %v483
  %v660 = vpack.c.b16 %v488, %v484
  %v661 = vpack.c.b16 %v493, %v489
  %v662 = vpack.c.b16 %v494, %v490
  %v663 = vpack.c.b16 %v495, %v491
  %v664 = vpack.c.b16 %v496, %v492
  %v665 = vpack.c.b16 %v501, %v497
  %v666 = vpack.c.b16 %v502, %v498
  %v667 = vpack.c.b16 %v503, %v499
  %v668 = vpack.c.b16 %v504, %v500
  %v669 = vpack.c.b16 %v509, %v505
  %v670 = vpack.c.b16 %v510, %v506
  %v671 = vpack.c.b16 %v511, %v507
  %v672 = vpack.c.b16 %v512, %v508
  %v673 = vpack.c.b16 %v517, %v513
  %v674 = vpack.c.b16 %v518, %v514
  %v675 = vpack.c.b16 %v519, %v515
  %v676 = vpack.c.b16 %v520, %v516
  %v677 = vpack.c.b16 %v525, %v521
  %v678 = vpack.c.b16 %v526, %v522
  %v679 = vpack.c.b16 %v527, %v523
  %v680 = vpack.c.b16 %v528, %v524
  %v681 = vpack.c.b16 %v533, %v529
  %v682 = vpack.c.b16 %v534, %v530
  %v683 = vpack.c.b16 %v535, %v531
  %v684 = vpack.c.b16 %v536, %v532
  %v685 = vpack.c.b16 %v541, %v537
  %v686 = vpack.c.b16 %v542, %v538
  %v687 = vpack.c.b16 %v543, %v539
  %v688 = vpack.c.b16 %v544, %v540
  %v689 = vpack.c.b16 %v549, %v545
  %v690 = vpack.c.b16 %v550, %v546
  %v691 = vpack.c.b16 %v551, %v547
  %v692 = vpack.c.b16 %v552, %v548
  %v693 = vpack.c.b16 %v557, %v553
  %v694 = vpack.c.b16 %v558, %v554
  %v695 = vpack.c.b16 %v559, %v555
  %v696 = vpack.c.b16 %v560, %v556
  %v697 = vpack.c.b16 %v565, %v561
  %v698 = vpack.c.b16 %v566, %v562
  %v699 = vpack.c.b16 %v567, %v563
  %v700 = vpack.c.b16 %v568, %v564
  %v701 = vpack.c.b16 %v573, %v569
  %v702 = vpack.c.b16 %v574, %v570
  %v703 = vpack.c.b16 %v575, %v571
  %v704 = vpack.c.b16 %v576, %v572
  %v851 = vunpack.c.l.b16 %v143
  %v852 = vunpack.c.l.b16 %v144
  %v853 = vunpack.c.l.b16 %v145
  %v854 = vunpack.c.l.b16 %v146
  %v855 = vunpack.c.l.b16 %v147
  %v856 = vunpack.c.l.b16 %v148
  %v857 = vunpack.c.l.b16 %v149
  %v858 = vunpack.c.l.b16 %v150
  %v859 = vunpack.c.l.b16 %v151
  %v860 = vunpack.c.l.b16 %v152
  %v861 = vunpack.c.l.b16 %v153
  %v862 = vunpack.c.l.b16 %v154
  %v863 = vunpack.c.l.b16 %v155
  %v864 = vunpack.c.l.b16 %v156
  %v865 = vunpack.c.l.b16 %v157
  %v866 = vunpack.c.l.b16 %v158
  %v867 = vunpack.c.l.b16 %v159
  %v868 = vunpack.c.l.b16 %v160
  %v869 = vunpack.c.l.b16 %v161
  %v870 = vunpack.c.l.b16 %v162
  %v871 = vunpack.c.l.b16 %v163
  %v872 = vunpack.c.l.b16 %v164
  %v873 = vunpack.c.l.b16 %v165
  %v874 = vunpack.c.l.b16 %v166
  %v875 = vunpack.c.l.b16 %v167
  %v876 = vunpack.c.l.b16 %v168
  %v877 = vunpack.c.l.b16 %v169
  %v878 = vunpack.c.l.b16 %v170
  %v879 = vunpack.c.l.b16 %v171
  %v880 = vunpack.c.l.b16 %v172
  %v881 = vunpack.c.l.b16 %v173
  %v882 = vunpack.c.l.b16 %v174
  %v883 = vunpack.c.l.b16 %v175
  %v884 = vunpack.c.l.b16 %v176
  %v885 = vunpack.c.l.b16 %v177
  %v886 = vunpack.c.l.b16 %v178
  %v887 = vunpack.c.l.b16 %v179
  %v888 = vunpack.c.l.b16 %v180
  %v889 = vunpack.c.l.b16 %v181
  %v890 = vunpack.c.l.b16 %v182
  %v891 = vunpack.c.l.b16 %v183
  %v892 = vunpack.c.l.b16 %v184
  %v893 = vunpack.c.l.b16 %v185
  %v894 = vunpack.c.l.b16 %v186
  %v895 = vunpack.c.l.b16 %v187
  %v896 = vunpack.c.l.b16 %v188
  %v897 = vunpack.c.l.b16 %v189
  %v898 = vunpack.c.l.b16 %v190
  %v899 = vunpack.c.l.b16 %v191
  %v900 = vunpack.c.l.b16 %v192
  %v901 = vpack.c.b16 %v852, %v851
  %v902 = vpack.c.b16 %v854, %v853
  %v903 = vpack.c.b16 %v856, %v855
  %v904 = vpack.c.b16 %v858, %v857
  %v905 = vpack.c.b16 %v860, %v859
  %v906 = vpack.c.b16 %v862, %v861
  %v907 = vpack.c.b16 %v864, %v863
  %v908 = vpack.c.b16 %v866, %v865
  %v909 = vpack.c.b16 %v868, %v867
  %v910 = vpack.c.b16 %v870, %v869
  %v911 = vpack.c.b16 %v872, %v871
  %v912 = vpack.c.b16 %v874, %v873
  %v913 = vpack.c.b16 %v876, %v875
  %v914 = vpack.c.b16 %v878, %v877
  %v915 = vpack.c.b16 %v880, %v879
  %v916 = vpack.c.b16 %v882, %v881
  %v917 = vpack.c.b16 %v884, %v883
  %v918 = vpack.c.b16 %v886, %v885
  %v919 = vpack.c.b16 %v888, %v887
  %v920 = vpack.c.b16 %v890, %v889
  %v921 = vpack.c.b16 %v892, %v891
  %v922 = vpack.c.b16 %v894, %v893
  %v923 = vpack.c.b16 %v896, %v895
  %v924 = vpack.c.b16 %v898, %v897
  %v925 = vpack.c.b16 %v900, %v899
  %vm951 = vcmask 130048
  %v953 = vsel %vm951, %v580, 0
  %v956 = vsel %vm951, %v584, 0
  %v959 = vsel %vm951, %v588, 0
  %v962 = vsel %vm951, %v592, 0
  %v965 = vsel %vm951, %v596, 0
  %v968 = vsel %vm951, %v600, 0
  %v971 = vsel %vm951, %v604, 0
  %v974 = vsel %vm951, %v608, 0
  %v977 = vsel %vm951, %v612, 0
  %v980 = vsel %vm951, %v616, 0
  %v983 = vsel %vm951, %v620, 0
  %v986 = vsel %vm951, %v624, 0
  %v989 = vsel %vm951, %v628, 0
  %v992 = vsel %vm951, %v632, 0
  %v995 = vsel %vm951, %v636, 0
  %v998 = vsel %vm951, %v640, 0
  %v1001 = vsel %vm951, %v644, 0
  %v1004 = vsel %vm951, %v648, 0
  %v1007 = vsel %vm951, %v652, 0
  %v1010 = vsel %vm951, %v656, 0
  %v1013 = vsel %vm951, %v660, 0
  %v1016 = vsel %vm951, %v664, 0
  %v1019 = vsel %vm951, %v668, 0
  %v1022 = vsel %vm951, %v672, 0
  %v1025 = vsel %vm951, %v676, 0
  %v1028 = vsel %vm951, %v680, 0
  %v1031 = vsel %vm951, %v684, 0
  %v1034 = vsel %vm951, %v688, 0
  %v1037 = vsel %vm951, %v692, 0
  %v1040 = vsel %vm951, %v696, 0
  %v1043 = vsel %vm951, %v700, 0
  %v1046 = vsel %vm951, %v704, 0
  %1048 = vmatprep.subr.bf16.mxu0 0
  %1049 = vmatpush1.bf16.msra.mxu0 %v908
  %1050 = vmatprep.subr.bf16.mxu0 0
  %1051 = vmatpush1.bf16.msra.mxu0 %v907
  %1052 = vmatprep.subr.bf16.mxu0 0
  %1053 = vmatpush1.bf16.msra.mxu0 %v906
  %1054 = vmatprep.subr.bf16.mxu0 0
  %1055 = vmatpush1.bf16.msra.mxu0 %v905
  %1056 = vmatprep.subr.bf16.mxu0 0
  %1057 = vmatpush1.bf16.msra.mxu0 %v904
  %1058 = vmatprep.subr.bf16.mxu0 0
  %1059 = vmatpush1.bf16.msra.mxu0 %v903
  %1060 = vmatprep.subr.bf16.mxu0 0
  %1061 = vmatpush1.bf16.msra.mxu0 %v902
  %1062 = vmatprep.subr.bf16.mxu0 0
  %1063 = vmatpush1.bf16.msra.mxu0 %v901
  %1064 = vmatprep.subr.bf16.mxu0 0
  %1065 = vmatpush2.bf16.msra.mxu0 %v916
  %1066 = vmatprep.subr.bf16.mxu0 0
  %1067 = vmatpush2.bf16.msra.mxu0 %v915
  %1068 = vmatprep.subr.bf16.mxu0 0
  %1069 = vmatpush2.bf16.msra.mxu0 %v914
  %1070 = vmatprep.subr.bf16.mxu0 0
  %1071 = vmatpush2.bf16.msra.mxu0 %v913
  %1072 = vmatprep.subr.bf16.mxu0 0
  %1073 = vmatpush2.bf16.msra.mxu0 %v912
  %1074 = vmatprep.subr.bf16.mxu0 0
  %1075 = vmatpush2.bf16.msra.mxu0 %v911
  %1076 = vmatprep.subr.bf16.mxu0 0
  %1077 = vmatpush2.bf16.msra.mxu0 %v910
  %1078 = vmatprep.subr.bf16.mxu0 0
  %1079 = vmatpush2.bf16.msra.mxu0 %v909
  %1080 = vmatprep.mubr.bf16.mxu0 %v578
  %1081 = vmatmul.mubr.bf16.gmra.mxu0 %v577
  %v1082 = vpop.f32.mrf.mxu0
  %v1083 = vadd.f32 0.0, %v1082
  %v1084 = vpop.f32.mrf.mxu0
  %v1085 = vpop.f32.mrf.mxu0
  %v1086 = vadd.f32 0.0, %v1085
  %v1087 = vpop.f32.mrf.mxu0
  %1088 = vmatprep.mubr.bf16.mxu0 %v582
  %1089 = vmatmul.mubr.bf16.gmra.mxu0 %v581
  %v1090 = vpop.f32.mrf.mxu0
  %v1091 = vadd.f32 0.0, %v1090
  %v1092 = vpop.f32.mrf.mxu0
  %v1093 = vpop.f32.mrf.mxu0
  %v1094 = vadd.f32 0.0, %v1093
  %v1095 = vpop.f32.mrf.mxu0
  %1096 = vmatprep.mubr.bf16.mxu0 %v586
  %1097 = vmatmul.mubr.bf16.gmra.mxu0 %v585
  %v1098 = vpop.f32.mrf.mxu0
  %v1099 = vadd.f32 0.0, %v1098
  %v1100 = vpop.f32.mrf.mxu0
  %v1101 = vpop.f32.mrf.mxu0
  %v1102 = vadd.f32 0.0, %v1101
  %v1103 = vpop.f32.mrf.mxu0
  %1104 = vmatprep.mubr.bf16.mxu0 %v590
  %1105 = vmatmul.mubr.bf16.gmra.mxu0 %v589
  %v1106 = vpop.f32.mrf.mxu0
  %v1107 = vadd.f32 0.0, %v1106
  %v1108 = vpop.f32.mrf.mxu0
  %v1109 = vpop.f32.mrf.mxu0
  %v1110 = vadd.f32 0.0, %v1109
  %v1111 = vpop.f32.mrf.mxu0
  %1112 = vmatprep.mubr.bf16.mxu0 %v594
  %1113 = vmatmul.mubr.bf16.gmra.mxu0 %v593
  %v1114 = vpop.f32.mrf.mxu0
  %v1115 = vadd.f32 0.0, %v1114
  %v1116 = vpop.f32.mrf.mxu0
  %v1117 = vpop.f32.mrf.mxu0
  %v1118 = vadd.f32 0.0, %v1117
  %v1119 = vpop.f32.mrf.mxu0
  %1120 = vmatprep.mubr.bf16.mxu0 %v598
  %1121 = vmatmul.mubr.bf16.gmra.mxu0 %v597
  %v1122 = vpop.f32.mrf.mxu0
  %v1123 = vadd.f32 0.0, %v1122
  %v1124 = vpop.f32.mrf.mxu0
  %v1125 = vpop.f32.mrf.mxu0
  %v1126 = vadd.f32 0.0, %v1125
  %v1127 = vpop.f32.mrf.mxu0
  %1128 = vmatprep.mubr.bf16.mxu0 %v602
  %1129 = vmatmul.mubr.bf16.gmra.mxu0 %v601
  %v1130 = vpop.f32.mrf.mxu0
  %v1131 = vadd.f32 0.0, %v1130
  %v1132 = vpop.f32.mrf.mxu0
  %v1133 = vpop.f32.mrf.mxu0
  %v1134 = vadd.f32 0.0, %v1133
  %v1135 = vpop.f32.mrf.mxu0
  %1136 = vmatprep.mubr.bf16.mxu0 %v606
  %1137 = vmatmul.mubr.bf16.gmra.mxu0 %v605
  %v1138 = vpop.f32.mrf.mxu0
  %v1139 = vadd.f32 0.0, %v1138
  %v1140 = vpop.f32.mrf.mxu0
  %v1141 = vpop.f32.mrf.mxu0
  %v1142 = vadd.f32 0.0, %v1141
  %v1143 = vpop.f32.mrf.mxu0
  %1144 = vmatprep.mubr.bf16.mxu0 %v610
  %1145 = vmatmul.mubr.bf16.gmra.mxu0 %v609
  %v1146 = vpop.f32.mrf.mxu0
  %v1147 = vadd.f32 0.0, %v1146
  %v1148 = vpop.f32.mrf.mxu0
  %v1149 = vpop.f32.mrf.mxu0
  %v1150 = vadd.f32 0.0, %v1149
  %v1151 = vpop.f32.mrf.mxu0
  %1152 = vmatprep.mubr.bf16.mxu0 %v614
  %1153 = vmatmul.mubr.bf16.gmra.mxu0 %v613
  %v1154 = vpop.f32.mrf.mxu0
  %v1155 = vadd.f32 0.0, %v1154
  %v1156 = vpop.f32.mrf.mxu0
  %v1157 = vpop.f32.mrf.mxu0
  %v1158 = vadd.f32 0.0, %v1157
  %v1159 = vpop.f32.mrf.mxu0
  %1160 = vmatprep.mubr.bf16.mxu0 %v618
  %1161 = vmatmul.mubr.bf16.gmra.mxu0 %v617
  %v1162 = vpop.f32.mrf.mxu0
  %v1163 = vadd.f32 0.0, %v1162
  %v1164 = vpop.f32.mrf.mxu0
  %v1165 = vpop.f32.mrf.mxu0
  %v1166 = vadd.f32 0.0, %v1165
  %v1167 = vpop.f32.mrf.mxu0
  %1168 = vmatprep.mubr.bf16.mxu0 %v622
  %1169 = vmatmul.mubr.bf16.gmra.mxu0 %v621
  %v1170 = vpop.f32.mrf.mxu0
  %v1171 = vadd.f32 0.0, %v1170
  %v1172 = vpop.f32.mrf.mxu0
  %v1173 = vpop.f32.mrf.mxu0
  %v1174 = vadd.f32 0.0, %v1173
  %v1175 = vpop.f32.mrf.mxu0
  %1176 = vmatprep.mubr.bf16.mxu0 %v626
  %1177 = vmatmul.mubr.bf16.gmra.mxu0 %v625
  %v1178 = vpop.f32.mrf.mxu0
  %v1179 = vadd.f32 0.0, %v1178
  %v1180 = vpop.f32.mrf.mxu0
  %v1181 = vpop.f32.mrf.mxu0
  %v1182 = vadd.f32 0.0, %v1181
  %v1183 = vpop.f32.mrf.mxu0
  %1184 = vmatprep.mubr.bf16.mxu0 %v630
  %1185 = vmatmul.mubr.bf16.gmra.mxu0 %v629
  %v1186 = vpop.f32.mrf.mxu0
  %v1187 = vadd.f32 0.0, %v1186
  %v1188 = vpop.f32.mrf.mxu0
  %v1189 = vpop.f32.mrf.mxu0
  %v1190 = vadd.f32 0.0, %v1189
  %v1191 = vpop.f32.mrf.mxu0
  %1192 = vmatprep.mubr.bf16.mxu0 %v634
  %1193 = vmatmul.mubr.bf16.gmra.mxu0 %v633
  %v1194 = vpop.f32.mrf.mxu0
  %v1195 = vadd.f32 0.0, %v1194
  %v1196 = vpop.f32.mrf.mxu0
  %v1197 = vpop.f32.mrf.mxu0
  %v1198 = vadd.f32 0.0, %v1197
  %v1199 = vpop.f32.mrf.mxu0
  %1200 = vmatprep.mubr.bf16.mxu0 %v638
  %1201 = vmatmul.mubr.bf16.gmra.mxu0 %v637
  %v1202 = vpop.f32.mrf.mxu0
  %v1203 = vadd.f32 0.0, %v1202
  %v1204 = vpop.f32.mrf.mxu0
  %v1205 = vpop.f32.mrf.mxu0
  %v1206 = vadd.f32 0.0, %v1205
  %v1207 = vpop.f32.mrf.mxu0
  %1208 = vmatprep.mubr.bf16.mxu0 %v642
  %1209 = vmatmul.mubr.bf16.gmra.mxu0 %v641
  %v1210 = vpop.f32.mrf.mxu0
  %v1211 = vadd.f32 0.0, %v1210
  %v1212 = vpop.f32.mrf.mxu0
  %v1213 = vpop.f32.mrf.mxu0
  %v1214 = vadd.f32 0.0, %v1213
  %v1215 = vpop.f32.mrf.mxu0
  %1216 = vmatprep.mubr.bf16.mxu0 %v646
  %1217 = vmatmul.mubr.bf16.gmra.mxu0 %v645
  %v1218 = vpop.f32.mrf.mxu0
  %v1219 = vadd.f32 0.0, %v1218
  %v1220 = vpop.f32.mrf.mxu0
  %v1221 = vpop.f32.mrf.mxu0
  %v1222 = vadd.f32 0.0, %v1221
  %v1223 = vpop.f32.mrf.mxu0
  %1224 = vmatprep.mubr.bf16.mxu0 %v650
  %1225 = vmatmul.mubr.bf16.gmra.mxu0 %v649
  %v1226 = vpop.f32.mrf.mxu0
  %v1227 = vadd.f32 0.0, %v1226
  %v1228 = vpop.f32.mrf.mxu0
  %v1229 = vpop.f32.mrf.mxu0
  %v1230 = vadd.f32 0.0, %v1229
  %v1231 = vpop.f32.mrf.mxu0
  %1232 = vmatprep.mubr.bf16.mxu0 %v654
  %1233 = vmatmul.mubr.bf16.gmra.mxu0 %v653
  %v1234 = vpop.f32.mrf.mxu0
  %v1235 = vadd.f32 0.0, %v1234
  %v1236 = vpop.f32.mrf.mxu0
  %v1237 = vpop.f32.mrf.mxu0
  %v1238 = vadd.f32 0.0, %v1237
  %v1239 = vpop.f32.mrf.mxu0
  %1240 = vmatprep.mubr.bf16.mxu0 %v658
  %1241 = vmatmul.mubr.bf16.gmra.mxu0 %v657
  %v1242 = vpop.f32.mrf.mxu0
  %v1243 = vadd.f32 0.0, %v1242
  %v1244 = vpop.f32.mrf.mxu0
  %v1245 = vpop.f32.mrf.mxu0
  %v1246 = vadd.f32 0.0, %v1245
  %v1247 = vpop.f32.mrf.mxu0
  %1248 = vmatprep.mubr.bf16.mxu0 %v662
  %1249 = vmatmul.mubr.bf16.gmra.mxu0 %v661
  %v1250 = vpop.f32.mrf.mxu0
  %v1251 = vadd.f32 0.0, %v1250
  %v1252 = vpop.f32.mrf.mxu0
  %v1253 = vpop.f32.mrf.mxu0
  %v1254 = vadd.f32 0.0, %v1253
  %v1255 = vpop.f32.mrf.mxu0
  %1256 = vmatprep.mubr.bf16.mxu0 %v666
  %1257 = vmatmul.mubr.bf16.gmra.mxu0 %v665
  %v1258 = vpop.f32.mrf.mxu0
  %v1259 = vadd.f32 0.0, %v1258
  %v1260 = vpop.f32.mrf.mxu0
  %v1261 = vpop.f32.mrf.mxu0
  %v1262 = vadd.f32 0.0, %v1261
  %v1263 = vpop.f32.mrf.mxu0
  %1264 = vmatprep.mubr.bf16.mxu0 %v670
  %1265 = vmatmul.mubr.bf16.gmra.mxu0 %v669
  %v1266 = vpop.f32.mrf.mxu0
  %v1267 = vadd.f32 0.0, %v1266
  %v1268 = vpop.f32.mrf.mxu0
  %v1269 = vpop.f32.mrf.mxu0
  %v1270 = vadd.f32 0.0, %v1269
  %v1271 = vpop.f32.mrf.mxu0
  %1272 = vmatprep.mubr.bf16.mxu0 %v674
  %1273 = vmatmul.mubr.bf16.gmra.mxu0 %v673
  %v1274 = vpop.f32.mrf.mxu0
  %v1275 = vadd.f32 0.0, %v1274
  %v1276 = vpop.f32.mrf.mxu0
  %v1277 = vpop.f32.mrf.mxu0
  %v1278 = vadd.f32 0.0, %v1277
  %v1279 = vpop.f32.mrf.mxu0
  %1280 = vmatprep.mubr.bf16.mxu0 %v678
  %1281 = vmatmul.mubr.bf16.gmra.mxu0 %v677
  %v1282 = vpop.f32.mrf.mxu0
  %v1283 = vadd.f32 0.0, %v1282
  %v1284 = vpop.f32.mrf.mxu0
  %v1285 = vpop.f32.mrf.mxu0
  %v1286 = vadd.f32 0.0, %v1285
  %v1287 = vpop.f32.mrf.mxu0
  %1288 = vmatprep.mubr.bf16.mxu0 %v682
  %1289 = vmatmul.mubr.bf16.gmra.mxu0 %v681
  %v1290 = vpop.f32.mrf.mxu0
  %v1291 = vadd.f32 0.0, %v1290
  %v1292 = vpop.f32.mrf.mxu0
  %v1293 = vpop.f32.mrf.mxu0
  %v1294 = vadd.f32 0.0, %v1293
  %v1295 = vpop.f32.mrf.mxu0
  %1296 = vmatprep.mubr.bf16.mxu0 %v686
  %1297 = vmatmul.mubr.bf16.gmra.mxu0 %v685
  %v1298 = vpop.f32.mrf.mxu0
  %v1299 = vadd.f32 0.0, %v1298
  %v1300 = vpop.f32.mrf.mxu0
  %v1301 = vpop.f32.mrf.mxu0
  %v1302 = vadd.f32 0.0, %v1301
  %v1303 = vpop.f32.mrf.mxu0
  %1304 = vmatprep.mubr.bf16.mxu0 %v690
  %1305 = vmatmul.mubr.bf16.gmra.mxu0 %v689
  %v1306 = vpop.f32.mrf.mxu0
  %v1307 = vadd.f32 0.0, %v1306
  %v1308 = vpop.f32.mrf.mxu0
  %v1309 = vpop.f32.mrf.mxu0
  %v1310 = vadd.f32 0.0, %v1309
  %v1311 = vpop.f32.mrf.mxu0
  %1312 = vmatprep.mubr.bf16.mxu0 %v694
  %1313 = vmatmul.mubr.bf16.gmra.mxu0 %v693
  %v1314 = vpop.f32.mrf.mxu0
  %v1315 = vadd.f32 0.0, %v1314
  %v1316 = vpop.f32.mrf.mxu0
  %v1317 = vpop.f32.mrf.mxu0
  %v1318 = vadd.f32 0.0, %v1317
  %v1319 = vpop.f32.mrf.mxu0
  %1320 = vmatprep.mubr.bf16.mxu0 %v698
  %1321 = vmatmul.mubr.bf16.gmra.mxu0 %v697
  %v1322 = vpop.f32.mrf.mxu0
  %v1323 = vadd.f32 0.0, %v1322
  %v1324 = vpop.f32.mrf.mxu0
  %v1325 = vpop.f32.mrf.mxu0
  %v1326 = vadd.f32 0.0, %v1325
  %v1327 = vpop.f32.mrf.mxu0
  %1328 = vmatprep.mubr.bf16.mxu0 %v702
  %1329 = vmatmul.mubr.bf16.gmra.mxu0 %v701
  %v1330 = vpop.f32.mrf.mxu0
  %v1331 = vadd.f32 0.0, %v1330
  %v1332 = vpop.f32.mrf.mxu0
  %v1333 = vpop.f32.mrf.mxu0
  %v1334 = vadd.f32 0.0, %v1333
  %v1335 = vpop.f32.mrf.mxu0
  %1336 = vdwg.mxu0
  %1337 = vmatprep.subr.bf16.mxu0 0
  %1338 = vmatpush1.bf16.msra.mxu0 %v924
  %1339 = vmatprep.subr.bf16.mxu0 0
  %1340 = vmatpush1.bf16.msra.mxu0 %v923
  %1341 = vmatprep.subr.bf16.mxu0 0
  %1342 = vmatpush1.bf16.msra.mxu0 %v922
  %1343 = vmatprep.subr.bf16.mxu0 0
  %1344 = vmatpush1.bf16.msra.mxu0 %v921
  %1345 = vmatprep.subr.bf16.mxu0 0
  %1346 = vmatpush1.bf16.msra.mxu0 %v920
  %1347 = vmatprep.subr.bf16.mxu0 0
  %1348 = vmatpush1.bf16.msra.mxu0 %v919
  %1349 = vmatprep.subr.bf16.mxu0 0
  %1350 = vmatpush1.bf16.msra.mxu0 %v918
  %1351 = vmatprep.subr.bf16.mxu0 0
  %1352 = vmatpush1.bf16.msra.mxu0 %v917
  %1353 = vmatprep.subr.bf16.mxu0 0
  %1354 = vmatpush2.bf16.msra.mxu0 0
  %1355 = vmatprep.subr.bf16.mxu0 0
  %1356 = vmatpush2.bf16.msra.mxu0 0
  %1357 = vmatprep.subr.bf16.mxu0 0
  %1358 = vmatpush2.bf16.msra.mxu0 0
  %1359 = vmatprep.subr.bf16.mxu0 0
  %1360 = vmatpush2.bf16.msra.mxu0 0
  %1361 = vmatprep.subr.bf16.mxu0 0
  %1362 = vmatpush2.bf16.msra.mxu0 0
  %1363 = vmatprep.subr.bf16.mxu0 0
  %1364 = vmatpush2.bf16.msra.mxu0 0
  %1365 = vmatprep.subr.bf16.mxu0 0
  %1366 = vmatpush2.bf16.msra.mxu0 0
  %1367 = vmatprep.subr.bf16.mxu0 0
  %1368 = vmatpush2.bf16.msra.mxu0 %v925
  %1369 = vmatprep.mubr.bf16.mxu0 %v953
  %1370 = vmatmul.mubr.bf16.gmra.mxu0 %v579
  %v1371 = vpop.f32.mrf.mxu0
  %v1372 = vadd.f32 %v1083, %v1371
  %v1373 = vpop.f32.mrf.mxu0
  %v1374 = vpop.f32.mrf.mxu0
  %v1375 = vadd.f32 %v1086, %v1374
  %v1376 = vpop.f32.mrf.mxu0
  %1377 = vmatprep.mubr.bf16.mxu0 %v956
  %1378 = vmatmul.mubr.bf16.gmra.mxu0 %v583
  %v1379 = vpop.f32.mrf.mxu0
  %v1380 = vadd.f32 %v1091, %v1379
  %v1381 = vpop.f32.mrf.mxu0
  %v1382 = vpop.f32.mrf.mxu0
  %v1383 = vadd.f32 %v1094, %v1382
  %v1384 = vpop.f32.mrf.mxu0
  %1385 = vmatprep.mubr.bf16.mxu0 %v959
  %1386 = vmatmul.mubr.bf16.gmra.mxu0 %v587
  %v1387 = vpop.f32.mrf.mxu0
  %v1388 = vadd.f32 %v1099, %v1387
  %v1389 = vpop.f32.mrf.mxu0
  %v1390 = vpop.f32.mrf.mxu0
  %v1391 = vadd.f32 %v1102, %v1390
  %v1392 = vpop.f32.mrf.mxu0
  %1393 = vmatprep.mubr.bf16.mxu0 %v962
  %1394 = vmatmul.mubr.bf16.gmra.mxu0 %v591
  %v1395 = vpop.f32.mrf.mxu0
  %v1396 = vadd.f32 %v1107, %v1395
  %v1397 = vpop.f32.mrf.mxu0
  %v1398 = vpop.f32.mrf.mxu0
  %v1399 = vadd.f32 %v1110, %v1398
  %v1400 = vpop.f32.mrf.mxu0
  %1401 = vmatprep.mubr.bf16.mxu0 %v965
  %1402 = vmatmul.mubr.bf16.gmra.mxu0 %v595
  %v1403 = vpop.f32.mrf.mxu0
  %v1404 = vadd.f32 %v1115, %v1403
  %v1405 = vpop.f32.mrf.mxu0
  %v1406 = vpop.f32.mrf.mxu0
  %v1407 = vadd.f32 %v1118, %v1406
  %v1408 = vpop.f32.mrf.mxu0
  %1409 = vmatprep.mubr.bf16.mxu0 %v968
  %1410 = vmatmul.mubr.bf16.gmra.mxu0 %v599
  %v1411 = vpop.f32.mrf.mxu0
  %v1412 = vadd.f32 %v1123, %v1411
  %v1413 = vpop.f32.mrf.mxu0
  %v1414 = vpop.f32.mrf.mxu0
  %v1415 = vadd.f32 %v1126, %v1414
  %v1416 = vpop.f32.mrf.mxu0
  %1417 = vmatprep.mubr.bf16.mxu0 %v971
  %1418 = vmatmul.mubr.bf16.gmra.mxu0 %v603
  %v1419 = vpop.f32.mrf.mxu0
  %v1420 = vadd.f32 %v1131, %v1419
  %v1421 = vpop.f32.mrf.mxu0
  %v1422 = vpop.f32.mrf.mxu0
  %v1423 = vadd.f32 %v1134, %v1422
  %v1424 = vpop.f32.mrf.mxu0
  %1425 = vmatprep.mubr.bf16.mxu0 %v974
  %1426 = vmatmul.mubr.bf16.gmra.mxu0 %v607
  %v1427 = vpop.f32.mrf.mxu0
  %v1428 = vadd.f32 %v1139, %v1427
  %v1429 = vpop.f32.mrf.mxu0
  %v1430 = vpop.f32.mrf.mxu0
  %v1431 = vadd.f32 %v1142, %v1430
  %v1432 = vpop.f32.mrf.mxu0
  %1433 = vmatprep.mubr.bf16.mxu0 %v977
  %1434 = vmatmul.mubr.bf16.gmra.mxu0 %v611
  %v1435 = vpop.f32.mrf.mxu0
  %v1436 = vadd.f32 %v1147, %v1435
  %v1437 = vpop.f32.mrf.mxu0
  %v1438 = vpop.f32.mrf.mxu0
  %v1439 = vadd.f32 %v1150, %v1438
  %v1440 = vpop.f32.mrf.mxu0
  %1441 = vmatprep.mubr.bf16.mxu0 %v980
  %1442 = vmatmul.mubr.bf16.gmra.mxu0 %v615
  %v1443 = vpop.f32.mrf.mxu0
  %v1444 = vadd.f32 %v1155, %v1443
  %v1445 = vpop.f32.mrf.mxu0
  %v1446 = vpop.f32.mrf.mxu0
  %v1447 = vadd.f32 %v1158, %v1446
  %v1448 = vpop.f32.mrf.mxu0
  %1449 = vmatprep.mubr.bf16.mxu0 %v983
  %1450 = vmatmul.mubr.bf16.gmra.mxu0 %v619
  %v1451 = vpop.f32.mrf.mxu0
  %v1452 = vadd.f32 %v1163, %v1451
  %v1453 = vpop.f32.mrf.mxu0
  %v1454 = vpop.f32.mrf.mxu0
  %v1455 = vadd.f32 %v1166, %v1454
  %v1456 = vpop.f32.mrf.mxu0
  %1457 = vmatprep.mubr.bf16.mxu0 %v986
  %1458 = vmatmul.mubr.bf16.gmra.mxu0 %v623
  %v1459 = vpop.f32.mrf.mxu0
  %v1460 = vadd.f32 %v1171, %v1459
  %v1461 = vpop.f32.mrf.mxu0
  %v1462 = vpop.f32.mrf.mxu0
  %v1463 = vadd.f32 %v1174, %v1462
  %v1464 = vpop.f32.mrf.mxu0
  %1465 = vmatprep.mubr.bf16.mxu0 %v989
  %1466 = vmatmul.mubr.bf16.gmra.mxu0 %v627
  %v1467 = vpop.f32.mrf.mxu0
  %v1468 = vadd.f32 %v1179, %v1467
  %v1469 = vpop.f32.mrf.mxu0
  %v1470 = vpop.f32.mrf.mxu0
  %v1471 = vadd.f32 %v1182, %v1470
  %v1472 = vpop.f32.mrf.mxu0
  %1473 = vmatprep.mubr.bf16.mxu0 %v992
  %1474 = vmatmul.mubr.bf16.gmra.mxu0 %v631
  %v1475 = vpop.f32.mrf.mxu0
  %v1476 = vadd.f32 %v1187, %v1475
  %v1477 = vpop.f32.mrf.mxu0
  %v1478 = vpop.f32.mrf.mxu0
  %v1479 = vadd.f32 %v1190, %v1478
  %v1480 = vpop.f32.mrf.mxu0
  %1481 = vmatprep.mubr.bf16.mxu0 %v995
  %1482 = vmatmul.mubr.bf16.gmra.mxu0 %v635
  %v1483 = vpop.f32.mrf.mxu0
  %v1484 = vadd.f32 %v1195, %v1483
  %v1485 = vpop.f32.mrf.mxu0
  %v1486 = vpop.f32.mrf.mxu0
  %v1487 = vadd.f32 %v1198, %v1486
  %v1488 = vpop.f32.mrf.mxu0
  %1489 = vmatprep.mubr.bf16.mxu0 %v998
  %1490 = vmatmul.mubr.bf16.gmra.mxu0 %v639
  %v1491 = vpop.f32.mrf.mxu0
  %v1492 = vadd.f32 %v1203, %v1491
  %v1493 = vpop.f32.mrf.mxu0
  %v1494 = vpop.f32.mrf.mxu0
  %v1495 = vadd.f32 %v1206, %v1494
  %v1496 = vpop.f32.mrf.mxu0
  %1497 = vmatprep.mubr.bf16.mxu0 %v1001
  %1498 = vmatmul.mubr.bf16.gmra.mxu0 %v643
  %v1499 = vpop.f32.mrf.mxu0
  %v1500 = vadd.f32 %v1211, %v1499
  %v1501 = vpop.f32.mrf.mxu0
  %v1502 = vpop.f32.mrf.mxu0
  %v1503 = vadd.f32 %v1214, %v1502
  %v1504 = vpop.f32.mrf.mxu0
  %1505 = vmatprep.mubr.bf16.mxu0 %v1004
  %1506 = vmatmul.mubr.bf16.gmra.mxu0 %v647
  %v1507 = vpop.f32.mrf.mxu0
  %v1508 = vadd.f32 %v1219, %v1507
  %v1509 = vpop.f32.mrf.mxu0
  %v1510 = vpop.f32.mrf.mxu0
  %v1511 = vadd.f32 %v1222, %v1510
  %v1512 = vpop.f32.mrf.mxu0
  %1513 = vmatprep.mubr.bf16.mxu0 %v1007
  %1514 = vmatmul.mubr.bf16.gmra.mxu0 %v651
  %v1515 = vpop.f32.mrf.mxu0
  %v1516 = vadd.f32 %v1227, %v1515
  %v1517 = vpop.f32.mrf.mxu0
  %v1518 = vpop.f32.mrf.mxu0
  %v1519 = vadd.f32 %v1230, %v1518
  %v1520 = vpop.f32.mrf.mxu0
  %1521 = vmatprep.mubr.bf16.mxu0 %v1010
  %1522 = vmatmul.mubr.bf16.gmra.mxu0 %v655
  %v1523 = vpop.f32.mrf.mxu0
  %v1524 = vadd.f32 %v1235, %v1523
  %v1525 = vpop.f32.mrf.mxu0
  %v1526 = vpop.f32.mrf.mxu0
  %v1527 = vadd.f32 %v1238, %v1526
  %v1528 = vpop.f32.mrf.mxu0
  %1529 = vmatprep.mubr.bf16.mxu0 %v1013
  %1530 = vmatmul.mubr.bf16.gmra.mxu0 %v659
  %v1531 = vpop.f32.mrf.mxu0
  %v1532 = vadd.f32 %v1243, %v1531
  %v1533 = vpop.f32.mrf.mxu0
  %v1534 = vpop.f32.mrf.mxu0
  %v1535 = vadd.f32 %v1246, %v1534
  %v1536 = vpop.f32.mrf.mxu0
  %1537 = vmatprep.mubr.bf16.mxu0 %v1016
  %1538 = vmatmul.mubr.bf16.gmra.mxu0 %v663
  %v1539 = vpop.f32.mrf.mxu0
  %v1540 = vadd.f32 %v1251, %v1539
  %v1541 = vpop.f32.mrf.mxu0
  %v1542 = vpop.f32.mrf.mxu0
  %v1543 = vadd.f32 %v1254, %v1542
  %v1544 = vpop.f32.mrf.mxu0
  %1545 = vmatprep.mubr.bf16.mxu0 %v1019
  %1546 = vmatmul.mubr.bf16.gmra.mxu0 %v667
  %v1547 = vpop.f32.mrf.mxu0
  %v1548 = vadd.f32 %v1259, %v1547
  %v1549 = vpop.f32.mrf.mxu0
  %v1550 = vpop.f32.mrf.mxu0
  %v1551 = vadd.f32 %v1262, %v1550
  %v1552 = vpop.f32.mrf.mxu0
  %1553 = vmatprep.mubr.bf16.mxu0 %v1022
  %1554 = vmatmul.mubr.bf16.gmra.mxu0 %v671
  %v1555 = vpop.f32.mrf.mxu0
  %v1556 = vadd.f32 %v1267, %v1555
  %v1557 = vpop.f32.mrf.mxu0
  %v1558 = vpop.f32.mrf.mxu0
  %v1559 = vadd.f32 %v1270, %v1558
  %v1560 = vpop.f32.mrf.mxu0
  %1561 = vmatprep.mubr.bf16.mxu0 %v1025
  %1562 = vmatmul.mubr.bf16.gmra.mxu0 %v675
  %v1563 = vpop.f32.mrf.mxu0
  %v1564 = vadd.f32 %v1275, %v1563
  %v1565 = vpop.f32.mrf.mxu0
  %v1566 = vpop.f32.mrf.mxu0
  %v1567 = vadd.f32 %v1278, %v1566
  %v1568 = vpop.f32.mrf.mxu0
  %1569 = vmatprep.mubr.bf16.mxu0 %v1028
  %1570 = vmatmul.mubr.bf16.gmra.mxu0 %v679
  %v1571 = vpop.f32.mrf.mxu0
  %v1572 = vadd.f32 %v1283, %v1571
  %v1573 = vpop.f32.mrf.mxu0
  %v1574 = vpop.f32.mrf.mxu0
  %v1575 = vadd.f32 %v1286, %v1574
  %v1576 = vpop.f32.mrf.mxu0
  %1577 = vmatprep.mubr.bf16.mxu0 %v1031
  %1578 = vmatmul.mubr.bf16.gmra.mxu0 %v683
  %v1579 = vpop.f32.mrf.mxu0
  %v1580 = vadd.f32 %v1291, %v1579
  %v1581 = vpop.f32.mrf.mxu0
  %v1582 = vpop.f32.mrf.mxu0
  %v1583 = vadd.f32 %v1294, %v1582
  %v1584 = vpop.f32.mrf.mxu0
  %1585 = vmatprep.mubr.bf16.mxu0 %v1034
  %1586 = vmatmul.mubr.bf16.gmra.mxu0 %v687
  %v1587 = vpop.f32.mrf.mxu0
  %v1588 = vadd.f32 %v1299, %v1587
  %v1589 = vpop.f32.mrf.mxu0
  %v1590 = vpop.f32.mrf.mxu0
  %v1591 = vadd.f32 %v1302, %v1590
  %v1592 = vpop.f32.mrf.mxu0
  %1593 = vmatprep.mubr.bf16.mxu0 %v1037
  %1594 = vmatmul.mubr.bf16.gmra.mxu0 %v691
  %v1595 = vpop.f32.mrf.mxu0
  %v1596 = vadd.f32 %v1307, %v1595
  %v1597 = vpop.f32.mrf.mxu0
  %v1598 = vpop.f32.mrf.mxu0
  %v1599 = vadd.f32 %v1310, %v1598
  %v1600 = vpop.f32.mrf.mxu0
  %1601 = vmatprep.mubr.bf16.mxu0 %v1040
  %1602 = vmatmul.mubr.bf16.gmra.mxu0 %v695
  %v1603 = vpop.f32.mrf.mxu0
  %v1604 = vadd.f32 %v1315, %v1603
  %v1605 = vpop.f32.mrf.mxu0
  %v1606 = vpop.f32.mrf.mxu0
  %v1607 = vadd.f32 %v1318, %v1606
  %v1608 = vpop.f32.mrf.mxu0
  %1609 = vmatprep.mubr.bf16.mxu0 %v1043
  %1610 = vmatmul.mubr.bf16.gmra.mxu0 %v699
  %v1611 = vpop.f32.mrf.mxu0
  %v1612 = vadd.f32 %v1323, %v1611
  %v1613 = vpop.f32.mrf.mxu0
  %v1614 = vpop.f32.mrf.mxu0
  %v1615 = vadd.f32 %v1326, %v1614
  %v1616 = vpop.f32.mrf.mxu0
  %1617 = vmatprep.mubr.bf16.mxu0 %v1046
  %1618 = vmatmul.mubr.bf16.gmra.mxu0 %v703
  %v1619 = vpop.f32.mrf.mxu0
  %v1620 = vadd.f32 %v1331, %v1619
  %v1621 = vpop.f32.mrf.mxu0
  %v1622 = vpop.f32.mrf.mxu0
  %v1623 = vadd.f32 %v1334, %v1622
  %v1624 = vpop.f32.mrf.mxu0
  %1625 = vdwg.mxu0
  %vm1626 = vcmask 261120
  %v1627 = vsel %vm1626, %v1372, -inf
  %v1628 = vsel %vm1626, %v1436, -inf
  %v1629 = vmax.f32 %v1627, %v1628
  %v1630 = vsel %vm1626, %v1500, -inf
  %v1631 = vmax.f32 %v1629, %v1630
  %v1632 = vsel %vm1626, %v1564, -inf
  %v1633 = vmax.f32 %v1631, %v1632
  %v1634 = vsel %vm1626, %v1375, -inf
  %v1635 = vsel %vm1626, %v1439, -inf
  %v1636 = vmax.f32 %v1634, %v1635
  %v1637 = vsel %vm1626, %v1503, -inf
  %v1638 = vmax.f32 %v1636, %v1637
  %v1639 = vsel %vm1626, %v1567, -inf
  %v1640 = vmax.f32 %v1638, %v1639
  %v1641 = vsel %vm1626, %v1380, -inf
  %v1642 = vsel %vm1626, %v1444, -inf
  %v1643 = vmax.f32 %v1641, %v1642
  %v1644 = vsel %vm1626, %v1508, -inf
  %v1645 = vmax.f32 %v1643, %v1644
  %v1646 = vsel %vm1626, %v1572, -inf
  %v1647 = vmax.f32 %v1645, %v1646
  %v1648 = vsel %vm1626, %v1383, -inf
  %v1649 = vsel %vm1626, %v1447, -inf
  %v1650 = vmax.f32 %v1648, %v1649
  %v1651 = vsel %vm1626, %v1511, -inf
  %v1652 = vmax.f32 %v1650, %v1651
  %v1653 = vsel %vm1626, %v1575, -inf
  %v1654 = vmax.f32 %v1652, %v1653
  %v1655 = vsel %vm1626, %v1388, -inf
  %v1656 = vsel %vm1626, %v1452, -inf
  %v1657 = vmax.f32 %v1655, %v1656
  %v1658 = vsel %vm1626, %v1516, -inf
  %v1659 = vmax.f32 %v1657, %v1658
  %v1660 = vsel %vm1626, %v1580, -inf
  %v1661 = vmax.f32 %v1659, %v1660
  %v1662 = vsel %vm1626, %v1391, -inf
  %v1663 = vsel %vm1626, %v1455, -inf
  %v1664 = vmax.f32 %v1662, %v1663
  %v1665 = vsel %vm1626, %v1519, -inf
  %v1666 = vmax.f32 %v1664, %v1665
  %v1667 = vsel %vm1626, %v1583, -inf
  %v1668 = vmax.f32 %v1666, %v1667
  %v1669 = vsel %vm1626, %v1396, -inf
  %v1670 = vsel %vm1626, %v1460, -inf
  %v1671 = vmax.f32 %v1669, %v1670
  %v1672 = vsel %vm1626, %v1524, -inf
  %v1673 = vmax.f32 %v1671, %v1672
  %v1674 = vsel %vm1626, %v1588, -inf
  %v1675 = vmax.f32 %v1673, %v1674
  %v1676 = vsel %vm1626, %v1399, -inf
  %v1677 = vsel %vm1626, %v1463, -inf
  %v1678 = vmax.f32 %v1676, %v1677
  %v1679 = vsel %vm1626, %v1527, -inf
  %v1680 = vmax.f32 %v1678, %v1679
  %v1681 = vsel %vm1626, %v1591, -inf
  %v1682 = vmax.f32 %v1680, %v1681
  %v1683 = vsel %vm1626, %v1404, -inf
  %v1684 = vsel %vm1626, %v1468, -inf
  %v1685 = vmax.f32 %v1683, %v1684
  %v1686 = vsel %vm1626, %v1532, -inf
  %v1687 = vmax.f32 %v1685, %v1686
  %v1688 = vsel %vm1626, %v1596, -inf
  %v1689 = vmax.f32 %v1687, %v1688
  %v1690 = vsel %vm1626, %v1407, -inf
  %v1691 = vsel %vm1626, %v1471, -inf
  %v1692 = vmax.f32 %v1690, %v1691
  %v1693 = vsel %vm1626, %v1535, -inf
  %v1694 = vmax.f32 %v1692, %v1693
  %v1695 = vsel %vm1626, %v1599, -inf
  %v1696 = vmax.f32 %v1694, %v1695
  %v1697 = vsel %vm1626, %v1412, -inf
  %v1698 = vsel %vm1626, %v1476, -inf
  %v1699 = vmax.f32 %v1697, %v1698
  %v1700 = vsel %vm1626, %v1540, -inf
  %v1701 = vmax.f32 %v1699, %v1700
  %v1702 = vsel %vm1626, %v1604, -inf
  %v1703 = vmax.f32 %v1701, %v1702
  %v1704 = vsel %vm1626, %v1415, -inf
  %v1705 = vsel %vm1626, %v1479, -inf
  %v1706 = vmax.f32 %v1704, %v1705
  %v1707 = vsel %vm1626, %v1543, -inf
  %v1708 = vmax.f32 %v1706, %v1707
  %v1709 = vsel %vm1626, %v1607, -inf
  %v1710 = vmax.f32 %v1708, %v1709
  %v1711 = vsel %vm1626, %v1420, -inf
  %v1712 = vsel %vm1626, %v1484, -inf
  %v1713 = vmax.f32 %v1711, %v1712
  %v1714 = vsel %vm1626, %v1548, -inf
  %v1715 = vmax.f32 %v1713, %v1714
  %v1716 = vsel %vm1626, %v1612, -inf
  %v1717 = vmax.f32 %v1715, %v1716
  %v1718 = vsel %vm1626, %v1423, -inf
  %v1719 = vsel %vm1626, %v1487, -inf
  %v1720 = vmax.f32 %v1718, %v1719
  %v1721 = vsel %vm1626, %v1551, -inf
  %v1722 = vmax.f32 %v1720, %v1721
  %v1723 = vsel %vm1626, %v1615, -inf
  %v1724 = vmax.f32 %v1722, %v1723
  %v1725 = vsel %vm1626, %v1428, -inf
  %v1726 = vsel %vm1626, %v1492, -inf
  %v1727 = vmax.f32 %v1725, %v1726
  %v1728 = vsel %vm1626, %v1556, -inf
  %v1729 = vmax.f32 %v1727, %v1728
  %v1730 = vsel %vm1626, %v1620, -inf
  %v1731 = vmax.f32 %v1729, %v1730
  %v1732 = vsel %vm1626, %v1431, -inf
  %v1733 = vsel %vm1626, %v1495, -inf
  %v1734 = vmax.f32 %v1732, %v1733
  %v1735 = vsel %vm1626, %v1559, -inf
  %v1736 = vmax.f32 %v1734, %v1735
  %v1737 = vsel %vm1626, %v1623, -inf
  %v1738 = vmax.f32 %v1736, %v1737
  %v1739 = vld [vmem:[%s2] sm:$0x1]
  %v1741 = vlaneseq
  %v1742 = vshrl.u32 %v1741, 7
  %v1743 = vsub.s32 0, %v1742
  %v1744 = vrot.slane %v1739, %v1743
  %v1746 = vadd.f32 %v1633, %v1744
  %v1747 = vadd.f32 %v1640, %v1744
  %v1748 = vadd.f32 %v1647, %v1744
  %v1749 = vadd.f32 %v1654, %v1744
  %v1750 = vadd.f32 %v1661, %v1744
  %v1751 = vadd.f32 %v1668, %v1744
  %v1752 = vadd.f32 %v1675, %v1744
  %v1753 = vadd.f32 %v1682, %v1744
  %v1754 = vadd.f32 %v1689, %v1744
  %v1755 = vadd.f32 %v1696, %v1744
  %v1756 = vadd.f32 %v1703, %v1744
  %v1757 = vadd.f32 %v1710, %v1744
  %v1758 = vadd.f32 %v1717, %v1744
  %v1759 = vadd.f32 %v1724, %v1744
  %v1760 = vadd.f32 %v1731, %v1744
  %v1761 = vadd.f32 %v1738, %v1744
  %v1762 = vmax.f32 %v1746, 0.0
  %v1763 = vmax.f32 %v1747, 0.0
  %v1764 = vmax.f32 %v1748, 0.0
  %v1765 = vmax.f32 %v1749, 0.0
  %v1766 = vmax.f32 %v1750, 0.0
  %v1767 = vmax.f32 %v1751, 0.0
  %v1768 = vmax.f32 %v1752, 0.0
  %v1769 = vmax.f32 %v1753, 0.0
  %v1770 = vmax.f32 %v1754, 0.0
  %v1771 = vmax.f32 %v1755, 0.0
  %v1772 = vmax.f32 %v1756, 0.0
  %v1773 = vmax.f32 %v1757, 0.0
  %v1774 = vmax.f32 %v1758, 0.0
  %v1775 = vmax.f32 %v1759, 0.0
  %v1776 = vmax.f32 %v1760, 0.0
  %v1777 = vmax.f32 %v1761, 0.0
  %v1778 = vpack.c.bf16 %v1763, %v1762
  %v1779 = vpack.c.bf16 %v1765, %v1764
  %v1780 = vpack.c.bf16 %v1767, %v1766
  %v1781 = vpack.c.bf16 %v1769, %v1768
  %v1782 = vpack.c.bf16 %v1771, %v1770
  %v1783 = vpack.c.bf16 %v1773, %v1772
  %v1784 = vpack.c.bf16 %v1775, %v1774
  %v1785 = vpack.c.bf16 %v1777, %v1776
  %v1794 = vunpack.c.l.b16 %v1778
  %v1795 = vunpack.c.h.b16 %v1778
  %v1796 = vunpack.c.l.b16 %v1779
  %v1797 = vunpack.c.h.b16 %v1779
  %v1798 = vunpack.c.l.b16 %v1780
  %v1799 = vunpack.c.h.b16 %v1780
  %v1800 = vunpack.c.l.b16 %v1781
  %v1801 = vunpack.c.h.b16 %v1781
  %v1802 = vunpack.c.l.b16 %v1782
  %v1803 = vunpack.c.h.b16 %v1782
  %v1804 = vunpack.c.l.b16 %v1783
  %v1805 = vunpack.c.h.b16 %v1783
  %v1806 = vunpack.c.l.b16 %v1784
  %v1807 = vunpack.c.h.b16 %v1784
  %v1808 = vunpack.c.l.b16 %v1785
  %v1809 = vunpack.c.h.b16 %v1785
  %v1810 = vpack.c.b16 %v1794, %v1794
  %v1811 = vpack.c.b16 %v1795, %v1795
  %v1812 = vpack.c.b16 %v1796, %v1796
  %v1813 = vpack.c.b16 %v1797, %v1797
  %v1814 = vpack.c.b16 %v1798, %v1798
  %v1815 = vpack.c.b16 %v1799, %v1799
  %v1816 = vpack.c.b16 %v1800, %v1800
  %v1817 = vpack.c.b16 %v1801, %v1801
  %v1818 = vpack.c.b16 %v1802, %v1802
  %v1819 = vpack.c.b16 %v1803, %v1803
  %v1820 = vpack.c.b16 %v1804, %v1804
  %v1821 = vpack.c.b16 %v1805, %v1805
  %v1822 = vpack.c.b16 %v1806, %v1806
  %v1823 = vpack.c.b16 %v1807, %v1807
  %v1824 = vpack.c.b16 %v1808, %v1808
  %v1825 = vpack.c.b16 %v1809, %v1809
  %vm1842 = vcmask 257024
  %1843 = vst.msk [vmem:[%s3] sm:$0xf] %vm1842, %v1810
  %1844 = vst.msk [vmem:[%s3 + $0x4] sm:$0xf] %vm1842, %v1811
  %1845 = vst.msk [vmem:[%s3 + $0x8] sm:$0xf] %vm1842, %v1812
  %1846 = vst.msk [vmem:[%s3 + $0xc] sm:$0xf] %vm1842, %v1813
  %1847 = vst.msk [vmem:[%s3 + $0x10] sm:$0xf] %vm1842, %v1814
  %1848 = vst.msk [vmem:[%s3 + $0x14] sm:$0xf] %vm1842, %v1815
  %1849 = vst.msk [vmem:[%s3 + $0x18] sm:$0xf] %vm1842, %v1816
  %1850 = vst.msk [vmem:[%s3 + $0x1c] sm:$0xf] %vm1842, %v1817
  %1851 = vst.msk [vmem:[%s3 + $0x20] sm:$0xf] %vm1842, %v1818
  %1852 = vst.msk [vmem:[%s3 + $0x24] sm:$0xf] %vm1842, %v1819
  %1853 = vst.msk [vmem:[%s3 + $0x28] sm:$0xf] %vm1842, %v1820
  %1854 = vst.msk [vmem:[%s3 + $0x2c] sm:$0xf] %vm1842, %v1821
  %1855 = vst.msk [vmem:[%s3 + $0x30] sm:$0xf] %vm1842, %v1822
  %1856 = vst.msk [vmem:[%s3 + $0x34] sm:$0xf] %vm1842, %v1823
  %1857 = vst.msk [vmem:[%s3 + $0x38] sm:$0xf] %vm1842, %v1824
  %1858 = vst.msk [vmem:[%s3 + $0x3c] sm:$0xf] %vm1842, %v1825
  // Predicated region
  $region14: #{cnn_forward.4} parent=0 // pred_check
    _
  $region15: #{cnn_forward.4} parent=0 // pred_check_branch
    %1860 = sbr.rel (0) target = $region17
  $region16: #{cnn_forward.4} parent=0 // pred_region
    _
  $region17: #{cnn_forward.4} parent=0 // pred_fallthru
    _
  // Predicated region
  $region18: #{cnn_forward.4} parent=0 // pred_check
    _
  $region19: #{cnn_forward.4} parent=0 // pred_check_branch
    %1862 = sbr.rel (0) target = $region21
  $region20: #{cnn_forward.4} parent=0 // pred_region
    _
  $region21: #{cnn_forward.4} parent=0 // pred_fallthru
    _

// kernel: cnn_forward.5
$region0: #{cnn_forward.5}
  #allocation0 [shape = 'u32[]', space=smem, size = 0x4, offset = 0x4, fixed_abs, tag = 'smem constant byte address 0x4 - core index']
  #allocation1 [shape = 'u32[144,128]{1,0:T(1,128)}', space=vmem, size = 0x12000, scoped, tag = 'internal scratch']
  %s0 = inlined_call_operand.vmem [shape: bf16[8,1568], index: 0, kind: input, shape index: {}]
  %s1 = inlined_call_operand.vmem [shape: bf16[1568,128], index: 1, kind: input, shape index: {}]
  %s2 = inlined_call_operand.vmem [shape: f32[1,128], index: 2, kind: input, shape index: {}]
  %s3 = inlined_call_operand.vmem [shape: f32[8,128], index: 3, kind: output, shape index: {}]
  %s4 = sld [smem:[#allocation0]]
  $region22: #{cnn_forward.5} parent=0
    _
  %s6 = ssub.s32 1, %s4
  %s7 = scalar_select 0, %s6, %s4
  // Predicated region
  $region2: #{cnn_forward.5} parent=0 // pred_check
    _
  $region3: #{cnn_forward.5} parent=0 // pred_check_branch
    %9 = sbr.rel (0) target = $region5
  $region4: #{cnn_forward.5} parent=0 // pred_region
    _
  $region5: #{cnn_forward.5} parent=0 // pred_fallthru
    _
  // Predicated region
  $region6: #{cnn_forward.5} parent=0 // pred_check
    _
  $region7: #{cnn_forward.5} parent=0 // pred_check_branch
    %11 = sbr.rel (0) target = $region9
  $region8: #{cnn_forward.5} parent=0 // pred_region
    _
  $region9: #{cnn_forward.5} parent=0 // pred_fallthru
    _
  // Predicated region
  $region10: #{cnn_forward.5} parent=0 // pred_check
    _
  $region11: #{cnn_forward.5} parent=0 // pred_check_branch
    %13 = sbr.rel (0) target = $region13
  $region12: #{cnn_forward.5} parent=0 // pred_region
    _
  $region13: #{cnn_forward.5} parent=0 // pred_fallthru
    _
  %v15 = vld [vmem:[%s0] sm:$0xff]
  %v16 = vld [vmem:[%s0 + $0x8] sm:$0xff]
  %v17 = vld [vmem:[%s0 + $0x10] sm:$0xff]
  %v18 = vld [vmem:[%s0 + $0x18] sm:$0xff]
  %v19 = vld [vmem:[%s0 + $0x20] sm:$0xff]
  %v20 = vld [vmem:[%s0 + $0x28] sm:$0xff]
  %v21 = vld [vmem:[%s0 + $0x30] sm:$0xf]
  %v22 = vld [vmem:[%s1] sm:$0xf]
  %v23 = vld [vmem:[%s1 + $0x4] sm:$0xf]
  %v24 = vld [vmem:[%s1 + $0x8] sm:$0xf]
  %v25 = vld [vmem:[%s1 + $0xc] sm:$0xf]
  %v26 = vld [vmem:[%s1 + $0x10] sm:$0xf]
  %v27 = vld [vmem:[%s1 + $0x14] sm:$0xf]
  %v28 = vld [vmem:[%s1 + $0x18] sm:$0xf]
  %v29 = vld [vmem:[%s1 + $0x1c] sm:$0xf]
  %v30 = vld [vmem:[%s1 + $0x20] sm:$0xf]
  %v31 = vld [vmem:[%s1 + $0x24] sm:$0xf]
  %v32 = vld [vmem:[%s1 + $0x28] sm:$0xf]
  %v33 = vld [vmem:[%s1 + $0x2c] sm:$0xf]
  %v34 = vld [vmem:[%s1 + $0x30] sm:$0xf]
  %v35 = vld [vmem:[%s1 + $0x34] sm:$0xf]
  %v36 = vld [vmem:[%s1 + $0x38] sm:$0xf]
  %v37 = vld [vmem:[%s1 + $0x3c] sm:$0xf]
  %v38 = vld [vmem:[%s1 + $0x40] sm:$0xf]
  %v39 = vld [vmem:[%s1 + $0x44] sm:$0xf]
  %v40 = vld [vmem:[%s1 + $0x48] sm:$0xf]
  %v41 = vld [vmem:[%s1 + $0x4c] sm:$0xf]
  %v42 = vld [vmem:[%s1 + $0x50] sm:$0xf]
  %v43 = vld [vmem:[%s1 + $0x54] sm:$0xf]
  %v44 = vld [vmem:[%s1 + $0x58] sm:$0xf]
  %v45 = vld [vmem:[%s1 + $0x5c] sm:$0xf]
  %v46 = vld [vmem:[%s1 + $0x60] sm:$0xf]
  %v47 = vld [vmem:[%s1 + $0x64] sm:$0xf]
  %v48 = vld [vmem:[%s1 + $0x68] sm:$0xf]
  %v49 = vld [vmem:[%s1 + $0x6c] sm:$0xf]
  %v50 = vld [vmem:[%s1 + $0x70] sm:$0xf]
  %v51 = vld [vmem:[%s1 + $0x74] sm:$0xf]
  %v52 = vld [vmem:[%s1 + $0x78] sm:$0xf]
  %v53 = vld [vmem:[%s1 + $0x7c] sm:$0xf]
  %v54 = vld [vmem:[%s1 + $0x80] sm:$0xf]
  %v55 = vld [vmem:[%s1 + $0x84] sm:$0xf]
  %v56 = vld [vmem:[%s1 + $0x88] sm:$0xf]
  %v57 = vld [vmem:[%s1 + $0x8c] sm:$0xf]
  %v58 = vld [vmem:[%s1 + $0x90] sm:$0xf]
  %v59 = vld [vmem:[%s1 + $0x94] sm:$0xf]
  %v60 = vld [vmem:[%s1 + $0x98] sm:$0xf]
  %v61 = vld [vmem:[%s1 + $0x9c] sm:$0xf]
  %v62 = vld [vmem:[%s1 + $0xa0] sm:$0xf]
  %v63 = vld [vmem:[%s1 + $0xa4] sm:$0xf]
  %v64 = vld [vmem:[%s1 + $0xa8] sm:$0xf]
  %v65 = vld [vmem:[%s1 + $0xac] sm:$0xf]
  %v66 = vld [vmem:[%s1 + $0xb0] sm:$0xf]
  %v67 = vld [vmem:[%s1 + $0xb4] sm:$0xf]
  %v68 = vld [vmem:[%s1 + $0xb8] sm:$0xf]
  %v69 = vld [vmem:[%s1 + $0xbc] sm:$0xf]
  %v70 = vld [vmem:[%s1 + $0xc0] sm:$0xf]
  %v71 = vld [vmem:[%s1 + $0xc4] sm:$0xf]
  %v72 = vld [vmem:[%s1 + $0xc8] sm:$0xf]
  %v73 = vld [vmem:[%s1 + $0xcc] sm:$0xf]
  %v74 = vld [vmem:[%s1 + $0xd0] sm:$0xf]
  %v75 = vld [vmem:[%s1 + $0xd4] sm:$0xf]
  %v76 = vld [vmem:[%s1 + $0xd8] sm:$0xf]
  %v77 = vld [vmem:[%s1 + $0xdc] sm:$0xf]
  %v78 = vld [vmem:[%s1 + $0xe0] sm:$0xf]
  %v79 = vld [vmem:[%s1 + $0xe4] sm:$0xf]
  %v80 = vld [vmem:[%s1 + $0xe8] sm:$0xf]
  %v81 = vld [vmem:[%s1 + $0xec] sm:$0xf]
  %v82 = vld [vmem:[%s1 + $0xf0] sm:$0xf]
  %v83 = vld [vmem:[%s1 + $0xf4] sm:$0xf]
  %v84 = vld [vmem:[%s1 + $0xf8] sm:$0xf]
  %v85 = vld [vmem:[%s1 + $0xfc] sm:$0xf]
  %v86 = vld [vmem:[%s1 + $0x100] sm:$0xf]
  %v87 = vld [vmem:[%s1 + $0x104] sm:$0xf]
  %v88 = vld [vmem:[%s1 + $0x108] sm:$0xf]
  %v89 = vld [vmem:[%s1 + $0x10c] sm:$0xf]
  %v90 = vld [vmem:[%s1 + $0x110] sm:$0xf]
  %v91 = vld [vmem:[%s1 + $0x114] sm:$0xf]
  %v92 = vld [vmem:[%s1 + $0x118] sm:$0xf]
  %v93 = vld [vmem:[%s1 + $0x11c] sm:$0xf]
  %v94 = vld [vmem:[%s1 + $0x120] sm:$0xf]
  %v95 = vld [vmem:[%s1 + $0x124] sm:$0xf]
  %v96 = vld [vmem:[%s1 + $0x128] sm:$0xf]
  %v97 = vld [vmem:[%s1 + $0x12c] sm:$0xf]
  %v98 = vld [vmem:[%s1 + $0x130] sm:$0xf]
  %v99 = vld [vmem:[%s1 + $0x134] sm:$0xf]
  %v100 = vld [vmem:[%s1 + $0x138] sm:$0xf]
  %v101 = vld [vmem:[%s1 + $0x13c] sm:$0xf]
  %v102 = vld [vmem:[%s1 + $0x140] sm:$0xf]
  %v103 = vld [vmem:[%s1 + $0x144] sm:$0xf]
  %v104 = vld [vmem:[%s1 + $0x148] sm:$0xf]
  %v105 = vld [vmem:[%s1 + $0x14c] sm:$0xf]
  %v106 = vld [vmem:[%s1 + $0x150] sm:$0xf]
  %v107 = vld [vmem:[%s1 + $0x154] sm:$0xf]
  %v108 = vld [vmem:[%s1 + $0x158] sm:$0xf]
  %v109 = vld [vmem:[%s1 + $0x15c] sm:$0xf]
  %v110 = vld [vmem:[%s1 + $0x160] sm:$0xf]
  %v111 = vld [vmem:[%s1 + $0x164] sm:$0xf]
  %v112 = vld [vmem:[%s1 + $0x168] sm:$0xf]
  %v113 = vld [vmem:[%s1 + $0x16c] sm:$0xf]
  %v114 = vld [vmem:[%s1 + $0x170] sm:$0xf]
  %v115 = vld [vmem:[%s1 + $0x174] sm:$0xf]
  %v116 = vld [vmem:[%s1 + $0x178] sm:$0xf]
  %v117 = vld [vmem:[%s1 + $0x17c] sm:$0xf]
  %v118 = vld [vmem:[%s1 + $0x180] sm:$0xf]
  %v119 = vld [vmem:[%s1 + $0x184] sm:$0xf]
  %v120 = vld [vmem:[%s1 + $0x188] sm:$0xf]
  %v121 = vld [vmem:[%s1 + $0x18c] sm:$0xf]
  %v122 = vld [vmem:[%s1 + $0x190] sm:$0xf]
  %v123 = vld [vmem:[%s1 + $0x194] sm:$0xf]
  %v124 = vld [vmem:[%s1 + $0x198] sm:$0xf]
  %v125 = vld [vmem:[%s1 + $0x19c] sm:$0xf]
  %v126 = vld [vmem:[%s1 + $0x1a0] sm:$0xf]
  %v127 = vld [vmem:[%s1 + $0x1a4] sm:$0xf]
  %v128 = vld [vmem:[%s1 + $0x1a8] sm:$0xf]
  %v129 = vld [vmem:[%s1 + $0x1ac] sm:$0xf]
  %v130 = vld [vmem:[%s1 + $0x1b0] sm:$0xf]
  %v131 = vld [vmem:[%s1 + $0x1b4] sm:$0xf]
  %v132 = vld [vmem:[%s1 + $0x1b8] sm:$0xf]
  %v133 = vld [vmem:[%s1 + $0x1bc] sm:$0xf]
  %v134 = vld [vmem:[%s1 + $0x1c0] sm:$0xf]
  %v135 = vld [vmem:[%s1 + $0x1c4] sm:$0xf]
  %v136 = vld [vmem:[%s1 + $0x1c8] sm:$0xf]
  %v137 = vld [vmem:[%s1 + $0x1cc] sm:$0xf]
  %v138 = vld [vmem:[%s1 + $0x1d0] sm:$0xf]
  %v139 = vld [vmem:[%s1 + $0x1d4] sm:$0xf]
  %v140 = vld [vmem:[%s1 + $0x1d8] sm:$0xf]
  %v141 = vld [vmem:[%s1 + $0x1dc] sm:$0xf]
  %v142 = vld [vmem:[%s1 + $0x1e0] sm:$0xf]
  %v143 = vld [vmem:[%s1 + $0x1e4] sm:$0xf]
  %v144 = vld [vmem:[%s1 + $0x1e8] sm:$0xf]
  %v145 = vld [vmem:[%s1 + $0x1ec] sm:$0xf]
  %v146 = vld [vmem:[%s1 + $0x1f0] sm:$0xf]
  %v147 = vld [vmem:[%s1 + $0x1f4] sm:$0xf]
  %v148 = vld [vmem:[%s1 + $0x1f8] sm:$0xf]
  %v149 = vld [vmem:[%s1 + $0x1fc] sm:$0xf]
  %v150 = vld [vmem:[%s1 + $0x200] sm:$0xf]
  %v151 = vld [vmem:[%s1 + $0x204] sm:$0xf]
  %v152 = vld [vmem:[%s1 + $0x208] sm:$0xf]
  %v153 = vld [vmem:[%s1 + $0x20c] sm:$0xf]
  %v154 = vld [vmem:[%s1 + $0x210] sm:$0xf]
  %v155 = vld [vmem:[%s1 + $0x214] sm:$0xf]
  %v156 = vld [vmem:[%s1 + $0x218] sm:$0xf]
  %v157 = vld [vmem:[%s1 + $0x21c] sm:$0xf]
  %v158 = vld [vmem:[%s1 + $0x220] sm:$0xf]
  %v159 = vld [vmem:[%s1 + $0x224] sm:$0xf]
  %v160 = vld [vmem:[%s1 + $0x228] sm:$0xf]
  %v161 = vld [vmem:[%s1 + $0x22c] sm:$0xf]
  %v162 = vld [vmem:[%s1 + $0x230] sm:$0xf]
  %v163 = vld [vmem:[%s1 + $0x234] sm:$0xf]
  %v164 = vld [vmem:[%s1 + $0x238] sm:$0xf]
  %v165 = vld [vmem:[%s1 + $0x23c] sm:$0xf]
  %v166 = vld [vmem:[%s1 + $0x240] sm:$0xf]
  %v167 = vld [vmem:[%s1 + $0x244] sm:$0xf]
  %v168 = vld [vmem:[%s1 + $0x248] sm:$0xf]
  %v169 = vld [vmem:[%s1 + $0x24c] sm:$0xf]
  %v170 = vld [vmem:[%s1 + $0x250] sm:$0xf]
  %v171 = vld [vmem:[%s1 + $0x254] sm:$0xf]
  %v172 = vld [vmem:[%s1 + $0x258] sm:$0xf]
  %v173 = vld [vmem:[%s1 + $0x25c] sm:$0xf]
  %v174 = vld [vmem:[%s1 + $0x260] sm:$0xf]
  %v175 = vld [vmem:[%s1 + $0x264] sm:$0xf]
  %v176 = vld [vmem:[%s1 + $0x268] sm:$0xf]
  %v177 = vld [vmem:[%s1 + $0x26c] sm:$0xf]
  %v178 = vld [vmem:[%s1 + $0x270] sm:$0xf]
  %v179 = vld [vmem:[%s1 + $0x274] sm:$0xf]
  %v180 = vld [vmem:[%s1 + $0x278] sm:$0xf]
  %v181 = vld [vmem:[%s1 + $0x27c] sm:$0xf]
  %v182 = vld [vmem:[%s1 + $0x280] sm:$0xf]
  %v183 = vld [vmem:[%s1 + $0x284] sm:$0xf]
  %v184 = vld [vmem:[%s1 + $0x288] sm:$0xf]
  %v185 = vld [vmem:[%s1 + $0x28c] sm:$0xf]
  %v186 = vld [vmem:[%s1 + $0x290] sm:$0xf]
  %v187 = vld [vmem:[%s1 + $0x294] sm:$0xf]
  %v188 = vld [vmem:[%s1 + $0x298] sm:$0xf]
  %v189 = vld [vmem:[%s1 + $0x29c] sm:$0xf]
  %v190 = vld [vmem:[%s1 + $0x2a0] sm:$0xf]
  %v191 = vld [vmem:[%s1 + $0x2a4] sm:$0xf]
  %v192 = vld [vmem:[%s1 + $0x2a8] sm:$0xf]
  %v193 = vld [vmem:[%s1 + $0x2ac] sm:$0xf]
  %v194 = vld [vmem:[%s1 + $0x2b0] sm:$0xf]
  %v195 = vld [vmem:[%s1 + $0x2b4] sm:$0xf]
  %v196 = vld [vmem:[%s1 + $0x2b8] sm:$0xf]
  %v197 = vld [vmem:[%s1 + $0x2bc] sm:$0xf]
  %v198 = vld [vmem:[%s1 + $0x2c0] sm:$0xf]
  %v199 = vld [vmem:[%s1 + $0x2c4] sm:$0xf]
  %v200 = vld [vmem:[%s1 + $0x2c8] sm:$0xf]
  %v201 = vld [vmem:[%s1 + $0x2cc] sm:$0xf]
  %v202 = vld [vmem:[%s1 + $0x2d0] sm:$0xf]
  %v203 = vld [vmem:[%s1 + $0x2d4] sm:$0xf]
  %v204 = vld [vmem:[%s1 + $0x2d8] sm:$0xf]
  %v205 = vld [vmem:[%s1 + $0x2dc] sm:$0xf]
  %v206 = vld [vmem:[%s1 + $0x2e0] sm:$0xf]
  %v207 = vld [vmem:[%s1 + $0x2e4] sm:$0xf]
  %v208 = vld [vmem:[%s1 + $0x2e8] sm:$0xf]
  %v209 = vld [vmem:[%s1 + $0x2ec] sm:$0xf]
  %v210 = vld [vmem:[%s1 + $0x2f0] sm:$0xf]
  %v211 = vld [vmem:[%s1 + $0x2f4] sm:$0xf]
  %v212 = vld [vmem:[%s1 + $0x2f8] sm:$0xf]
  %v213 = vld [vmem:[%s1 + $0x2fc] sm:$0xf]
  %v214 = vld [vmem:[%s1 + $0x300] sm:$0xf]
  %v215 = vld [vmem:[%s1 + $0x304] sm:$0xf]
  %v216 = vld [vmem:[%s1 + $0x308] sm:$0xf]
  %v217 = vld [vmem:[%s1 + $0x30c] sm:$0xf]
  %v218 = vld [vmem:[%s2] sm:$0x1]
  %v220 = vlaneseq
  %v221 = vshrl.u32 %v220, 7
  %v222 = vsub.s32 0, %v221
  %v223 = vrot.slane %v218, %v222
  %v232 = vunpack.c.l.b16 %v15
  %v233 = vunpack.c.h.b16 %v15
  %v234 = vunpack.c.l.b16 %v16
  %v235 = vunpack.c.h.b16 %v16
  %v236 = vunpack.c.l.b16 %v17
  %v237 = vunpack.c.h.b16 %v17
  %v238 = vunpack.c.l.b16 %v18
  %v239 = vunpack.c.h.b16 %v18
  %v240 = vunpack.c.l.b16 %v19
  %v241 = vunpack.c.h.b16 %v19
  %v242 = vunpack.c.l.b16 %v20
  %v243 = vunpack.c.h.b16 %v20
  %v244 = vunpack.c.l.b16 %v21
  %v245 = vpack.c.b16 %v232, %v232
  %v246 = vpack.c.b16 %v233, %v233
  %v247 = vpack.c.b16 %v234, %v234
  %v248 = vpack.c.b16 %v235, %v235
  %v249 = vpack.c.b16 %v236, %v236
  %v250 = vpack.c.b16 %v237, %v237
  %v251 = vpack.c.b16 %v238, %v238
  %v252 = vpack.c.b16 %v239, %v239
  %v253 = vpack.c.b16 %v240, %v240
  %v254 = vpack.c.b16 %v241, %v241
  %v255 = vpack.c.b16 %v242, %v242
  %v256 = vpack.c.b16 %v243, %v243
  %v257 = vpack.c.b16 %v244, %v244
  %v466 = vunpack.c.l.b16 %v22
  %v467 = vunpack.c.l.b16 %v23
  %v468 = vunpack.c.l.b16 %v24
  %v469 = vunpack.c.l.b16 %v25
  %v470 = vunpack.c.l.b16 %v26
  %v471 = vunpack.c.l.b16 %v27
  %v472 = vunpack.c.l.b16 %v28
  %v473 = vunpack.c.l.b16 %v29
  %v474 = vunpack.c.l.b16 %v30
  %v475 = vunpack.c.l.b16 %v31
  %v476 = vunpack.c.l.b16 %v32
  %v477 = vunpack.c.l.b16 %v33
  %v478 = vunpack.c.l.b16 %v34
  %v479 = vunpack.c.l.b16 %v35
  %v480 = vunpack.c.l.b16 %v36
  %v481 = vunpack.c.l.b16 %v37
  %v482 = vunpack.c.l.b16 %v38
  %v483 = vunpack.c.l.b16 %v39
  %v484 = vunpack.c.l.b16 %v40
  %v485 = vunpack.c.l.b16 %v41
  %v486 = vunpack.c.l.b16 %v42
  %v487 = vunpack.c.l.b16 %v43
  %v488 = vunpack.c.l.b16 %v44
  %v489 = vunpack.c.l.b16 %v45
  %v490 = vunpack.c.l.b16 %v46
  %v491 = vunpack.c.l.b16 %v47
  %v492 = vunpack.c.l.b16 %v48
  %v493 = vunpack.c.l.b16 %v49
  %v494 = vunpack.c.l.b16 %v50
  %v495 = vunpack.c.l.b16 %v51
  %v496 = vunpack.c.l.b16 %v52
  %v497 = vunpack.c.l.b16 %v53
  %v498 = vunpack.c.l.b16 %v54
  %v499 = vunpack.c.l.b16 %v55
  %v500 = vunpack.c.l.b16 %v56
  %v501 = vunpack.c.l.b16 %v57
  %v502 = vunpack.c.l.b16 %v58
  %v503 = vunpack.c.l.b16 %v59
  %v504 = vunpack.c.l.b16 %v60
  %v505 = vunpack.c.l.b16 %v61
  %v506 = vunpack.c.l.b16 %v62
  %v507 = vunpack.c.l.b16 %v63
  %v508 = vunpack.c.l.b16 %v64
  %v509 = vunpack.c.l.b16 %v65
  %v510 = vunpack.c.l.b16 %v66
  %v511 = vunpack.c.l.b16 %v67
  %v512 = vunpack.c.l.b16 %v68
  %v513 = vunpack.c.l.b16 %v69
  %v514 = vunpack.c.l.b16 %v70
  %v515 = vunpack.c.l.b16 %v71
  %v516 = vunpack.c.l.b16 %v72
  %v517 = vunpack.c.l.b16 %v73
  %v518 = vunpack.c.l.b16 %v74
  %v519 = vunpack.c.l.b16 %v75
  %v520 = vunpack.c.l.b16 %v76
  %v521 = vunpack.c.l.b16 %v77
  %v522 = vunpack.c.l.b16 %v78
  %v523 = vunpack.c.l.b16 %v79
  %v524 = vunpack.c.l.b16 %v80
  %v525 = vunpack.c.l.b16 %v81
  %v526 = vunpack.c.l.b16 %v82
  %v527 = vunpack.c.l.b16 %v83
  %v528 = vunpack.c.l.b16 %v84
  %v529 = vunpack.c.l.b16 %v85
  %v530 = vunpack.c.l.b16 %v86
  %v531 = vunpack.c.l.b16 %v87
  %v532 = vunpack.c.l.b16 %v88
  %v533 = vunpack.c.l.b16 %v89
  %v534 = vunpack.c.l.b16 %v90
  %v535 = vunpack.c.l.b16 %v91
  %v536 = vunpack.c.l.b16 %v92
  %v537 = vunpack.c.l.b16 %v93
  %v538 = vunpack.c.l.b16 %v94
  %v539 = vunpack.c.l.b16 %v95
  %v540 = vunpack.c.l.b16 %v96
  %v541 = vunpack.c.l.b16 %v97
  %v542 = vunpack.c.l.b16 %v98
  %v543 = vunpack.c.l.b16 %v99
  %v544 = vunpack.c.l.b16 %v100
  %v545 = vunpack.c.l.b16 %v101
  %v546 = vunpack.c.l.b16 %v102
  %v547 = vunpack.c.l.b16 %v103
  %v548 = vunpack.c.l.b16 %v104
  %v549 = vunpack.c.l.b16 %v105
  %v550 = vunpack.c.l.b16 %v106
  %v551 = vunpack.c.l.b16 %v107
  %v552 = vunpack.c.l.b16 %v108
  %v553 = vunpack.c.l.b16 %v109
  %v554 = vunpack.c.l.b16 %v110
  %v555 = vunpack.c.l.b16 %v111
  %v556 = vunpack.c.l.b16 %v112
  %v557 = vunpack.c.l.b16 %v113
  %v558 = vunpack.c.l.b16 %v114
  %v559 = vunpack.c.l.b16 %v115
  %v560 = vunpack.c.l.b16 %v116
  %v561 = vunpack.c.l.b16 %v117
  %v562 = vunpack.c.l.b16 %v118
  %v563 = vunpack.c.l.b16 %v119
  %v564 = vunpack.c.l.b16 %v120
  %v565 = vunpack.c.l.b16 %v121
  %v566 = vunpack.c.l.b16 %v122
  %v567 = vunpack.c.l.b16 %v123
  %v568 = vunpack.c.l.b16 %v124
  %v569 = vunpack.c.l.b16 %v125
  %v570 = vunpack.c.l.b16 %v126
  %v571 = vunpack.c.l.b16 %v127
  %v572 = vunpack.c.l.b16 %v128
  %v573 = vunpack.c.l.b16 %v129
  %v574 = vunpack.c.l.b16 %v130
  %v575 = vunpack.c.l.b16 %v131
  %v576 = vunpack.c.l.b16 %v132
  %v577 = vunpack.c.l.b16 %v133
  %v578 = vunpack.c.l.b16 %v134
  %v579 = vunpack.c.l.b16 %v135
  %v580 = vunpack.c.l.b16 %v136
  %v581 = vunpack.c.l.b16 %v137
  %v582 = vunpack.c.l.b16 %v138
  %v583 = vunpack.c.l.b16 %v139
  %v584 = vunpack.c.l.b16 %v140
  %v585 = vunpack.c.l.b16 %v141
  %v586 = vunpack.c.l.b16 %v142
  %v587 = vunpack.c.l.b16 %v143
  %v588 = vunpack.c.l.b16 %v144
  %v589 = vunpack.c.l.b16 %v145
  %v590 = vunpack.c.l.b16 %v146
  %v591 = vunpack.c.l.b16 %v147
  %v592 = vunpack.c.l.b16 %v148
  %v593 = vunpack.c.l.b16 %v149
  %v594 = vunpack.c.l.b16 %v150
  %v595 = vunpack.c.l.b16 %v151
  %v596 = vunpack.c.l.b16 %v152
  %v597 = vunpack.c.l.b16 %v153
  %v598 = vunpack.c.l.b16 %v154
  %v599 = vunpack.c.l.b16 %v155
  %v600 = vunpack.c.l.b16 %v156
  %v601 = vunpack.c.l.b16 %v157
  %v602 = vunpack.c.l.b16 %v158
  %v603 = vunpack.c.l.b16 %v159
  %v604 = vunpack.c.l.b16 %v160
  %v605 = vunpack.c.l.b16 %v161
  %v606 = vunpack.c.l.b16 %v162
  %v607 = vunpack.c.l.b16 %v163
  %v608 = vunpack.c.l.b16 %v164
  %v609 = vunpack.c.l.b16 %v165
  %v610 = vunpack.c.l.b16 %v166
  %v611 = vunpack.c.l.b16 %v167
  %v612 = vunpack.c.l.b16 %v168
  %v613 = vunpack.c.l.b16 %v169
  %v614 = vunpack.c.l.b16 %v170
  %v615 = vunpack.c.l.b16 %v171
  %v616 = vunpack.c.l.b16 %v172
  %v617 = vunpack.c.l.b16 %v173
  %v618 = vunpack.c.l.b16 %v174
  %v619 = vunpack.c.l.b16 %v175
  %v620 = vunpack.c.l.b16 %v176
  %v621 = vunpack.c.l.b16 %v177
  %v622 = vunpack.c.l.b16 %v178
  %v623 = vunpack.c.l.b16 %v179
  %v624 = vunpack.c.l.b16 %v180
  %v625 = vunpack.c.l.b16 %v181
  %v626 = vunpack.c.l.b16 %v182
  %v627 = vunpack.c.l.b16 %v183
  %v628 = vunpack.c.l.b16 %v184
  %v629 = vunpack.c.l.b16 %v185
  %v630 = vunpack.c.l.b16 %v186
  %v631 = vunpack.c.l.b16 %v187
  %v632 = vunpack.c.l.b16 %v188
  %v633 = vunpack.c.l.b16 %v189
  %v634 = vunpack.c.l.b16 %v190
  %v635 = vunpack.c.l.b16 %v191
  %v636 = vunpack.c.l.b16 %v192
  %v637 = vunpack.c.l.b16 %v193
  %v638 = vunpack.c.l.b16 %v194
  %v639 = vunpack.c.l.b16 %v195
  %v640 = vunpack.c.l.b16 %v196
  %v641 = vunpack.c.l.b16 %v197
  %v642 = vunpack.c.l.b16 %v198
  %v643 = vunpack.c.l.b16 %v199
  %v644 = vunpack.c.l.b16 %v200
  %v645 = vunpack.c.l.b16 %v201
  %v646 = vunpack.c.l.b16 %v202
  %v647 = vunpack.c.l.b16 %v203
  %v648 = vunpack.c.l.b16 %v204
  %v649 = vunpack.c.l.b16 %v205
  %v650 = vunpack.c.l.b16 %v206
  %v651 = vunpack.c.l.b16 %v207
  %v652 = vunpack.c.l.b16 %v208
  %v653 = vunpack.c.l.b16 %v209
  %v654 = vunpack.c.l.b16 %v210
  %v655 = vunpack.c.l.b16 %v211
  %v656 = vunpack.c.l.b16 %v212
  %v657 = vunpack.c.l.b16 %v213
  %v658 = vunpack.c.l.b16 %v214
  %v659 = vunpack.c.l.b16 %v215
  %v660 = vunpack.c.l.b16 %v216
  %v661 = vunpack.c.l.b16 %v217
  %v662 = vpack.c.b16 %v467, %v466
  %v663 = vpack.c.b16 %v469, %v468
  %v664 = vpack.c.b16 %v471, %v470
  %v665 = vpack.c.b16 %v473, %v472
  %v666 = vpack.c.b16 %v475, %v474
  %v667 = vpack.c.b16 %v477, %v476
  %v668 = vpack.c.b16 %v479, %v478
  %v669 = vpack.c.b16 %v481, %v480
  %v670 = vpack.c.b16 %v483, %v482
  %v671 = vpack.c.b16 %v485, %v484
  %v672 = vpack.c.b16 %v487, %v486
  %v673 = vpack.c.b16 %v489, %v488
  %v674 = vpack.c.b16 %v491, %v490
  %v675 = vpack.c.b16 %v493, %v492
  %v676 = vpack.c.b16 %v495, %v494
  %v677 = vpack.c.b16 %v497, %v496
  %v678 = vpack.c.b16 %v499, %v498
  %v679 = vpack.c.b16 %v501, %v500
  %v680 = vpack.c.b16 %v503, %v502
  %v681 = vpack.c.b16 %v505, %v504
  %v682 = vpack.c.b16 %v507, %v506
  %v683 = vpack.c.b16 %v509, %v508
  %v684 = vpack.c.b16 %v511, %v510
  %v685 = vpack.c.b16 %v513, %v512
  %v686 = vpack.c.b16 %v515, %v514
  %v687 = vpack.c.b16 %v517, %v516
  %v688 = vpack.c.b16 %v519, %v518
  %v689 = vpack.c.b16 %v521, %v520
  %v690 = vpack.c.b16 %v523, %v522
  %v691 = vpack.c.b16 %v525, %v524
  %v692 = vpack.c.b16 %v527, %v526
  %v693 = vpack.c.b16 %v529, %v528
  %v694 = vpack.c.b16 %v531, %v530
  %v695 = vpack.c.b16 %v533, %v532
  %v696 = vpack.c.b16 %v535, %v534
  %v697 = vpack.c.b16 %v537, %v536
  %v698 = vpack.c.b16 %v539, %v538
  %v699 = vpack.c.b16 %v541, %v540
  %v700 = vpack.c.b16 %v543, %v542
  %v701 = vpack.c.b16 %v545, %v544
  %v702 = vpack.c.b16 %v547, %v546
  %v703 = vpack.c.b16 %v549, %v548
  %v704 = vpack.c.b16 %v551, %v550
  %v705 = vpack.c.b16 %v553, %v552
  %v706 = vpack.c.b16 %v555, %v554
  %v707 = vpack.c.b16 %v557, %v556
  %v708 = vpack.c.b16 %v559, %v558
  %v709 = vpack.c.b16 %v561, %v560
  %v710 = vpack.c.b16 %v563, %v562
  %v711 = vpack.c.b16 %v565, %v564
  %v712 = vpack.c.b16 %v567, %v566
  %v713 = vpack.c.b16 %v569, %v568
  %v714 = vpack.c.b16 %v571, %v570
  %v715 = vpack.c.b16 %v573, %v572
  %v716 = vpack.c.b16 %v575, %v574
  %v717 = vpack.c.b16 %v577, %v576
  %v718 = vpack.c.b16 %v579, %v578
  %v719 = vpack.c.b16 %v581, %v580
  %v720 = vpack.c.b16 %v583, %v582
  %v721 = vpack.c.b16 %v585, %v584
  %v722 = vpack.c.b16 %v587, %v586
  %v723 = vpack.c.b16 %v589, %v588
  %v724 = vpack.c.b16 %v591, %v590
  %v725 = vpack.c.b16 %v593, %v592
  %v726 = vpack.c.b16 %v595, %v594
  %v727 = vpack.c.b16 %v597, %v596
  %v728 = vpack.c.b16 %v599, %v598
  %v729 = vpack.c.b16 %v601, %v600
  %v730 = vpack.c.b16 %v603, %v602
  %v731 = vpack.c.b16 %v605, %v604
  %v732 = vpack.c.b16 %v607, %v606
  %v733 = vpack.c.b16 %v609, %v608
  %v734 = vpack.c.b16 %v611, %v610
  %v735 = vpack.c.b16 %v613, %v612
  %v736 = vpack.c.b16 %v615, %v614
  %v737 = vpack.c.b16 %v617, %v616
  %v738 = vpack.c.b16 %v619, %v618
  %v739 = vpack.c.b16 %v621, %v620
  %v740 = vpack.c.b16 %v623, %v622
  %v741 = vpack.c.b16 %v625, %v624
  %v742 = vpack.c.b16 %v627, %v626
  %v743 = vpack.c.b16 %v629, %v628
  %v744 = vpack.c.b16 %v631, %v630
  %v745 = vpack.c.b16 %v633, %v632
  %v746 = vpack.c.b16 %v635, %v634
  %v747 = vpack.c.b16 %v637, %v636
  %v748 = vpack.c.b16 %v639, %v638
  %v749 = vpack.c.b16 %v641, %v640
  %v750 = vpack.c.b16 %v643, %v642
  %v751 = vpack.c.b16 %v645, %v644
  %v752 = vpack.c.b16 %v647, %v646
  %v753 = vpack.c.b16 %v649, %v648
  %v754 = vpack.c.b16 %v651, %v650
  %v755 = vpack.c.b16 %v653, %v652
  %v756 = vpack.c.b16 %v655, %v654
  %v757 = vpack.c.b16 %v657, %v656
  %v758 = vpack.c.b16 %v659, %v658
  %v759 = vpack.c.b16 %v661, %v660
  %vm858 = vcmask 261120
  %v860 = vsel %vm858, %v257, 0
  %862 = vmatprep.subr.bf16.mxu0 0
  %863 = vmatpush1.bf16.msra.mxu0 %v669
  %864 = vmatprep.subr.bf16.mxu0 0
  %865 = vmatpush1.bf16.msra.mxu0 %v668
  %866 = vmatprep.subr.bf16.mxu0 0
  %867 = vmatpush1.bf16.msra.mxu0 %v667
  %868 = vmatprep.subr.bf16.mxu0 0
  %869 = vmatpush1.bf16.msra.mxu0 %v666
  %870 = vmatprep.subr.bf16.mxu0 0
  %871 = vmatpush1.bf16.msra.mxu0 %v665
  %872 = vmatprep.subr.bf16.mxu0 0
  %873 = vmatpush1.bf16.msra.mxu0 %v664
  %874 = vmatprep.subr.bf16.mxu0 0
  %875 = vmatpush1.bf16.msra.mxu0 %v663
  %876 = vmatprep.subr.bf16.mxu0 0
  %877 = vmatpush1.bf16.msra.mxu0 %v662
  %878 = vmatprep.subr.bf16.mxu0 0
  %879 = vmatpush2.bf16.msra.mxu0 %v677
  %880 = vmatprep.subr.bf16.mxu0 0
  %881 = vmatpush2.bf16.msra.mxu0 %v676
  %882 = vmatprep.subr.bf16.mxu0 0
  %883 = vmatpush2.bf16.msra.mxu0 %v675
  %884 = vmatprep.subr.bf16.mxu0 0
  %885 = vmatpush2.bf16.msra.mxu0 %v674
  %886 = vmatprep.subr.bf16.mxu0 0
  %887 = vmatpush2.bf16.msra.mxu0 %v673
  %888 = vmatprep.subr.bf16.mxu0 0
  %889 = vmatpush2.bf16.msra.mxu0 %v672
  %890 = vmatprep.subr.bf16.mxu0 0
  %891 = vmatpush2.bf16.msra.mxu0 %v671
  %892 = vmatprep.subr.bf16.mxu0 0
  %893 = vmatpush2.bf16.msra.mxu0 %v670
  %894 = vmatprep.mubr.bf16.mxu0 %v246
  %895 = vmatmul.mubr.bf16.gmra.mxu0 %v245
  %v896 = vpop.f32.mrf.mxu0
  %v897 = vadd.f32 %v223, %v896
  %v898 = vpop.f32.mrf.mxu0
  %v899 = vpop.f32.mrf.mxu0
  %v900 = vpop.f32.mrf.mxu0
  %901 = vdwg.mxu0
  %902 = vmatprep.subr.bf16.mxu0 0
  %903 = vmatpush1.bf16.msra.mxu0 %v685
  %904 = vmatprep.subr.bf16.mxu0 0
  %905 = vmatpush1.bf16.msra.mxu0 %v684
  %906 = vmatprep.subr.bf16.mxu0 0
  %907 = vmatpush1.bf16.msra.mxu0 %v683
  %908 = vmatprep.subr.bf16.mxu0 0
  %909 = vmatpush1.bf16.msra.mxu0 %v682
  %910 = vmatprep.subr.bf16.mxu0 0
  %911 = vmatpush1.bf16.msra.mxu0 %v681
  %912 = vmatprep.subr.bf16.mxu0 0
  %913 = vmatpush1.bf16.msra.mxu0 %v680
  %914 = vmatprep.subr.bf16.mxu0 0
  %915 = vmatpush1.bf16.msra.mxu0 %v679
  %916 = vmatprep.subr.bf16.mxu0 0
  %917 = vmatpush1.bf16.msra.mxu0 %v678
  %918 = vmatprep.subr.bf16.mxu0 0
  %919 = vmatpush2.bf16.msra.mxu0 %v693
  %920 = vmatprep.subr.bf16.mxu0 0
  %921 = vmatpush2.bf16.msra.mxu0 %v692
  %922 = vmatprep.subr.bf16.mxu0 0
  %923 = vmatpush2.bf16.msra.mxu0 %v691
  %924 = vmatprep.subr.bf16.mxu0 0
  %925 = vmatpush2.bf16.msra.mxu0 %v690
  %926 = vmatprep.subr.bf16.mxu0 0
  %927 = vmatpush2.bf16.msra.mxu0 %v689
  %928 = vmatprep.subr.bf16.mxu0 0
  %929 = vmatpush2.bf16.msra.mxu0 %v688
  %930 = vmatprep.subr.bf16.mxu0 0
  %931 = vmatpush2.bf16.msra.mxu0 %v687
  %932 = vmatprep.subr.bf16.mxu0 0
  %933 = vmatpush2.bf16.msra.mxu0 %v686
  %934 = vmatprep.mubr.bf16.mxu0 %v248
  %935 = vmatmul.mubr.bf16.gmra.mxu0 %v247
  %v936 = vpop.f32.mrf.mxu0
  %v937 = vadd.f32 %v897, %v936
  %v938 = vpop.f32.mrf.mxu0
  %v939 = vpop.f32.mrf.mxu0
  %v940 = vpop.f32.mrf.mxu0
  %941 = vdwg.mxu0
  %942 = vmatprep.subr.bf16.mxu0 0
  %943 = vmatpush1.bf16.msra.mxu0 %v701
  %944 = vmatprep.subr.bf16.mxu0 0
  %945 = vmatpush1.bf16.msra.mxu0 %v700
  %946 = vmatprep.subr.bf16.mxu0 0
  %947 = vmatpush1.bf16.msra.mxu0 %v699
  %948 = vmatprep.subr.bf16.mxu0 0
  %949 = vmatpush1.bf16.msra.mxu0 %v698
  %950 = vmatprep.subr.bf16.mxu0 0
  %951 = vmatpush1.bf16.msra.mxu0 %v697
  %952 = vmatprep.subr.bf16.mxu0 0
  %953 = vmatpush1.bf16.msra.mxu0 %v696
  %954 = vmatprep.subr.bf16.mxu0 0
  %955 = vmatpush1.bf16.msra.mxu0 %v695
  %956 = vmatprep.subr.bf16.mxu0 0
  %957 = vmatpush1.bf16.msra.mxu0 %v694
  %958 = vmatprep.subr.bf16.mxu0 0
  %959 = vmatpush2.bf16.msra.mxu0 %v709
  %960 = vmatprep.subr.bf16.mxu0 0
  %961 = vmatpush2.bf16.msra.mxu0 %v708
  %962 = vmatprep.subr.bf16.mxu0 0
  %963 = vmatpush2.bf16.msra.mxu0 %v707
  %964 = vmatprep.subr.bf16.mxu0 0
  %965 = vmatpush2.bf16.msra.mxu0 %v706
  %966 = vmatprep.subr.bf16.mxu0 0
  %967 = vmatpush2.bf16.msra.mxu0 %v705
  %968 = vmatprep.subr.bf16.mxu0 0
  %969 = vmatpush2.bf16.msra.mxu0 %v704
  %970 = vmatprep.subr.bf16.mxu0 0
  %971 = vmatpush2.bf16.msra.mxu0 %v703
  %972 = vmatprep.subr.bf16.mxu0 0
  %973 = vmatpush2.bf16.msra.mxu0 %v702
  %974 = vmatprep.mubr.bf16.mxu0 %v250
  %975 = vmatmul.mubr.bf16.gmra.mxu0 %v249
  %v976 = vpop.f32.mrf.mxu0
  %v977 = vadd.f32 %v937, %v976
  %v978 = vpop.f32.mrf.mxu0
  %v979 = vpop.f32.mrf.mxu0
  %v980 = vpop.f32.mrf.mxu0
  %981 = vdwg.mxu0
  %982 = vmatprep.subr.bf16.mxu0 0
  %983 = vmatpush1.bf16.msra.mxu0 %v717
  %984 = vmatprep.subr.bf16.mxu0 0
  %985 = vmatpush1.bf16.msra.mxu0 %v716
  %986 = vmatprep.subr.bf16.mxu0 0
  %987 = vmatpush1.bf16.msra.mxu0 %v715
  %988 = vmatprep.subr.bf16.mxu0 0
  %989 = vmatpush1.bf16.msra.mxu0 %v714
  %990 = vmatprep.subr.bf16.mxu0 0
  %991 = vmatpush1.bf16.msra.mxu0 %v713
  %992 = vmatprep.subr.bf16.mxu0 0
  %993 = vmatpush1.bf16.msra.mxu0 %v712
  %994 = vmatprep.subr.bf16.mxu0 0
  %995 = vmatpush1.bf16.msra.mxu0 %v711
  %996 = vmatprep.subr.bf16.mxu0 0
  %997 = vmatpush1.bf16.msra.mxu0 %v710
  %998 = vmatprep.subr.bf16.mxu0 0
  %999 = vmatpush2.bf16.msra.mxu0 %v725
  %1000 = vmatprep.subr.bf16.mxu0 0
  %1001 = vmatpush2.bf16.msra.mxu0 %v724
  %1002 = vmatprep.subr.bf16.mxu0 0
  %1003 = vmatpush2.bf16.msra.mxu0 %v723
  %1004 = vmatprep.subr.bf16.mxu0 0
  %1005 = vmatpush2.bf16.msra.mxu0 %v722
  %1006 = vmatprep.subr.bf16.mxu0 0
  %1007 = vmatpush2.bf16.msra.mxu0 %v721
  %1008 = vmatprep.subr.bf16.mxu0 0
  %1009 = vmatpush2.bf16.msra.mxu0 %v720
  %1010 = vmatprep.subr.bf16.mxu0 0
  %1011 = vmatpush2.bf16.msra.mxu0 %v719
  %1012 = vmatprep.subr.bf16.mxu0 0
  %1013 = vmatpush2.bf16.msra.mxu0 %v718
  %1014 = vmatprep.mubr.bf16.mxu0 %v252
  %1015 = vmatmul.mubr.bf16.gmra.mxu0 %v251
  %v1016 = vpop.f32.mrf.mxu0
  %v1017 = vadd.f32 %v977, %v1016
  %v1018 = vpop.f32.mrf.mxu0
  %v1019 = vpop.f32.mrf.mxu0
  %v1020 = vpop.f32.mrf.mxu0
  %1021 = vdwg.mxu0
  %1022 = vmatprep.subr.bf16.mxu0 0
  %1023 = vmatpush1.bf16.msra.mxu0 %v733
  %1024 = vmatprep.subr.bf16.mxu0 0
  %1025 = vmatpush1.bf16.msra.mxu0 %v732
  %1026 = vmatprep.subr.bf16.mxu0 0
  %1027 = vmatpush1.bf16.msra.mxu0 %v731
  %1028 = vmatprep.subr.bf16.mxu0 0
  %1029 = vmatpush1.bf16.msra.mxu0 %v730
  %1030 = vmatprep.subr.bf16.mxu0 0
  %1031 = vmatpush1.bf16.msra.mxu0 %v729
  %1032 = vmatprep.subr.bf16.mxu0 0
  %1033 = vmatpush1.bf16.msra.mxu0 %v728
  %1034 = vmatprep.subr.bf16.mxu0 0
  %1035 = vmatpush1.bf16.msra.mxu0 %v727
  %1036 = vmatprep.subr.bf16.mxu0 0
  %1037 = vmatpush1.bf16.msra.mxu0 %v726
  %1038 = vmatprep.subr.bf16.mxu0 0
  %1039 = vmatpush2.bf16.msra.mxu0 %v741
  %1040 = vmatprep.subr.bf16.mxu0 0
  %1041 = vmatpush2.bf16.msra.mxu0 %v740
  %1042 = vmatprep.subr.bf16.mxu0 0
  %1043 = vmatpush2.bf16.msra.mxu0 %v739
  %1044 = vmatprep.subr.bf16.mxu0 0
  %1045 = vmatpush2.bf16.msra.mxu0 %v738
  %1046 = vmatprep.subr.bf16.mxu0 0
  %1047 = vmatpush2.bf16.msra.mxu0 %v737
  %1048 = vmatprep.subr.bf16.mxu0 0
  %1049 = vmatpush2.bf16.msra.mxu0 %v736
  %1050 = vmatprep.subr.bf16.mxu0 0
  %1051 = vmatpush2.bf16.msra.mxu0 %v735
  %1052 = vmatprep.subr.bf16.mxu0 0
  %1053 = vmatpush2.bf16.msra.mxu0 %v734
  %1054 = vmatprep.mubr.bf16.mxu0 %v254
  %1055 = vmatmul.mubr.bf16.gmra.mxu0 %v253
  %v1056 = vpop.f32.mrf.mxu0
  %v1057 = vadd.f32 %v1017, %v1056
  %v1058 = vpop.f32.mrf.mxu0
  %v1059 = vpop.f32.mrf.mxu0
  %v1060 = vpop.f32.mrf.mxu0
  %1061 = vdwg.mxu0
  %1062 = vmatprep.subr.bf16.mxu0 0
  %1063 = vmatpush1.bf16.msra.mxu0 %v749
  %1064 = vmatprep.subr.bf16.mxu0 0
  %1065 = vmatpush1.bf16.msra.mxu0 %v748
  %1066 = vmatprep.subr.bf16.mxu0 0
  %1067 = vmatpush1.bf16.msra.mxu0 %v747
  %1068 = vmatprep.subr.bf16.mxu0 0
  %1069 = vmatpush1.bf16.msra.mxu0 %v746
  %1070 = vmatprep.subr.bf16.mxu0 0
  %1071 = vmatpush1.bf16.msra.mxu0 %v745
  %1072 = vmatprep.subr.bf16.mxu0 0
  %1073 = vmatpush1.bf16.msra.mxu0 %v744
  %1074 = vmatprep.subr.bf16.mxu0 0
  %1075 = vmatpush1.bf16.msra.mxu0 %v743
  %1076 = vmatprep.subr.bf16.mxu0 0
  %1077 = vmatpush1.bf16.msra.mxu0 %v742
  %1078 = vmatprep.subr.bf16.mxu0 0
  %1079 = vmatpush2.bf16.msra.mxu0 %v757
  %1080 = vmatprep.subr.bf16.mxu0 0
  %1081 = vmatpush2.bf16.msra.mxu0 %v756
  %1082 = vmatprep.subr.bf16.mxu0 0
  %1083 = vmatpush2.bf16.msra.mxu0 %v755
  %1084 = vmatprep.subr.bf16.mxu0 0
  %1085 = vmatpush2.bf16.msra.mxu0 %v754
  %1086 = vmatprep.subr.bf16.mxu0 0
  %1087 = vmatpush2.bf16.msra.mxu0 %v753
  %1088 = vmatprep.subr.bf16.mxu0 0
  %1089 = vmatpush2.bf16.msra.mxu0 %v752
  %1090 = vmatprep.subr.bf16.mxu0 0
  %1091 = vmatpush2.bf16.msra.mxu0 %v751
  %1092 = vmatprep.subr.bf16.mxu0 0
  %1093 = vmatpush2.bf16.msra.mxu0 %v750
  %1094 = vmatprep.mubr.bf16.mxu0 %v256
  %1095 = vmatmul.mubr.bf16.gmra.mxu0 %v255
  %v1096 = vpop.f32.mrf.mxu0
  %v1097 = vadd.f32 %v1057, %v1096
  %v1098 = vpop.f32.mrf.mxu0
  %v1099 = vpop.f32.mrf.mxu0
  %v1100 = vpop.f32.mrf.mxu0
  %1101 = vdwg.mxu0
  %1102 = vmatprep.subr.bf16.mxu0 0
  %1103 = vmatpush1.bf16.msra.mxu0 0
  %1104 = vmatprep.subr.bf16.mxu0 0
  %1105 = vmatpush1.bf16.msra.mxu0 0
  %1106 = vmatprep.subr.bf16.mxu0 0
  %1107 = vmatpush1.bf16.msra.mxu0 0
  %1108 = vmatprep.subr.bf16.mxu0 0
  %1109 = vmatpush1.bf16.msra.mxu0 0
  %1110 = vmatprep.subr.bf16.mxu0 0
  %1111 = vmatpush1.bf16.msra.mxu0 0
  %1112 = vmatprep.subr.bf16.mxu0 0
  %1113 = vmatpush1.bf16.msra.mxu0 0
  %1114 = vmatprep.subr.bf16.mxu0 0
  %1115 = vmatpush1.bf16.msra.mxu0 %v759
  %1116 = vmatprep.subr.bf16.mxu0 0
  %1117 = vmatpush1.bf16.msra.mxu0 %v758
  %1118 = vmatprep.subr.bf16.mxu0 0
  %1119 = vmatpush2.bf16.msra.mxu0 0
  %1120 = vmatprep.subr.bf16.mxu0 0
  %1121 = vmatpush2.bf16.msra.mxu0 0
  %1122 = vmatprep.subr.bf16.mxu0 0
  %1123 = vmatpush2.bf16.msra.mxu0 0
  %1124 = vmatprep.subr.bf16.mxu0 0
  %1125 = vmatpush2.bf16.msra.mxu0 0
  %1126 = vmatprep.subr.bf16.mxu0 0
  %1127 = vmatpush2.bf16.msra.mxu0 0
  %1128 = vmatprep.subr.bf16.mxu0 0
  %1129 = vmatpush2.bf16.msra.mxu0 0
  %1130 = vmatprep.subr.bf16.mxu0 0
  %1131 = vmatpush2.bf16.msra.mxu0 0
  %1132 = vmatprep.subr.bf16.mxu0 0
  %1133 = vmatpush2.bf16.msra.mxu0 0
  %1134 = vmatprep.mubr.bf16.mxu0 0
  %1135 = vmatmul.mubr.bf16.gmra.mxu0 %v860
  %v1136 = vpop.f32.mrf.mxu0
  %v1137 = vadd.f32 %v1097, %v1136
  %v1138 = vpop.f32.mrf.mxu0
  %v1139 = vpop.f32.mrf.mxu0
  %v1140 = vpop.f32.mrf.mxu0
  %1141 = vdwg.mxu0
  %1142 = vst [vmem:[%s3] sm:$0xff] %v1137
  // Predicated region
  $region14: #{cnn_forward.5} parent=0 // pred_check
    _
  $region15: #{cnn_forward.5} parent=0 // pred_check_branch
    %1144 = sbr.rel (0) target = $region17
  $region16: #{cnn_forward.5} parent=0 // pred_region
    _
  $region17: #{cnn_forward.5} parent=0 // pred_fallthru
    _
  // Predicated region
  $region18: #{cnn_forward.5} parent=0 // pred_check
    _
  $region19: #{cnn_forward.5} parent=0 // pred_check_branch
    %1146 = sbr.rel (0) target = $region21
  $region20: #{cnn_forward.5} parent=0 // pred_region
    _
  $region21: #{cnn_forward.5} parent=0 // pred_fallthru
    _

</llo_original>
